<compile_context>
chip_gen: v7x
topology: tpu7x:2x2x1
jax: 0.10.0
libtpu: 0.0.40
codegen_flags: <defaults>
</compile_context>

<pallas_src>
import jax
import jax.numpy as jnp
from jax.experimental import pallas as pl
from jax.experimental.pallas import tpu as pltpu

# DimeNet(hidden_channels=32, out_channels=1, num_blocks=2, num_bilinear=8,
#         num_spherical=4, num_radial=4, cutoff=5.0)
N = 8            # nodes total (2 graphs x 4 nodes)
B = 2            # graphs in the batch
H = 32           # hidden_channels
OUT = 1          # out_channels
NBLK = 2         # num_blocks (interaction blocks)
NB = 8           # num_bilinear
S = 4            # num_spherical
R = 4            # num_radial
CUTOFF = 5.0
E = N * N        # dense directed edge slots, row i*N+j holds edge j->i
SR = S * R
NOB = NBLK + 1   # number of output blocks

# -------- packed weight / bias stack indices --------
WI_INT = 0                 # per interaction block: [kj, ji, lin0..lin6] -> 9 each
WI_OUT = NBLK * 9          # per output block: 3 lins
BI_EMB_RBF = 0
BI_EMB_LIN = 1
BI_INT = 2                 # per interaction block: [kj, ji, lin0..lin6]
BI_OUT = 2 + NBLK * 9


# ----------------------------------------------------------------------------
# Pallas kernel: the entire DimeNet network on dense edge/triplet tensors.
# ----------------------------------------------------------------------------
def dimenet_kernel(xcat_ref, rbf_ref, sbf_ref, oneh_ref, pool_ref, msk_ref,
                   wrbf_ref, wemb_ref, wsbf_ref, w2d_ref, whh_ref, bias_ref,
                   ofw_ref, out_ref):
    f32, bf16 = jnp.float32, jnp.bfloat16
    act = jax.nn.silu                                   # DimeNet "swish" (f32 on VPU/EUP)

    def dot(a, b):                                      # bf16 MXU, f32 accumulation
        return jnp.dot(a.astype(bf16), b.astype(bf16), preferred_element_type=f32)

    # ---- all radial-basis projections in a single MXU call ----
    # columns: [emb | int blk0 | int blk1 | out ob0 | out ob1 | out ob2]
    rbf_all = dot(rbf_ref[...], wrbf_ref[...])                         # (E, 6H) f32

    # ---- Embedding block: act(lin([x_i | x_j | act(lin_rbf(rbf))])) ----
    rbf_e = act(rbf_all[:, 0:H] + bias_ref[BI_EMB_RBF])                # (E, H)
    emb_in = jnp.concatenate([xcat_ref[...], rbf_e.astype(bf16)], axis=1)   # (E, 3H)
    m = act(dot(emb_in, wemb_ref[...]) + bias_ref[BI_EMB_LIN])         # (E, H) edge messages

    # ---- Output block (shared structure) ----
    def output_block(msg, ob):
        col = H * (1 + NBLK + ob)
        t = rbf_all[:, col:col + H] * msg                              # lin_rbf(rbf) * x
        node = dot(pool_ref[...], t)                                   # scatter-sum to dst (N, H)
        for li in range(3):                                            # num_output_layers = 3
            node = act(dot(node, whh_ref[WI_OUT + ob * 3 + li])
                       + bias_ref[BI_OUT + ob * 3 + li])
        return dot(node, ofw_ref[ob])                                  # (N, OUT), no bias/act

    p = output_block(m, 0)

    msk = msk_ref[...]                                                 # (E, E): delta(j, j')
    for blk in range(NBLK):
        wb, bb = WI_INT + blk * 9, BI_INT + blk * 9
        rbf_l = rbf_all[:, H * (1 + blk):H * (2 + blk)]                # lin_rbf(rbf)  (E, H)
        x_ji = act(dot(m, whh_ref[wb + 1]) + bias_ref[bb + 1])
        x_kj = act(dot(m, whh_ref[wb + 0]) + bias_ref[bb + 0]) * rbf_l

        # Bilinear triplet aggregation
        #   agg[(i,j),o] = sum_{k,b,l} sbf_proj[i,j,k,b] * x_kj[(j,k),l] * W[o,b,l]
        s = dot(sbf_ref[...], wsbf_ref[blk])                           # (E, NB*N), col b*N+k
        y = dot(x_kj, w2d_ref[blk])                                    # (E, NB*H), col b*H+o
        sp_parts, y_parts = [], []
        for b in range(NB):
            sb = s[:, b * N:(b + 1) * N].astype(bf16)                  # (E, N)
            sp_parts.append(jnp.concatenate([sb] * N, axis=1) * msk)   # (E, E) j==j' masked
            y_parts.append(y[:, b * H:(b + 1) * H])                    # (E, H)
        spmat = jnp.concatenate(sp_parts, axis=1)                      # (E, NB*E)
        y_big = jnp.concatenate(y_parts, axis=0)                       # (NB*E, H)
        agg = dot(spmat, y_big)                                        # (E, H)

        h = x_ji + agg
        # 1 residual layer before skip
        h = h + act(dot(act(dot(h, whh_ref[wb + 2]) + bias_ref[bb + 2]),
                        whh_ref[wb + 3]) + bias_ref[bb + 3])
        # skip connection
        h = act(dot(h, whh_ref[wb + 4]) + bias_ref[bb + 4]) + m
        # 2 residual layers after skip
        h = h + act(dot(act(dot(h, whh_ref[wb + 5]) + bias_ref[bb + 5]),
                        whh_ref[wb + 6]) + bias_ref[bb + 6])
        h = h + act(dot(act(dot(h, whh_ref[wb + 7]) + bias_ref[bb + 7]),
                        whh_ref[wb + 8]) + bias_ref[bb + 8])
        m = h
        p = p + output_block(m, blk + 1)

    graph = dot(oneh_ref[...], p)                                      # per-graph sum (B, OUT)
    out_ref[...] = jax.nn.sigmoid(graph)                               # torch.sigmoid(out)


# ----------------------------------------------------------------------------
# Deterministic parameter initialization (shapes follow torch_geometric DimeNet)
# ----------------------------------------------------------------------------
def init_params(key):
    cnt = [0]

    def rand(shape, scale):
        cnt[0] += 1
        k = jax.random.fold_in(key, cnt[0])
        return jax.random.normal(k, shape, jnp.float32) * scale

    def lin(shape):
        return rand(shape, float(shape[-2]) ** -0.5)

    p = {}
    p['emb_table'] = jax.random.uniform(jax.random.fold_in(key, 999),
                                        (95, H), jnp.float32, -3 ** 0.5, 3 ** 0.5)
    p['emb_rbf_w'] = lin((R, H));  p['emb_rbf_b'] = jnp.zeros((1, H), jnp.float32)
    p['emb_w_dst'] = lin((H, H));  p['emb_w_src'] = lin((H, H))
    p['emb_w_rbf'] = lin((H, H));  p['emb_b'] = jnp.zeros((1, H), jnp.float32)

    p['int_rbf_w'] = rand((NBLK, R, H), R ** -0.5)
    p['int_sbf_w'] = rand((NBLK, SR, NB), SR ** -0.5)
    p['int_kj_w'] = rand((NBLK, H, H), H ** -0.5)
    p['int_kj_b'] = jnp.zeros((NBLK, 1, H), jnp.float32)
    p['int_ji_w'] = rand((NBLK, H, H), H ** -0.5)
    p['int_ji_b'] = jnp.zeros((NBLK, 1, H), jnp.float32)
    p['int_W'] = rand((NBLK, H, NB, H), 2.0 / H)        # bilinear tensor W[o, b, l]
    p['int_lin_w'] = rand((NBLK * 7, H, H), H ** -0.5)  # 1 res-before + skip + 2 res-after
    p['int_lin_b'] = jnp.zeros((NBLK * 7, 1, H), jnp.float32)

    p['out_rbf_w'] = rand((NOB, R, H), R ** -0.5)
    p['out_lin_w'] = rand((NOB * 3, H, H), H ** -0.5)
    p['out_lin_b'] = jnp.zeros((NOB * 3, 1, H), jnp.float32)
    # small scale so the random-weight logit does not drive sigmoid deep into saturation
    p['out_final_w'] = rand((NOB, H, OUT), (H ** -0.5) * 0.05)
    return p


# ----------------------------------------------------------------------------
# One-time parameter packing (done once per parameter set, NOT per forward)
# ----------------------------------------------------------------------------
def pack_params(prm):
    bf16 = jnp.bfloat16
    # all rbf projections side by side: [emb | int0 | int1 | out0 | out1 | out2]
    wrbf = jnp.concatenate(
        [prm['emb_rbf_w']]
        + [prm['int_rbf_w'][b] for b in range(NBLK)]
        + [prm['out_rbf_w'][ob] for ob in range(NOB)], axis=1)          # (R, 6H)

    # fused embedding weight: rows [W_dst; W_src; W_rbf]
    wemb = jnp.concatenate([prm['emb_w_dst'], prm['emb_w_src'],
                            prm['emb_w_rbf']], axis=0)                  # (3H, H)

    # sbf weight, block-diagonal over k, columns ordered b*N + k
    eyeN = jnp.eye(N, dtype=jnp.float32)
    wsbf = jnp.stack([
        jnp.einsum('fb,kK->kfbK', prm['int_sbf_w'][b], eyeN).reshape(N * SR, NB * N)
        for b in range(NBLK)])                                          # (NBLK, N*SR, NB*N)

    # bilinear tensor flattened:  W2d[l, b*H+o] = W[o, b, l]
    w2d = jnp.stack([
        jnp.transpose(prm['int_W'][b], (2, 1, 0)).reshape(H, NB * H)
        for b in range(NBLK)])                                          # (NBLK, H, NB*H)

    whh_list = []
    bias_list = [prm['emb_rbf_b'], prm['emb_b']]
    for blk in range(NBLK):
        whh_list += [prm['int_kj_w'][blk], prm['int_ji_w'][blk]]
        whh_list += [prm['int_lin_w'][blk * 7 + i] for i in range(7)]
        bias_list += [prm['int_kj_b'][blk], prm['int_ji_b'][blk]]
        bias_list += [prm['int_lin_b'][blk * 7 + i] for i in range(7)]
    for ob in range(NOB):
        whh_list += [prm['out_lin_w'][ob * 3 + i] for i in range(3)]
        bias_list += [prm['out_lin_b'][ob * 3 + i] for i in range(3)]
    whh = jnp.stack(whh_list)                                           # (27, H, H)
    bias = jnp.stack(bias_list)                                         # (29, 1, H)

    pool = jnp.kron(jnp.eye(N, dtype=jnp.float32),
                    jnp.ones((1, N), jnp.float32))                      # (N, E): dst-node pooling
    msk = jnp.tile(pool, (N, 1))                                        # (E, E): delta(j, j')

    return {
        'emb_table': prm['emb_table'],
        'wrbf': wrbf.astype(bf16), 'wemb': wemb.astype(bf16),
        'wsbf': wsbf.astype(bf16), 'w2d': w2d.astype(bf16),
        'whh': whh.astype(bf16), 'bias': bias.astype(jnp.float32),
        'ofw': prm['out_final_w'].astype(bf16),
        'pool': pool.astype(bf16), 'msk': msk.astype(bf16),
    }


# ----------------------------------------------------------------------------
# Per-call glue: dense graph construction + basis functions (geometry only).
# ----------------------------------------------------------------------------
def envelope(x, p=6):                                   # Envelope(exponent=5) -> p=6
    a = -(p + 1) * (p + 2) / 2.0
    b = p * (p + 2.0)
    c = -p * (p + 1) / 2.0
    return (1.0 / x + a * x ** (p - 1) + b * x ** p + c * x ** (p + 1)) * (x < 1.0)


def prepare_geometry(z, pos, batch, emb_table):
    bf16 = jnp.bfloat16
    x0 = emb_table[z]                                   # atom embeddings (N, H)
    x_dst = jnp.repeat(x0, N, axis=0)                   # row i*N+j -> x0[i]
    x_src = jnp.tile(x0, (N, 1))                        # row i*N+j -> x0[j]
    xcat = jnp.concatenate([x_dst, x_src], axis=1)      # (E, 2H)

    diff = pos[:, None, :] - pos[None, :, :]            # diff[a,b] = pos[a]-pos[b]
    dist = jnp.sqrt(jnp.sum(diff * diff, axis=-1))
    eye = jnp.eye(N, dtype=bool)
    adj = (dist < CUTOFF) & (~eye) & (batch[:, None] == batch[None, :])
    d_safe = jnp.where(adj, dist, 1.0)

    freqs = jnp.pi * jnp.arange(1, R + 1, dtype=jnp.float32)
    xr = d_safe / CUTOFF
    rbf = envelope(xr)[..., None] * jnp.sin(freqs * xr[..., None])     # Bessel basis (N,N,R)
    rbf_flat = jnp.where(adj[..., None], rbf, 0.0).reshape(E, R)

    # Triplet (k -> j -> i): torch_geometric DimeNet angle convention.
    v = -diff                                           # v[i,j] = pos[j] - pos[i]
    a_ijk = jnp.einsum('ijd,ikd->ijk', v, v)
    cross = jnp.cross(v[:, :, None, :], v[:, None, :, :])
    b_ijk = jnp.sqrt(jnp.sum(cross * cross, axis=-1) + 1e-30)
    angle = jnp.arctan2(b_ijk, a_ijk)                   # (N,N,N) indexed (i,j,k)

    mask3 = adj[:, :, None] & adj[None, :, :] & (~jnp.eye(N, dtype=bool)[:, None, :])

    # TODO(synk): the exact sympy-generated spherical Bessel / real spherical
    # harmonic basis of SphericalBasisLayer is not reproduced; a structurally
    # equivalent (envelope * radial sinusoid) x cos(l*angle) basis is used.
    d_kj = d_safe[None, :, :] / CUTOFF                  # value at [i,j,k] = d(j,k)/c
    rad = envelope(d_kj)[..., None] * jnp.sin(freqs * d_kj[..., None])
    rad = jnp.broadcast_to(rad, (N, N, N, R))
    ang = jnp.cos(jnp.arange(S, dtype=jnp.float32) * angle[..., None])
    sbf = ang[..., :, None] * rad[..., None, :]         # (N,N,N,S,R)
    sbf2 = jnp.where(mask3[..., None, None], sbf, 0.0).reshape(E, N * SR)

    onehot = (batch[None, :] == jnp.arange(B)[:, None]).astype(jnp.float32)
    return (xcat.astype(bf16), rbf_flat.astype(bf16),
            sbf2.astype(bf16), onehot.astype(bf16))


def dimenet_predictor(z, pos, batch, packed):
    xcat, rbf, sbf2, onehot = prepare_geometry(z, pos, batch, packed['emb_table'])
    inputs = [xcat, rbf, sbf2, onehot,
              packed['pool'], packed['msk'],
              packed['wrbf'], packed['wemb'], packed['wsbf'], packed['w2d'],
              packed['whh'], packed['bias'], packed['ofw']]
    out = pl.pallas_call(
        dimenet_kernel,
        out_shape=jax.ShapeDtypeStruct((B, OUT), jnp.float32),
        in_specs=[pl.BlockSpec(memory_space=pltpu.MemorySpace.VMEM)] * len(inputs),
        out_specs=pl.BlockSpec(memory_space=pltpu.MemorySpace.VMEM),
    )(*inputs)
    return out[:, 0]                                    # sigmoid(out).squeeze(-1) -> (B,)


if __name__ == "__main__":
    key = jax.random.PRNGKey(0)
    prm = init_params(key)
    packed = pack_params(prm)                           # one-time parameter packing
    kz, kp = jax.random.split(jax.random.fold_in(key, 12345))
    z = jax.random.randint(kz, (N,), 1, 10)             # atomic numbers
    pos = jax.random.normal(kp, (N, 3), jnp.float32) * 1.5
    batch = jnp.repeat(jnp.arange(B, dtype=jnp.int32), N // B)

    out = jax.jit(dimenet_predictor)(z, pos, batch, packed)
    out = jax.block_until_ready(out)
    assert out.shape == (B,), out.shape
    assert bool(jnp.all(jnp.isfinite(out)))
    assert bool(jnp.all((out >= 0.0) & (out <= 1.0)))   # sigmoid range (inclusive)
    print("KERNEL_OK")
</pallas_src>

<mosaic_0001>
module attributes {stable_mosaic.version = 11 : i64} {
  func.func @dimenet_kernel(%arg0: memref<64x64xbf16, #tpu.memory_space<vmem>>, %arg1: memref<64x4xbf16, #tpu.memory_space<vmem>>, %arg2: memref<64x128xbf16, #tpu.memory_space<vmem>>, %arg3: memref<2x8xbf16, #tpu.memory_space<vmem>>, %arg4: memref<8x64xbf16, #tpu.memory_space<vmem>>, %arg5: memref<64x64xbf16, #tpu.memory_space<vmem>>, %arg6: memref<4x192xbf16, #tpu.memory_space<vmem>>, %arg7: memref<96x32xbf16, #tpu.memory_space<vmem>>, %arg8: memref<2x128x64xbf16, #tpu.memory_space<vmem>>, %arg9: memref<2x32x256xbf16, #tpu.memory_space<vmem>>, %arg10: memref<27x32x32xbf16, #tpu.memory_space<vmem>>, %arg11: memref<29x1x32xf32, #tpu.memory_space<vmem>>, %arg12: memref<3x32x1xbf16, #tpu.memory_space<vmem>>, %arg13: memref<2x1xf32, #tpu.memory_space<vmem>>) attributes {dimension_semantics = [], scalar_prefetch = 0 : i64, scratch_operands = 0 : i64, tpu.core_type = #tpu.core_type<tc>} {
    %c0 = arith.constant 0 : index
    %c0_0 = arith.constant 0 : index
    %0 = vector.load %arg1[%c0, %c0_0] : memref<64x4xbf16, #tpu.memory_space<vmem>>, vector<64x4xbf16>
    %c0_1 = arith.constant 0 : index
    %c0_2 = arith.constant 0 : index
    %1 = vector.load %arg6[%c0_1, %c0_2] : memref<4x192xbf16, #tpu.memory_space<vmem>>, vector<4x192xbf16>
    %cst = arith.constant dense<0.000000e+00> : vector<64x192xf32>
    %2 = tpu.matmul %0, %1, %cst {dimension_numbers = #tpu.dot_dimension_numbers<[1], [0], [0], [1], [0, 0, 1, 1], [], []>} : vector<64x4xbf16>, vector<4x192xbf16>, vector<64x192xf32> -> vector<64x192xf32>
    %3 = vector.extract_strided_slice %2 {offsets = [0, 0], sizes = [64, 32], strides = [1, 1]} : vector<64x192xf32> to vector<64x32xf32>
    %c0_3 = arith.constant 0 : index
    %c0_4 = arith.constant 0 : index
    %c0_5 = arith.constant 0 : index
    %4 = vector.load %arg11[%c0_3, %c0_4, %c0_5] : memref<29x1x32xf32, #tpu.memory_space<vmem>>, vector<1x1x32xf32>
    %5 = vector.shape_cast %4 : vector<1x1x32xf32> to vector<1x32xf32>
    %6 = vector.broadcast %5 : vector<1x32xf32> to vector<64x32xf32>
    %7 = arith.addf %3, %6 : vector<64x32xf32>
    %8 = arith.negf %7 : vector<64x32xf32>
    %9 = math.exp %8 : vector<64x32xf32>
    %cst_6 = arith.constant 1.000000e+00 : f32
    %10 = vector.broadcast %cst_6 : f32 to vector<64x32xf32>
    %11 = arith.addf %10, %9 : vector<64x32xf32>
    %12 = arith.divf %10, %11 : vector<64x32xf32>
    %13 = arith.mulf %7, %12 : vector<64x32xf32>
    %c0_7 = arith.constant 0 : index
    %c0_8 = arith.constant 0 : index
    %14 = vector.load %arg0[%c0_7, %c0_8] : memref<64x64xbf16, #tpu.memory_space<vmem>>, vector<64x64xbf16>
    %15 = arith.truncf %13 : vector<64x32xf32> to vector<64x32xbf16>
    %16 = tpu.concatenate %14, %15 in 1 : vector<64x64xbf16>, vector<64x32xbf16> -> vector<64x96xbf16>
    %c0_9 = arith.constant 0 : index
    %c0_10 = arith.constant 0 : index
    %17 = vector.load %arg7[%c0_9, %c0_10] : memref<96x32xbf16, #tpu.memory_space<vmem>>, vector<96x32xbf16>
    %cst_11 = arith.constant dense<0.000000e+00> : vector<64x32xf32>
    %18 = tpu.matmul %16, %17, %cst_11 {dimension_numbers = #tpu.dot_dimension_numbers<[1], [0], [0], [1], [0, 0, 1, 1], [], []>} : vector<64x96xbf16>, vector<96x32xbf16>, vector<64x32xf32> -> vector<64x32xf32>
    %c1 = arith.constant 1 : index
    %c0_12 = arith.constant 0 : index
    %c0_13 = arith.constant 0 : index
    %19 = vector.load %arg11[%c1, %c0_12, %c0_13] : memref<29x1x32xf32, #tpu.memory_space<vmem>>, vector<1x1x32xf32>
    %20 = vector.shape_cast %19 : vector<1x1x32xf32> to vector<1x32xf32>
    %21 = vector.broadcast %20 : vector<1x32xf32> to vector<64x32xf32>
    %22 = arith.addf %18, %21 : vector<64x32xf32>
    %23 = arith.negf %22 : vector<64x32xf32>
    %24 = math.exp %23 : vector<64x32xf32>
    %cst_14 = arith.constant 1.000000e+00 : f32
    %25 = vector.broadcast %cst_14 : f32 to vector<64x32xf32>
    %26 = arith.addf %25, %24 : vector<64x32xf32>
    %27 = arith.divf %25, %26 : vector<64x32xf32>
    %28 = arith.mulf %22, %27 : vector<64x32xf32>
    %29 = vector.extract_strided_slice %2 {offsets = [0, 96], sizes = [64, 32], strides = [1, 1]} : vector<64x192xf32> to vector<64x32xf32>
    %30 = arith.mulf %29, %28 : vector<64x32xf32>
    %c0_15 = arith.constant 0 : index
    %c0_16 = arith.constant 0 : index
    %31 = vector.load %arg4[%c0_15, %c0_16] : memref<8x64xbf16, #tpu.memory_space<vmem>>, vector<8x64xbf16>
    %32 = arith.truncf %30 : vector<64x32xf32> to vector<64x32xbf16>
    %cst_17 = arith.constant dense<0.000000e+00> : vector<8x32xf32>
    %33 = tpu.matmul %31, %32, %cst_17 {dimension_numbers = #tpu.dot_dimension_numbers<[1], [0], [0], [1], [0, 0, 1, 1], [], []>} : vector<8x64xbf16>, vector<64x32xbf16>, vector<8x32xf32> -> vector<8x32xf32>
    %c18 = arith.constant 18 : index
    %c0_18 = arith.constant 0 : index
    %c0_19 = arith.constant 0 : index
    %34 = vector.load %arg10[%c18, %c0_18, %c0_19] : memref<27x32x32xbf16, #tpu.memory_space<vmem>>, vector<1x32x32xbf16>
    %35 = vector.shape_cast %34 : vector<1x32x32xbf16> to vector<32x32xbf16>
    %36 = arith.truncf %33 : vector<8x32xf32> to vector<8x32xbf16>
    %cst_20 = arith.constant dense<0.000000e+00> : vector<8x32xf32>
    %37 = tpu.matmul %36, %35, %cst_20 {dimension_numbers = #tpu.dot_dimension_numbers<[1], [0], [0], [1], [0, 0, 1, 1], [], []>} : vector<8x32xbf16>, vector<32x32xbf16>, vector<8x32xf32> -> vector<8x32xf32>
    %c20 = arith.constant 20 : index
    %c0_21 = arith.constant 0 : index
    %c0_22 = arith.constant 0 : index
    %38 = vector.load %arg11[%c20, %c0_21, %c0_22] : memref<29x1x32xf32, #tpu.memory_space<vmem>>, vector<1x1x32xf32>
    %39 = vector.shape_cast %38 : vector<1x1x32xf32> to vector<1x32xf32>
    %40 = vector.broadcast %39 : vector<1x32xf32> to vector<8x32xf32>
    %41 = arith.addf %37, %40 : vector<8x32xf32>
    %42 = arith.negf %41 : vector<8x32xf32>
    %43 = math.exp %42 : vector<8x32xf32>
    %cst_23 = arith.constant 1.000000e+00 : f32
    %44 = vector.broadcast %cst_23 : f32 to vector<8x32xf32>
    %45 = arith.addf %44, %43 : vector<8x32xf32>
    %46 = arith.divf %44, %45 : vector<8x32xf32>
    %47 = arith.mulf %41, %46 : vector<8x32xf32>
    %c19 = arith.constant 19 : index
    %c0_24 = arith.constant 0 : index
    %c0_25 = arith.constant 0 : index
    %48 = vector.load %arg10[%c19, %c0_24, %c0_25] : memref<27x32x32xbf16, #tpu.memory_space<vmem>>, vector<1x32x32xbf16>
    %49 = vector.shape_cast %48 : vector<1x32x32xbf16> to vector<32x32xbf16>
    %50 = arith.truncf %47 : vector<8x32xf32> to vector<8x32xbf16>
    %cst_26 = arith.constant dense<0.000000e+00> : vector<8x32xf32>
    %51 = tpu.matmul %50, %49, %cst_26 {dimension_numbers = #tpu.dot_dimension_numbers<[1], [0], [0], [1], [0, 0, 1, 1], [], []>} : vector<8x32xbf16>, vector<32x32xbf16>, vector<8x32xf32> -> vector<8x32xf32>
    %c21 = arith.constant 21 : index
    %c0_27 = arith.constant 0 : index
    %c0_28 = arith.constant 0 : index
    %52 = vector.load %arg11[%c21, %c0_27, %c0_28] : memref<29x1x32xf32, #tpu.memory_space<vmem>>, vector<1x1x32xf32>
    %53 = vector.shape_cast %52 : vector<1x1x32xf32> to vector<1x32xf32>
    %54 = vector.broadcast %53 : vector<1x32xf32> to vector<8x32xf32>
    %55 = arith.addf %51, %54 : vector<8x32xf32>
    %56 = arith.negf %55 : vector<8x32xf32>
    %57 = math.exp %56 : vector<8x32xf32>
    %cst_29 = arith.constant 1.000000e+00 : f32
    %58 = vector.broadcast %cst_29 : f32 to vector<8x32xf32>
    %59 = arith.addf %58, %57 : vector<8x32xf32>
    %60 = arith.divf %58, %59 : vector<8x32xf32>
    %61 = arith.mulf %55, %60 : vector<8x32xf32>
    %c20_30 = arith.constant 20 : index
    %c0_31 = arith.constant 0 : index
    %c0_32 = arith.constant 0 : index
    %62 = vector.load %arg10[%c20_30, %c0_31, %c0_32] : memref<27x32x32xbf16, #tpu.memory_space<vmem>>, vector<1x32x32xbf16>
    %63 = vector.shape_cast %62 : vector<1x32x32xbf16> to vector<32x32xbf16>
    %64 = arith.truncf %61 : vector<8x32xf32> to vector<8x32xbf16>
    %cst_33 = arith.constant dense<0.000000e+00> : vector<8x32xf32>
    %65 = tpu.matmul %64, %63, %cst_33 {dimension_numbers = #tpu.dot_dimension_numbers<[1], [0], [0], [1], [0, 0, 1, 1], [], []>} : vector<8x32xbf16>, vector<32x32xbf16>, vector<8x32xf32> -> vector<8x32xf32>
    %c22 = arith.constant 22 : index
    %c0_34 = arith.constant 0 : index
    %c0_35 = arith.constant 0 : index
    %66 = vector.load %arg11[%c22, %c0_34, %c0_35] : memref<29x1x32xf32, #tpu.memory_space<vmem>>, vector<1x1x32xf32>
    %67 = vector.shape_cast %66 : vector<1x1x32xf32> to vector<1x32xf32>
    %68 = vector.broadcast %67 : vector<1x32xf32> to vector<8x32xf32>
    %69 = arith.addf %65, %68 : vector<8x32xf32>
    %70 = arith.negf %69 : vector<8x32xf32>
    %71 = math.exp %70 : vector<8x32xf32>
    %cst_36 = arith.constant 1.000000e+00 : f32
    %72 = vector.broadcast %cst_36 : f32 to vector<8x32xf32>
    %73 = arith.addf %72, %71 : vector<8x32xf32>
    %74 = arith.divf %72, %73 : vector<8x32xf32>
    %75 = arith.mulf %69, %74 : vector<8x32xf32>
    %c0_37 = arith.constant 0 : index
    %c0_38 = arith.constant 0 : index
    %c0_39 = arith.constant 0 : index
    %76 = vector.load %arg12[%c0_37, %c0_38, %c0_39] : memref<3x32x1xbf16, #tpu.memory_space<vmem>>, vector<1x32x1xbf16>
    %77 = vector.shape_cast %76 : vector<1x32x1xbf16> to vector<32x1xbf16>
    %78 = arith.truncf %75 : vector<8x32xf32> to vector<8x32xbf16>
    %cst_40 = arith.constant dense<0.000000e+00> : vector<8x1xf32>
    %79 = tpu.matmul %78, %77, %cst_40 {dimension_numbers = #tpu.dot_dimension_numbers<[1], [0], [0], [1], [0, 0, 1, 1], [], []>} : vector<8x32xbf16>, vector<32x1xbf16>, vector<8x1xf32> -> vector<8x1xf32>
    %c0_41 = arith.constant 0 : index
    %c0_42 = arith.constant 0 : index
    %80 = vector.load %arg5[%c0_41, %c0_42] : memref<64x64xbf16, #tpu.memory_space<vmem>>, vector<64x64xbf16>
    %81 = vector.extract_strided_slice %2 {offsets = [0, 32], sizes = [64, 32], strides = [1, 1]} : vector<64x192xf32> to vector<64x32xf32>
    %c1_43 = arith.constant 1 : index
    %c0_44 = arith.constant 0 : index
    %c0_45 = arith.constant 0 : index
    %82 = vector.load %arg10[%c1_43, %c0_44, %c0_45] : memref<27x32x32xbf16, #tpu.memory_space<vmem>>, vector<1x32x32xbf16>
    %83 = vector.shape_cast %82 : vector<1x32x32xbf16> to vector<32x32xbf16>
    %84 = arith.truncf %28 : vector<64x32xf32> to vector<64x32xbf16>
    %cst_46 = arith.constant dense<0.000000e+00> : vector<64x32xf32>
    %85 = tpu.matmul %84, %83, %cst_46 {dimension_numbers = #tpu.dot_dimension_numbers<[1], [0], [0], [1], [0, 0, 1, 1], [], []>} : vector<64x32xbf16>, vector<32x32xbf16>, vector<64x32xf32> -> vector<64x32xf32>
    %c3 = arith.constant 3 : index
    %c0_47 = arith.constant 0 : index
    %c0_48 = arith.constant 0 : index
    %86 = vector.load %arg11[%c3, %c0_47, %c0_48] : memref<29x1x32xf32, #tpu.memory_space<vmem>>, vector<1x1x32xf32>
    %87 = vector.shape_cast %86 : vector<1x1x32xf32> to vector<1x32xf32>
    %88 = vector.broadcast %87 : vector<1x32xf32> to vector<64x32xf32>
    %89 = arith.addf %85, %88 : vector<64x32xf32>
    %90 = arith.negf %89 : vector<64x32xf32>
    %91 = math.exp %90 : vector<64x32xf32>
    %cst_49 = arith.constant 1.000000e+00 : f32
    %92 = vector.broadcast %cst_49 : f32 to vector<64x32xf32>
    %93 = arith.addf %92, %91 : vector<64x32xf32>
    %94 = arith.divf %92, %93 : vector<64x32xf32>
    %95 = arith.mulf %89, %94 : vector<64x32xf32>
    %c0_50 = arith.constant 0 : index
    %c0_51 = arith.constant 0 : index
    %c0_52 = arith.constant 0 : index
    %96 = vector.load %arg10[%c0_50, %c0_51, %c0_52] : memref<27x32x32xbf16, #tpu.memory_space<vmem>>, vector<1x32x32xbf16>
    %97 = vector.shape_cast %96 : vector<1x32x32xbf16> to vector<32x32xbf16>
    %98 = arith.truncf %28 : vector<64x32xf32> to vector<64x32xbf16>
    %cst_53 = arith.constant dense<0.000000e+00> : vector<64x32xf32>
    %99 = tpu.matmul %98, %97, %cst_53 {dimension_numbers = #tpu.dot_dimension_numbers<[1], [0], [0], [1], [0, 0, 1, 1], [], []>} : vector<64x32xbf16>, vector<32x32xbf16>, vector<64x32xf32> -> vector<64x32xf32>
    %c2 = arith.constant 2 : index
    %c0_54 = arith.constant 0 : index
    %c0_55 = arith.constant 0 : index
    %100 = vector.load %arg11[%c2, %c0_54, %c0_55] : memref<29x1x32xf32, #tpu.memory_space<vmem>>, vector<1x1x32xf32>
    %101 = vector.shape_cast %100 : vector<1x1x32xf32> to vector<1x32xf32>
    %102 = vector.broadcast %101 : vector<1x32xf32> to vector<64x32xf32>
    %103 = arith.addf %99, %102 : vector<64x32xf32>
    %104 = arith.negf %103 : vector<64x32xf32>
    %105 = math.exp %104 : vector<64x32xf32>
    %cst_56 = arith.constant 1.000000e+00 : f32
    %106 = vector.broadcast %cst_56 : f32 to vector<64x32xf32>
    %107 = arith.addf %106, %105 : vector<64x32xf32>
    %108 = arith.divf %106, %107 : vector<64x32xf32>
    %109 = arith.mulf %103, %108 : vector<64x32xf32>
    %110 = arith.mulf %109, %81 : vector<64x32xf32>
    %c0_57 = arith.constant 0 : index
    %c0_58 = arith.constant 0 : index
    %111 = vector.load %arg2[%c0_57, %c0_58] : memref<64x128xbf16, #tpu.memory_space<vmem>>, vector<64x128xbf16>
    %c0_59 = arith.constant 0 : index
    %c0_60 = arith.constant 0 : index
    %c0_61 = arith.constant 0 : index
    %112 = vector.load %arg8[%c0_59, %c0_60, %c0_61] : memref<2x128x64xbf16, #tpu.memory_space<vmem>>, vector<1x128x64xbf16>
    %113 = vector.shape_cast %112 : vector<1x128x64xbf16> to vector<128x64xbf16>
    %cst_62 = arith.constant dense<0.000000e+00> : vector<64x64xf32>
    %114 = tpu.matmul %111, %113, %cst_62 {dimension_numbers = #tpu.dot_dimension_numbers<[1], [0], [0], [1], [0, 0, 1, 1], [], []>} : vector<64x128xbf16>, vector<128x64xbf16>, vector<64x64xf32> -> vector<64x64xf32>
    %c0_63 = arith.constant 0 : index
    %c0_64 = arith.constant 0 : index
    %c0_65 = arith.constant 0 : index
    %115 = vector.load %arg9[%c0_63, %c0_64, %c0_65] : memref<2x32x256xbf16, #tpu.memory_space<vmem>>, vector<1x32x256xbf16>
    %116 = vector.shape_cast %115 : vector<1x32x256xbf16> to vector<32x256xbf16>
    %117 = arith.truncf %110 : vector<64x32xf32> to vector<64x32xbf16>
    %cst_66 = arith.constant dense<0.000000e+00> : vector<64x256xf32>
    %118 = tpu.matmul %117, %116, %cst_66 {dimension_numbers = #tpu.dot_dimension_numbers<[1], [0], [0], [1], [0, 0, 1, 1], [], []>} : vector<64x32xbf16>, vector<32x256xbf16>, vector<64x256xf32> -> vector<64x256xf32>
    %119 = vector.extract_strided_slice %114 {offsets = [0, 0], sizes = [64, 8], strides = [1, 1]} : vector<64x64xf32> to vector<64x8xf32>
    %120 = arith.truncf %119 : vector<64x8xf32> to vector<64x8xbf16>
    %121 = tpu.concatenate %120, %120, %120, %120, %120, %120, %120, %120 in 1 : vector<64x8xbf16>, vector<64x8xbf16>, vector<64x8xbf16>, vector<64x8xbf16>, vector<64x8xbf16>, vector<64x8xbf16>, vector<64x8xbf16>, vector<64x8xbf16> -> vector<64x64xbf16>
    %122 = arith.mulf %121, %80 : vector<64x64xbf16>
    %123 = vector.extract_strided_slice %118 {offsets = [0, 0], sizes = [64, 32], strides = [1, 1]} : vector<64x256xf32> to vector<64x32xf32>
    %124 = vector.extract_strided_slice %114 {offsets = [0, 8], sizes = [64, 8], strides = [1, 1]} : vector<64x64xf32> to vector<64x8xf32>
    %125 = arith.truncf %124 : vector<64x8xf32> to vector<64x8xbf16>
    %126 = tpu.concatenate %125, %125, %125, %125, %125, %125, %125, %125 in 1 : vector<64x8xbf16>, vector<64x8xbf16>, vector<64x8xbf16>, vector<64x8xbf16>, vector<64x8xbf16>, vector<64x8xbf16>, vector<64x8xbf16>, vector<64x8xbf16> -> vector<64x64xbf16>
    %127 = arith.mulf %126, %80 : vector<64x64xbf16>
    %128 = vector.extract_strided_slice %118 {offsets = [0, 32], sizes = [64, 32], strides = [1, 1]} : vector<64x256xf32> to vector<64x32xf32>
    %129 = vector.extract_strided_slice %114 {offsets = [0, 16], sizes = [64, 8], strides = [1, 1]} : vector<64x64xf32> to vector<64x8xf32>
    %130 = arith.truncf %129 : vector<64x8xf32> to vector<64x8xbf16>
    %131 = tpu.concatenate %130, %130, %130, %130, %130, %130, %130, %130 in 1 : vector<64x8xbf16>, vector<64x8xbf16>, vector<64x8xbf16>, vector<64x8xbf16>, vector<64x8xbf16>, vector<64x8xbf16>, vector<64x8xbf16>, vector<64x8xbf16> -> vector<64x64xbf16>
    %132 = arith.mulf %131, %80 : vector<64x64xbf16>
    %133 = vector.extract_strided_slice %118 {offsets = [0, 64], sizes = [64, 32], strides = [1, 1]} : vector<64x256xf32> to vector<64x32xf32>
    %134 = vector.extract_strided_slice %114 {offsets = [0, 24], sizes = [64, 8], strides = [1, 1]} : vector<64x64xf32> to vector<64x8xf32>
    %135 = arith.truncf %134 : vector<64x8xf32> to vector<64x8xbf16>
    %136 = tpu.concatenate %135, %135, %135, %135, %135, %135, %135, %135 in 1 : vector<64x8xbf16>, vector<64x8xbf16>, vector<64x8xbf16>, vector<64x8xbf16>, vector<64x8xbf16>, vector<64x8xbf16>, vector<64x8xbf16>, vector<64x8xbf16> -> vector<64x64xbf16>
    %137 = arith.mulf %136, %80 : vector<64x64xbf16>
    %138 = vector.extract_strided_slice %118 {offsets = [0, 96], sizes = [64, 32], strides = [1, 1]} : vector<64x256xf32> to vector<64x32xf32>
    %139 = vector.extract_strided_slice %114 {offsets = [0, 32], sizes = [64, 8], strides = [1, 1]} : vector<64x64xf32> to vector<64x8xf32>
    %140 = arith.truncf %139 : vector<64x8xf32> to vector<64x8xbf16>
    %141 = tpu.concatenate %140, %140, %140, %140, %140, %140, %140, %140 in 1 : vector<64x8xbf16>, vector<64x8xbf16>, vector<64x8xbf16>, vector<64x8xbf16>, vector<64x8xbf16>, vector<64x8xbf16>, vector<64x8xbf16>, vector<64x8xbf16> -> vector<64x64xbf16>
    %142 = arith.mulf %141, %80 : vector<64x64xbf16>
    %143 = vector.extract_strided_slice %118 {offsets = [0, 128], sizes = [64, 32], strides = [1, 1]} : vector<64x256xf32> to vector<64x32xf32>
    %144 = vector.extract_strided_slice %114 {offsets = [0, 40], sizes = [64, 8], strides = [1, 1]} : vector<64x64xf32> to vector<64x8xf32>
    %145 = arith.truncf %144 : vector<64x8xf32> to vector<64x8xbf16>
    %146 = tpu.concatenate %145, %145, %145, %145, %145, %145, %145, %145 in 1 : vector<64x8xbf16>, vector<64x8xbf16>, vector<64x8xbf16>, vector<64x8xbf16>, vector<64x8xbf16>, vector<64x8xbf16>, vector<64x8xbf16>, vector<64x8xbf16> -> vector<64x64xbf16>
    %147 = arith.mulf %146, %80 : vector<64x64xbf16>
    %148 = vector.extract_strided_slice %118 {offsets = [0, 160], sizes = [64, 32], strides = [1, 1]} : vector<64x256xf32> to vector<64x32xf32>
    %149 = vector.extract_strided_slice %114 {offsets = [0, 48], sizes = [64, 8], strides = [1, 1]} : vector<64x64xf32> to vector<64x8xf32>
    %150 = arith.truncf %149 : vector<64x8xf32> to vector<64x8xbf16>
    %151 = tpu.concatenate %150, %150, %150, %150, %150, %150, %150, %150 in 1 : vector<64x8xbf16>, vector<64x8xbf16>, vector<64x8xbf16>, vector<64x8xbf16>, vector<64x8xbf16>, vector<64x8xbf16>, vector<64x8xbf16>, vector<64x8xbf16> -> vector<64x64xbf16>
    %152 = arith.mulf %151, %80 : vector<64x64xbf16>
    %153 = vector.extract_strided_slice %118 {offsets = [0, 192], sizes = [64, 32], strides = [1, 1]} : vector<64x256xf32> to vector<64x32xf32>
    %154 = vector.extract_strided_slice %114 {offsets = [0, 56], sizes = [64, 8], strides = [1, 1]} : vector<64x64xf32> to vector<64x8xf32>
    %155 = arith.truncf %154 : vector<64x8xf32> to vector<64x8xbf16>
    %156 = tpu.concatenate %155, %155, %155, %155, %155, %155, %155, %155 in 1 : vector<64x8xbf16>, vector<64x8xbf16>, vector<64x8xbf16>, vector<64x8xbf16>, vector<64x8xbf16>, vector<64x8xbf16>, vector<64x8xbf16>, vector<64x8xbf16> -> vector<64x64xbf16>
    %157 = arith.mulf %156, %80 : vector<64x64xbf16>
    %158 = vector.extract_strided_slice %118 {offsets = [0, 224], sizes = [64, 32], strides = [1, 1]} : vector<64x256xf32> to vector<64x32xf32>
    %159 = tpu.concatenate %122, %127, %132, %137, %142, %147, %152, %157 in 1 : vector<64x64xbf16>, vector<64x64xbf16>, vector<64x64xbf16>, vector<64x64xbf16>, vector<64x64xbf16>, vector<64x64xbf16>, vector<64x64xbf16>, vector<64x64xbf16> -> vector<64x512xbf16>
    %160 = tpu.concatenate %123, %128, %133, %138, %143, %148, %153, %158 in 0 : vector<64x32xf32>, vector<64x32xf32>, vector<64x32xf32>, vector<64x32xf32>, vector<64x32xf32>, vector<64x32xf32>, vector<64x32xf32>, vector<64x32xf32> -> vector<512x32xf32>
    %161 = arith.truncf %160 : vector<512x32xf32> to vector<512x32xbf16>
    %cst_67 = arith.constant dense<0.000000e+00> : vector<64x32xf32>
    %162 = tpu.matmul %159, %161, %cst_67 {dimension_numbers = #tpu.dot_dimension_numbers<[1], [0], [0], [1], [0, 0, 1, 1], [], []>} : vector<64x512xbf16>, vector<512x32xbf16>, vector<64x32xf32> -> vector<64x32xf32>
    %163 = arith.addf %95, %162 : vector<64x32xf32>
    %c2_68 = arith.constant 2 : index
    %c0_69 = arith.constant 0 : index
    %c0_70 = arith.constant 0 : index
    %164 = vector.load %arg10[%c2_68, %c0_69, %c0_70] : memref<27x32x32xbf16, #tpu.memory_space<vmem>>, vector<1x32x32xbf16>
    %165 = vector.shape_cast %164 : vector<1x32x32xbf16> to vector<32x32xbf16>
    %166 = arith.truncf %163 : vector<64x32xf32> to vector<64x32xbf16>
    %cst_71 = arith.constant dense<0.000000e+00> : vector<64x32xf32>
    %167 = tpu.matmul %166, %165, %cst_71 {dimension_numbers = #tpu.dot_dimension_numbers<[1], [0], [0], [1], [0, 0, 1, 1], [], []>} : vector<64x32xbf16>, vector<32x32xbf16>, vector<64x32xf32> -> vector<64x32xf32>
    %c4 = arith.constant 4 : index
    %c0_72 = arith.constant 0 : index
    %c0_73 = arith.constant 0 : index
    %168 = vector.load %arg11[%c4, %c0_72, %c0_73] : memref<29x1x32xf32, #tpu.memory_space<vmem>>, vector<1x1x32xf32>
    %169 = vector.shape_cast %168 : vector<1x1x32xf32> to vector<1x32xf32>
    %170 = vector.broadcast %169 : vector<1x32xf32> to vector<64x32xf32>
    %171 = arith.addf %167, %170 : vector<64x32xf32>
    %172 = arith.negf %171 : vector<64x32xf32>
    %173 = math.exp %172 : vector<64x32xf32>
    %cst_74 = arith.constant 1.000000e+00 : f32
    %174 = vector.broadcast %cst_74 : f32 to vector<64x32xf32>
    %175 = arith.addf %174, %173 : vector<64x32xf32>
    %176 = arith.divf %174, %175 : vector<64x32xf32>
    %177 = arith.mulf %171, %176 : vector<64x32xf32>
    %c3_75 = arith.constant 3 : index
    %c0_76 = arith.constant 0 : index
    %c0_77 = arith.constant 0 : index
    %178 = vector.load %arg10[%c3_75, %c0_76, %c0_77] : memref<27x32x32xbf16, #tpu.memory_space<vmem>>, vector<1x32x32xbf16>
    %179 = vector.shape_cast %178 : vector<1x32x32xbf16> to vector<32x32xbf16>
    %180 = arith.truncf %177 : vector<64x32xf32> to vector<64x32xbf16>
    %cst_78 = arith.constant dense<0.000000e+00> : vector<64x32xf32>
    %181 = tpu.matmul %180, %179, %cst_78 {dimension_numbers = #tpu.dot_dimension_numbers<[1], [0], [0], [1], [0, 0, 1, 1], [], []>} : vector<64x32xbf16>, vector<32x32xbf16>, vector<64x32xf32> -> vector<64x32xf32>
    %c5 = arith.constant 5 : index
    %c0_79 = arith.constant 0 : index
    %c0_80 = arith.constant 0 : index
    %182 = vector.load %arg11[%c5, %c0_79, %c0_80] : memref<29x1x32xf32, #tpu.memory_space<vmem>>, vector<1x1x32xf32>
    %183 = vector.shape_cast %182 : vector<1x1x32xf32> to vector<1x32xf32>
    %184 = vector.broadcast %183 : vector<1x32xf32> to vector<64x32xf32>
    %185 = arith.addf %181, %184 : vector<64x32xf32>
    %186 = arith.negf %185 : vector<64x32xf32>
    %187 = math.exp %186 : vector<64x32xf32>
    %cst_81 = arith.constant 1.000000e+00 : f32
    %188 = vector.broadcast %cst_81 : f32 to vector<64x32xf32>
    %189 = arith.addf %188, %187 : vector<64x32xf32>
    %190 = arith.divf %188, %189 : vector<64x32xf32>
    %191 = arith.mulf %185, %190 : vector<64x32xf32>
    %192 = arith.addf %163, %191 : vector<64x32xf32>
    %c4_82 = arith.constant 4 : index
    %c0_83 = arith.constant 0 : index
    %c0_84 = arith.constant 0 : index
    %193 = vector.load %arg10[%c4_82, %c0_83, %c0_84] : memref<27x32x32xbf16, #tpu.memory_space<vmem>>, vector<1x32x32xbf16>
    %194 = vector.shape_cast %193 : vector<1x32x32xbf16> to vector<32x32xbf16>
    %195 = arith.truncf %192 : vector<64x32xf32> to vector<64x32xbf16>
    %cst_85 = arith.constant dense<0.000000e+00> : vector<64x32xf32>
    %196 = tpu.matmul %195, %194, %cst_85 {dimension_numbers = #tpu.dot_dimension_numbers<[1], [0], [0], [1], [0, 0, 1, 1], [], []>} : vector<64x32xbf16>, vector<32x32xbf16>, vector<64x32xf32> -> vector<64x32xf32>
    %c6 = arith.constant 6 : index
    %c0_86 = arith.constant 0 : index
    %c0_87 = arith.constant 0 : index
    %197 = vector.load %arg11[%c6, %c0_86, %c0_87] : memref<29x1x32xf32, #tpu.memory_space<vmem>>, vector<1x1x32xf32>
    %198 = vector.shape_cast %197 : vector<1x1x32xf32> to vector<1x32xf32>
    %199 = vector.broadcast %198 : vector<1x32xf32> to vector<64x32xf32>
    %200 = arith.addf %196, %199 : vector<64x32xf32>
    %201 = arith.negf %200 : vector<64x32xf32>
    %202 = math.exp %201 : vector<64x32xf32>
    %cst_88 = arith.constant 1.000000e+00 : f32
    %203 = vector.broadcast %cst_88 : f32 to vector<64x32xf32>
    %204 = arith.addf %203, %202 : vector<64x32xf32>
    %205 = arith.divf %203, %204 : vector<64x32xf32>
    %206 = arith.mulf %200, %205 : vector<64x32xf32>
    %207 = arith.addf %206, %28 : vector<64x32xf32>
    %c5_89 = arith.constant 5 : index
    %c0_90 = arith.constant 0 : index
    %c0_91 = arith.constant 0 : index
    %208 = vector.load %arg10[%c5_89, %c0_90, %c0_91] : memref<27x32x32xbf16, #tpu.memory_space<vmem>>, vector<1x32x32xbf16>
    %209 = vector.shape_cast %208 : vector<1x32x32xbf16> to vector<32x32xbf16>
    %210 = arith.truncf %207 : vector<64x32xf32> to vector<64x32xbf16>
    %cst_92 = arith.constant dense<0.000000e+00> : vector<64x32xf32>
    %211 = tpu.matmul %210, %209, %cst_92 {dimension_numbers = #tpu.dot_dimension_numbers<[1], [0], [0], [1], [0, 0, 1, 1], [], []>} : vector<64x32xbf16>, vector<32x32xbf16>, vector<64x32xf32> -> vector<64x32xf32>
    %c7 = arith.constant 7 : index
    %c0_93 = arith.constant 0 : index
    %c0_94 = arith.constant 0 : index
    %212 = vector.load %arg11[%c7, %c0_93, %c0_94] : memref<29x1x32xf32, #tpu.memory_space<vmem>>, vector<1x1x32xf32>
    %213 = vector.shape_cast %212 : vector<1x1x32xf32> to vector<1x32xf32>
    %214 = vector.broadcast %213 : vector<1x32xf32> to vector<64x32xf32>
    %215 = arith.addf %211, %214 : vector<64x32xf32>
    %216 = arith.negf %215 : vector<64x32xf32>
    %217 = math.exp %216 : vector<64x32xf32>
    %cst_95 = arith.constant 1.000000e+00 : f32
    %218 = vector.broadcast %cst_95 : f32 to vector<64x32xf32>
    %219 = arith.addf %218, %217 : vector<64x32xf32>
    %220 = arith.divf %218, %219 : vector<64x32xf32>
    %221 = arith.mulf %215, %220 : vector<64x32xf32>
    %c6_96 = arith.constant 6 : index
    %c0_97 = arith.constant 0 : index
    %c0_98 = arith.constant 0 : index
    %222 = vector.load %arg10[%c6_96, %c0_97, %c0_98] : memref<27x32x32xbf16, #tpu.memory_space<vmem>>, vector<1x32x32xbf16>
    %223 = vector.shape_cast %222 : vector<1x32x32xbf16> to vector<32x32xbf16>
    %224 = arith.truncf %221 : vector<64x32xf32> to vector<64x32xbf16>
    %cst_99 = arith.constant dense<0.000000e+00> : vector<64x32xf32>
    %225 = tpu.matmul %224, %223, %cst_99 {dimension_numbers = #tpu.dot_dimension_numbers<[1], [0], [0], [1], [0, 0, 1, 1], [], []>} : vector<64x32xbf16>, vector<32x32xbf16>, vector<64x32xf32> -> vector<64x32xf32>
    %c8 = arith.constant 8 : index
    %c0_100 = arith.constant 0 : index
    %c0_101 = arith.constant 0 : index
    %226 = vector.load %arg11[%c8, %c0_100, %c0_101] : memref<29x1x32xf32, #tpu.memory_space<vmem>>, vector<1x1x32xf32>
    %227 = vector.shape_cast %226 : vector<1x1x32xf32> to vector<1x32xf32>
    %228 = vector.broadcast %227 : vector<1x32xf32> to vector<64x32xf32>
    %229 = arith.addf %225, %228 : vector<64x32xf32>
    %230 = arith.negf %229 : vector<64x32xf32>
    %231 = math.exp %230 : vector<64x32xf32>
    %cst_102 = arith.constant 1.000000e+00 : f32
    %232 = vector.broadcast %cst_102 : f32 to vector<64x32xf32>
    %233 = arith.addf %232, %231 : vector<64x32xf32>
    %234 = arith.divf %232, %233 : vector<64x32xf32>
    %235 = arith.mulf %229, %234 : vector<64x32xf32>
    %236 = arith.addf %207, %235 : vector<64x32xf32>
    %c7_103 = arith.constant 7 : index
    %c0_104 = arith.constant 0 : index
    %c0_105 = arith.constant 0 : index
    %237 = vector.load %arg10[%c7_103, %c0_104, %c0_105] : memref<27x32x32xbf16, #tpu.memory_space<vmem>>, vector<1x32x32xbf16>
    %238 = vector.shape_cast %237 : vector<1x32x32xbf16> to vector<32x32xbf16>
    %239 = arith.truncf %236 : vector<64x32xf32> to vector<64x32xbf16>
    %cst_106 = arith.constant dense<0.000000e+00> : vector<64x32xf32>
    %240 = tpu.matmul %239, %238, %cst_106 {dimension_numbers = #tpu.dot_dimension_numbers<[1], [0], [0], [1], [0, 0, 1, 1], [], []>} : vector<64x32xbf16>, vector<32x32xbf16>, vector<64x32xf32> -> vector<64x32xf32>
    %c9 = arith.constant 9 : index
    %c0_107 = arith.constant 0 : index
    %c0_108 = arith.constant 0 : index
    %241 = vector.load %arg11[%c9, %c0_107, %c0_108] : memref<29x1x32xf32, #tpu.memory_space<vmem>>, vector<1x1x32xf32>
    %242 = vector.shape_cast %241 : vector<1x1x32xf32> to vector<1x32xf32>
    %243 = vector.broadcast %242 : vector<1x32xf32> to vector<64x32xf32>
    %244 = arith.addf %240, %243 : vector<64x32xf32>
    %245 = arith.negf %244 : vector<64x32xf32>
    %246 = math.exp %245 : vector<64x32xf32>
    %cst_109 = arith.constant 1.000000e+00 : f32
    %247 = vector.broadcast %cst_109 : f32 to vector<64x32xf32>
    %248 = arith.addf %247, %246 : vector<64x32xf32>
    %249 = arith.divf %247, %248 : vector<64x32xf32>
    %250 = arith.mulf %244, %249 : vector<64x32xf32>
    %c8_110 = arith.constant 8 : index
    %c0_111 = arith.constant 0 : index
    %c0_112 = arith.constant 0 : index
    %251 = vector.load %arg10[%c8_110, %c0_111, %c0_112] : memref<27x32x32xbf16, #tpu.memory_space<vmem>>, vector<1x32x32xbf16>
    %252 = vector.shape_cast %251 : vector<1x32x32xbf16> to vector<32x32xbf16>
    %253 = arith.truncf %250 : vector<64x32xf32> to vector<64x32xbf16>
    %cst_113 = arith.constant dense<0.000000e+00> : vector<64x32xf32>
    %254 = tpu.matmul %253, %252, %cst_113 {dimension_numbers = #tpu.dot_dimension_numbers<[1], [0], [0], [1], [0, 0, 1, 1], [], []>} : vector<64x32xbf16>, vector<32x32xbf16>, vector<64x32xf32> -> vector<64x32xf32>
    %c10 = arith.constant 10 : index
    %c0_114 = arith.constant 0 : index
    %c0_115 = arith.constant 0 : index
    %255 = vector.load %arg11[%c10, %c0_114, %c0_115] : memref<29x1x32xf32, #tpu.memory_space<vmem>>, vector<1x1x32xf32>
    %256 = vector.shape_cast %255 : vector<1x1x32xf32> to vector<1x32xf32>
    %257 = vector.broadcast %256 : vector<1x32xf32> to vector<64x32xf32>
    %258 = arith.addf %254, %257 : vector<64x32xf32>
    %259 = arith.negf %258 : vector<64x32xf32>
    %260 = math.exp %259 : vector<64x32xf32>
    %cst_116 = arith.constant 1.000000e+00 : f32
    %261 = vector.broadcast %cst_116 : f32 to vector<64x32xf32>
    %262 = arith.addf %261, %260 : vector<64x32xf32>
    %263 = arith.divf %261, %262 : vector<64x32xf32>
    %264 = arith.mulf %258, %263 : vector<64x32xf32>
    %265 = arith.addf %236, %264 : vector<64x32xf32>
    %266 = vector.extract_strided_slice %2 {offsets = [0, 128], sizes = [64, 32], strides = [1, 1]} : vector<64x192xf32> to vector<64x32xf32>
    %267 = arith.mulf %266, %265 : vector<64x32xf32>
    %c0_117 = arith.constant 0 : index
    %c0_118 = arith.constant 0 : index
    %268 = vector.load %arg4[%c0_117, %c0_118] : memref<8x64xbf16, #tpu.memory_space<vmem>>, vector<8x64xbf16>
    %269 = arith.truncf %267 : vector<64x32xf32> to vector<64x32xbf16>
    %cst_119 = arith.constant dense<0.000000e+00> : vector<8x32xf32>
    %270 = tpu.matmul %268, %269, %cst_119 {dimension_numbers = #tpu.dot_dimension_numbers<[1], [0], [0], [1], [0, 0, 1, 1], [], []>} : vector<8x64xbf16>, vector<64x32xbf16>, vector<8x32xf32> -> vector<8x32xf32>
    %c21_120 = arith.constant 21 : index
    %c0_121 = arith.constant 0 : index
    %c0_122 = arith.constant 0 : index
    %271 = vector.load %arg10[%c21_120, %c0_121, %c0_122] : memref<27x32x32xbf16, #tpu.memory_space<vmem>>, vector<1x32x32xbf16>
    %272 = vector.shape_cast %271 : vector<1x32x32xbf16> to vector<32x32xbf16>
    %273 = arith.truncf %270 : vector<8x32xf32> to vector<8x32xbf16>
    %cst_123 = arith.constant dense<0.000000e+00> : vector<8x32xf32>
    %274 = tpu.matmul %273, %272, %cst_123 {dimension_numbers = #tpu.dot_dimension_numbers<[1], [0], [0], [1], [0, 0, 1, 1], [], []>} : vector<8x32xbf16>, vector<32x32xbf16>, vector<8x32xf32> -> vector<8x32xf32>
    %c23 = arith.constant 23 : index
    %c0_124 = arith.constant 0 : index
    %c0_125 = arith.constant 0 : index
    %275 = vector.load %arg11[%c23, %c0_124, %c0_125] : memref<29x1x32xf32, #tpu.memory_space<vmem>>, vector<1x1x32xf32>
    %276 = vector.shape_cast %275 : vector<1x1x32xf32> to vector<1x32xf32>
    %277 = vector.broadcast %276 : vector<1x32xf32> to vector<8x32xf32>
    %278 = arith.addf %274, %277 : vector<8x32xf32>
    %279 = arith.negf %278 : vector<8x32xf32>
    %280 = math.exp %279 : vector<8x32xf32>
    %cst_126 = arith.constant 1.000000e+00 : f32
    %281 = vector.broadcast %cst_126 : f32 to vector<8x32xf32>
    %282 = arith.addf %281, %280 : vector<8x32xf32>
    %283 = arith.divf %281, %282 : vector<8x32xf32>
    %284 = arith.mulf %278, %283 : vector<8x32xf32>
    %c22_127 = arith.constant 22 : index
    %c0_128 = arith.constant 0 : index
    %c0_129 = arith.constant 0 : index
    %285 = vector.load %arg10[%c22_127, %c0_128, %c0_129] : memref<27x32x32xbf16, #tpu.memory_space<vmem>>, vector<1x32x32xbf16>
    %286 = vector.shape_cast %285 : vector<1x32x32xbf16> to vector<32x32xbf16>
    %287 = arith.truncf %284 : vector<8x32xf32> to vector<8x32xbf16>
    %cst_130 = arith.constant dense<0.000000e+00> : vector<8x32xf32>
    %288 = tpu.matmul %287, %286, %cst_130 {dimension_numbers = #tpu.dot_dimension_numbers<[1], [0], [0], [1], [0, 0, 1, 1], [], []>} : vector<8x32xbf16>, vector<32x32xbf16>, vector<8x32xf32> -> vector<8x32xf32>
    %c24 = arith.constant 24 : index
    %c0_131 = arith.constant 0 : index
    %c0_132 = arith.constant 0 : index
    %289 = vector.load %arg11[%c24, %c0_131, %c0_132] : memref<29x1x32xf32, #tpu.memory_space<vmem>>, vector<1x1x32xf32>
    %290 = vector.shape_cast %289 : vector<1x1x32xf32> to vector<1x32xf32>
    %291 = vector.broadcast %290 : vector<1x32xf32> to vector<8x32xf32>
    %292 = arith.addf %288, %291 : vector<8x32xf32>
    %293 = arith.negf %292 : vector<8x32xf32>
    %294 = math.exp %293 : vector<8x32xf32>
    %cst_133 = arith.constant 1.000000e+00 : f32
    %295 = vector.broadcast %cst_133 : f32 to vector<8x32xf32>
    %296 = arith.addf %295, %294 : vector<8x32xf32>
    %297 = arith.divf %295, %296 : vector<8x32xf32>
    %298 = arith.mulf %292, %297 : vector<8x32xf32>
    %c23_134 = arith.constant 23 : index
    %c0_135 = arith.constant 0 : index
    %c0_136 = arith.constant 0 : index
    %299 = vector.load %arg10[%c23_134, %c0_135, %c0_136] : memref<27x32x32xbf16, #tpu.memory_space<vmem>>, vector<1x32x32xbf16>
    %300 = vector.shape_cast %299 : vector<1x32x32xbf16> to vector<32x32xbf16>
    %301 = arith.truncf %298 : vector<8x32xf32> to vector<8x32xbf16>
    %cst_137 = arith.constant dense<0.000000e+00> : vector<8x32xf32>
    %302 = tpu.matmul %301, %300, %cst_137 {dimension_numbers = #tpu.dot_dimension_numbers<[1], [0], [0], [1], [0, 0, 1, 1], [], []>} : vector<8x32xbf16>, vector<32x32xbf16>, vector<8x32xf32> -> vector<8x32xf32>
    %c25 = arith.constant 25 : index
    %c0_138 = arith.constant 0 : index
    %c0_139 = arith.constant 0 : index
    %303 = vector.load %arg11[%c25, %c0_138, %c0_139] : memref<29x1x32xf32, #tpu.memory_space<vmem>>, vector<1x1x32xf32>
    %304 = vector.shape_cast %303 : vector<1x1x32xf32> to vector<1x32xf32>
    %305 = vector.broadcast %304 : vector<1x32xf32> to vector<8x32xf32>
    %306 = arith.addf %302, %305 : vector<8x32xf32>
    %307 = arith.negf %306 : vector<8x32xf32>
    %308 = math.exp %307 : vector<8x32xf32>
    %cst_140 = arith.constant 1.000000e+00 : f32
    %309 = vector.broadcast %cst_140 : f32 to vector<8x32xf32>
    %310 = arith.addf %309, %308 : vector<8x32xf32>
    %311 = arith.divf %309, %310 : vector<8x32xf32>
    %312 = arith.mulf %306, %311 : vector<8x32xf32>
    %c1_141 = arith.constant 1 : index
    %c0_142 = arith.constant 0 : index
    %c0_143 = arith.constant 0 : index
    %313 = vector.load %arg12[%c1_141, %c0_142, %c0_143] : memref<3x32x1xbf16, #tpu.memory_space<vmem>>, vector<1x32x1xbf16>
    %314 = vector.shape_cast %313 : vector<1x32x1xbf16> to vector<32x1xbf16>
    %315 = arith.truncf %312 : vector<8x32xf32> to vector<8x32xbf16>
    %cst_144 = arith.constant dense<0.000000e+00> : vector<8x1xf32>
    %316 = tpu.matmul %315, %314, %cst_144 {dimension_numbers = #tpu.dot_dimension_numbers<[1], [0], [0], [1], [0, 0, 1, 1], [], []>} : vector<8x32xbf16>, vector<32x1xbf16>, vector<8x1xf32> -> vector<8x1xf32>
    %317 = arith.addf %79, %316 : vector<8x1xf32>
    %318 = vector.extract_strided_slice %2 {offsets = [0, 64], sizes = [64, 32], strides = [1, 1]} : vector<64x192xf32> to vector<64x32xf32>
    %c10_145 = arith.constant 10 : index
    %c0_146 = arith.constant 0 : index
    %c0_147 = arith.constant 0 : index
    %319 = vector.load %arg10[%c10_145, %c0_146, %c0_147] : memref<27x32x32xbf16, #tpu.memory_space<vmem>>, vector<1x32x32xbf16>
    %320 = vector.shape_cast %319 : vector<1x32x32xbf16> to vector<32x32xbf16>
    %321 = arith.truncf %265 : vector<64x32xf32> to vector<64x32xbf16>
    %cst_148 = arith.constant dense<0.000000e+00> : vector<64x32xf32>
    %322 = tpu.matmul %321, %320, %cst_148 {dimension_numbers = #tpu.dot_dimension_numbers<[1], [0], [0], [1], [0, 0, 1, 1], [], []>} : vector<64x32xbf16>, vector<32x32xbf16>, vector<64x32xf32> -> vector<64x32xf32>
    %c12 = arith.constant 12 : index
    %c0_149 = arith.constant 0 : index
    %c0_150 = arith.constant 0 : index
    %323 = vector.load %arg11[%c12, %c0_149, %c0_150] : memref<29x1x32xf32, #tpu.memory_space<vmem>>, vector<1x1x32xf32>
    %324 = vector.shape_cast %323 : vector<1x1x32xf32> to vector<1x32xf32>
    %325 = vector.broadcast %324 : vector<1x32xf32> to vector<64x32xf32>
    %326 = arith.addf %322, %325 : vector<64x32xf32>
    %327 = arith.negf %326 : vector<64x32xf32>
    %328 = math.exp %327 : vector<64x32xf32>
    %cst_151 = arith.constant 1.000000e+00 : f32
    %329 = vector.broadcast %cst_151 : f32 to vector<64x32xf32>
    %330 = arith.addf %329, %328 : vector<64x32xf32>
    %331 = arith.divf %329, %330 : vector<64x32xf32>
    %332 = arith.mulf %326, %331 : vector<64x32xf32>
    %c9_152 = arith.constant 9 : index
    %c0_153 = arith.constant 0 : index
    %c0_154 = arith.constant 0 : index
    %333 = vector.load %arg10[%c9_152, %c0_153, %c0_154] : memref<27x32x32xbf16, #tpu.memory_space<vmem>>, vector<1x32x32xbf16>
    %334 = vector.shape_cast %333 : vector<1x32x32xbf16> to vector<32x32xbf16>
    %335 = arith.truncf %265 : vector<64x32xf32> to vector<64x32xbf16>
    %cst_155 = arith.constant dense<0.000000e+00> : vector<64x32xf32>
    %336 = tpu.matmul %335, %334, %cst_155 {dimension_numbers = #tpu.dot_dimension_numbers<[1], [0], [0], [1], [0, 0, 1, 1], [], []>} : vector<64x32xbf16>, vector<32x32xbf16>, vector<64x32xf32> -> vector<64x32xf32>
    %c11 = arith.constant 11 : index
    %c0_156 = arith.constant 0 : index
    %c0_157 = arith.constant 0 : index
    %337 = vector.load %arg11[%c11, %c0_156, %c0_157] : memref<29x1x32xf32, #tpu.memory_space<vmem>>, vector<1x1x32xf32>
    %338 = vector.shape_cast %337 : vector<1x1x32xf32> to vector<1x32xf32>
    %339 = vector.broadcast %338 : vector<1x32xf32> to vector<64x32xf32>
    %340 = arith.addf %336, %339 : vector<64x32xf32>
    %341 = arith.negf %340 : vector<64x32xf32>
    %342 = math.exp %341 : vector<64x32xf32>
    %cst_158 = arith.constant 1.000000e+00 : f32
    %343 = vector.broadcast %cst_158 : f32 to vector<64x32xf32>
    %344 = arith.addf %343, %342 : vector<64x32xf32>
    %345 = arith.divf %343, %344 : vector<64x32xf32>
    %346 = arith.mulf %340, %345 : vector<64x32xf32>
    %347 = arith.mulf %346, %318 : vector<64x32xf32>
    %c0_159 = arith.constant 0 : index
    %c0_160 = arith.constant 0 : index
    %348 = vector.load %arg2[%c0_159, %c0_160] : memref<64x128xbf16, #tpu.memory_space<vmem>>, vector<64x128xbf16>
    %c1_161 = arith.constant 1 : index
    %c0_162 = arith.constant 0 : index
    %c0_163 = arith.constant 0 : index
    %349 = vector.load %arg8[%c1_161, %c0_162, %c0_163] : memref<2x128x64xbf16, #tpu.memory_space<vmem>>, vector<1x128x64xbf16>
    %350 = vector.shape_cast %349 : vector<1x128x64xbf16> to vector<128x64xbf16>
    %cst_164 = arith.constant dense<0.000000e+00> : vector<64x64xf32>
    %351 = tpu.matmul %348, %350, %cst_164 {dimension_numbers = #tpu.dot_dimension_numbers<[1], [0], [0], [1], [0, 0, 1, 1], [], []>} : vector<64x128xbf16>, vector<128x64xbf16>, vector<64x64xf32> -> vector<64x64xf32>
    %c1_165 = arith.constant 1 : index
    %c0_166 = arith.constant 0 : index
    %c0_167 = arith.constant 0 : index
    %352 = vector.load %arg9[%c1_165, %c0_166, %c0_167] : memref<2x32x256xbf16, #tpu.memory_space<vmem>>, vector<1x32x256xbf16>
    %353 = vector.shape_cast %352 : vector<1x32x256xbf16> to vector<32x256xbf16>
    %354 = arith.truncf %347 : vector<64x32xf32> to vector<64x32xbf16>
    %cst_168 = arith.constant dense<0.000000e+00> : vector<64x256xf32>
    %355 = tpu.matmul %354, %353, %cst_168 {dimension_numbers = #tpu.dot_dimension_numbers<[1], [0], [0], [1], [0, 0, 1, 1], [], []>} : vector<64x32xbf16>, vector<32x256xbf16>, vector<64x256xf32> -> vector<64x256xf32>
    %356 = vector.extract_strided_slice %351 {offsets = [0, 0], sizes = [64, 8], strides = [1, 1]} : vector<64x64xf32> to vector<64x8xf32>
    %357 = arith.truncf %356 : vector<64x8xf32> to vector<64x8xbf16>
    %358 = tpu.concatenate %357, %357, %357, %357, %357, %357, %357, %357 in 1 : vector<64x8xbf16>, vector<64x8xbf16>, vector<64x8xbf16>, vector<64x8xbf16>, vector<64x8xbf16>, vector<64x8xbf16>, vector<64x8xbf16>, vector<64x8xbf16> -> vector<64x64xbf16>
    %359 = arith.mulf %358, %80 : vector<64x64xbf16>
    %360 = vector.extract_strided_slice %355 {offsets = [0, 0], sizes = [64, 32], strides = [1, 1]} : vector<64x256xf32> to vector<64x32xf32>
    %361 = vector.extract_strided_slice %351 {offsets = [0, 8], sizes = [64, 8], strides = [1, 1]} : vector<64x64xf32> to vector<64x8xf32>
    %362 = arith.truncf %361 : vector<64x8xf32> to vector<64x8xbf16>
    %363 = tpu.concatenate %362, %362, %362, %362, %362, %362, %362, %362 in 1 : vector<64x8xbf16>, vector<64x8xbf16>, vector<64x8xbf16>, vector<64x8xbf16>, vector<64x8xbf16>, vector<64x8xbf16>, vector<64x8xbf16>, vector<64x8xbf16> -> vector<64x64xbf16>
    %364 = arith.mulf %363, %80 : vector<64x64xbf16>
    %365 = vector.extract_strided_slice %355 {offsets = [0, 32], sizes = [64, 32], strides = [1, 1]} : vector<64x256xf32> to vector<64x32xf32>
    %366 = vector.extract_strided_slice %351 {offsets = [0, 16], sizes = [64, 8], strides = [1, 1]} : vector<64x64xf32> to vector<64x8xf32>
    %367 = arith.truncf %366 : vector<64x8xf32> to vector<64x8xbf16>
    %368 = tpu.concatenate %367, %367, %367, %367, %367, %367, %367, %367 in 1 : vector<64x8xbf16>, vector<64x8xbf16>, vector<64x8xbf16>, vector<64x8xbf16>, vector<64x8xbf16>, vector<64x8xbf16>, vector<64x8xbf16>, vector<64x8xbf16> -> vector<64x64xbf16>
    %369 = arith.mulf %368, %80 : vector<64x64xbf16>
    %370 = vector.extract_strided_slice %355 {offsets = [0, 64], sizes = [64, 32], strides = [1, 1]} : vector<64x256xf32> to vector<64x32xf32>
    %371 = vector.extract_strided_slice %351 {offsets = [0, 24], sizes = [64, 8], strides = [1, 1]} : vector<64x64xf32> to vector<64x8xf32>
    %372 = arith.truncf %371 : vector<64x8xf32> to vector<64x8xbf16>
    %373 = tpu.concatenate %372, %372, %372, %372, %372, %372, %372, %372 in 1 : vector<64x8xbf16>, vector<64x8xbf16>, vector<64x8xbf16>, vector<64x8xbf16>, vector<64x8xbf16>, vector<64x8xbf16>, vector<64x8xbf16>, vector<64x8xbf16> -> vector<64x64xbf16>
    %374 = arith.mulf %373, %80 : vector<64x64xbf16>
    %375 = vector.extract_strided_slice %355 {offsets = [0, 96], sizes = [64, 32], strides = [1, 1]} : vector<64x256xf32> to vector<64x32xf32>
    %376 = vector.extract_strided_slice %351 {offsets = [0, 32], sizes = [64, 8], strides = [1, 1]} : vector<64x64xf32> to vector<64x8xf32>
    %377 = arith.truncf %376 : vector<64x8xf32> to vector<64x8xbf16>
    %378 = tpu.concatenate %377, %377, %377, %377, %377, %377, %377, %377 in 1 : vector<64x8xbf16>, vector<64x8xbf16>, vector<64x8xbf16>, vector<64x8xbf16>, vector<64x8xbf16>, vector<64x8xbf16>, vector<64x8xbf16>, vector<64x8xbf16> -> vector<64x64xbf16>
    %379 = arith.mulf %378, %80 : vector<64x64xbf16>
    %380 = vector.extract_strided_slice %355 {offsets = [0, 128], sizes = [64, 32], strides = [1, 1]} : vector<64x256xf32> to vector<64x32xf32>
    %381 = vector.extract_strided_slice %351 {offsets = [0, 40], sizes = [64, 8], strides = [1, 1]} : vector<64x64xf32> to vector<64x8xf32>
    %382 = arith.truncf %381 : vector<64x8xf32> to vector<64x8xbf16>
    %383 = tpu.concatenate %382, %382, %382, %382, %382, %382, %382, %382 in 1 : vector<64x8xbf16>, vector<64x8xbf16>, vector<64x8xbf16>, vector<64x8xbf16>, vector<64x8xbf16>, vector<64x8xbf16>, vector<64x8xbf16>, vector<64x8xbf16> -> vector<64x64xbf16>
    %384 = arith.mulf %383, %80 : vector<64x64xbf16>
    %385 = vector.extract_strided_slice %355 {offsets = [0, 160], sizes = [64, 32], strides = [1, 1]} : vector<64x256xf32> to vector<64x32xf32>
    %386 = vector.extract_strided_slice %351 {offsets = [0, 48], sizes = [64, 8], strides = [1, 1]} : vector<64x64xf32> to vector<64x8xf32>
    %387 = arith.truncf %386 : vector<64x8xf32> to vector<64x8xbf16>
    %388 = tpu.concatenate %387, %387, %387, %387, %387, %387, %387, %387 in 1 : vector<64x8xbf16>, vector<64x8xbf16>, vector<64x8xbf16>, vector<64x8xbf16>, vector<64x8xbf16>, vector<64x8xbf16>, vector<64x8xbf16>, vector<64x8xbf16> -> vector<64x64xbf16>
    %389 = arith.mulf %388, %80 : vector<64x64xbf16>
    %390 = vector.extract_strided_slice %355 {offsets = [0, 192], sizes = [64, 32], strides = [1, 1]} : vector<64x256xf32> to vector<64x32xf32>
    %391 = vector.extract_strided_slice %351 {offsets = [0, 56], sizes = [64, 8], strides = [1, 1]} : vector<64x64xf32> to vector<64x8xf32>
    %392 = arith.truncf %391 : vector<64x8xf32> to vector<64x8xbf16>
    %393 = tpu.concatenate %392, %392, %392, %392, %392, %392, %392, %392 in 1 : vector<64x8xbf16>, vector<64x8xbf16>, vector<64x8xbf16>, vector<64x8xbf16>, vector<64x8xbf16>, vector<64x8xbf16>, vector<64x8xbf16>, vector<64x8xbf16> -> vector<64x64xbf16>
    %394 = arith.mulf %393, %80 : vector<64x64xbf16>
    %395 = vector.extract_strided_slice %355 {offsets = [0, 224], sizes = [64, 32], strides = [1, 1]} : vector<64x256xf32> to vector<64x32xf32>
    %396 = tpu.concatenate %359, %364, %369, %374, %379, %384, %389, %394 in 1 : vector<64x64xbf16>, vector<64x64xbf16>, vector<64x64xbf16>, vector<64x64xbf16>, vector<64x64xbf16>, vector<64x64xbf16>, vector<64x64xbf16>, vector<64x64xbf16> -> vector<64x512xbf16>
    %397 = tpu.concatenate %360, %365, %370, %375, %380, %385, %390, %395 in 0 : vector<64x32xf32>, vector<64x32xf32>, vector<64x32xf32>, vector<64x32xf32>, vector<64x32xf32>, vector<64x32xf32>, vector<64x32xf32>, vector<64x32xf32> -> vector<512x32xf32>
    %398 = arith.truncf %397 : vector<512x32xf32> to vector<512x32xbf16>
    %cst_169 = arith.constant dense<0.000000e+00> : vector<64x32xf32>
    %399 = tpu.matmul %396, %398, %cst_169 {dimension_numbers = #tpu.dot_dimension_numbers<[1], [0], [0], [1], [0, 0, 1, 1], [], []>} : vector<64x512xbf16>, vector<512x32xbf16>, vector<64x32xf32> -> vector<64x32xf32>
    %400 = arith.addf %332, %399 : vector<64x32xf32>
    %c11_170 = arith.constant 11 : index
    %c0_171 = arith.constant 0 : index
    %c0_172 = arith.constant 0 : index
    %401 = vector.load %arg10[%c11_170, %c0_171, %c0_172] : memref<27x32x32xbf16, #tpu.memory_space<vmem>>, vector<1x32x32xbf16>
    %402 = vector.shape_cast %401 : vector<1x32x32xbf16> to vector<32x32xbf16>
    %403 = arith.truncf %400 : vector<64x32xf32> to vector<64x32xbf16>
    %cst_173 = arith.constant dense<0.000000e+00> : vector<64x32xf32>
    %404 = tpu.matmul %403, %402, %cst_173 {dimension_numbers = #tpu.dot_dimension_numbers<[1], [0], [0], [1], [0, 0, 1, 1], [], []>} : vector<64x32xbf16>, vector<32x32xbf16>, vector<64x32xf32> -> vector<64x32xf32>
    %c13 = arith.constant 13 : index
    %c0_174 = arith.constant 0 : index
    %c0_175 = arith.constant 0 : index
    %405 = vector.load %arg11[%c13, %c0_174, %c0_175] : memref<29x1x32xf32, #tpu.memory_space<vmem>>, vector<1x1x32xf32>
    %406 = vector.shape_cast %405 : vector<1x1x32xf32> to vector<1x32xf32>
    %407 = vector.broadcast %406 : vector<1x32xf32> to vector<64x32xf32>
    %408 = arith.addf %404, %407 : vector<64x32xf32>
    %409 = arith.negf %408 : vector<64x32xf32>
    %410 = math.exp %409 : vector<64x32xf32>
    %cst_176 = arith.constant 1.000000e+00 : f32
    %411 = vector.broadcast %cst_176 : f32 to vector<64x32xf32>
    %412 = arith.addf %411, %410 : vector<64x32xf32>
    %413 = arith.divf %411, %412 : vector<64x32xf32>
    %414 = arith.mulf %408, %413 : vector<64x32xf32>
    %c12_177 = arith.constant 12 : index
    %c0_178 = arith.constant 0 : index
    %c0_179 = arith.constant 0 : index
    %415 = vector.load %arg10[%c12_177, %c0_178, %c0_179] : memref<27x32x32xbf16, #tpu.memory_space<vmem>>, vector<1x32x32xbf16>
    %416 = vector.shape_cast %415 : vector<1x32x32xbf16> to vector<32x32xbf16>
    %417 = arith.truncf %414 : vector<64x32xf32> to vector<64x32xbf16>
    %cst_180 = arith.constant dense<0.000000e+00> : vector<64x32xf32>
    %418 = tpu.matmul %417, %416, %cst_180 {dimension_numbers = #tpu.dot_dimension_numbers<[1], [0], [0], [1], [0, 0, 1, 1], [], []>} : vector<64x32xbf16>, vector<32x32xbf16>, vector<64x32xf32> -> vector<64x32xf32>
    %c14 = arith.constant 14 : index
    %c0_181 = arith.constant 0 : index
    %c0_182 = arith.constant 0 : index
    %419 = vector.load %arg11[%c14, %c0_181, %c0_182] : memref<29x1x32xf32, #tpu.memory_space<vmem>>, vector<1x1x32xf32>
    %420 = vector.shape_cast %419 : vector<1x1x32xf32> to vector<1x32xf32>
    %421 = vector.broadcast %420 : vector<1x32xf32> to vector<64x32xf32>
    %422 = arith.addf %418, %421 : vector<64x32xf32>
    %423 = arith.negf %422 : vector<64x32xf32>
    %424 = math.exp %423 : vector<64x32xf32>
    %cst_183 = arith.constant 1.000000e+00 : f32
    %425 = vector.broadcast %cst_183 : f32 to vector<64x32xf32>
    %426 = arith.addf %425, %424 : vector<64x32xf32>
    %427 = arith.divf %425, %426 : vector<64x32xf32>
    %428 = arith.mulf %422, %427 : vector<64x32xf32>
    %429 = arith.addf %400, %428 : vector<64x32xf32>
    %c13_184 = arith.constant 13 : index
    %c0_185 = arith.constant 0 : index
    %c0_186 = arith.constant 0 : index
    %430 = vector.load %arg10[%c13_184, %c0_185, %c0_186] : memref<27x32x32xbf16, #tpu.memory_space<vmem>>, vector<1x32x32xbf16>
    %431 = vector.shape_cast %430 : vector<1x32x32xbf16> to vector<32x32xbf16>
    %432 = arith.truncf %429 : vector<64x32xf32> to vector<64x32xbf16>
    %cst_187 = arith.constant dense<0.000000e+00> : vector<64x32xf32>
    %433 = tpu.matmul %432, %431, %cst_187 {dimension_numbers = #tpu.dot_dimension_numbers<[1], [0], [0], [1], [0, 0, 1, 1], [], []>} : vector<64x32xbf16>, vector<32x32xbf16>, vector<64x32xf32> -> vector<64x32xf32>
    %c15 = arith.constant 15 : index
    %c0_188 = arith.constant 0 : index
    %c0_189 = arith.constant 0 : index
    %434 = vector.load %arg11[%c15, %c0_188, %c0_189] : memref<29x1x32xf32, #tpu.memory_space<vmem>>, vector<1x1x32xf32>
    %435 = vector.shape_cast %434 : vector<1x1x32xf32> to vector<1x32xf32>
    %436 = vector.broadcast %435 : vector<1x32xf32> to vector<64x32xf32>
    %437 = arith.addf %433, %436 : vector<64x32xf32>
    %438 = arith.negf %437 : vector<64x32xf32>
    %439 = math.exp %438 : vector<64x32xf32>
    %cst_190 = arith.constant 1.000000e+00 : f32
    %440 = vector.broadcast %cst_190 : f32 to vector<64x32xf32>
    %441 = arith.addf %440, %439 : vector<64x32xf32>
    %442 = arith.divf %440, %441 : vector<64x32xf32>
    %443 = arith.mulf %437, %442 : vector<64x32xf32>
    %444 = arith.addf %443, %265 : vector<64x32xf32>
    %c14_191 = arith.constant 14 : index
    %c0_192 = arith.constant 0 : index
    %c0_193 = arith.constant 0 : index
    %445 = vector.load %arg10[%c14_191, %c0_192, %c0_193] : memref<27x32x32xbf16, #tpu.memory_space<vmem>>, vector<1x32x32xbf16>
    %446 = vector.shape_cast %445 : vector<1x32x32xbf16> to vector<32x32xbf16>
    %447 = arith.truncf %444 : vector<64x32xf32> to vector<64x32xbf16>
    %cst_194 = arith.constant dense<0.000000e+00> : vector<64x32xf32>
    %448 = tpu.matmul %447, %446, %cst_194 {dimension_numbers = #tpu.dot_dimension_numbers<[1], [0], [0], [1], [0, 0, 1, 1], [], []>} : vector<64x32xbf16>, vector<32x32xbf16>, vector<64x32xf32> -> vector<64x32xf32>
    %c16 = arith.constant 16 : index
    %c0_195 = arith.constant 0 : index
    %c0_196 = arith.constant 0 : index
    %449 = vector.load %arg11[%c16, %c0_195, %c0_196] : memref<29x1x32xf32, #tpu.memory_space<vmem>>, vector<1x1x32xf32>
    %450 = vector.shape_cast %449 : vector<1x1x32xf32> to vector<1x32xf32>
    %451 = vector.broadcast %450 : vector<1x32xf32> to vector<64x32xf32>
    %452 = arith.addf %448, %451 : vector<64x32xf32>
    %453 = arith.negf %452 : vector<64x32xf32>
    %454 = math.exp %453 : vector<64x32xf32>
    %cst_197 = arith.constant 1.000000e+00 : f32
    %455 = vector.broadcast %cst_197 : f32 to vector<64x32xf32>
    %456 = arith.addf %455, %454 : vector<64x32xf32>
    %457 = arith.divf %455, %456 : vector<64x32xf32>
    %458 = arith.mulf %452, %457 : vector<64x32xf32>
    %c15_198 = arith.constant 15 : index
    %c0_199 = arith.constant 0 : index
    %c0_200 = arith.constant 0 : index
    %459 = vector.load %arg10[%c15_198, %c0_199, %c0_200] : memref<27x32x32xbf16, #tpu.memory_space<vmem>>, vector<1x32x32xbf16>
    %460 = vector.shape_cast %459 : vector<1x32x32xbf16> to vector<32x32xbf16>
    %461 = arith.truncf %458 : vector<64x32xf32> to vector<64x32xbf16>
    %cst_201 = arith.constant dense<0.000000e+00> : vector<64x32xf32>
    %462 = tpu.matmul %461, %460, %cst_201 {dimension_numbers = #tpu.dot_dimension_numbers<[1], [0], [0], [1], [0, 0, 1, 1], [], []>} : vector<64x32xbf16>, vector<32x32xbf16>, vector<64x32xf32> -> vector<64x32xf32>
    %c17 = arith.constant 17 : index
    %c0_202 = arith.constant 0 : index
    %c0_203 = arith.constant 0 : index
    %463 = vector.load %arg11[%c17, %c0_202, %c0_203] : memref<29x1x32xf32, #tpu.memory_space<vmem>>, vector<1x1x32xf32>
    %464 = vector.shape_cast %463 : vector<1x1x32xf32> to vector<1x32xf32>
    %465 = vector.broadcast %464 : vector<1x32xf32> to vector<64x32xf32>
    %466 = arith.addf %462, %465 : vector<64x32xf32>
    %467 = arith.negf %466 : vector<64x32xf32>
    %468 = math.exp %467 : vector<64x32xf32>
    %cst_204 = arith.constant 1.000000e+00 : f32
    %469 = vector.broadcast %cst_204 : f32 to vector<64x32xf32>
    %470 = arith.addf %469, %468 : vector<64x32xf32>
    %471 = arith.divf %469, %470 : vector<64x32xf32>
    %472 = arith.mulf %466, %471 : vector<64x32xf32>
    %473 = arith.addf %444, %472 : vector<64x32xf32>
    %c16_205 = arith.constant 16 : index
    %c0_206 = arith.constant 0 : index
    %c0_207 = arith.constant 0 : index
    %474 = vector.load %arg10[%c16_205, %c0_206, %c0_207] : memref<27x32x32xbf16, #tpu.memory_space<vmem>>, vector<1x32x32xbf16>
    %475 = vector.shape_cast %474 : vector<1x32x32xbf16> to vector<32x32xbf16>
    %476 = arith.truncf %473 : vector<64x32xf32> to vector<64x32xbf16>
    %cst_208 = arith.constant dense<0.000000e+00> : vector<64x32xf32>
    %477 = tpu.matmul %476, %475, %cst_208 {dimension_numbers = #tpu.dot_dimension_numbers<[1], [0], [0], [1], [0, 0, 1, 1], [], []>} : vector<64x32xbf16>, vector<32x32xbf16>, vector<64x32xf32> -> vector<64x32xf32>
    %c18_209 = arith.constant 18 : index
    %c0_210 = arith.constant 0 : index
    %c0_211 = arith.constant 0 : index
    %478 = vector.load %arg11[%c18_209, %c0_210, %c0_211] : memref<29x1x32xf32, #tpu.memory_space<vmem>>, vector<1x1x32xf32>
    %479 = vector.shape_cast %478 : vector<1x1x32xf32> to vector<1x32xf32>
    %480 = vector.broadcast %479 : vector<1x32xf32> to vector<64x32xf32>
    %481 = arith.addf %477, %480 : vector<64x32xf32>
    %482 = arith.negf %481 : vector<64x32xf32>
    %483 = math.exp %482 : vector<64x32xf32>
    %cst_212 = arith.constant 1.000000e+00 : f32
    %484 = vector.broadcast %cst_212 : f32 to vector<64x32xf32>
    %485 = arith.addf %484, %483 : vector<64x32xf32>
    %486 = arith.divf %484, %485 : vector<64x32xf32>
    %487 = arith.mulf %481, %486 : vector<64x32xf32>
    %c17_213 = arith.constant 17 : index
    %c0_214 = arith.constant 0 : index
    %c0_215 = arith.constant 0 : index
    %488 = vector.load %arg10[%c17_213, %c0_214, %c0_215] : memref<27x32x32xbf16, #tpu.memory_space<vmem>>, vector<1x32x32xbf16>
    %489 = vector.shape_cast %488 : vector<1x32x32xbf16> to vector<32x32xbf16>
    %490 = arith.truncf %487 : vector<64x32xf32> to vector<64x32xbf16>
    %cst_216 = arith.constant dense<0.000000e+00> : vector<64x32xf32>
    %491 = tpu.matmul %490, %489, %cst_216 {dimension_numbers = #tpu.dot_dimension_numbers<[1], [0], [0], [1], [0, 0, 1, 1], [], []>} : vector<64x32xbf16>, vector<32x32xbf16>, vector<64x32xf32> -> vector<64x32xf32>
    %c19_217 = arith.constant 19 : index
    %c0_218 = arith.constant 0 : index
    %c0_219 = arith.constant 0 : index
    %492 = vector.load %arg11[%c19_217, %c0_218, %c0_219] : memref<29x1x32xf32, #tpu.memory_space<vmem>>, vector<1x1x32xf32>
    %493 = vector.shape_cast %492 : vector<1x1x32xf32> to vector<1x32xf32>
    %494 = vector.broadcast %493 : vector<1x32xf32> to vector<64x32xf32>
    %495 = arith.addf %491, %494 : vector<64x32xf32>
    %496 = arith.negf %495 : vector<64x32xf32>
    %497 = math.exp %496 : vector<64x32xf32>
    %cst_220 = arith.constant 1.000000e+00 : f32
    %498 = vector.broadcast %cst_220 : f32 to vector<64x32xf32>
    %499 = arith.addf %498, %497 : vector<64x32xf32>
    %500 = arith.divf %498, %499 : vector<64x32xf32>
    %501 = arith.mulf %495, %500 : vector<64x32xf32>
    %502 = arith.addf %473, %501 : vector<64x32xf32>
    %503 = vector.extract_strided_slice %2 {offsets = [0, 160], sizes = [64, 32], strides = [1, 1]} : vector<64x192xf32> to vector<64x32xf32>
    %504 = arith.mulf %503, %502 : vector<64x32xf32>
    %c0_221 = arith.constant 0 : index
    %c0_222 = arith.constant 0 : index
    %505 = vector.load %arg4[%c0_221, %c0_222] : memref<8x64xbf16, #tpu.memory_space<vmem>>, vector<8x64xbf16>
    %506 = arith.truncf %504 : vector<64x32xf32> to vector<64x32xbf16>
    %cst_223 = arith.constant dense<0.000000e+00> : vector<8x32xf32>
    %507 = tpu.matmul %505, %506, %cst_223 {dimension_numbers = #tpu.dot_dimension_numbers<[1], [0], [0], [1], [0, 0, 1, 1], [], []>} : vector<8x64xbf16>, vector<64x32xbf16>, vector<8x32xf32> -> vector<8x32xf32>
    %c24_224 = arith.constant 24 : index
    %c0_225 = arith.constant 0 : index
    %c0_226 = arith.constant 0 : index
    %508 = vector.load %arg10[%c24_224, %c0_225, %c0_226] : memref<27x32x32xbf16, #tpu.memory_space<vmem>>, vector<1x32x32xbf16>
    %509 = vector.shape_cast %508 : vector<1x32x32xbf16> to vector<32x32xbf16>
    %510 = arith.truncf %507 : vector<8x32xf32> to vector<8x32xbf16>
    %cst_227 = arith.constant dense<0.000000e+00> : vector<8x32xf32>
    %511 = tpu.matmul %510, %509, %cst_227 {dimension_numbers = #tpu.dot_dimension_numbers<[1], [0], [0], [1], [0, 0, 1, 1], [], []>} : vector<8x32xbf16>, vector<32x32xbf16>, vector<8x32xf32> -> vector<8x32xf32>
    %c26 = arith.constant 26 : index
    %c0_228 = arith.constant 0 : index
    %c0_229 = arith.constant 0 : index
    %512 = vector.load %arg11[%c26, %c0_228, %c0_229] : memref<29x1x32xf32, #tpu.memory_space<vmem>>, vector<1x1x32xf32>
    %513 = vector.shape_cast %512 : vector<1x1x32xf32> to vector<1x32xf32>
    %514 = vector.broadcast %513 : vector<1x32xf32> to vector<8x32xf32>
    %515 = arith.addf %511, %514 : vector<8x32xf32>
    %516 = arith.negf %515 : vector<8x32xf32>
    %517 = math.exp %516 : vector<8x32xf32>
    %cst_230 = arith.constant 1.000000e+00 : f32
    %518 = vector.broadcast %cst_230 : f32 to vector<8x32xf32>
    %519 = arith.addf %518, %517 : vector<8x32xf32>
    %520 = arith.divf %518, %519 : vector<8x32xf32>
    %521 = arith.mulf %515, %520 : vector<8x32xf32>
    %c25_231 = arith.constant 25 : index
    %c0_232 = arith.constant 0 : index
    %c0_233 = arith.constant 0 : index
    %522 = vector.load %arg10[%c25_231, %c0_232, %c0_233] : memref<27x32x32xbf16, #tpu.memory_space<vmem>>, vector<1x32x32xbf16>
    %523 = vector.shape_cast %522 : vector<1x32x32xbf16> to vector<32x32xbf16>
    %524 = arith.truncf %521 : vector<8x32xf32> to vector<8x32xbf16>
    %cst_234 = arith.constant dense<0.000000e+00> : vector<8x32xf32>
    %525 = tpu.matmul %524, %523, %cst_234 {dimension_numbers = #tpu.dot_dimension_numbers<[1], [0], [0], [1], [0, 0, 1, 1], [], []>} : vector<8x32xbf16>, vector<32x32xbf16>, vector<8x32xf32> -> vector<8x32xf32>
    %c27 = arith.constant 27 : index
    %c0_235 = arith.constant 0 : index
    %c0_236 = arith.constant 0 : index
    %526 = vector.load %arg11[%c27, %c0_235, %c0_236] : memref<29x1x32xf32, #tpu.memory_space<vmem>>, vector<1x1x32xf32>
    %527 = vector.shape_cast %526 : vector<1x1x32xf32> to vector<1x32xf32>
    %528 = vector.broadcast %527 : vector<1x32xf32> to vector<8x32xf32>
    %529 = arith.addf %525, %528 : vector<8x32xf32>
    %530 = arith.negf %529 : vector<8x32xf32>
    %531 = math.exp %530 : vector<8x32xf32>
    %cst_237 = arith.constant 1.000000e+00 : f32
    %532 = vector.broadcast %cst_237 : f32 to vector<8x32xf32>
    %533 = arith.addf %532, %531 : vector<8x32xf32>
    %534 = arith.divf %532, %533 : vector<8x32xf32>
    %535 = arith.mulf %529, %534 : vector<8x32xf32>
    %c26_238 = arith.constant 26 : index
    %c0_239 = arith.constant 0 : index
    %c0_240 = arith.constant 0 : index
    %536 = vector.load %arg10[%c26_238, %c0_239, %c0_240] : memref<27x32x32xbf16, #tpu.memory_space<vmem>>, vector<1x32x32xbf16>
    %537 = vector.shape_cast %536 : vector<1x32x32xbf16> to vector<32x32xbf16>
    %538 = arith.truncf %535 : vector<8x32xf32> to vector<8x32xbf16>
    %cst_241 = arith.constant dense<0.000000e+00> : vector<8x32xf32>
    %539 = tpu.matmul %538, %537, %cst_241 {dimension_numbers = #tpu.dot_dimension_numbers<[1], [0], [0], [1], [0, 0, 1, 1], [], []>} : vector<8x32xbf16>, vector<32x32xbf16>, vector<8x32xf32> -> vector<8x32xf32>
    %c28 = arith.constant 28 : index
    %c0_242 = arith.constant 0 : index
    %c0_243 = arith.constant 0 : index
    %540 = vector.load %arg11[%c28, %c0_242, %c0_243] : memref<29x1x32xf32, #tpu.memory_space<vmem>>, vector<1x1x32xf32>
    %541 = vector.shape_cast %540 : vector<1x1x32xf32> to vector<1x32xf32>
    %542 = vector.broadcast %541 : vector<1x32xf32> to vector<8x32xf32>
    %543 = arith.addf %539, %542 : vector<8x32xf32>
    %544 = arith.negf %543 : vector<8x32xf32>
    %545 = math.exp %544 : vector<8x32xf32>
    %cst_244 = arith.constant 1.000000e+00 : f32
    %546 = vector.broadcast %cst_244 : f32 to vector<8x32xf32>
    %547 = arith.addf %546, %545 : vector<8x32xf32>
    %548 = arith.divf %546, %547 : vector<8x32xf32>
    %549 = arith.mulf %543, %548 : vector<8x32xf32>
    %c2_245 = arith.constant 2 : index
    %c0_246 = arith.constant 0 : index
    %c0_247 = arith.constant 0 : index
    %550 = vector.load %arg12[%c2_245, %c0_246, %c0_247] : memref<3x32x1xbf16, #tpu.memory_space<vmem>>, vector<1x32x1xbf16>
    %551 = vector.shape_cast %550 : vector<1x32x1xbf16> to vector<32x1xbf16>
    %552 = arith.truncf %549 : vector<8x32xf32> to vector<8x32xbf16>
    %cst_248 = arith.constant dense<0.000000e+00> : vector<8x1xf32>
    %553 = tpu.matmul %552, %551, %cst_248 {dimension_numbers = #tpu.dot_dimension_numbers<[1], [0], [0], [1], [0, 0, 1, 1], [], []>} : vector<8x32xbf16>, vector<32x1xbf16>, vector<8x1xf32> -> vector<8x1xf32>
    %554 = arith.addf %317, %553 : vector<8x1xf32>
    %c0_249 = arith.constant 0 : index
    %c0_250 = arith.constant 0 : index
    %555 = vector.load %arg3[%c0_249, %c0_250] : memref<2x8xbf16, #tpu.memory_space<vmem>>, vector<2x8xbf16>
    %556 = arith.truncf %554 : vector<8x1xf32> to vector<8x1xbf16>
    %cst_251 = arith.constant dense<0.000000e+00> : vector<2x1xf32>
    %557 = tpu.matmul %555, %556, %cst_251 {dimension_numbers = #tpu.dot_dimension_numbers<[1], [0], [0], [1], [0, 0, 1, 1], [], []>} : vector<2x8xbf16>, vector<8x1xbf16>, vector<2x1xf32> -> vector<2x1xf32>
    %558 = arith.negf %557 : vector<2x1xf32>
    %559 = math.exp %558 : vector<2x1xf32>
    %cst_252 = arith.constant 1.000000e+00 : f32
    %560 = vector.broadcast %cst_252 : f32 to vector<2x1xf32>
    %561 = arith.addf %560, %559 : vector<2x1xf32>
    %562 = arith.divf %560, %561 : vector<2x1xf32>
    %c0_253 = arith.constant 0 : index
    %c0_254 = arith.constant 0 : index
    %563 = vector.load %arg13[%c0_253, %c0_254] : memref<2x1xf32, #tpu.memory_space<vmem>>, vector<2x1xf32>
    tpu.vector_store %arg13[%c0_253, %c0_254], %562 {strides = array<i32>} : memref<2x1xf32, #tpu.memory_space<vmem>>, vector<2x1xf32>,
    return
  }
}

</mosaic_0001>

<llo_original>
// kernel: dimenet_predictor.1
$region0: #{dimenet_predictor.1}
  #allocation0 [shape = 'u32[]', space=smem, size = 0x4, offset = 0x4, fixed_abs, tag = 'smem constant byte address 0x4 - core index']
  #allocation1 [shape = 'u32[144,128]{1,0:T(1,128)}', space=vmem, size = 0x12000, scoped, tag = 'internal scratch']
  %s0 = inlined_call_operand.vmem [shape: bf16[64,64], index: 0, kind: input, shape index: {}]
  %s1 = inlined_call_operand.vmem [shape: bf16[64,4], index: 1, kind: input, shape index: {}]
  %s2 = inlined_call_operand.vmem [shape: bf16[64,128], index: 2, kind: input, shape index: {}]
  %s3 = inlined_call_operand.vmem [shape: bf16[2,8], index: 3, kind: input, shape index: {}]
  %s4 = inlined_call_operand.vmem [shape: bf16[8,64], index: 4, kind: input, shape index: {}]
  %s5 = inlined_call_operand.vmem [shape: bf16[64,64], index: 5, kind: input, shape index: {}]
  %s6 = inlined_call_operand.vmem [shape: bf16[4,192], index: 6, kind: input, shape index: {}]
  %s7 = inlined_call_operand.vmem [shape: bf16[96,32], index: 7, kind: input, shape index: {}]
  %s8 = inlined_call_operand.vmem [shape: bf16[2,128,64], index: 8, kind: input, shape index: {}]
  %s9 = inlined_call_operand.vmem [shape: bf16[2,32,256], index: 9, kind: input, shape index: {}]
  %s10 = inlined_call_operand.vmem [shape: bf16[27,32,32], index: 10, kind: input, shape index: {}]
  %s11 = inlined_call_operand.vmem [shape: f32[29,1,32], index: 11, kind: input, shape index: {}]
  %s12 = inlined_call_operand.vmem [shape: bf16[3,32,1], index: 12, kind: input, shape index: {}]
  %s13 = inlined_call_operand.vmem [shape: f32[2,1], index: 13, kind: output, shape index: {}]
  %s14 = sld [smem:[#allocation0]]
  $region62: #{dimenet_predictor.1} parent=0
    _
  %s16 = ssub.s32 1, %s14
  %s17 = scalar_select 0, %s16, %s14
  // Predicated region
  $region2: #{dimenet_predictor.1} parent=0 // pred_check
    _
  $region3: #{dimenet_predictor.1} parent=0 // pred_check_branch
    %19 = sbr.rel (0) target = $region5
  $region4: #{dimenet_predictor.1} parent=0 // pred_region
    _
  $region5: #{dimenet_predictor.1} parent=0 // pred_fallthru
    _
  // Predicated region
  $region6: #{dimenet_predictor.1} parent=0 // pred_check
    _
  $region7: #{dimenet_predictor.1} parent=0 // pred_check_branch
    %21 = sbr.rel (0) target = $region9
  $region8: #{dimenet_predictor.1} parent=0 // pred_region
    _
  $region9: #{dimenet_predictor.1} parent=0 // pred_fallthru
    _
  // Predicated region
  $region10: #{dimenet_predictor.1} parent=0 // pred_check
    _
  $region11: #{dimenet_predictor.1} parent=0 // pred_check_branch
    %23 = sbr.rel (0) target = $region13
  $region12: #{dimenet_predictor.1} parent=0 // pred_region
    _
  $region13: #{dimenet_predictor.1} parent=0 // pred_fallthru
    _
  // Predicated region
  $region14: #{dimenet_predictor.1} parent=0 // pred_check
    _
  $region15: #{dimenet_predictor.1} parent=0 // pred_check_branch
    %25 = sbr.rel (0) target = $region17
  $region16: #{dimenet_predictor.1} parent=0 // pred_region
    _
  $region17: #{dimenet_predictor.1} parent=0 // pred_fallthru
    _
  // Predicated region
  $region18: #{dimenet_predictor.1} parent=0 // pred_check
    _
  $region19: #{dimenet_predictor.1} parent=0 // pred_check_branch
    %27 = sbr.rel (0) target = $region21
  $region20: #{dimenet_predictor.1} parent=0 // pred_region
    _
  $region21: #{dimenet_predictor.1} parent=0 // pred_fallthru
    _
  // Predicated region
  $region22: #{dimenet_predictor.1} parent=0 // pred_check
    _
  $region23: #{dimenet_predictor.1} parent=0 // pred_check_branch
    %29 = sbr.rel (0) target = $region25
  $region24: #{dimenet_predictor.1} parent=0 // pred_region
    _
  $region25: #{dimenet_predictor.1} parent=0 // pred_fallthru
    _
  // Predicated region
  $region26: #{dimenet_predictor.1} parent=0 // pred_check
    _
  $region27: #{dimenet_predictor.1} parent=0 // pred_check_branch
    %31 = sbr.rel (0) target = $region29
  $region28: #{dimenet_predictor.1} parent=0 // pred_region
    _
  $region29: #{dimenet_predictor.1} parent=0 // pred_fallthru
    _
  // Predicated region
  $region30: #{dimenet_predictor.1} parent=0 // pred_check
    _
  $region31: #{dimenet_predictor.1} parent=0 // pred_check_branch
    %33 = sbr.rel (0) target = $region33
  $region32: #{dimenet_predictor.1} parent=0 // pred_region
    _
  $region33: #{dimenet_predictor.1} parent=0 // pred_fallthru
    _
  // Predicated region
  $region34: #{dimenet_predictor.1} parent=0 // pred_check
    _
  $region35: #{dimenet_predictor.1} parent=0 // pred_check_branch
    %35 = sbr.rel (0) target = $region37
  $region36: #{dimenet_predictor.1} parent=0 // pred_region
    _
  $region37: #{dimenet_predictor.1} parent=0 // pred_fallthru
    _
  // Predicated region
  $region38: #{dimenet_predictor.1} parent=0 // pred_check
    _
  $region39: #{dimenet_predictor.1} parent=0 // pred_check_branch
    %37 = sbr.rel (0) target = $region41
  $region40: #{dimenet_predictor.1} parent=0 // pred_region
    _
  $region41: #{dimenet_predictor.1} parent=0 // pred_fallthru
    _
  // Predicated region
  $region42: #{dimenet_predictor.1} parent=0 // pred_check
    _
  $region43: #{dimenet_predictor.1} parent=0 // pred_check_branch
    %39 = sbr.rel (0) target = $region45
  $region44: #{dimenet_predictor.1} parent=0 // pred_region
    _
  $region45: #{dimenet_predictor.1} parent=0 // pred_fallthru
    _
  // Predicated region
  $region46: #{dimenet_predictor.1} parent=0 // pred_check
    _
  $region47: #{dimenet_predictor.1} parent=0 // pred_check_branch
    %41 = sbr.rel (0) target = $region49
  $region48: #{dimenet_predictor.1} parent=0 // pred_region
    _
  $region49: #{dimenet_predictor.1} parent=0 // pred_fallthru
    _
  // Predicated region
  $region50: #{dimenet_predictor.1} parent=0 // pred_check
    _
  $region51: #{dimenet_predictor.1} parent=0 // pred_check_branch
    %43 = sbr.rel (0) target = $region53
  $region52: #{dimenet_predictor.1} parent=0 // pred_region
    _
  $region53: #{dimenet_predictor.1} parent=0 // pred_fallthru
    _
  %v45 = vld [vmem:[%s1] sm:$0xf]
  %v46 = vld [vmem:[%s1 + $0x4] sm:$0xf]
  %v47 = vld [vmem:[%s1 + $0x8] sm:$0xf]
  %v48 = vld [vmem:[%s1 + $0xc] sm:$0xf]
  %v49 = vld [vmem:[%s1 + $0x10] sm:$0xf]
  %v50 = vld [vmem:[%s1 + $0x14] sm:$0xf]
  %v51 = vld [vmem:[%s1 + $0x18] sm:$0xf]
  %v52 = vld [vmem:[%s1 + $0x1c] sm:$0xf]
  %v53 = vld [vmem:[%s6] sm:$0xf]
  %v62 = vunpack.c.l.b16 %v45
  %v63 = vunpack.c.l.b16 %v46
  %v64 = vunpack.c.l.b16 %v47
  %v65 = vunpack.c.l.b16 %v48
  %v66 = vunpack.c.l.b16 %v49
  %v67 = vunpack.c.l.b16 %v50
  %v68 = vunpack.c.l.b16 %v51
  %v69 = vunpack.c.l.b16 %v52
  %v70 = vpack.c.b16 %v63, %v62
  %v71 = vpack.c.b16 %v65, %v64
  %v72 = vpack.c.b16 %v67, %v66
  %v73 = vpack.c.b16 %v69, %v68
  %v76 = vunpack.c.l.s4 1983009808
  %v77 = vunpack.c.0.s8 %v76
  %v78 = vlaneseq
  %v79 = vshrl.u32 %v78, 7
  %v80 = vsub.s32 %v77, %v79
  %v81 = vrot.slane %v53, %v80
  %v82 = vcombine.high %v81, %v81
  %vm83 = vcmask 31744
  %v85 = vsel %vm83, %v70, 0
  %v88 = vsel %vm83, %v71, 0
  %v91 = vsel %vm83, %v72, 0
  %v94 = vsel %vm83, %v73, 0
  %vm96 = vcmask 1041408
  %v98 = vsel %vm96, %v81, 0
  %v101 = vsel %vm96, %v82, 0
  %103 = vmatprep.subr.bf16.mxu0 %v101
  %104 = vmatpush1.bf16.msra.mxu0 %v98
  %105 = vmatprep.subr.bf16.mxu0 0
  %106 = vmatpush1.bf16.msra.mxu0 0
  %107 = vmatprep.subr.bf16.mxu0 0
  %108 = vmatpush1.bf16.msra.mxu0 0
  %109 = vmatprep.subr.bf16.mxu0 0
  %110 = vmatpush1.bf16.msra.mxu0 0
  %111 = vmatprep.subr.bf16.mxu0 0
  %112 = vmatpush1.bf16.msra.mxu0 0
  %113 = vmatprep.subr.bf16.mxu0 0
  %114 = vmatpush1.bf16.msra.mxu0 0
  %115 = vmatprep.subr.bf16.mxu0 0
  %116 = vmatpush1.bf16.msra.mxu0 0
  %117 = vmatprep.subr.bf16.mxu0 0
  %118 = vmatpush1.bf16.msra.mxu0 0
  %119 = vmatprep.subr.bf16.mxu0 0
  %120 = vmatpush1.bf16.msra.mxu0 0
  %121 = vmatprep.subr.bf16.mxu0 0
  %122 = vmatpush1.bf16.msra.mxu0 0
  %123 = vmatprep.subr.bf16.mxu0 0
  %124 = vmatpush1.bf16.msra.mxu0 0
  %125 = vmatprep.subr.bf16.mxu0 0
  %126 = vmatpush1.bf16.msra.mxu0 0
  %127 = vmatprep.subr.bf16.mxu0 0
  %128 = vmatpush1.bf16.msra.mxu0 0
  %129 = vmatprep.subr.bf16.mxu0 0
  %130 = vmatpush1.bf16.msra.mxu0 0
  %131 = vmatprep.subr.bf16.mxu0 0
  %132 = vmatpush1.bf16.msra.mxu0 0
  %133 = vmatprep.subr.bf16.mxu0 0
  %134 = vmatpush1.bf16.msra.mxu0 0
  %135 = vmatprep.mubr.bf16.mxu0 0
  %136 = vmatmul.mubr.bf16.gmra.mrb[0].mxu0 %v85
  %v137 = vpop.f32.mrb[0].mxu0
  %v138 = vadd.f32 0.0, %v137
  %v139 = vpop.f32.mrb[0].mxu0
  %v140 = vadd.f32 0.0, %v139
  %v141 = vpop.f32.mrb[0].mxu0
  %v142 = vadd.f32 0.0, %v141
  %v143 = vpop.f32.mrb[0].mxu0
  %v144 = vadd.f32 0.0, %v143
  %145 = vmatprep.mubr.bf16.mxu0 0
  %146 = vmatmul.mubr.bf16.gmra.mrb[0].mxu0 %v88
  %v147 = vpop.f32.mrb[0].mxu0
  %v148 = vadd.f32 0.0, %v147
  %v149 = vpop.f32.mrb[0].mxu0
  %v150 = vadd.f32 0.0, %v149
  %v151 = vpop.f32.mrb[0].mxu0
  %v152 = vadd.f32 0.0, %v151
  %v153 = vpop.f32.mrb[0].mxu0
  %v154 = vadd.f32 0.0, %v153
  %155 = vmatprep.mubr.bf16.mxu0 0
  %156 = vmatmul.mubr.bf16.gmra.mrb[0].mxu0 %v91
  %v157 = vpop.f32.mrb[0].mxu0
  %v158 = vadd.f32 0.0, %v157
  %v159 = vpop.f32.mrb[0].mxu0
  %v160 = vadd.f32 0.0, %v159
  %v161 = vpop.f32.mrb[0].mxu0
  %v162 = vadd.f32 0.0, %v161
  %v163 = vpop.f32.mrb[0].mxu0
  %v164 = vadd.f32 0.0, %v163
  %165 = vmatprep.mubr.bf16.mxu0 0
  %166 = vmatmul.mubr.bf16.gmra.mrb[0].mxu0 %v94
  %v167 = vpop.f32.mrb[0].mxu0
  %v168 = vadd.f32 0.0, %v167
  %v169 = vpop.f32.mrb[0].mxu0
  %v170 = vadd.f32 0.0, %v169
  %v171 = vpop.f32.mrb[0].mxu0
  %v172 = vadd.f32 0.0, %v171
  %v173 = vpop.f32.mrb[0].mxu0
  %v174 = vadd.f32 0.0, %v173
  %175 = vdwg.mxu0
  %v176 = vld [vmem:[%s11] sm:$0x1]
  %v178 = vlaneseq
  %v179 = vshrl.u32 %v178, 7
  %v180 = vsub.s32 0, %v179
  %v181 = vrot.slane %v176, %v180
  %v183 = vadd.f32 %v138, %v181
  %v184 = vadd.f32 %v142, %v181
  %v185 = vadd.f32 %v148, %v181
  %v186 = vadd.f32 %v152, %v181
  %v187 = vadd.f32 %v158, %v181
  %v188 = vadd.f32 %v162, %v181
  %v189 = vadd.f32 %v168, %v181
  %v190 = vadd.f32 %v172, %v181
  %v191 = vxor.u32 %v183, 2147483648
  %v192 = vxor.u32 %v184, 2147483648
  %v193 = vxor.u32 %v185, 2147483648
  %v194 = vxor.u32 %v186, 2147483648
  %v195 = vxor.u32 %v187, 2147483648
  %v196 = vxor.u32 %v188, 2147483648
  %v197 = vxor.u32 %v189, 2147483648
  %v198 = vxor.u32 %v190, 2147483648
  %v199 = vmul.f32 %v191, 1.442695
  %v200 = vpow.pop %v199
  %v201 = vmul.f32 %v192, 1.442695
  %v202 = vpow.pop %v201
  %v203 = vmul.f32 %v193, 1.442695
  %v204 = vpow.pop %v203
  %v205 = vmul.f32 %v194, 1.442695
  %v206 = vpow.pop %v205
  %v207 = vmul.f32 %v195, 1.442695
  %v208 = vpow.pop %v207
  %v209 = vmul.f32 %v196, 1.442695
  %v210 = vpow.pop %v209
  %v211 = vmul.f32 %v197, 1.442695
  %v212 = vpow.pop %v211
  %v213 = vmul.f32 %v198, 1.442695
  %v214 = vpow.pop %v213
  %v215 = vadd.f32 %v200, 1.0
  %v216 = vadd.f32 %v202, 1.0
  %v217 = vadd.f32 %v204, 1.0
  %v218 = vadd.f32 %v206, 1.0
  %v219 = vadd.f32 %v208, 1.0
  %v220 = vadd.f32 %v210, 1.0
  %v221 = vadd.f32 %v212, 1.0
  %v222 = vadd.f32 %v214, 1.0
  %v223 = vrcp.pop %v215
  %v224 = vmul.f32 1.0, %v223
  %v225 = vrcp.pop %v216
  %v226 = vmul.f32 1.0, %v225
  %v227 = vrcp.pop %v217
  %v228 = vmul.f32 1.0, %v227
  %v229 = vrcp.pop %v218
  %v230 = vmul.f32 1.0, %v229
  %v231 = vrcp.pop %v219
  %v232 = vmul.f32 1.0, %v231
  %v233 = vrcp.pop %v220
  %v234 = vmul.f32 1.0, %v233
  %v235 = vrcp.pop %v221
  %v236 = vmul.f32 1.0, %v235
  %v237 = vrcp.pop %v222
  %v238 = vmul.f32 1.0, %v237
  %v239 = vmul.f32 %v183, %v224
  %v240 = vmul.f32 %v184, %v226
  %v241 = vmul.f32 %v185, %v228
  %v242 = vmul.f32 %v186, %v230
  %v243 = vmul.f32 %v187, %v232
  %v244 = vmul.f32 %v188, %v234
  %v245 = vmul.f32 %v189, %v236
  %v246 = vmul.f32 %v190, %v238
  %v247 = vld [vmem:[%s0] sm:$0xf]
  %v248 = vld [vmem:[%s0 + $0x4] sm:$0xf]
  %v249 = vld [vmem:[%s0 + $0x8] sm:$0xf]
  %v250 = vld [vmem:[%s0 + $0xc] sm:$0xf]
  %v251 = vld [vmem:[%s0 + $0x10] sm:$0xf]
  %v252 = vld [vmem:[%s0 + $0x14] sm:$0xf]
  %v253 = vld [vmem:[%s0 + $0x18] sm:$0xf]
  %v254 = vld [vmem:[%s0 + $0x1c] sm:$0xf]
  %v255 = vpack.c.bf16 %v240, %v239
  %v256 = vpack.c.bf16 %v242, %v241
  %v257 = vpack.c.bf16 %v244, %v243
  %v258 = vpack.c.bf16 %v246, %v245
  %v267 = vunpack.c.l.b16 %v247
  %v268 = vunpack.c.l.b16 %v248
  %v269 = vunpack.c.l.b16 %v249
  %v270 = vunpack.c.l.b16 %v250
  %v271 = vunpack.c.l.b16 %v251
  %v272 = vunpack.c.l.b16 %v252
  %v273 = vunpack.c.l.b16 %v253
  %v274 = vunpack.c.l.b16 %v254
  %v275 = vpack.c.b16 %v268, %v267
  %v276 = vpack.c.b16 %v270, %v269
  %v277 = vpack.c.b16 %v272, %v271
  %v278 = vpack.c.b16 %v274, %v273
  %283 = vrot.lane.b32.xlu0 %v255, 64
  %v284 = vpop.permute.xlu0 %283
  %285 = vrot.lane.b32.xlu0 %v256, 64
  %v286 = vpop.permute.xlu0 %285
  %287 = vrot.lane.b32.xlu0 %v257, 64
  %v288 = vpop.permute.xlu0 %287
  %289 = vrot.lane.b32.xlu0 %v258, 64
  %v290 = vpop.permute.xlu0 %289
  %vm291 = vcmask 523264
  %v294 = vsel %vm291, %v275, %v284
  %v297 = vsel %vm291, %v276, %v286
  %v300 = vsel %vm291, %v277, %v288
  %v303 = vsel %vm291, %v278, %v290
  %v304 = vld [vmem:[%s7] sm:$0xf]
  %v305 = vld [vmem:[%s7 + $0x4] sm:$0xf]
  %v306 = vld [vmem:[%s7 + $0x8] sm:$0xf]
  %v307 = vld [vmem:[%s7 + $0xc] sm:$0xf]
  %v308 = vld [vmem:[%s7 + $0x10] sm:$0xf]
  %v309 = vld [vmem:[%s7 + $0x14] sm:$0xf]
  %v310 = vld [vmem:[%s7 + $0x18] sm:$0xf]
  %v311 = vld [vmem:[%s7 + $0x1c] sm:$0xf]
  %v312 = vld [vmem:[%s7 + $0x20] sm:$0xf]
  %v313 = vld [vmem:[%s7 + $0x24] sm:$0xf]
  %v314 = vld [vmem:[%s7 + $0x28] sm:$0xf]
  %v315 = vld [vmem:[%s7 + $0x2c] sm:$0xf]
  %s316 = scalar_lea.vmem %s11, 1
  %v317 = vld [vmem:[%s316] sm:$0x1]
  %v319 = vlaneseq
  %v320 = vshrl.u32 %v319, 7
  %v321 = vsub.s32 0, %v320
  %v322 = vrot.slane %v317, %v321
  %v336 = vunpack.c.l.b16 %v304
  %v337 = vunpack.c.l.b16 %v305
  %v338 = vunpack.c.l.b16 %v306
  %v339 = vunpack.c.l.b16 %v307
  %v340 = vunpack.c.l.b16 %v308
  %v341 = vunpack.c.l.b16 %v309
  %v342 = vunpack.c.l.b16 %v310
  %v343 = vunpack.c.l.b16 %v311
  %v344 = vunpack.c.l.b16 %v312
  %v345 = vunpack.c.l.b16 %v313
  %v346 = vunpack.c.l.b16 %v314
  %v347 = vunpack.c.l.b16 %v315
  %v348 = vpack.c.b16 %v337, %v336
  %v349 = vpack.c.b16 %v339, %v338
  %v350 = vpack.c.b16 %v341, %v340
  %v351 = vpack.c.b16 %v343, %v342
  %v352 = vpack.c.b16 %v345, %v344
  %v353 = vpack.c.b16 %v347, %v346
  %vm360 = vcmask 785408
  %v361 = vsel %vm360, %v294, 0
  %v363 = vsel %vm360, %v297, 0
  %v365 = vsel %vm360, %v300, 0
  %v367 = vsel %vm360, %v303, 0
  %369 = vmatprep.subr.bf16.mxu0 0
  %370 = vmatpush1.bf16.msra.mxu0 %v348
  %371 = vmatprep.subr.bf16.mxu0 0
  %372 = vmatpush1.bf16.msra.mxu0 %v349
  %373 = vmatprep.subr.bf16.mxu0 0
  %374 = vmatpush1.bf16.msra.mxu0 %v350
  %375 = vmatprep.subr.bf16.mxu0 0
  %376 = vmatpush1.bf16.msra.mxu0 %v351
  %377 = vmatprep.subr.bf16.mxu0 0
  %378 = vmatpush1.bf16.msra.mxu0 %v352
  %379 = vmatprep.subr.bf16.mxu0 0
  %380 = vmatpush1.bf16.msra.mxu0 %v353
  %381 = vmatprep.subr.bf16.mxu0 0
  %382 = vmatpush1.bf16.msra.mxu0 0
  %383 = vmatprep.subr.bf16.mxu0 0
  %384 = vmatpush1.bf16.msra.mxu0 0
  %385 = vmatprep.subr.bf16.mxu0 0
  %386 = vmatpush1.bf16.msra.mxu0 0
  %387 = vmatprep.subr.bf16.mxu0 0
  %388 = vmatpush1.bf16.msra.mxu0 0
  %389 = vmatprep.subr.bf16.mxu0 0
  %390 = vmatpush1.bf16.msra.mxu0 0
  %391 = vmatprep.subr.bf16.mxu0 0
  %392 = vmatpush1.bf16.msra.mxu0 0
  %393 = vmatprep.subr.bf16.mxu0 0
  %394 = vmatpush1.bf16.msra.mxu0 0
  %395 = vmatprep.subr.bf16.mxu0 0
  %396 = vmatpush1.bf16.msra.mxu0 0
  %397 = vmatprep.subr.bf16.mxu0 0
  %398 = vmatpush1.bf16.msra.mxu0 0
  %399 = vmatprep.subr.bf16.mxu0 0
  %400 = vmatpush1.bf16.msra.mxu0 0
  %401 = vmatprep.mubr.bf16.mxu0 0
  %402 = vmatmul.mubr.bf16.gmra.mrb[0].mxu0 %v361
  %v403 = vpop.f32.mrb[0].mxu0
  %v404 = vadd.f32 %v322, %v403
  %v405 = vpop.f32.mrb[0].mxu0
  %v406 = vpop.f32.mrb[0].mxu0
  %v407 = vadd.f32 %v322, %v406
  %v408 = vpop.f32.mrb[0].mxu0
  %409 = vmatprep.mubr.bf16.mxu0 0
  %410 = vmatmul.mubr.bf16.gmra.mrb[0].mxu0 %v363
  %v411 = vpop.f32.mrb[0].mxu0
  %v412 = vadd.f32 %v322, %v411
  %v413 = vpop.f32.mrb[0].mxu0
  %v414 = vpop.f32.mrb[0].mxu0
  %v415 = vadd.f32 %v322, %v414
  %v416 = vpop.f32.mrb[0].mxu0
  %417 = vmatprep.mubr.bf16.mxu0 0
  %418 = vmatmul.mubr.bf16.gmra.mrb[0].mxu0 %v365
  %v419 = vpop.f32.mrb[0].mxu0
  %v420 = vadd.f32 %v322, %v419
  %v421 = vpop.f32.mrb[0].mxu0
  %v422 = vpop.f32.mrb[0].mxu0
  %v423 = vadd.f32 %v322, %v422
  %v424 = vpop.f32.mrb[0].mxu0
  %425 = vmatprep.mubr.bf16.mxu0 0
  %426 = vmatmul.mubr.bf16.gmra.mrb[0].mxu0 %v367
  %v427 = vpop.f32.mrb[0].mxu0
  %v428 = vadd.f32 %v322, %v427
  %v429 = vpop.f32.mrb[0].mxu0
  %v430 = vpop.f32.mrb[0].mxu0
  %v431 = vadd.f32 %v322, %v430
  %v432 = vpop.f32.mrb[0].mxu0
  %433 = vdwg.mxu0
  %v434 = vxor.u32 %v404, 2147483648
  %v435 = vxor.u32 %v407, 2147483648
  %v436 = vxor.u32 %v412, 2147483648
  %v437 = vxor.u32 %v415, 2147483648
  %v438 = vxor.u32 %v420, 2147483648
  %v439 = vxor.u32 %v423, 2147483648
  %v440 = vxor.u32 %v428, 2147483648
  %v441 = vxor.u32 %v431, 2147483648
  %v442 = vmul.f32 %v434, 1.442695
  %v443 = vpow.pop %v442
  %v444 = vmul.f32 %v435, 1.442695
  %v445 = vpow.pop %v444
  %v446 = vmul.f32 %v436, 1.442695
  %v447 = vpow.pop %v446
  %v448 = vmul.f32 %v437, 1.442695
  %v449 = vpow.pop %v448
  %v450 = vmul.f32 %v438, 1.442695
  %v451 = vpow.pop %v450
  %v452 = vmul.f32 %v439, 1.442695
  %v453 = vpow.pop %v452
  %v454 = vmul.f32 %v440, 1.442695
  %v455 = vpow.pop %v454
  %v456 = vmul.f32 %v441, 1.442695
  %v457 = vpow.pop %v456
  %v458 = vadd.f32 %v443, 1.0
  %v459 = vadd.f32 %v445, 1.0
  %v460 = vadd.f32 %v447, 1.0
  %v461 = vadd.f32 %v449, 1.0
  %v462 = vadd.f32 %v451, 1.0
  %v463 = vadd.f32 %v453, 1.0
  %v464 = vadd.f32 %v455, 1.0
  %v465 = vadd.f32 %v457, 1.0
  %v466 = vrcp.pop %v458
  %v467 = vmul.f32 1.0, %v466
  %v468 = vrcp.pop %v459
  %v469 = vmul.f32 1.0, %v468
  %v470 = vrcp.pop %v460
  %v471 = vmul.f32 1.0, %v470
  %v472 = vrcp.pop %v461
  %v473 = vmul.f32 1.0, %v472
  %v474 = vrcp.pop %v462
  %v475 = vmul.f32 1.0, %v474
  %v476 = vrcp.pop %v463
  %v477 = vmul.f32 1.0, %v476
  %v478 = vrcp.pop %v464
  %v479 = vmul.f32 1.0, %v478
  %v480 = vrcp.pop %v465
  %v481 = vmul.f32 1.0, %v480
  %v482 = vmul.f32 %v404, %v467
  %v483 = vmul.f32 %v407, %v469
  %v484 = vmul.f32 %v412, %v471
  %v485 = vmul.f32 %v415, %v473
  %v486 = vmul.f32 %v420, %v475
  %v487 = vmul.f32 %v423, %v477
  %v488 = vmul.f32 %v428, %v479
  %v489 = vmul.f32 %v431, %v481
  %498 = vrot.lane.b32.xlu0 %v482, 96
  %v499 = vpop.permute.xlu0 %498
  %500 = vrot.lane.b32.xlu0 %v483, 96
  %v501 = vpop.permute.xlu0 %500
  %502 = vrot.lane.b32.xlu0 %v484, 96
  %v503 = vpop.permute.xlu0 %502
  %504 = vrot.lane.b32.xlu0 %v485, 96
  %v505 = vpop.permute.xlu0 %504
  %506 = vrot.lane.b32.xlu0 %v486, 96
  %v507 = vpop.permute.xlu0 %506
  %508 = vrot.lane.b32.xlu0 %v487, 96
  %v509 = vpop.permute.xlu0 %508
  %510 = vrot.lane.b32.xlu0 %v488, 96
  %v511 = vpop.permute.xlu0 %510
  %512 = vrot.lane.b32.xlu0 %v489, 96
  %v513 = vpop.permute.xlu0 %512
  %v522 = vmul.f32 %v138, %v499
  %v523 = vmul.f32 %v142, %v501
  %v524 = vmul.f32 %v148, %v503
  %v525 = vmul.f32 %v152, %v505
  %v526 = vmul.f32 %v158, %v507
  %v527 = vmul.f32 %v162, %v509
  %v528 = vmul.f32 %v168, %v511
  %v529 = vmul.f32 %v172, %v513
  %v530 = vld [vmem:[%s4] sm:$0xf]
  %v531 = vpack.c.bf16 %v523, %v522
  %v532 = vpack.c.bf16 %v525, %v524
  %v533 = vpack.c.bf16 %v527, %v526
  %v534 = vpack.c.bf16 %v529, %v528
  %539 = vrot.lane.b32.xlu0 %v531, 32
  %v540 = vpop.permute.xlu0 %539
  %541 = vrot.lane.b32.xlu0 %v532, 32
  %v542 = vpop.permute.xlu0 %541
  %543 = vrot.lane.b32.xlu0 %v533, 32
  %v544 = vpop.permute.xlu0 %543
  %545 = vrot.lane.b32.xlu0 %v534, 32
  %v546 = vpop.permute.xlu0 %545
  %v552 = vsel %vm291, %v530, 0
  %554 = vmatprep.subr.bf16.mxu0 0
  %555 = vmatpush1.bf16.msra.mxu0 %v540
  %556 = vmatprep.subr.bf16.mxu0 0
  %557 = vmatpush1.bf16.msra.mxu0 %v542
  %558 = vmatprep.subr.bf16.mxu0 0
  %559 = vmatpush1.bf16.msra.mxu0 %v544
  %560 = vmatprep.subr.bf16.mxu0 0
  %561 = vmatpush1.bf16.msra.mxu0 %v546
  %562 = vmatprep.subr.bf16.mxu0 0
  %563 = vmatpush1.bf16.msra.mxu0 0
  %564 = vmatprep.subr.bf16.mxu0 0
  %565 = vmatpush1.bf16.msra.mxu0 0
  %566 = vmatprep.subr.bf16.mxu0 0
  %567 = vmatpush1.bf16.msra.mxu0 0
  %568 = vmatprep.subr.bf16.mxu0 0
  %569 = vmatpush1.bf16.msra.mxu0 0
  %570 = vmatprep.subr.bf16.mxu0 0
  %571 = vmatpush1.bf16.msra.mxu0 0
  %572 = vmatprep.subr.bf16.mxu0 0
  %573 = vmatpush1.bf16.msra.mxu0 0
  %574 = vmatprep.subr.bf16.mxu0 0
  %575 = vmatpush1.bf16.msra.mxu0 0
  %576 = vmatprep.subr.bf16.mxu0 0
  %577 = vmatpush1.bf16.msra.mxu0 0
  %578 = vmatprep.subr.bf16.mxu0 0
  %579 = vmatpush1.bf16.msra.mxu0 0
  %580 = vmatprep.subr.bf16.mxu0 0
  %581 = vmatpush1.bf16.msra.mxu0 0
  %582 = vmatprep.subr.bf16.mxu0 0
  %583 = vmatpush1.bf16.msra.mxu0 0
  %584 = vmatprep.subr.bf16.mxu0 0
  %585 = vmatpush1.bf16.msra.mxu0 0
  %586 = vmatprep.mubr.bf16.mxu0 0
  %587 = vmatmul.mubr.bf16.gmra.mrb[0].mxu0 %v552
  %v588 = vpop.f32.mrb[0].mxu0
  %v589 = vadd.f32 0.0, %v588
  %v590 = vpop.f32.mrb[0].mxu0
  %v591 = vpop.f32.mrb[0].mxu0
  %v592 = vpop.f32.mrb[0].mxu0
  %593 = vdwg.mxu0
  %s594 = scalar_lea.vmem %s10, 288
  %v595 = vld [vmem:[%s594] sm:$0xf]
  %v596 = vld [vmem:[%s594 + $0x4] sm:$0xf]
  %v597 = vld [vmem:[%s594 + $0x8] sm:$0xf]
  %v598 = vld [vmem:[%s594 + $0xc] sm:$0xf]
  %v599 = vpack.c.bf16 %v589, %v589
  %s600 = scalar_lea.vmem %s11, 20
  %v601 = vld [vmem:[%s600] sm:$0x1]
  %v603 = vlaneseq
  %v604 = vshrl.u32 %v603, 7
  %v605 = vsub.s32 0, %v604
  %v606 = vrot.slane %v601, %v605
  %v612 = vunpack.c.l.b16 %v595
  %v613 = vunpack.c.l.b16 %v596
  %v614 = vunpack.c.l.b16 %v597
  %v615 = vunpack.c.l.b16 %v598
  %v616 = vpack.c.b16 %v613, %v612
  %v617 = vpack.c.b16 %v615, %v614
  %vm620 = vcmask 261120
  %v622 = vsel %vm620, %v599, 0
  %624 = vmatprep.subr.bf16.mxu0 0
  %625 = vmatpush1.bf16.msra.mxu0 %v616
  %626 = vmatprep.subr.bf16.mxu0 0
  %627 = vmatpush1.bf16.msra.mxu0 %v617
  %628 = vmatprep.subr.bf16.mxu0 0
  %629 = vmatpush1.bf16.msra.mxu0 0
  %630 = vmatprep.subr.bf16.mxu0 0
  %631 = vmatpush1.bf16.msra.mxu0 0
  %632 = vmatprep.subr.bf16.mxu0 0
  %633 = vmatpush1.bf16.msra.mxu0 0
  %634 = vmatprep.subr.bf16.mxu0 0
  %635 = vmatpush1.bf16.msra.mxu0 0
  %636 = vmatprep.subr.bf16.mxu0 0
  %637 = vmatpush1.bf16.msra.mxu0 0
  %638 = vmatprep.subr.bf16.mxu0 0
  %639 = vmatpush1.bf16.msra.mxu0 0
  %640 = vmatprep.subr.bf16.mxu0 0
  %641 = vmatpush1.bf16.msra.mxu0 0
  %642 = vmatprep.subr.bf16.mxu0 0
  %643 = vmatpush1.bf16.msra.mxu0 0
  %644 = vmatprep.subr.bf16.mxu0 0
  %645 = vmatpush1.bf16.msra.mxu0 0
  %646 = vmatprep.subr.bf16.mxu0 0
  %647 = vmatpush1.bf16.msra.mxu0 0
  %648 = vmatprep.subr.bf16.mxu0 0
  %649 = vmatpush1.bf16.msra.mxu0 0
  %650 = vmatprep.subr.bf16.mxu0 0
  %651 = vmatpush1.bf16.msra.mxu0 0
  %652 = vmatprep.subr.bf16.mxu0 0
  %653 = vmatpush1.bf16.msra.mxu0 0
  %654 = vmatprep.subr.bf16.mxu0 0
  %655 = vmatpush1.bf16.msra.mxu0 0
  %656 = vmatprep.mubr.bf16.mxu0 0
  %657 = vmatmul.mubr.bf16.gmra.mrb[0].mxu0 %v622
  %v658 = vpop.f32.mrb[0].mxu0
  %v659 = vadd.f32 %v606, %v658
  %v660 = vpop.f32.mrb[0].mxu0
  %v661 = vpop.f32.mrb[0].mxu0
  %v662 = vpop.f32.mrb[0].mxu0
  %663 = vdwg.mxu0
  %v664 = vxor.u32 %v659, 2147483648
  %v665 = vmul.f32 %v664, 1.442695
  %v666 = vpow.pop %v665
  %v667 = vadd.f32 %v666, 1.0
  %v668 = vrcp.pop %v667
  %v669 = vmul.f32 1.0, %v668
  %v670 = vmul.f32 %v659, %v669
  %s671 = scalar_lea.vmem %s10, 304
  %v672 = vld [vmem:[%s671] sm:$0xf]
  %v673 = vld [vmem:[%s671 + $0x4] sm:$0xf]
  %v674 = vld [vmem:[%s671 + $0x8] sm:$0xf]
  %v675 = vld [vmem:[%s671 + $0xc] sm:$0xf]
  %v676 = vpack.c.bf16 %v670, %v670
  %s677 = scalar_lea.vmem %s11, 21
  %v678 = vld [vmem:[%s677] sm:$0x1]
  %v680 = vlaneseq
  %v681 = vshrl.u32 %v680, 7
  %v682 = vsub.s32 0, %v681
  %v683 = vrot.slane %v678, %v682
  %v689 = vunpack.c.l.b16 %v672
  %v690 = vunpack.c.l.b16 %v673
  %v691 = vunpack.c.l.b16 %v674
  %v692 = vunpack.c.l.b16 %v675
  %v693 = vpack.c.b16 %v690, %v689
  %v694 = vpack.c.b16 %v692, %v691
  %v698 = vsel %vm620, %v676, 0
  %700 = vmatprep.subr.bf16.mxu0 0
  %701 = vmatpush1.bf16.msra.mxu0 %v693
  %702 = vmatprep.subr.bf16.mxu0 0
  %703 = vmatpush1.bf16.msra.mxu0 %v694
  %704 = vmatprep.subr.bf16.mxu0 0
  %705 = vmatpush1.bf16.msra.mxu0 0
  %706 = vmatprep.subr.bf16.mxu0 0
  %707 = vmatpush1.bf16.msra.mxu0 0
  %708 = vmatprep.subr.bf16.mxu0 0
  %709 = vmatpush1.bf16.msra.mxu0 0
  %710 = vmatprep.subr.bf16.mxu0 0
  %711 = vmatpush1.bf16.msra.mxu0 0
  %712 = vmatprep.subr.bf16.mxu0 0
  %713 = vmatpush1.bf16.msra.mxu0 0
  %714 = vmatprep.subr.bf16.mxu0 0
  %715 = vmatpush1.bf16.msra.mxu0 0
  %716 = vmatprep.subr.bf16.mxu0 0
  %717 = vmatpush1.bf16.msra.mxu0 0
  %718 = vmatprep.subr.bf16.mxu0 0
  %719 = vmatpush1.bf16.msra.mxu0 0
  %720 = vmatprep.subr.bf16.mxu0 0
  %721 = vmatpush1.bf16.msra.mxu0 0
  %722 = vmatprep.subr.bf16.mxu0 0
  %723 = vmatpush1.bf16.msra.mxu0 0
  %724 = vmatprep.subr.bf16.mxu0 0
  %725 = vmatpush1.bf16.msra.mxu0 0
  %726 = vmatprep.subr.bf16.mxu0 0
  %727 = vmatpush1.bf16.msra.mxu0 0
  %728 = vmatprep.subr.bf16.mxu0 0
  %729 = vmatpush1.bf16.msra.mxu0 0
  %730 = vmatprep.subr.bf16.mxu0 0
  %731 = vmatpush1.bf16.msra.mxu0 0
  %732 = vmatprep.mubr.bf16.mxu0 0
  %733 = vmatmul.mubr.bf16.gmra.mrb[0].mxu0 %v698
  %v734 = vpop.f32.mrb[0].mxu0
  %v735 = vadd.f32 %v683, %v734
  %v736 = vpop.f32.mrb[0].mxu0
  %v737 = vpop.f32.mrb[0].mxu0
  %v738 = vpop.f32.mrb[0].mxu0
  %739 = vdwg.mxu0
  %v740 = vxor.u32 %v735, 2147483648
  %v741 = vmul.f32 %v740, 1.442695
  %v742 = vpow.pop %v741
  %v743 = vadd.f32 %v742, 1.0
  %v744 = vrcp.pop %v743
  %v745 = vmul.f32 1.0, %v744
  %v746 = vmul.f32 %v735, %v745
  %s747 = scalar_lea.vmem %s10, 320
  %v748 = vld [vmem:[%s747] sm:$0xf]
  %v749 = vld [vmem:[%s747 + $0x4] sm:$0xf]
  %v750 = vld [vmem:[%s747 + $0x8] sm:$0xf]
  %v751 = vld [vmem:[%s747 + $0xc] sm:$0xf]
  %v752 = vpack.c.bf16 %v746, %v746
  %s753 = scalar_lea.vmem %s11, 22
  %v754 = vld [vmem:[%s753] sm:$0x1]
  %v756 = vlaneseq
  %v757 = vshrl.u32 %v756, 7
  %v758 = vsub.s32 0, %v757
  %v759 = vrot.slane %v754, %v758
  %v765 = vunpack.c.l.b16 %v748
  %v766 = vunpack.c.l.b16 %v749
  %v767 = vunpack.c.l.b16 %v750
  %v768 = vunpack.c.l.b16 %v751
  %v769 = vpack.c.b16 %v766, %v765
  %v770 = vpack.c.b16 %v768, %v767
  %v774 = vsel %vm620, %v752, 0
  %776 = vmatprep.subr.bf16.mxu0 0
  %777 = vmatpush1.bf16.msra.mxu0 %v769
  %778 = vmatprep.subr.bf16.mxu0 0
  %779 = vmatpush1.bf16.msra.mxu0 %v770
  %780 = vmatprep.subr.bf16.mxu0 0
  %781 = vmatpush1.bf16.msra.mxu0 0
  %782 = vmatprep.subr.bf16.mxu0 0
  %783 = vmatpush1.bf16.msra.mxu0 0
  %784 = vmatprep.subr.bf16.mxu0 0
  %785 = vmatpush1.bf16.msra.mxu0 0
  %786 = vmatprep.subr.bf16.mxu0 0
  %787 = vmatpush1.bf16.msra.mxu0 0
  %788 = vmatprep.subr.bf16.mxu0 0
  %789 = vmatpush1.bf16.msra.mxu0 0
  %790 = vmatprep.subr.bf16.mxu0 0
  %791 = vmatpush1.bf16.msra.mxu0 0
  %792 = vmatprep.subr.bf16.mxu0 0
  %793 = vmatpush1.bf16.msra.mxu0 0
  %794 = vmatprep.subr.bf16.mxu0 0
  %795 = vmatpush1.bf16.msra.mxu0 0
  %796 = vmatprep.subr.bf16.mxu0 0
  %797 = vmatpush1.bf16.msra.mxu0 0
  %798 = vmatprep.subr.bf16.mxu0 0
  %799 = vmatpush1.bf16.msra.mxu0 0
  %800 = vmatprep.subr.bf16.mxu0 0
  %801 = vmatpush1.bf16.msra.mxu0 0
  %802 = vmatprep.subr.bf16.mxu0 0
  %803 = vmatpush1.bf16.msra.mxu0 0
  %804 = vmatprep.subr.bf16.mxu0 0
  %805 = vmatpush1.bf16.msra.mxu0 0
  %806 = vmatprep.subr.bf16.mxu0 0
  %807 = vmatpush1.bf16.msra.mxu0 0
  %808 = vmatprep.mubr.bf16.mxu0 0
  %809 = vmatmul.mubr.bf16.gmra.mrb[0].mxu0 %v774
  %v810 = vpop.f32.mrb[0].mxu0
  %v811 = vadd.f32 %v759, %v810
  %v812 = vpop.f32.mrb[0].mxu0
  %v813 = vpop.f32.mrb[0].mxu0
  %v814 = vpop.f32.mrb[0].mxu0
  %815 = vdwg.mxu0
  %v816 = vxor.u32 %v811, 2147483648
  %v817 = vmul.f32 %v816, 1.442695
  %v818 = vpow.pop %v817
  %v819 = vadd.f32 %v818, 1.0
  %v820 = vrcp.pop %v819
  %v821 = vmul.f32 1.0, %v820
  %v822 = vmul.f32 %v811, %v821
  %v823 = vld [vmem:[%s12] sm:$0xf]
  %v824 = vld [vmem:[%s12 + $0x4] sm:$0xf]
  %v825 = vld [vmem:[%s12 + $0x8] sm:$0xf]
  %v826 = vld [vmem:[%s12 + $0xc] sm:$0xf]
  %v827 = vpack.c.bf16 %v822, %v822
  %v828 = vld [vmem:[%s5] sm:$0xf]
  %v829 = vld [vmem:[%s5 + $0x4] sm:$0xf]
  %v830 = vld [vmem:[%s5 + $0x8] sm:$0xf]
  %v831 = vld [vmem:[%s5 + $0xc] sm:$0xf]
  %v832 = vld [vmem:[%s5 + $0x10] sm:$0xf]
  %v833 = vld [vmem:[%s5 + $0x14] sm:$0xf]
  %v834 = vld [vmem:[%s5 + $0x18] sm:$0xf]
  %v835 = vld [vmem:[%s5 + $0x1c] sm:$0xf]
  %s836 = scalar_lea.vmem %s10, 16
  %v837 = vld [vmem:[%s836] sm:$0xf]
  %v838 = vld [vmem:[%s836 + $0x4] sm:$0xf]
  %v839 = vld [vmem:[%s836 + $0x8] sm:$0xf]
  %v840 = vld [vmem:[%s836 + $0xc] sm:$0xf]
  %v841 = vpack.c.bf16 %v483, %v482
  %v842 = vpack.c.bf16 %v485, %v484
  %v843 = vpack.c.bf16 %v487, %v486
  %v844 = vpack.c.bf16 %v489, %v488
  %s845 = scalar_lea.vmem %s11, 3
  %v846 = vld [vmem:[%s845] sm:$0x1]
  %v848 = vlaneseq
  %v849 = vshrl.u32 %v848, 7
  %v850 = vsub.s32 0, %v849
  %v851 = vrot.slane %v846, %v850
  %v857 = vunpack.c.l.b16 %v837
  %v858 = vunpack.c.l.b16 %v838
  %v859 = vunpack.c.l.b16 %v839
  %v860 = vunpack.c.l.b16 %v840
  %v861 = vpack.c.b16 %v858, %v857
  %v862 = vpack.c.b16 %v860, %v859
  %v866 = vsel %vm620, %v841, 0
  %v869 = vsel %vm620, %v842, 0
  %v872 = vsel %vm620, %v843, 0
  %v875 = vsel %vm620, %v844, 0
  %877 = vmatprep.subr.bf16.mxu0 0
  %878 = vmatpush1.bf16.msra.mxu0 %v861
  %879 = vmatprep.subr.bf16.mxu0 0
  %880 = vmatpush1.bf16.msra.mxu0 %v862
  %881 = vmatprep.subr.bf16.mxu0 0
  %882 = vmatpush1.bf16.msra.mxu0 0
  %883 = vmatprep.subr.bf16.mxu0 0
  %884 = vmatpush1.bf16.msra.mxu0 0
  %885 = vmatprep.subr.bf16.mxu0 0
  %886 = vmatpush1.bf16.msra.mxu0 0
  %887 = vmatprep.subr.bf16.mxu0 0
  %888 = vmatpush1.bf16.msra.mxu0 0
  %889 = vmatprep.subr.bf16.mxu0 0
  %890 = vmatpush1.bf16.msra.mxu0 0
  %891 = vmatprep.subr.bf16.mxu0 0
  %892 = vmatpush1.bf16.msra.mxu0 0
  %893 = vmatprep.subr.bf16.mxu0 0
  %894 = vmatpush1.bf16.msra.mxu0 0
  %895 = vmatprep.subr.bf16.mxu0 0
  %896 = vmatpush1.bf16.msra.mxu0 0
  %897 = vmatprep.subr.bf16.mxu0 0
  %898 = vmatpush1.bf16.msra.mxu0 0
  %899 = vmatprep.subr.bf16.mxu0 0
  %900 = vmatpush1.bf16.msra.mxu0 0
  %901 = vmatprep.subr.bf16.mxu0 0
  %902 = vmatpush1.bf16.msra.mxu0 0
  %903 = vmatprep.subr.bf16.mxu0 0
  %904 = vmatpush1.bf16.msra.mxu0 0
  %905 = vmatprep.subr.bf16.mxu0 0
  %906 = vmatpush1.bf16.msra.mxu0 0
  %907 = vmatprep.subr.bf16.mxu0 0
  %908 = vmatpush1.bf16.msra.mxu0 0
  %909 = vmatprep.mubr.bf16.mxu0 0
  %910 = vmatmul.mubr.bf16.gmra.mrb[0].mxu0 %v866
  %v911 = vpop.f32.mrb[0].mxu0
  %v912 = vadd.f32 %v851, %v911
  %v913 = vpop.f32.mrb[0].mxu0
  %v914 = vpop.f32.mrb[0].mxu0
  %v915 = vadd.f32 %v851, %v914
  %v916 = vpop.f32.mrb[0].mxu0
  %917 = vmatprep.mubr.bf16.mxu0 0
  %918 = vmatmul.mubr.bf16.gmra.mrb[0].mxu0 %v869
  %v919 = vpop.f32.mrb[0].mxu0
  %v920 = vadd.f32 %v851, %v919
  %v921 = vpop.f32.mrb[0].mxu0
  %v922 = vpop.f32.mrb[0].mxu0
  %v923 = vadd.f32 %v851, %v922
  %v924 = vpop.f32.mrb[0].mxu0
  %925 = vmatprep.mubr.bf16.mxu0 0
  %926 = vmatmul.mubr.bf16.gmra.mrb[0].mxu0 %v872
  %v927 = vpop.f32.mrb[0].mxu0
  %v928 = vadd.f32 %v851, %v927
  %v929 = vpop.f32.mrb[0].mxu0
  %v930 = vpop.f32.mrb[0].mxu0
  %v931 = vadd.f32 %v851, %v930
  %v932 = vpop.f32.mrb[0].mxu0
  %933 = vmatprep.mubr.bf16.mxu0 0
  %934 = vmatmul.mubr.bf16.gmra.mrb[0].mxu0 %v875
  %v935 = vpop.f32.mrb[0].mxu0
  %v936 = vadd.f32 %v851, %v935
  %v937 = vpop.f32.mrb[0].mxu0
  %v938 = vpop.f32.mrb[0].mxu0
  %v939 = vadd.f32 %v851, %v938
  %v940 = vpop.f32.mrb[0].mxu0
  %941 = vdwg.mxu0
  %v942 = vxor.u32 %v912, 2147483648
  %v943 = vxor.u32 %v915, 2147483648
  %v944 = vxor.u32 %v920, 2147483648
  %v945 = vxor.u32 %v923, 2147483648
  %v946 = vxor.u32 %v928, 2147483648
  %v947 = vxor.u32 %v931, 2147483648
  %v948 = vxor.u32 %v936, 2147483648
  %v949 = vxor.u32 %v939, 2147483648
  %v950 = vmul.f32 %v942, 1.442695
  %v951 = vpow.pop %v950
  %v952 = vmul.f32 %v943, 1.442695
  %v953 = vpow.pop %v952
  %v954 = vmul.f32 %v944, 1.442695
  %v955 = vpow.pop %v954
  %v956 = vmul.f32 %v945, 1.442695
  %v957 = vpow.pop %v956
  %v958 = vmul.f32 %v946, 1.442695
  %v959 = vpow.pop %v958
  %v960 = vmul.f32 %v947, 1.442695
  %v961 = vpow.pop %v960
  %v962 = vmul.f32 %v948, 1.442695
  %v963 = vpow.pop %v962
  %v964 = vmul.f32 %v949, 1.442695
  %v965 = vpow.pop %v964
  %v966 = vadd.f32 %v951, 1.0
  %v967 = vadd.f32 %v953, 1.0
  %v968 = vadd.f32 %v955, 1.0
  %v969 = vadd.f32 %v957, 1.0
  %v970 = vadd.f32 %v959, 1.0
  %v971 = vadd.f32 %v961, 1.0
  %v972 = vadd.f32 %v963, 1.0
  %v973 = vadd.f32 %v965, 1.0
  %v974 = vrcp.pop %v966
  %v975 = vmul.f32 1.0, %v974
  %v976 = vrcp.pop %v967
  %v977 = vmul.f32 1.0, %v976
  %v978 = vrcp.pop %v968
  %v979 = vmul.f32 1.0, %v978
  %v980 = vrcp.pop %v969
  %v981 = vmul.f32 1.0, %v980
  %v982 = vrcp.pop %v970
  %v983 = vmul.f32 1.0, %v982
  %v984 = vrcp.pop %v971
  %v985 = vmul.f32 1.0, %v984
  %v986 = vrcp.pop %v972
  %v987 = vmul.f32 1.0, %v986
  %v988 = vrcp.pop %v973
  %v989 = vmul.f32 1.0, %v988
  %v990 = vmul.f32 %v912, %v975
  %v991 = vmul.f32 %v915, %v977
  %v992 = vmul.f32 %v920, %v979
  %v993 = vmul.f32 %v923, %v981
  %v994 = vmul.f32 %v928, %v983
  %v995 = vmul.f32 %v931, %v985
  %v996 = vmul.f32 %v936, %v987
  %v997 = vmul.f32 %v939, %v989
  %v998 = vld [vmem:[%s10] sm:$0xf]
  %v999 = vld [vmem:[%s10 + $0x4] sm:$0xf]
  %v1000 = vld [vmem:[%s10 + $0x8] sm:$0xf]
  %v1001 = vld [vmem:[%s10 + $0xc] sm:$0xf]
  %s1002 = scalar_lea.vmem %s11, 2
  %v1003 = vld [vmem:[%s1002] sm:$0x1]
  %v1005 = vlaneseq
  %v1006 = vshrl.u32 %v1005, 7
  %v1007 = vsub.s32 0, %v1006
  %v1008 = vrot.slane %v1003, %v1007
  %v1014 = vunpack.c.l.b16 %v998
  %v1015 = vunpack.c.l.b16 %v999
  %v1016 = vunpack.c.l.b16 %v1000
  %v1017 = vunpack.c.l.b16 %v1001
  %v1018 = vpack.c.b16 %v1015, %v1014
  %v1019 = vpack.c.b16 %v1017, %v1016
  %1022 = vmatprep.subr.bf16.mxu0 0
  %1023 = vmatpush1.bf16.msra.mxu0 %v1018
  %1024 = vmatprep.subr.bf16.mxu0 0
  %1025 = vmatpush1.bf16.msra.mxu0 %v1019
  %1026 = vmatprep.subr.bf16.mxu0 0
  %1027 = vmatpush1.bf16.msra.mxu0 0
  %1028 = vmatprep.subr.bf16.mxu0 0
  %1029 = vmatpush1.bf16.msra.mxu0 0
  %1030 = vmatprep.subr.bf16.mxu0 0
  %1031 = vmatpush1.bf16.msra.mxu0 0
  %1032 = vmatprep.subr.bf16.mxu0 0
  %1033 = vmatpush1.bf16.msra.mxu0 0
  %1034 = vmatprep.subr.bf16.mxu0 0
  %1035 = vmatpush1.bf16.msra.mxu0 0
  %1036 = vmatprep.subr.bf16.mxu0 0
  %1037 = vmatpush1.bf16.msra.mxu0 0
  %1038 = vmatprep.subr.bf16.mxu0 0
  %1039 = vmatpush1.bf16.msra.mxu0 0
  %1040 = vmatprep.subr.bf16.mxu0 0
  %1041 = vmatpush1.bf16.msra.mxu0 0
  %1042 = vmatprep.subr.bf16.mxu0 0
  %1043 = vmatpush1.bf16.msra.mxu0 0
  %1044 = vmatprep.subr.bf16.mxu0 0
  %1045 = vmatpush1.bf16.msra.mxu0 0
  %1046 = vmatprep.subr.bf16.mxu0 0
  %1047 = vmatpush1.bf16.msra.mxu0 0
  %1048 = vmatprep.subr.bf16.mxu0 0
  %1049 = vmatpush1.bf16.msra.mxu0 0
  %1050 = vmatprep.subr.bf16.mxu0 0
  %1051 = vmatpush1.bf16.msra.mxu0 0
  %1052 = vmatprep.subr.bf16.mxu0 0
  %1053 = vmatpush1.bf16.msra.mxu0 0
  %1054 = vmatprep.mubr.bf16.mxu0 0
  %1055 = vmatmul.mubr.bf16.gmra.mrb[0].mxu0 %v866
  %v1056 = vpop.f32.mrb[0].mxu0
  %v1057 = vadd.f32 %v1008, %v1056
  %v1058 = vpop.f32.mrb[0].mxu0
  %v1059 = vpop.f32.mrb[0].mxu0
  %v1060 = vadd.f32 %v1008, %v1059
  %v1061 = vpop.f32.mrb[0].mxu0
  %1062 = vmatprep.mubr.bf16.mxu0 0
  %1063 = vmatmul.mubr.bf16.gmra.mrb[0].mxu0 %v869
  %v1064 = vpop.f32.mrb[0].mxu0
  %v1065 = vadd.f32 %v1008, %v1064
  %v1066 = vpop.f32.mrb[0].mxu0
  %v1067 = vpop.f32.mrb[0].mxu0
  %v1068 = vadd.f32 %v1008, %v1067
  %v1069 = vpop.f32.mrb[0].mxu0
  %1070 = vmatprep.mubr.bf16.mxu0 0
  %1071 = vmatmul.mubr.bf16.gmra.mrb[0].mxu0 %v872
  %v1072 = vpop.f32.mrb[0].mxu0
  %v1073 = vadd.f32 %v1008, %v1072
  %v1074 = vpop.f32.mrb[0].mxu0
  %v1075 = vpop.f32.mrb[0].mxu0
  %v1076 = vadd.f32 %v1008, %v1075
  %v1077 = vpop.f32.mrb[0].mxu0
  %1078 = vmatprep.mubr.bf16.mxu0 0
  %1079 = vmatmul.mubr.bf16.gmra.mrb[0].mxu0 %v875
  %v1080 = vpop.f32.mrb[0].mxu0
  %v1081 = vadd.f32 %v1008, %v1080
  %v1082 = vpop.f32.mrb[0].mxu0
  %v1083 = vpop.f32.mrb[0].mxu0
  %v1084 = vadd.f32 %v1008, %v1083
  %v1085 = vpop.f32.mrb[0].mxu0
  %1086 = vdwg.mxu0
  %v1087 = vxor.u32 %v1057, 2147483648
  %v1088 = vxor.u32 %v1060, 2147483648
  %v1089 = vxor.u32 %v1065, 2147483648
  %v1090 = vxor.u32 %v1068, 2147483648
  %v1091 = vxor.u32 %v1073, 2147483648
  %v1092 = vxor.u32 %v1076, 2147483648
  %v1093 = vxor.u32 %v1081, 2147483648
  %v1094 = vxor.u32 %v1084, 2147483648
  %v1095 = vmul.f32 %v1087, 1.442695
  %v1096 = vpow.pop %v1095
  %v1097 = vmul.f32 %v1088, 1.442695
  %v1098 = vpow.pop %v1097
  %v1099 = vmul.f32 %v1089, 1.442695
  %v1100 = vpow.pop %v1099
  %v1101 = vmul.f32 %v1090, 1.442695
  %v1102 = vpow.pop %v1101
  %v1103 = vmul.f32 %v1091, 1.442695
  %v1104 = vpow.pop %v1103
  %v1105 = vmul.f32 %v1092, 1.442695
  %v1106 = vpow.pop %v1105
  %v1107 = vmul.f32 %v1093, 1.442695
  %v1108 = vpow.pop %v1107
  %v1109 = vmul.f32 %v1094, 1.442695
  %v1110 = vpow.pop %v1109
  %v1111 = vadd.f32 %v1096, 1.0
  %v1112 = vadd.f32 %v1098, 1.0
  %v1113 = vadd.f32 %v1100, 1.0
  %v1114 = vadd.f32 %v1102, 1.0
  %v1115 = vadd.f32 %v1104, 1.0
  %v1116 = vadd.f32 %v1106, 1.0
  %v1117 = vadd.f32 %v1108, 1.0
  %v1118 = vadd.f32 %v1110, 1.0
  %v1119 = vrcp.pop %v1111
  %v1120 = vmul.f32 1.0, %v1119
  %v1121 = vrcp.pop %v1112
  %v1122 = vmul.f32 1.0, %v1121
  %v1123 = vrcp.pop %v1113
  %v1124 = vmul.f32 1.0, %v1123
  %v1125 = vrcp.pop %v1114
  %v1126 = vmul.f32 1.0, %v1125
  %v1127 = vrcp.pop %v1115
  %v1128 = vmul.f32 1.0, %v1127
  %v1129 = vrcp.pop %v1116
  %v1130 = vmul.f32 1.0, %v1129
  %v1131 = vrcp.pop %v1117
  %v1132 = vmul.f32 1.0, %v1131
  %v1133 = vrcp.pop %v1118
  %v1134 = vmul.f32 1.0, %v1133
  %v1135 = vmul.f32 %v1057, %v1120
  %v1136 = vmul.f32 %v1060, %v1122
  %v1137 = vmul.f32 %v1065, %v1124
  %v1138 = vmul.f32 %v1068, %v1126
  %v1139 = vmul.f32 %v1073, %v1128
  %v1140 = vmul.f32 %v1076, %v1130
  %v1141 = vmul.f32 %v1081, %v1132
  %v1142 = vmul.f32 %v1084, %v1134
  %1151 = vrot.lane.b32.xlu0 %v138, 96
  %v1152 = vpop.permute.xlu0 %1151
  %1153 = vrot.lane.b32.xlu0 %v142, 96
  %v1154 = vpop.permute.xlu0 %1153
  %1155 = vrot.lane.b32.xlu0 %v148, 96
  %v1156 = vpop.permute.xlu0 %1155
  %1157 = vrot.lane.b32.xlu0 %v152, 96
  %v1158 = vpop.permute.xlu0 %1157
  %1159 = vrot.lane.b32.xlu0 %v158, 96
  %v1160 = vpop.permute.xlu0 %1159
  %1161 = vrot.lane.b32.xlu0 %v162, 96
  %v1162 = vpop.permute.xlu0 %1161
  %1163 = vrot.lane.b32.xlu0 %v168, 96
  %v1164 = vpop.permute.xlu0 %1163
  %1165 = vrot.lane.b32.xlu0 %v172, 96
  %v1166 = vpop.permute.xlu0 %1165
  %v1175 = vmul.f32 %v1135, %v1152
  %v1176 = vmul.f32 %v1136, %v1154
  %v1177 = vmul.f32 %v1137, %v1156
  %v1178 = vmul.f32 %v1138, %v1158
  %v1179 = vmul.f32 %v1139, %v1160
  %v1180 = vmul.f32 %v1140, %v1162
  %v1181 = vmul.f32 %v1141, %v1164
  %v1182 = vmul.f32 %v1142, %v1166
  %v1183 = vld [vmem:[%s2] sm:$0xf]
  %v1184 = vld [vmem:[%s2 + $0x4] sm:$0xf]
  %v1185 = vld [vmem:[%s2 + $0x8] sm:$0xf]
  %v1186 = vld [vmem:[%s2 + $0xc] sm:$0xf]
  %v1187 = vld [vmem:[%s2 + $0x10] sm:$0xf]
  %v1188 = vld [vmem:[%s2 + $0x14] sm:$0xf]
  %v1189 = vld [vmem:[%s2 + $0x18] sm:$0xf]
  %v1190 = vld [vmem:[%s2 + $0x1c] sm:$0xf]
  %v1191 = vld [vmem:[%s8] sm:$0xf]
  %v1192 = vld [vmem:[%s8 + $0x4] sm:$0xf]
  %v1193 = vld [vmem:[%s8 + $0x8] sm:$0xf]
  %v1194 = vld [vmem:[%s8 + $0xc] sm:$0xf]
  %v1195 = vld [vmem:[%s8 + $0x10] sm:$0xf]
  %v1196 = vld [vmem:[%s8 + $0x14] sm:$0xf]
  %v1197 = vld [vmem:[%s8 + $0x18] sm:$0xf]
  %v1198 = vld [vmem:[%s8 + $0x1c] sm:$0xf]
  %v1199 = vld [vmem:[%s8 + $0x20] sm:$0xf]
  %v1200 = vld [vmem:[%s8 + $0x24] sm:$0xf]
  %v1201 = vld [vmem:[%s8 + $0x28] sm:$0xf]
  %v1202 = vld [vmem:[%s8 + $0x2c] sm:$0xf]
  %v1203 = vld [vmem:[%s8 + $0x30] sm:$0xf]
  %v1204 = vld [vmem:[%s8 + $0x34] sm:$0xf]
  %v1205 = vld [vmem:[%s8 + $0x38] sm:$0xf]
  %v1206 = vld [vmem:[%s8 + $0x3c] sm:$0xf]
  %v1215 = vunpack.c.l.b16 %v1183
  %v1216 = vunpack.c.l.b16 %v1184
  %v1217 = vunpack.c.l.b16 %v1185
  %v1218 = vunpack.c.l.b16 %v1186
  %v1219 = vunpack.c.l.b16 %v1187
  %v1220 = vunpack.c.l.b16 %v1188
  %v1221 = vunpack.c.l.b16 %v1189
  %v1222 = vunpack.c.l.b16 %v1190
  %v1223 = vpack.c.b16 %v1216, %v1215
  %v1224 = vpack.c.b16 %v1218, %v1217
  %v1225 = vpack.c.b16 %v1220, %v1219
  %v1226 = vpack.c.b16 %v1222, %v1221
  %v1247 = vunpack.c.l.b16 %v1191
  %v1248 = vunpack.c.l.b16 %v1192
  %v1249 = vunpack.c.l.b16 %v1193
  %v1250 = vunpack.c.l.b16 %v1194
  %v1251 = vunpack.c.l.b16 %v1195
  %v1252 = vunpack.c.l.b16 %v1196
  %v1253 = vunpack.c.l.b16 %v1197
  %v1254 = vunpack.c.l.b16 %v1198
  %v1255 = vunpack.c.l.b16 %v1199
  %v1256 = vunpack.c.l.b16 %v1200
  %v1257 = vunpack.c.l.b16 %v1201
  %v1258 = vunpack.c.l.b16 %v1202
  %v1259 = vunpack.c.l.b16 %v1203
  %v1260 = vunpack.c.l.b16 %v1204
  %v1261 = vunpack.c.l.b16 %v1205
  %v1262 = vunpack.c.l.b16 %v1206
  %v1263 = vpack.c.b16 %v1248, %v1247
  %v1264 = vpack.c.b16 %v1250, %v1249
  %v1265 = vpack.c.b16 %v1252, %v1251
  %v1266 = vpack.c.b16 %v1254, %v1253
  %v1267 = vpack.c.b16 %v1256, %v1255
  %v1268 = vpack.c.b16 %v1258, %v1257
  %v1269 = vpack.c.b16 %v1260, %v1259
  %v1270 = vpack.c.b16 %v1262, %v1261
  %1279 = vmatprep.subr.bf16.mxu0 0
  %1280 = vmatpush1.bf16.msra.mxu0 %v1263
  %1281 = vmatprep.subr.bf16.mxu0 0
  %1282 = vmatpush1.bf16.msra.mxu0 %v1264
  %1283 = vmatprep.subr.bf16.mxu0 0
  %1284 = vmatpush1.bf16.msra.mxu0 %v1265
  %1285 = vmatprep.subr.bf16.mxu0 0
  %1286 = vmatpush1.bf16.msra.mxu0 %v1266
  %1287 = vmatprep.subr.bf16.mxu0 0
  %1288 = vmatpush1.bf16.msra.mxu0 %v1267
  %1289 = vmatprep.subr.bf16.mxu0 0
  %1290 = vmatpush1.bf16.msra.mxu0 %v1268
  %1291 = vmatprep.subr.bf16.mxu0 0
  %1292 = vmatpush1.bf16.msra.mxu0 %v1269
  %1293 = vmatprep.subr.bf16.mxu0 0
  %1294 = vmatpush1.bf16.msra.mxu0 %v1270
  %1295 = vmatprep.subr.bf16.mxu0 0
  %1296 = vmatpush1.bf16.msra.mxu0 0
  %1297 = vmatprep.subr.bf16.mxu0 0
  %1298 = vmatpush1.bf16.msra.mxu0 0
  %1299 = vmatprep.subr.bf16.mxu0 0
  %1300 = vmatpush1.bf16.msra.mxu0 0
  %1301 = vmatprep.subr.bf16.mxu0 0
  %1302 = vmatpush1.bf16.msra.mxu0 0
  %1303 = vmatprep.subr.bf16.mxu0 0
  %1304 = vmatpush1.bf16.msra.mxu0 0
  %1305 = vmatprep.subr.bf16.mxu0 0
  %1306 = vmatpush1.bf16.msra.mxu0 0
  %1307 = vmatprep.subr.bf16.mxu0 0
  %1308 = vmatpush1.bf16.msra.mxu0 0
  %1309 = vmatprep.subr.bf16.mxu0 0
  %1310 = vmatpush1.bf16.msra.mxu0 0
  %1311 = vmatprep.mubr.bf16.mxu0 0
  %1312 = vmatmul.mubr.bf16.gmra.mrb[0].mxu0 %v1223
  %v1313 = vpop.f32.mrb[0].mxu0
  %v1314 = vadd.f32 0.0, %v1313
  %v1315 = vpop.f32.mrb[0].mxu0
  %v1316 = vpop.f32.mrb[0].mxu0
  %v1317 = vadd.f32 0.0, %v1316
  %v1318 = vpop.f32.mrb[0].mxu0
  %1319 = vmatprep.mubr.bf16.mxu0 0
  %1320 = vmatmul.mubr.bf16.gmra.mrb[0].mxu0 %v1224
  %v1321 = vpop.f32.mrb[0].mxu0
  %v1322 = vadd.f32 0.0, %v1321
  %v1323 = vpop.f32.mrb[0].mxu0
  %v1324 = vpop.f32.mrb[0].mxu0
  %v1325 = vadd.f32 0.0, %v1324
  %v1326 = vpop.f32.mrb[0].mxu0
  %1327 = vmatprep.mubr.bf16.mxu0 0
  %1328 = vmatmul.mubr.bf16.gmra.mrb[0].mxu0 %v1225
  %v1329 = vpop.f32.mrb[0].mxu0
  %v1330 = vadd.f32 0.0, %v1329
  %v1331 = vpop.f32.mrb[0].mxu0
  %v1332 = vpop.f32.mrb[0].mxu0
  %v1333 = vadd.f32 0.0, %v1332
  %v1334 = vpop.f32.mrb[0].mxu0
  %1335 = vmatprep.mubr.bf16.mxu0 0
  %1336 = vmatmul.mubr.bf16.gmra.mrb[0].mxu0 %v1226
  %v1337 = vpop.f32.mrb[0].mxu0
  %v1338 = vadd.f32 0.0, %v1337
  %v1339 = vpop.f32.mrb[0].mxu0
  %v1340 = vpop.f32.mrb[0].mxu0
  %v1341 = vadd.f32 0.0, %v1340
  %v1342 = vpop.f32.mrb[0].mxu0
  %1343 = vdwg.mxu0
  %v1344 = vld [vmem:[%s9] sm:$0xff]
  %v1345 = vld [vmem:[%s9 + $0x8] sm:$0xff]
  %v1346 = vld [vmem:[%s9 + $0x10] sm:$0xff]
  %v1347 = vld [vmem:[%s9 + $0x18] sm:$0xff]
  %v1348 = vpack.c.bf16 %v1176, %v1175
  %v1349 = vpack.c.bf16 %v1178, %v1177
  %v1350 = vpack.c.bf16 %v1180, %v1179
  %v1351 = vpack.c.bf16 %v1182, %v1181
  %v1356 = vunpack.c.l.b16 %v1344
  %v1357 = vunpack.c.h.b16 %v1344
  %v1358 = vunpack.c.l.b16 %v1345
  %v1359 = vunpack.c.h.b16 %v1345
  %v1360 = vunpack.c.l.b16 %v1346
  %v1361 = vunpack.c.h.b16 %v1346
  %v1362 = vunpack.c.l.b16 %v1347
  %v1363 = vunpack.c.h.b16 %v1347
  %v1364 = vpack.c.b16 %v1358, %v1356
  %v1365 = vpack.c.b16 %v1359, %v1357
  %v1366 = vpack.c.b16 %v1362, %v1360
  %v1367 = vpack.c.b16 %v1363, %v1361
  %v1373 = vsel %vm620, %v1348, 0
  %v1376 = vsel %vm620, %v1349, 0
  %v1379 = vsel %vm620, %v1350, 0
  %v1382 = vsel %vm620, %v1351, 0
  %1384 = vmatprep.subr.bf16.mxu0 %v1365
  %1385 = vmatpush1.bf16.msra.mxu0 %v1364
  %1386 = vmatprep.subr.bf16.mxu0 %v1367
  %1387 = vmatpush1.bf16.msra.mxu0 %v1366
  %1388 = vmatprep.subr.bf16.mxu0 0
  %1389 = vmatpush1.bf16.msra.mxu0 0
  %1390 = vmatprep.subr.bf16.mxu0 0
  %1391 = vmatpush1.bf16.msra.mxu0 0
  %1392 = vmatprep.subr.bf16.mxu0 0
  %1393 = vmatpush1.bf16.msra.mxu0 0
  %1394 = vmatprep.subr.bf16.mxu0 0
  %1395 = vmatpush1.bf16.msra.mxu0 0
  %1396 = vmatprep.subr.bf16.mxu0 0
  %1397 = vmatpush1.bf16.msra.mxu0 0
  %1398 = vmatprep.subr.bf16.mxu0 0
  %1399 = vmatpush1.bf16.msra.mxu0 0
  %1400 = vmatprep.subr.bf16.mxu0 0
  %1401 = vmatpush1.bf16.msra.mxu0 0
  %1402 = vmatprep.subr.bf16.mxu0 0
  %1403 = vmatpush1.bf16.msra.mxu0 0
  %1404 = vmatprep.subr.bf16.mxu0 0
  %1405 = vmatpush1.bf16.msra.mxu0 0
  %1406 = vmatprep.subr.bf16.mxu0 0
  %1407 = vmatpush1.bf16.msra.mxu0 0
  %1408 = vmatprep.subr.bf16.mxu0 0
  %1409 = vmatpush1.bf16.msra.mxu0 0
  %1410 = vmatprep.subr.bf16.mxu0 0
  %1411 = vmatpush1.bf16.msra.mxu0 0
  %1412 = vmatprep.subr.bf16.mxu0 0
  %1413 = vmatpush1.bf16.msra.mxu0 0
  %1414 = vmatprep.subr.bf16.mxu0 0
  %1415 = vmatpush1.bf16.msra.mxu0 0
  %1416 = vmatprep.mubr.bf16.mxu0 0
  %1417 = vmatmul.mubr.bf16.gmra.mrb[0].mxu0 %v1373
  %v1418 = vpop.f32.mrb[0].mxu0
  %v1419 = vadd.f32 0.0, %v1418
  %v1420 = vpop.f32.mrb[0].mxu0
  %v1421 = vadd.f32 0.0, %v1420
  %v1422 = vpop.f32.mrb[0].mxu0
  %v1423 = vadd.f32 0.0, %v1422
  %v1424 = vpop.f32.mrb[0].mxu0
  %v1425 = vadd.f32 0.0, %v1424
  %1426 = vmatprep.mubr.bf16.mxu0 0
  %1427 = vmatmul.mubr.bf16.gmra.mrb[0].mxu0 %v1376
  %v1428 = vpop.f32.mrb[0].mxu0
  %v1429 = vadd.f32 0.0, %v1428
  %v1430 = vpop.f32.mrb[0].mxu0
  %v1431 = vadd.f32 0.0, %v1430
  %v1432 = vpop.f32.mrb[0].mxu0
  %v1433 = vadd.f32 0.0, %v1432
  %v1434 = vpop.f32.mrb[0].mxu0
  %v1435 = vadd.f32 0.0, %v1434
  %1436 = vmatprep.mubr.bf16.mxu0 0
  %1437 = vmatmul.mubr.bf16.gmra.mrb[0].mxu0 %v1379
  %v1438 = vpop.f32.mrb[0].mxu0
  %v1439 = vadd.f32 0.0, %v1438
  %v1440 = vpop.f32.mrb[0].mxu0
  %v1441 = vadd.f32 0.0, %v1440
  %v1442 = vpop.f32.mrb[0].mxu0
  %v1443 = vadd.f32 0.0, %v1442
  %v1444 = vpop.f32.mrb[0].mxu0
  %v1445 = vadd.f32 0.0, %v1444
  %1446 = vmatprep.mubr.bf16.mxu0 0
  %1447 = vmatmul.mubr.bf16.gmra.mrb[0].mxu0 %v1382
  %v1448 = vpop.f32.mrb[0].mxu0
  %v1449 = vadd.f32 0.0, %v1448
  %v1450 = vpop.f32.mrb[0].mxu0
  %v1451 = vadd.f32 0.0, %v1450
  %v1452 = vpop.f32.mrb[0].mxu0
  %v1453 = vadd.f32 0.0, %v1452
  %v1454 = vpop.f32.mrb[0].mxu0
  %v1455 = vadd.f32 0.0, %v1454
  %1456 = vdwg.mxu0
  %v1457 = vpack.c.bf16 %v1317, %v1314
  %v1458 = vpack.c.bf16 %v1325, %v1322
  %v1459 = vpack.c.bf16 %v1333, %v1330
  %v1460 = vpack.c.bf16 %v1341, %v1338
  %1465 = vrot.lane.b32.xlu0 %v1457, 8
  %v1466 = vpop.permute.xlu0 %1465
  %1467 = vrot.lane.b32.xlu0 %v1458, 8
  %v1468 = vpop.permute.xlu0 %1467
  %1469 = vrot.lane.b32.xlu0 %v1459, 8
  %v1470 = vpop.permute.xlu0 %1469
  %1471 = vrot.lane.b32.xlu0 %v1460, 8
  %v1472 = vpop.permute.xlu0 %1471
  %1473 = vrot.lane.b32.xlu0 %v1457, 16
  %v1474 = vpop.permute.xlu0 %1473
  %1475 = vrot.lane.b32.xlu0 %v1458, 16
  %v1476 = vpop.permute.xlu0 %1475
  %1477 = vrot.lane.b32.xlu0 %v1459, 16
  %v1478 = vpop.permute.xlu0 %1477
  %1479 = vrot.lane.b32.xlu0 %v1460, 16
  %v1480 = vpop.permute.xlu0 %1479
  %1481 = vrot.lane.b32.xlu0 %v1457, 24
  %v1482 = vpop.permute.xlu0 %1481
  %1483 = vrot.lane.b32.xlu0 %v1458, 24
  %v1484 = vpop.permute.xlu0 %1483
  %1485 = vrot.lane.b32.xlu0 %v1459, 24
  %v1486 = vpop.permute.xlu0 %1485
  %1487 = vrot.lane.b32.xlu0 %v1460, 24
  %v1488 = vpop.permute.xlu0 %1487
  %1489 = vrot.lane.b32.xlu0 %v1457, 32
  %v1490 = vpop.permute.xlu0 %1489
  %1491 = vrot.lane.b32.xlu0 %v1458, 32
  %v1492 = vpop.permute.xlu0 %1491
  %1493 = vrot.lane.b32.xlu0 %v1459, 32
  %v1494 = vpop.permute.xlu0 %1493
  %1495 = vrot.lane.b32.xlu0 %v1460, 32
  %v1496 = vpop.permute.xlu0 %1495
  %1497 = vrot.lane.b32.xlu0 %v1457, 40
  %v1498 = vpop.permute.xlu0 %1497
  %1499 = vrot.lane.b32.xlu0 %v1458, 40
  %v1500 = vpop.permute.xlu0 %1499
  %1501 = vrot.lane.b32.xlu0 %v1459, 40
  %v1502 = vpop.permute.xlu0 %1501
  %1503 = vrot.lane.b32.xlu0 %v1460, 40
  %v1504 = vpop.permute.xlu0 %1503
  %1505 = vrot.lane.b32.xlu0 %v1457, 48
  %v1506 = vpop.permute.xlu0 %1505
  %1507 = vrot.lane.b32.xlu0 %v1458, 48
  %v1508 = vpop.permute.xlu0 %1507
  %1509 = vrot.lane.b32.xlu0 %v1459, 48
  %v1510 = vpop.permute.xlu0 %1509
  %1511 = vrot.lane.b32.xlu0 %v1460, 48
  %v1512 = vpop.permute.xlu0 %1511
  %1513 = vrot.lane.b32.xlu0 %v1457, 56
  %v1514 = vpop.permute.xlu0 %1513
  %1515 = vrot.lane.b32.xlu0 %v1458, 56
  %v1516 = vpop.permute.xlu0 %1515
  %1517 = vrot.lane.b32.xlu0 %v1459, 56
  %v1518 = vpop.permute.xlu0 %1517
  %1519 = vrot.lane.b32.xlu0 %v1460, 56
  %v1520 = vpop.permute.xlu0 %1519
  %vm1521 = vcmask 64512
  %v1524 = vsel %vm1521, %v1457, %v1466
  %v1527 = vsel %vm1521, %v1458, %v1468
  %v1530 = vsel %vm1521, %v1459, %v1470
  %v1533 = vsel %vm1521, %v1460, %v1472
  %vm1534 = vcmask 130048
  %v1536 = vsel %vm1534, %v1524, %v1474
  %v1538 = vsel %vm1534, %v1527, %v1476
  %v1540 = vsel %vm1534, %v1530, %v1478
  %v1542 = vsel %vm1534, %v1533, %v1480
  %vm1543 = vcmask 195584
  %v1545 = vsel %vm1543, %v1536, %v1482
  %v1547 = vsel %vm1543, %v1538, %v1484
  %v1549 = vsel %vm1543, %v1540, %v1486
  %v1551 = vsel %vm1543, %v1542, %v1488
  %v1553 = vsel %vm620, %v1545, %v1490
  %v1555 = vsel %vm620, %v1547, %v1492
  %v1557 = vsel %vm620, %v1549, %v1494
  %v1559 = vsel %vm620, %v1551, %v1496
  %vm1560 = vcmask 326656
  %v1562 = vsel %vm1560, %v1553, %v1498
  %v1564 = vsel %vm1560, %v1555, %v1500
  %v1566 = vsel %vm1560, %v1557, %v1502
  %v1568 = vsel %vm1560, %v1559, %v1504
  %vm1569 = vcmask 392192
  %v1571 = vsel %vm1569, %v1562, %v1506
  %v1573 = vsel %vm1569, %v1564, %v1508
  %v1575 = vsel %vm1569, %v1566, %v1510
  %v1577 = vsel %vm1569, %v1568, %v1512
  %vm1578 = vcmask 457728
  %v1580 = vsel %vm1578, %v1571, %v1514
  %v1583 = vsel %vm1578, %v1573, %v1516
  %v1586 = vsel %vm1578, %v1575, %v1518
  %v1589 = vsel %vm1578, %v1577, %v1520
  %v1599 = vunpack.c.l.b16 %v828
  %v1600 = vunpack.c.l.b16 %v829
  %v1601 = vunpack.c.l.b16 %v830
  %v1602 = vunpack.c.l.b16 %v831
  %v1603 = vunpack.c.l.b16 %v832
  %v1604 = vunpack.c.l.b16 %v833
  %v1605 = vunpack.c.l.b16 %v834
  %v1606 = vunpack.c.l.b16 %v835
  %v1607 = vpack.c.b16 %v1600, %v1599
  %v1608 = vpack.c.b16 %v1602, %v1601
  %v1609 = vpack.c.b16 %v1604, %v1603
  %v1610 = vpack.c.b16 %v1606, %v1605
  %v1615 = vmul.bf16 %v1580, %v1607
  %v1616 = vmul.bf16 %v1583, %v1608
  %v1617 = vmul.bf16 %v1586, %v1609
  %v1618 = vmul.bf16 %v1589, %v1610
  %1619 = vrot.lane.b32.xlu0 %v1457, 120
  %v1620 = vpop.permute.xlu0 %1619
  %1621 = vrot.lane.b32.xlu0 %v1458, 120
  %v1622 = vpop.permute.xlu0 %1621
  %1623 = vrot.lane.b32.xlu0 %v1459, 120
  %v1624 = vpop.permute.xlu0 %1623
  %1625 = vrot.lane.b32.xlu0 %v1460, 120
  %v1626 = vpop.permute.xlu0 %1625
  %v1628 = vsel %vm1521, %v1620, %v1457
  %v1630 = vsel %vm1521, %v1622, %v1458
  %v1632 = vsel %vm1521, %v1624, %v1459
  %v1634 = vsel %vm1521, %v1626, %v1460
  %v1635 = vsel %vm1534, %v1628, %v1466
  %v1636 = vsel %vm1534, %v1630, %v1468
  %v1637 = vsel %vm1534, %v1632, %v1470
  %v1638 = vsel %vm1534, %v1634, %v1472
  %v1639 = vsel %vm1543, %v1635, %v1474
  %v1640 = vsel %vm1543, %v1636, %v1476
  %v1641 = vsel %vm1543, %v1637, %v1478
  %v1642 = vsel %vm1543, %v1638, %v1480
  %v1643 = vsel %vm620, %v1639, %v1482
  %v1644 = vsel %vm620, %v1640, %v1484
  %v1645 = vsel %vm620, %v1641, %v1486
  %v1646 = vsel %vm620, %v1642, %v1488
  %v1647 = vsel %vm1560, %v1643, %v1490
  %v1648 = vsel %vm1560, %v1644, %v1492
  %v1649 = vsel %vm1560, %v1645, %v1494
  %v1650 = vsel %vm1560, %v1646, %v1496
  %v1651 = vsel %vm1569, %v1647, %v1498
  %v1652 = vsel %vm1569, %v1648, %v1500
  %v1653 = vsel %vm1569, %v1649, %v1502
  %v1654 = vsel %vm1569, %v1650, %v1504
  %v1655 = vsel %vm1578, %v1651, %v1506
  %v1657 = vsel %vm1578, %v1652, %v1508
  %v1659 = vsel %vm1578, %v1653, %v1510
  %v1661 = vsel %vm1578, %v1654, %v1512
  %v1663 = vmul.bf16 %v1655, %v1607
  %v1664 = vmul.bf16 %v1657, %v1608
  %v1665 = vmul.bf16 %v1659, %v1609
  %v1666 = vmul.bf16 %v1661, %v1610
  %1667 = vrot.lane.b32.xlu0 %v1457, 112
  %v1668 = vpop.permute.xlu0 %1667
  %1669 = vrot.lane.b32.xlu0 %v1458, 112
  %v1670 = vpop.permute.xlu0 %1669
  %1671 = vrot.lane.b32.xlu0 %v1459, 112
  %v1672 = vpop.permute.xlu0 %1671
  %1673 = vrot.lane.b32.xlu0 %v1460, 112
  %v1674 = vpop.permute.xlu0 %1673
  %v1676 = vsel %vm1521, %v1668, %v1620
  %v1678 = vsel %vm1521, %v1670, %v1622
  %v1680 = vsel %vm1521, %v1672, %v1624
  %v1682 = vsel %vm1521, %v1674, %v1626
  %v1683 = vsel %vm1534, %v1676, %v1457
  %v1684 = vsel %vm1534, %v1678, %v1458
  %v1685 = vsel %vm1534, %v1680, %v1459
  %v1686 = vsel %vm1534, %v1682, %v1460
  %v1687 = vsel %vm1543, %v1683, %v1466
  %v1688 = vsel %vm1543, %v1684, %v1468
  %v1689 = vsel %vm1543, %v1685, %v1470
  %v1690 = vsel %vm1543, %v1686, %v1472
  %v1691 = vsel %vm620, %v1687, %v1474
  %v1692 = vsel %vm620, %v1688, %v1476
  %v1693 = vsel %vm620, %v1689, %v1478
  %v1694 = vsel %vm620, %v1690, %v1480
  %v1695 = vsel %vm1560, %v1691, %v1482
  %v1696 = vsel %vm1560, %v1692, %v1484
  %v1697 = vsel %vm1560, %v1693, %v1486
  %v1698 = vsel %vm1560, %v1694, %v1488
  %v1699 = vsel %vm1569, %v1695, %v1490
  %v1700 = vsel %vm1569, %v1696, %v1492
  %v1701 = vsel %vm1569, %v1697, %v1494
  %v1702 = vsel %vm1569, %v1698, %v1496
  %v1703 = vsel %vm1578, %v1699, %v1498
  %v1705 = vsel %vm1578, %v1700, %v1500
  %v1707 = vsel %vm1578, %v1701, %v1502
  %v1709 = vsel %vm1578, %v1702, %v1504
  %v1711 = vmul.bf16 %v1703, %v1607
  %v1712 = vmul.bf16 %v1705, %v1608
  %v1713 = vmul.bf16 %v1707, %v1609
  %v1714 = vmul.bf16 %v1709, %v1610
  %1715 = vrot.lane.b32.xlu0 %v1457, 104
  %v1716 = vpop.permute.xlu0 %1715
  %1717 = vrot.lane.b32.xlu0 %v1458, 104
  %v1718 = vpop.permute.xlu0 %1717
  %1719 = vrot.lane.b32.xlu0 %v1459, 104
  %v1720 = vpop.permute.xlu0 %1719
  %1721 = vrot.lane.b32.xlu0 %v1460, 104
  %v1722 = vpop.permute.xlu0 %1721
  %v1724 = vsel %vm1521, %v1716, %v1668
  %v1726 = vsel %vm1521, %v1718, %v1670
  %v1728 = vsel %vm1521, %v1720, %v1672
  %v1730 = vsel %vm1521, %v1722, %v1674
  %v1731 = vsel %vm1534, %v1724, %v1620
  %v1732 = vsel %vm1534, %v1726, %v1622
  %v1733 = vsel %vm1534, %v1728, %v1624
  %v1734 = vsel %vm1534, %v1730, %v1626
  %v1735 = vsel %vm1543, %v1731, %v1457
  %v1736 = vsel %vm1543, %v1732, %v1458
  %v1737 = vsel %vm1543, %v1733, %v1459
  %v1738 = vsel %vm1543, %v1734, %v1460
  %v1739 = vsel %vm620, %v1735, %v1466
  %v1740 = vsel %vm620, %v1736, %v1468
  %v1741 = vsel %vm620, %v1737, %v1470
  %v1742 = vsel %vm620, %v1738, %v1472
  %v1743 = vsel %vm1560, %v1739, %v1474
  %v1744 = vsel %vm1560, %v1740, %v1476
  %v1745 = vsel %vm1560, %v1741, %v1478
  %v1746 = vsel %vm1560, %v1742, %v1480
  %v1747 = vsel %vm1569, %v1743, %v1482
  %v1748 = vsel %vm1569, %v1744, %v1484
  %v1749 = vsel %vm1569, %v1745, %v1486
  %v1750 = vsel %vm1569, %v1746, %v1488
  %v1751 = vsel %vm1578, %v1747, %v1490
  %v1753 = vsel %vm1578, %v1748, %v1492
  %v1755 = vsel %vm1578, %v1749, %v1494
  %v1757 = vsel %vm1578, %v1750, %v1496
  %v1759 = vmul.bf16 %v1751, %v1607
  %v1760 = vmul.bf16 %v1753, %v1608
  %v1761 = vmul.bf16 %v1755, %v1609
  %v1762 = vmul.bf16 %v1757, %v1610
  %1763 = vrot.lane.b32.xlu0 %v1457, 96
  %v1764 = vpop.permute.xlu0 %1763
  %1765 = vrot.lane.b32.xlu0 %v1458, 96
  %v1766 = vpop.permute.xlu0 %1765
  %1767 = vrot.lane.b32.xlu0 %v1459, 96
  %v1768 = vpop.permute.xlu0 %1767
  %1769 = vrot.lane.b32.xlu0 %v1460, 96
  %v1770 = vpop.permute.xlu0 %1769
  %v1772 = vsel %vm1521, %v1764, %v1716
  %v1774 = vsel %vm1521, %v1766, %v1718
  %v1776 = vsel %vm1521, %v1768, %v1720
  %v1778 = vsel %vm1521, %v1770, %v1722
  %v1779 = vsel %vm1534, %v1772, %v1668
  %v1780 = vsel %vm1534, %v1774, %v1670
  %v1781 = vsel %vm1534, %v1776, %v1672
  %v1782 = vsel %vm1534, %v1778, %v1674
  %v1783 = vsel %vm1543, %v1779, %v1620
  %v1784 = vsel %vm1543, %v1780, %v1622
  %v1785 = vsel %vm1543, %v1781, %v1624
  %v1786 = vsel %vm1543, %v1782, %v1626
  %v1787 = vsel %vm620, %v1783, %v1457
  %v1788 = vsel %vm620, %v1784, %v1458
  %v1789 = vsel %vm620, %v1785, %v1459
  %v1790 = vsel %vm620, %v1786, %v1460
  %v1791 = vsel %vm1560, %v1787, %v1466
  %v1792 = vsel %vm1560, %v1788, %v1468
  %v1793 = vsel %vm1560, %v1789, %v1470
  %v1794 = vsel %vm1560, %v1790, %v1472
  %v1795 = vsel %vm1569, %v1791, %v1474
  %v1796 = vsel %vm1569, %v1792, %v1476
  %v1797 = vsel %vm1569, %v1793, %v1478
  %v1798 = vsel %vm1569, %v1794, %v1480
  %v1799 = vsel %vm1578, %v1795, %v1482
  %v1801 = vsel %vm1578, %v1796, %v1484
  %v1803 = vsel %vm1578, %v1797, %v1486
  %v1805 = vsel %vm1578, %v1798, %v1488
  %v1807 = vmul.bf16 %v1799, %v1607
  %v1808 = vmul.bf16 %v1801, %v1608
  %v1809 = vmul.bf16 %v1803, %v1609
  %v1810 = vmul.bf16 %v1805, %v1610
  %1811 = vrot.lane.b32.xlu0 %v1457, 88
  %v1812 = vpop.permute.xlu0 %1811
  %1813 = vrot.lane.b32.xlu0 %v1458, 88
  %v1814 = vpop.permute.xlu0 %1813
  %1815 = vrot.lane.b32.xlu0 %v1459, 88
  %v1816 = vpop.permute.xlu0 %1815
  %1817 = vrot.lane.b32.xlu0 %v1460, 88
  %v1818 = vpop.permute.xlu0 %1817
  %v1820 = vsel %vm1521, %v1812, %v1764
  %v1822 = vsel %vm1521, %v1814, %v1766
  %v1824 = vsel %vm1521, %v1816, %v1768
  %v1826 = vsel %vm1521, %v1818, %v1770
  %v1827 = vsel %vm1534, %v1820, %v1716
  %v1828 = vsel %vm1534, %v1822, %v1718
  %v1829 = vsel %vm1534, %v1824, %v1720
  %v1830 = vsel %vm1534, %v1826, %v1722
  %v1831 = vsel %vm1543, %v1827, %v1668
  %v1832 = vsel %vm1543, %v1828, %v1670
  %v1833 = vsel %vm1543, %v1829, %v1672
  %v1834 = vsel %vm1543, %v1830, %v1674
  %v1835 = vsel %vm620, %v1831, %v1620
  %v1836 = vsel %vm620, %v1832, %v1622
  %v1837 = vsel %vm620, %v1833, %v1624
  %v1838 = vsel %vm620, %v1834, %v1626
  %v1839 = vsel %vm1560, %v1835, %v1457
  %v1840 = vsel %vm1560, %v1836, %v1458
  %v1841 = vsel %vm1560, %v1837, %v1459
  %v1842 = vsel %vm1560, %v1838, %v1460
  %v1843 = vsel %vm1569, %v1839, %v1466
  %v1844 = vsel %vm1569, %v1840, %v1468
  %v1845 = vsel %vm1569, %v1841, %v1470
  %v1846 = vsel %vm1569, %v1842, %v1472
  %v1847 = vsel %vm1578, %v1843, %v1474
  %v1849 = vsel %vm1578, %v1844, %v1476
  %v1851 = vsel %vm1578, %v1845, %v1478
  %v1853 = vsel %vm1578, %v1846, %v1480
  %v1855 = vmul.bf16 %v1847, %v1607
  %v1856 = vmul.bf16 %v1849, %v1608
  %v1857 = vmul.bf16 %v1851, %v1609
  %v1858 = vmul.bf16 %v1853, %v1610
  %1859 = vrot.lane.b32.xlu0 %v1457, 80
  %v1860 = vpop.permute.xlu0 %1859
  %1861 = vrot.lane.b32.xlu0 %v1458, 80
  %v1862 = vpop.permute.xlu0 %1861
  %1863 = vrot.lane.b32.xlu0 %v1459, 80
  %v1864 = vpop.permute.xlu0 %1863
  %1865 = vrot.lane.b32.xlu0 %v1460, 80
  %v1866 = vpop.permute.xlu0 %1865
  %v1868 = vsel %vm1521, %v1860, %v1812
  %v1870 = vsel %vm1521, %v1862, %v1814
  %v1872 = vsel %vm1521, %v1864, %v1816
  %v1874 = vsel %vm1521, %v1866, %v1818
  %v1875 = vsel %vm1534, %v1868, %v1764
  %v1876 = vsel %vm1534, %v1870, %v1766
  %v1877 = vsel %vm1534, %v1872, %v1768
  %v1878 = vsel %vm1534, %v1874, %v1770
  %v1879 = vsel %vm1543, %v1875, %v1716
  %v1880 = vsel %vm1543, %v1876, %v1718
  %v1881 = vsel %vm1543, %v1877, %v1720
  %v1882 = vsel %vm1543, %v1878, %v1722
  %v1883 = vsel %vm620, %v1879, %v1668
  %v1884 = vsel %vm620, %v1880, %v1670
  %v1885 = vsel %vm620, %v1881, %v1672
  %v1886 = vsel %vm620, %v1882, %v1674
  %v1887 = vsel %vm1560, %v1883, %v1620
  %v1888 = vsel %vm1560, %v1884, %v1622
  %v1889 = vsel %vm1560, %v1885, %v1624
  %v1890 = vsel %vm1560, %v1886, %v1626
  %v1891 = vsel %vm1569, %v1887, %v1457
  %v1892 = vsel %vm1569, %v1888, %v1458
  %v1893 = vsel %vm1569, %v1889, %v1459
  %v1894 = vsel %vm1569, %v1890, %v1460
  %v1895 = vsel %vm1578, %v1891, %v1466
  %v1897 = vsel %vm1578, %v1892, %v1468
  %v1899 = vsel %vm1578, %v1893, %v1470
  %v1901 = vsel %vm1578, %v1894, %v1472
  %v1903 = vmul.bf16 %v1895, %v1607
  %v1904 = vmul.bf16 %v1897, %v1608
  %v1905 = vmul.bf16 %v1899, %v1609
  %v1906 = vmul.bf16 %v1901, %v1610
  %1907 = vrot.lane.b32.xlu0 %v1457, 72
  %v1908 = vpop.permute.xlu0 %1907
  %1909 = vrot.lane.b32.xlu0 %v1458, 72
  %v1910 = vpop.permute.xlu0 %1909
  %1911 = vrot.lane.b32.xlu0 %v1459, 72
  %v1912 = vpop.permute.xlu0 %1911
  %1913 = vrot.lane.b32.xlu0 %v1460, 72
  %v1914 = vpop.permute.xlu0 %1913
  %v1916 = vsel %vm1521, %v1908, %v1860
  %v1918 = vsel %vm1521, %v1910, %v1862
  %v1920 = vsel %vm1521, %v1912, %v1864
  %v1922 = vsel %vm1521, %v1914, %v1866
  %v1923 = vsel %vm1534, %v1916, %v1812
  %v1924 = vsel %vm1534, %v1918, %v1814
  %v1925 = vsel %vm1534, %v1920, %v1816
  %v1926 = vsel %vm1534, %v1922, %v1818
  %v1927 = vsel %vm1543, %v1923, %v1764
  %v1928 = vsel %vm1543, %v1924, %v1766
  %v1929 = vsel %vm1543, %v1925, %v1768
  %v1930 = vsel %vm1543, %v1926, %v1770
  %v1931 = vsel %vm620, %v1927, %v1716
  %v1932 = vsel %vm620, %v1928, %v1718
  %v1933 = vsel %vm620, %v1929, %v1720
  %v1934 = vsel %vm620, %v1930, %v1722
  %v1935 = vsel %vm1560, %v1931, %v1668
  %v1936 = vsel %vm1560, %v1932, %v1670
  %v1937 = vsel %vm1560, %v1933, %v1672
  %v1938 = vsel %vm1560, %v1934, %v1674
  %v1939 = vsel %vm1569, %v1935, %v1620
  %v1940 = vsel %vm1569, %v1936, %v1622
  %v1941 = vsel %vm1569, %v1937, %v1624
  %v1942 = vsel %vm1569, %v1938, %v1626
  %v1943 = vsel %vm1578, %v1939, %v1457
  %v1945 = vsel %vm1578, %v1940, %v1458
  %v1947 = vsel %vm1578, %v1941, %v1459
  %v1949 = vsel %vm1578, %v1942, %v1460
  %v1951 = vmul.bf16 %v1943, %v1607
  %v1952 = vmul.bf16 %v1945, %v1608
  %v1953 = vmul.bf16 %v1947, %v1609
  %v1954 = vmul.bf16 %v1949, %v1610
  %1959 = vrot.lane.b32.xlu0 %v1663, 64
  %v1960 = vpop.permute.xlu0 %1959
  %1961 = vrot.lane.b32.xlu0 %v1664, 64
  %v1962 = vpop.permute.xlu0 %1961
  %1963 = vrot.lane.b32.xlu0 %v1665, 64
  %v1964 = vpop.permute.xlu0 %1963
  %1965 = vrot.lane.b32.xlu0 %v1666, 64
  %v1966 = vpop.permute.xlu0 %1965
  %1971 = vrot.lane.b32.xlu0 %v1759, 64
  %v1972 = vpop.permute.xlu0 %1971
  %1973 = vrot.lane.b32.xlu0 %v1760, 64
  %v1974 = vpop.permute.xlu0 %1973
  %1975 = vrot.lane.b32.xlu0 %v1761, 64
  %v1976 = vpop.permute.xlu0 %1975
  %1977 = vrot.lane.b32.xlu0 %v1762, 64
  %v1978 = vpop.permute.xlu0 %1977
  %1983 = vrot.lane.b32.xlu0 %v1855, 64
  %v1984 = vpop.permute.xlu0 %1983
  %1985 = vrot.lane.b32.xlu0 %v1856, 64
  %v1986 = vpop.permute.xlu0 %1985
  %1987 = vrot.lane.b32.xlu0 %v1857, 64
  %v1988 = vpop.permute.xlu0 %1987
  %1989 = vrot.lane.b32.xlu0 %v1858, 64
  %v1990 = vpop.permute.xlu0 %1989
  %1995 = vrot.lane.b32.xlu0 %v1951, 64
  %v1996 = vpop.permute.xlu0 %1995
  %1997 = vrot.lane.b32.xlu0 %v1952, 64
  %v1998 = vpop.permute.xlu0 %1997
  %1999 = vrot.lane.b32.xlu0 %v1953, 64
  %v2000 = vpop.permute.xlu0 %1999
  %2001 = vrot.lane.b32.xlu0 %v1954, 64
  %v2002 = vpop.permute.xlu0 %2001
  %v2005 = vsel %vm291, %v1615, %v1960
  %v2009 = vsel %vm291, %v1616, %v1962
  %v2013 = vsel %vm291, %v1617, %v1964
  %v2017 = vsel %vm291, %v1618, %v1966
  %v2021 = vsel %vm291, %v1711, %v1972
  %v2025 = vsel %vm291, %v1712, %v1974
  %v2029 = vsel %vm291, %v1713, %v1976
  %v2033 = vsel %vm291, %v1714, %v1978
  %v2037 = vsel %vm291, %v1807, %v1984
  %v2041 = vsel %vm291, %v1808, %v1986
  %v2045 = vsel %vm291, %v1809, %v1988
  %v2049 = vsel %vm291, %v1810, %v1990
  %v2053 = vsel %vm291, %v1903, %v1996
  %v2057 = vsel %vm291, %v1904, %v1998
  %v2061 = vsel %vm291, %v1905, %v2000
  %v2065 = vsel %vm291, %v1906, %v2002
  %2075 = vrot.lane.b32.xlu0 %v1419, 96
  %v2076 = vpop.permute.xlu0 %2075
  %2077 = vrot.lane.b32.xlu0 %v1423, 96
  %v2078 = vpop.permute.xlu0 %2077
  %2079 = vrot.lane.b32.xlu0 %v1429, 96
  %v2080 = vpop.permute.xlu0 %2079
  %2081 = vrot.lane.b32.xlu0 %v1433, 96
  %v2082 = vpop.permute.xlu0 %2081
  %2083 = vrot.lane.b32.xlu0 %v1439, 96
  %v2084 = vpop.permute.xlu0 %2083
  %2085 = vrot.lane.b32.xlu0 %v1443, 96
  %v2086 = vpop.permute.xlu0 %2085
  %2087 = vrot.lane.b32.xlu0 %v1449, 96
  %v2088 = vpop.permute.xlu0 %2087
  %2089 = vrot.lane.b32.xlu0 %v1453, 96
  %v2090 = vpop.permute.xlu0 %2089
  %2099 = vrot.lane.b32.xlu0 %v1419, 64
  %v2100 = vpop.permute.xlu0 %2099
  %2101 = vrot.lane.b32.xlu0 %v1423, 64
  %v2102 = vpop.permute.xlu0 %2101
  %2103 = vrot.lane.b32.xlu0 %v1429, 64
  %v2104 = vpop.permute.xlu0 %2103
  %2105 = vrot.lane.b32.xlu0 %v1433, 64
  %v2106 = vpop.permute.xlu0 %2105
  %2107 = vrot.lane.b32.xlu0 %v1439, 64
  %v2108 = vpop.permute.xlu0 %2107
  %2109 = vrot.lane.b32.xlu0 %v1443, 64
  %v2110 = vpop.permute.xlu0 %2109
  %2111 = vrot.lane.b32.xlu0 %v1449, 64
  %v2112 = vpop.permute.xlu0 %2111
  %2113 = vrot.lane.b32.xlu0 %v1453, 64
  %v2114 = vpop.permute.xlu0 %2113
  %2123 = vrot.lane.b32.xlu0 %v1419, 32
  %v2124 = vpop.permute.xlu0 %2123
  %2125 = vrot.lane.b32.xlu0 %v1423, 32
  %v2126 = vpop.permute.xlu0 %2125
  %2127 = vrot.lane.b32.xlu0 %v1429, 32
  %v2128 = vpop.permute.xlu0 %2127
  %2129 = vrot.lane.b32.xlu0 %v1433, 32
  %v2130 = vpop.permute.xlu0 %2129
  %2131 = vrot.lane.b32.xlu0 %v1439, 32
  %v2132 = vpop.permute.xlu0 %2131
  %2133 = vrot.lane.b32.xlu0 %v1443, 32
  %v2134 = vpop.permute.xlu0 %2133
  %2135 = vrot.lane.b32.xlu0 %v1449, 32
  %v2136 = vpop.permute.xlu0 %2135
  %2137 = vrot.lane.b32.xlu0 %v1453, 32
  %v2138 = vpop.permute.xlu0 %2137
  %2155 = vrot.lane.b32.xlu0 %v1421, 96
  %v2156 = vpop.permute.xlu0 %2155
  %2157 = vrot.lane.b32.xlu0 %v1425, 96
  %v2158 = vpop.permute.xlu0 %2157
  %2159 = vrot.lane.b32.xlu0 %v1431, 96
  %v2160 = vpop.permute.xlu0 %2159
  %2161 = vrot.lane.b32.xlu0 %v1435, 96
  %v2162 = vpop.permute.xlu0 %2161
  %2163 = vrot.lane.b32.xlu0 %v1441, 96
  %v2164 = vpop.permute.xlu0 %2163
  %2165 = vrot.lane.b32.xlu0 %v1445, 96
  %v2166 = vpop.permute.xlu0 %2165
  %2167 = vrot.lane.b32.xlu0 %v1451, 96
  %v2168 = vpop.permute.xlu0 %2167
  %2169 = vrot.lane.b32.xlu0 %v1455, 96
  %v2170 = vpop.permute.xlu0 %2169
  %2179 = vrot.lane.b32.xlu0 %v1421, 64
  %v2180 = vpop.permute.xlu0 %2179
  %2181 = vrot.lane.b32.xlu0 %v1425, 64
  %v2182 = vpop.permute.xlu0 %2181
  %2183 = vrot.lane.b32.xlu0 %v1431, 64
  %v2184 = vpop.permute.xlu0 %2183
  %2185 = vrot.lane.b32.xlu0 %v1435, 64
  %v2186 = vpop.permute.xlu0 %2185
  %2187 = vrot.lane.b32.xlu0 %v1441, 64
  %v2188 = vpop.permute.xlu0 %2187
  %2189 = vrot.lane.b32.xlu0 %v1445, 64
  %v2190 = vpop.permute.xlu0 %2189
  %2191 = vrot.lane.b32.xlu0 %v1451, 64
  %v2192 = vpop.permute.xlu0 %2191
  %2193 = vrot.lane.b32.xlu0 %v1455, 64
  %v2194 = vpop.permute.xlu0 %2193
  %2203 = vrot.lane.b32.xlu0 %v1421, 32
  %v2204 = vpop.permute.xlu0 %2203
  %2205 = vrot.lane.b32.xlu0 %v1425, 32
  %v2206 = vpop.permute.xlu0 %2205
  %2207 = vrot.lane.b32.xlu0 %v1431, 32
  %v2208 = vpop.permute.xlu0 %2207
  %2209 = vrot.lane.b32.xlu0 %v1435, 32
  %v2210 = vpop.permute.xlu0 %2209
  %2211 = vrot.lane.b32.xlu0 %v1441, 32
  %v2212 = vpop.permute.xlu0 %2211
  %2213 = vrot.lane.b32.xlu0 %v1445, 32
  %v2214 = vpop.permute.xlu0 %2213
  %2215 = vrot.lane.b32.xlu0 %v1451, 32
  %v2216 = vpop.permute.xlu0 %2215
  %2217 = vrot.lane.b32.xlu0 %v1455, 32
  %v2218 = vpop.permute.xlu0 %2217
  %v2227 = vpack.c.bf16 %v1423, %v1419
  %v2228 = vpack.c.bf16 %v1433, %v1429
  %v2229 = vpack.c.bf16 %v1443, %v1439
  %v2230 = vpack.c.bf16 %v1453, %v1449
  %v2231 = vpack.c.bf16 %v2078, %v2076
  %v2232 = vpack.c.bf16 %v2082, %v2080
  %v2233 = vpack.c.bf16 %v2086, %v2084
  %v2234 = vpack.c.bf16 %v2090, %v2088
  %v2235 = vpack.c.bf16 %v2102, %v2100
  %v2236 = vpack.c.bf16 %v2106, %v2104
  %v2237 = vpack.c.bf16 %v2110, %v2108
  %v2238 = vpack.c.bf16 %v2114, %v2112
  %v2239 = vpack.c.bf16 %v2126, %v2124
  %v2240 = vpack.c.bf16 %v2130, %v2128
  %v2241 = vpack.c.bf16 %v2134, %v2132
  %v2242 = vpack.c.bf16 %v2138, %v2136
  %v2243 = vpack.c.bf16 %v1425, %v1421
  %v2244 = vpack.c.bf16 %v1435, %v1431
  %v2245 = vpack.c.bf16 %v1445, %v1441
  %v2246 = vpack.c.bf16 %v1455, %v1451
  %v2247 = vpack.c.bf16 %v2158, %v2156
  %v2248 = vpack.c.bf16 %v2162, %v2160
  %v2249 = vpack.c.bf16 %v2166, %v2164
  %v2250 = vpack.c.bf16 %v2170, %v2168
  %v2251 = vpack.c.bf16 %v2182, %v2180
  %v2252 = vpack.c.bf16 %v2186, %v2184
  %v2253 = vpack.c.bf16 %v2190, %v2188
  %v2254 = vpack.c.bf16 %v2194, %v2192
  %v2255 = vpack.c.bf16 %v2206, %v2204
  %v2256 = vpack.c.bf16 %v2210, %v2208
  %v2257 = vpack.c.bf16 %v2214, %v2212
  %v2258 = vpack.c.bf16 %v2218, %v2216
  %2259 = vmatprep.subr.bf16.mxu0 0
  %2260 = vmatpush1.bf16.msra.mxu0 %v2227
  %2261 = vmatprep.subr.bf16.mxu0 0
  %2262 = vmatpush1.bf16.msra.mxu0 %v2228
  %2263 = vmatprep.subr.bf16.mxu0 0
  %2264 = vmatpush1.bf16.msra.mxu0 %v2229
  %2265 = vmatprep.subr.bf16.mxu0 0
  %2266 = vmatpush1.bf16.msra.mxu0 %v2230
  %2267 = vmatprep.subr.bf16.mxu0 0
  %2268 = vmatpush1.bf16.msra.mxu0 %v2231
  %2269 = vmatprep.subr.bf16.mxu0 0
  %2270 = vmatpush1.bf16.msra.mxu0 %v2232
  %2271 = vmatprep.subr.bf16.mxu0 0
  %2272 = vmatpush1.bf16.msra.mxu0 %v2233
  %2273 = vmatprep.subr.bf16.mxu0 0
  %2274 = vmatpush1.bf16.msra.mxu0 %v2234
  %2275 = vmatprep.subr.bf16.mxu0 0
  %2276 = vmatpush1.bf16.msra.mxu0 %v2235
  %2277 = vmatprep.subr.bf16.mxu0 0
  %2278 = vmatpush1.bf16.msra.mxu0 %v2236
  %2279 = vmatprep.subr.bf16.mxu0 0
  %2280 = vmatpush1.bf16.msra.mxu0 %v2237
  %2281 = vmatprep.subr.bf16.mxu0 0
  %2282 = vmatpush1.bf16.msra.mxu0 %v2238
  %2283 = vmatprep.subr.bf16.mxu0 0
  %2284 = vmatpush1.bf16.msra.mxu0 %v2239
  %2285 = vmatprep.subr.bf16.mxu0 0
  %2286 = vmatpush1.bf16.msra.mxu0 %v2240
  %2287 = vmatprep.subr.bf16.mxu0 0
  %2288 = vmatpush1.bf16.msra.mxu0 %v2241
  %2289 = vmatprep.subr.bf16.mxu0 0
  %2290 = vmatpush1.bf16.msra.mxu0 %v2242
  %2291 = vmatprep.mubr.bf16.mxu0 %v2021
  %2292 = vmatmul.mubr.bf16.gmra.mrb[0].mxu0 %v2005
  %v2293 = vpop.f32.mrb[0].mxu0
  %v2294 = vadd.f32 0.0, %v2293
  %v2295 = vpop.f32.mrb[0].mxu0
  %v2296 = vpop.f32.mrb[0].mxu0
  %v2297 = vadd.f32 0.0, %v2296
  %v2298 = vpop.f32.mrb[0].mxu0
  %2299 = vmatprep.mubr.bf16.mxu0 %v2025
  %2300 = vmatmul.mubr.bf16.gmra.mrb[0].mxu0 %v2009
  %v2301 = vpop.f32.mrb[0].mxu0
  %v2302 = vadd.f32 0.0, %v2301
  %v2303 = vpop.f32.mrb[0].mxu0
  %v2304 = vpop.f32.mrb[0].mxu0
  %v2305 = vadd.f32 0.0, %v2304
  %v2306 = vpop.f32.mrb[0].mxu0
  %2307 = vmatprep.mubr.bf16.mxu0 %v2029
  %2308 = vmatmul.mubr.bf16.gmra.mrb[0].mxu0 %v2013
  %v2309 = vpop.f32.mrb[0].mxu0
  %v2310 = vadd.f32 0.0, %v2309
  %v2311 = vpop.f32.mrb[0].mxu0
  %v2312 = vpop.f32.mrb[0].mxu0
  %v2313 = vadd.f32 0.0, %v2312
  %v2314 = vpop.f32.mrb[0].mxu0
  %2315 = vmatprep.mubr.bf16.mxu0 %v2033
  %2316 = vmatmul.mubr.bf16.gmra.mrb[0].mxu0 %v2017
  %v2317 = vpop.f32.mrb[0].mxu0
  %v2318 = vadd.f32 0.0, %v2317
  %v2319 = vpop.f32.mrb[0].mxu0
  %v2320 = vpop.f32.mrb[0].mxu0
  %v2321 = vadd.f32 0.0, %v2320
  %v2322 = vpop.f32.mrb[0].mxu0
  %2323 = vdwg.mxu0
  %2324 = vmatprep.subr.bf16.mxu0 0
  %2325 = vmatpush1.bf16.msra.mxu0 %v2243
  %2326 = vmatprep.subr.bf16.mxu0 0
  %2327 = vmatpush1.bf16.msra.mxu0 %v2244
  %2328 = vmatprep.subr.bf16.mxu0 0
  %2329 = vmatpush1.bf16.msra.mxu0 %v2245
  %2330 = vmatprep.subr.bf16.mxu0 0
  %2331 = vmatpush1.bf16.msra.mxu0 %v2246
  %2332 = vmatprep.subr.bf16.mxu0 0
  %2333 = vmatpush1.bf16.msra.mxu0 %v2247
  %2334 = vmatprep.subr.bf16.mxu0 0
  %2335 = vmatpush1.bf16.msra.mxu0 %v2248
  %2336 = vmatprep.subr.bf16.mxu0 0
  %2337 = vmatpush1.bf16.msra.mxu0 %v2249
  %2338 = vmatprep.subr.bf16.mxu0 0
  %2339 = vmatpush1.bf16.msra.mxu0 %v2250
  %2340 = vmatprep.subr.bf16.mxu0 0
  %2341 = vmatpush1.bf16.msra.mxu0 %v2251
  %2342 = vmatprep.subr.bf16.mxu0 0
  %2343 = vmatpush1.bf16.msra.mxu0 %v2252
  %2344 = vmatprep.subr.bf16.mxu0 0
  %2345 = vmatpush1.bf16.msra.mxu0 %v2253
  %2346 = vmatprep.subr.bf16.mxu0 0
  %2347 = vmatpush1.bf16.msra.mxu0 %v2254
  %2348 = vmatprep.subr.bf16.mxu0 0
  %2349 = vmatpush1.bf16.msra.mxu0 %v2255
  %2350 = vmatprep.subr.bf16.mxu0 0
  %2351 = vmatpush1.bf16.msra.mxu0 %v2256
  %2352 = vmatprep.subr.bf16.mxu0 0
  %2353 = vmatpush1.bf16.msra.mxu0 %v2257
  %2354 = vmatprep.subr.bf16.mxu0 0
  %2355 = vmatpush1.bf16.msra.mxu0 %v2258
  %2356 = vmatprep.mubr.bf16.mxu0 %v2053
  %2357 = vmatmul.mubr.bf16.gmra.mrb[0].mxu0 %v2037
  %v2358 = vpop.f32.mrb[0].mxu0
  %v2359 = vadd.f32 %v2294, %v2358
  %v2360 = vpop.f32.mrb[0].mxu0
  %v2361 = vpop.f32.mrb[0].mxu0
  %v2362 = vadd.f32 %v2297, %v2361
  %v2363 = vpop.f32.mrb[0].mxu0
  %2364 = vmatprep.mubr.bf16.mxu0 %v2057
  %2365 = vmatmul.mubr.bf16.gmra.mrb[0].mxu0 %v2041
  %v2366 = vpop.f32.mrb[0].mxu0
  %v2367 = vadd.f32 %v2302, %v2366
  %v2368 = vpop.f32.mrb[0].mxu0
  %v2369 = vpop.f32.mrb[0].mxu0
  %v2370 = vadd.f32 %v2305, %v2369
  %v2371 = vpop.f32.mrb[0].mxu0
  %2372 = vmatprep.mubr.bf16.mxu0 %v2061
  %2373 = vmatmul.mubr.bf16.gmra.mrb[0].mxu0 %v2045
  %v2374 = vpop.f32.mrb[0].mxu0
  %v2375 = vadd.f32 %v2310, %v2374
  %v2376 = vpop.f32.mrb[0].mxu0
  %v2377 = vpop.f32.mrb[0].mxu0
  %v2378 = vadd.f32 %v2313, %v2377
  %v2379 = vpop.f32.mrb[0].mxu0
  %2380 = vmatprep.mubr.bf16.mxu0 %v2065
  %2381 = vmatmul.mubr.bf16.gmra.mrb[0].mxu0 %v2049
  %v2382 = vpop.f32.mrb[0].mxu0
  %v2383 = vadd.f32 %v2318, %v2382
  %v2384 = vpop.f32.mrb[0].mxu0
  %v2385 = vpop.f32.mrb[0].mxu0
  %v2386 = vadd.f32 %v2321, %v2385
  %v2387 = vpop.f32.mrb[0].mxu0
  %2388 = vdwg.mxu0
  %v2389 = vadd.f32 %v990, %v2359
  %v2390 = vadd.f32 %v991, %v2362
  %v2391 = vadd.f32 %v992, %v2367
  %v2392 = vadd.f32 %v993, %v2370
  %v2393 = vadd.f32 %v994, %v2375
  %v2394 = vadd.f32 %v995, %v2378
  %v2395 = vadd.f32 %v996, %v2383
  %v2396 = vadd.f32 %v997, %v2386
  %s2397 = scalar_lea.vmem %s10, 32
  %v2398 = vld [vmem:[%s2397] sm:$0xf]
  %v2399 = vld [vmem:[%s2397 + $0x4] sm:$0xf]
  %v2400 = vld [vmem:[%s2397 + $0x8] sm:$0xf]
  %v2401 = vld [vmem:[%s2397 + $0xc] sm:$0xf]
  %v2402 = vpack.c.bf16 %v2390, %v2389
  %v2403 = vpack.c.bf16 %v2392, %v2391
  %v2404 = vpack.c.bf16 %v2394, %v2393
  %v2405 = vpack.c.bf16 %v2396, %v2395
  %s2406 = scalar_lea.vmem %s11, 4
  %v2407 = vld [vmem:[%s2406] sm:$0x1]
  %v2409 = vlaneseq
  %v2410 = vshrl.u32 %v2409, 7
  %v2411 = vsub.s32 0, %v2410
  %v2412 = vrot.slane %v2407, %v2411
  %v2418 = vunpack.c.l.b16 %v2398
  %v2419 = vunpack.c.l.b16 %v2399
  %v2420 = vunpack.c.l.b16 %v2400
  %v2421 = vunpack.c.l.b16 %v2401
  %v2422 = vpack.c.b16 %v2419, %v2418
  %v2423 = vpack.c.b16 %v2421, %v2420
  %v2427 = vsel %vm620, %v2402, 0
  %v2430 = vsel %vm620, %v2403, 0
  %v2433 = vsel %vm620, %v2404, 0
  %v2436 = vsel %vm620, %v2405, 0
  %2438 = vmatprep.subr.bf16.mxu0 0
  %2439 = vmatpush1.bf16.msra.mxu0 %v2422
  %2440 = vmatprep.subr.bf16.mxu0 0
  %2441 = vmatpush1.bf16.msra.mxu0 %v2423
  %2442 = vmatprep.subr.bf16.mxu0 0
  %2443 = vmatpush1.bf16.msra.mxu0 0
  %2444 = vmatprep.subr.bf16.mxu0 0
  %2445 = vmatpush1.bf16.msra.mxu0 0
  %2446 = vmatprep.subr.bf16.mxu0 0
  %2447 = vmatpush1.bf16.msra.mxu0 0
  %2448 = vmatprep.subr.bf16.mxu0 0
  %2449 = vmatpush1.bf16.msra.mxu0 0
  %2450 = vmatprep.subr.bf16.mxu0 0
  %2451 = vmatpush1.bf16.msra.mxu0 0
  %2452 = vmatprep.subr.bf16.mxu0 0
  %2453 = vmatpush1.bf16.msra.mxu0 0
  %2454 = vmatprep.subr.bf16.mxu0 0
  %2455 = vmatpush1.bf16.msra.mxu0 0
  %2456 = vmatprep.subr.bf16.mxu0 0
  %2457 = vmatpush1.bf16.msra.mxu0 0
  %2458 = vmatprep.subr.bf16.mxu0 0
  %2459 = vmatpush1.bf16.msra.mxu0 0
  %2460 = vmatprep.subr.bf16.mxu0 0
  %2461 = vmatpush1.bf16.msra.mxu0 0
  %2462 = vmatprep.subr.bf16.mxu0 0
  %2463 = vmatpush1.bf16.msra.mxu0 0
  %2464 = vmatprep.subr.bf16.mxu0 0
  %2465 = vmatpush1.bf16.msra.mxu0 0
  %2466 = vmatprep.subr.bf16.mxu0 0
  %2467 = vmatpush1.bf16.msra.mxu0 0
  %2468 = vmatprep.subr.bf16.mxu0 0
  %2469 = vmatpush1.bf16.msra.mxu0 0
  %2470 = vmatprep.mubr.bf16.mxu0 0
  %2471 = vmatmul.mubr.bf16.gmra.mrb[0].mxu0 %v2427
  %v2472 = vpop.f32.mrb[0].mxu0
  %v2473 = vadd.f32 %v2412, %v2472
  %v2474 = vpop.f32.mrb[0].mxu0
  %v2475 = vpop.f32.mrb[0].mxu0
  %v2476 = vadd.f32 %v2412, %v2475
  %v2477 = vpop.f32.mrb[0].mxu0
  %2478 = vmatprep.mubr.bf16.mxu0 0
  %2479 = vmatmul.mubr.bf16.gmra.mrb[0].mxu0 %v2430
  %v2480 = vpop.f32.mrb[0].mxu0
  %v2481 = vadd.f32 %v2412, %v2480
  %v2482 = vpop.f32.mrb[0].mxu0
  %v2483 = vpop.f32.mrb[0].mxu0
  %v2484 = vadd.f32 %v2412, %v2483
  %v2485 = vpop.f32.mrb[0].mxu0
  %2486 = vmatprep.mubr.bf16.mxu0 0
  %2487 = vmatmul.mubr.bf16.gmra.mrb[0].mxu0 %v2433
  %v2488 = vpop.f32.mrb[0].mxu0
  %v2489 = vadd.f32 %v2412, %v2488
  %v2490 = vpop.f32.mrb[0].mxu0
  %v2491 = vpop.f32.mrb[0].mxu0
  %v2492 = vadd.f32 %v2412, %v2491
  %v2493 = vpop.f32.mrb[0].mxu0
  %2494 = vmatprep.mubr.bf16.mxu0 0
  %2495 = vmatmul.mubr.bf16.gmra.mrb[0].mxu0 %v2436
  %v2496 = vpop.f32.mrb[0].mxu0
  %v2497 = vadd.f32 %v2412, %v2496
  %v2498 = vpop.f32.mrb[0].mxu0
  %v2499 = vpop.f32.mrb[0].mxu0
  %v2500 = vadd.f32 %v2412, %v2499
  %v2501 = vpop.f32.mrb[0].mxu0
  %2502 = vdwg.mxu0
  %v2503 = vxor.u32 %v2473, 2147483648
  %v2504 = vxor.u32 %v2476, 2147483648
  %v2505 = vxor.u32 %v2481, 2147483648
  %v2506 = vxor.u32 %v2484, 2147483648
  %v2507 = vxor.u32 %v2489, 2147483648
  %v2508 = vxor.u32 %v2492, 2147483648
  %v2509 = vxor.u32 %v2497, 2147483648
  %v2510 = vxor.u32 %v2500, 2147483648
  %v2511 = vmul.f32 %v2503, 1.442695
  %v2512 = vpow.pop %v2511
  %v2513 = vmul.f32 %v2504, 1.442695
  %v2514 = vpow.pop %v2513
  %v2515 = vmul.f32 %v2505, 1.442695
  %v2516 = vpow.pop %v2515
  %v2517 = vmul.f32 %v2506, 1.442695
  %v2518 = vpow.pop %v2517
  %v2519 = vmul.f32 %v2507, 1.442695
  %v2520 = vpow.pop %v2519
  %v2521 = vmul.f32 %v2508, 1.442695
  %v2522 = vpow.pop %v2521
  %v2523 = vmul.f32 %v2509, 1.442695
  %v2524 = vpow.pop %v2523
  %v2525 = vmul.f32 %v2510, 1.442695
  %v2526 = vpow.pop %v2525
  %v2527 = vadd.f32 %v2512, 1.0
  %v2528 = vadd.f32 %v2514, 1.0
  %v2529 = vadd.f32 %v2516, 1.0
  %v2530 = vadd.f32 %v2518, 1.0
  %v2531 = vadd.f32 %v2520, 1.0
  %v2532 = vadd.f32 %v2522, 1.0
  %v2533 = vadd.f32 %v2524, 1.0
  %v2534 = vadd.f32 %v2526, 1.0
  %v2535 = vrcp.pop %v2527
  %v2536 = vmul.f32 1.0, %v2535
  %v2537 = vrcp.pop %v2528
  %v2538 = vmul.f32 1.0, %v2537
  %v2539 = vrcp.pop %v2529
  %v2540 = vmul.f32 1.0, %v2539
  %v2541 = vrcp.pop %v2530
  %v2542 = vmul.f32 1.0, %v2541
  %v2543 = vrcp.pop %v2531
  %v2544 = vmul.f32 1.0, %v2543
  %v2545 = vrcp.pop %v2532
  %v2546 = vmul.f32 1.0, %v2545
  %v2547 = vrcp.pop %v2533
  %v2548 = vmul.f32 1.0, %v2547
  %v2549 = vrcp.pop %v2534
  %v2550 = vmul.f32 1.0, %v2549
  %v2551 = vmul.f32 %v2473, %v2536
  %v2552 = vmul.f32 %v2476, %v2538
  %v2553 = vmul.f32 %v2481, %v2540
  %v2554 = vmul.f32 %v2484, %v2542
  %v2555 = vmul.f32 %v2489, %v2544
  %v2556 = vmul.f32 %v2492, %v2546
  %v2557 = vmul.f32 %v2497, %v2548
  %v2558 = vmul.f32 %v2500, %v2550
  %s2559 = scalar_lea.vmem %s10, 48
  %v2560 = vld [vmem:[%s2559] sm:$0xf]
  %v2561 = vld [vmem:[%s2559 + $0x4] sm:$0xf]
  %v2562 = vld [vmem:[%s2559 + $0x8] sm:$0xf]
  %v2563 = vld [vmem:[%s2559 + $0xc] sm:$0xf]
  %v2564 = vpack.c.bf16 %v2552, %v2551
  %v2565 = vpack.c.bf16 %v2554, %v2553
  %v2566 = vpack.c.bf16 %v2556, %v2555
  %v2567 = vpack.c.bf16 %v2558, %v2557
  %s2568 = scalar_lea.vmem %s11, 5
  %v2569 = vld [vmem:[%s2568] sm:$0x1]
  %v2571 = vlaneseq
  %v2572 = vshrl.u32 %v2571, 7
  %v2573 = vsub.s32 0, %v2572
  %v2574 = vrot.slane %v2569, %v2573
  %v2580 = vunpack.c.l.b16 %v2560
  %v2581 = vunpack.c.l.b16 %v2561
  %v2582 = vunpack.c.l.b16 %v2562
  %v2583 = vunpack.c.l.b16 %v2563
  %v2584 = vpack.c.b16 %v2581, %v2580
  %v2585 = vpack.c.b16 %v2583, %v2582
  %v2589 = vsel %vm620, %v2564, 0
  %v2592 = vsel %vm620, %v2565, 0
  %v2595 = vsel %vm620, %v2566, 0
  %v2598 = vsel %vm620, %v2567, 0
  %2600 = vmatprep.subr.bf16.mxu0 0
  %2601 = vmatpush1.bf16.msra.mxu0 %v2584
  %2602 = vmatprep.subr.bf16.mxu0 0
  %2603 = vmatpush1.bf16.msra.mxu0 %v2585
  %2604 = vmatprep.subr.bf16.mxu0 0
  %2605 = vmatpush1.bf16.msra.mxu0 0
  %2606 = vmatprep.subr.bf16.mxu0 0
  %2607 = vmatpush1.bf16.msra.mxu0 0
  %2608 = vmatprep.subr.bf16.mxu0 0
  %2609 = vmatpush1.bf16.msra.mxu0 0
  %2610 = vmatprep.subr.bf16.mxu0 0
  %2611 = vmatpush1.bf16.msra.mxu0 0
  %2612 = vmatprep.subr.bf16.mxu0 0
  %2613 = vmatpush1.bf16.msra.mxu0 0
  %2614 = vmatprep.subr.bf16.mxu0 0
  %2615 = vmatpush1.bf16.msra.mxu0 0
  %2616 = vmatprep.subr.bf16.mxu0 0
  %2617 = vmatpush1.bf16.msra.mxu0 0
  %2618 = vmatprep.subr.bf16.mxu0 0
  %2619 = vmatpush1.bf16.msra.mxu0 0
  %2620 = vmatprep.subr.bf16.mxu0 0
  %2621 = vmatpush1.bf16.msra.mxu0 0
  %2622 = vmatprep.subr.bf16.mxu0 0
  %2623 = vmatpush1.bf16.msra.mxu0 0
  %2624 = vmatprep.subr.bf16.mxu0 0
  %2625 = vmatpush1.bf16.msra.mxu0 0
  %2626 = vmatprep.subr.bf16.mxu0 0
  %2627 = vmatpush1.bf16.msra.mxu0 0
  %2628 = vmatprep.subr.bf16.mxu0 0
  %2629 = vmatpush1.bf16.msra.mxu0 0
  %2630 = vmatprep.subr.bf16.mxu0 0
  %2631 = vmatpush1.bf16.msra.mxu0 0
  %2632 = vmatprep.mubr.bf16.mxu0 0
  %2633 = vmatmul.mubr.bf16.gmra.mrb[0].mxu0 %v2589
  %v2634 = vpop.f32.mrb[0].mxu0
  %v2635 = vadd.f32 %v2574, %v2634
  %v2636 = vpop.f32.mrb[0].mxu0
  %v2637 = vpop.f32.mrb[0].mxu0
  %v2638 = vadd.f32 %v2574, %v2637
  %v2639 = vpop.f32.mrb[0].mxu0
  %2640 = vmatprep.mubr.bf16.mxu0 0
  %2641 = vmatmul.mubr.bf16.gmra.mrb[0].mxu0 %v2592
  %v2642 = vpop.f32.mrb[0].mxu0
  %v2643 = vadd.f32 %v2574, %v2642
  %v2644 = vpop.f32.mrb[0].mxu0
  %v2645 = vpop.f32.mrb[0].mxu0
  %v2646 = vadd.f32 %v2574, %v2645
  %v2647 = vpop.f32.mrb[0].mxu0
  %2648 = vmatprep.mubr.bf16.mxu0 0
  %2649 = vmatmul.mubr.bf16.gmra.mrb[0].mxu0 %v2595
  %v2650 = vpop.f32.mrb[0].mxu0
  %v2651 = vadd.f32 %v2574, %v2650
  %v2652 = vpop.f32.mrb[0].mxu0
  %v2653 = vpop.f32.mrb[0].mxu0
  %v2654 = vadd.f32 %v2574, %v2653
  %v2655 = vpop.f32.mrb[0].mxu0
  %2656 = vmatprep.mubr.bf16.mxu0 0
  %2657 = vmatmul.mubr.bf16.gmra.mrb[0].mxu0 %v2598
  %v2658 = vpop.f32.mrb[0].mxu0
  %v2659 = vadd.f32 %v2574, %v2658
  %v2660 = vpop.f32.mrb[0].mxu0
  %v2661 = vpop.f32.mrb[0].mxu0
  %v2662 = vadd.f32 %v2574, %v2661
  %v2663 = vpop.f32.mrb[0].mxu0
  %2664 = vdwg.mxu0
  %v2665 = vxor.u32 %v2635, 2147483648
  %v2666 = vxor.u32 %v2638, 2147483648
  %v2667 = vxor.u32 %v2643, 2147483648
  %v2668 = vxor.u32 %v2646, 2147483648
  %v2669 = vxor.u32 %v2651, 2147483648
  %v2670 = vxor.u32 %v2654, 2147483648
  %v2671 = vxor.u32 %v2659, 2147483648
  %v2672 = vxor.u32 %v2662, 2147483648
  %v2673 = vmul.f32 %v2665, 1.442695
  %v2674 = vpow.pop %v2673
  %v2675 = vmul.f32 %v2666, 1.442695
  %v2676 = vpow.pop %v2675
  %v2677 = vmul.f32 %v2667, 1.442695
  %v2678 = vpow.pop %v2677
  %v2679 = vmul.f32 %v2668, 1.442695
  %v2680 = vpow.pop %v2679
  %v2681 = vmul.f32 %v2669, 1.442695
  %v2682 = vpow.pop %v2681
  %v2683 = vmul.f32 %v2670, 1.442695
  %v2684 = vpow.pop %v2683
  %v2685 = vmul.f32 %v2671, 1.442695
  %v2686 = vpow.pop %v2685
  %v2687 = vmul.f32 %v2672, 1.442695
  %v2688 = vpow.pop %v2687
  %v2689 = vadd.f32 %v2674, 1.0
  %v2690 = vadd.f32 %v2676, 1.0
  %v2691 = vadd.f32 %v2678, 1.0
  %v2692 = vadd.f32 %v2680, 1.0
  %v2693 = vadd.f32 %v2682, 1.0
  %v2694 = vadd.f32 %v2684, 1.0
  %v2695 = vadd.f32 %v2686, 1.0
  %v2696 = vadd.f32 %v2688, 1.0
  %v2697 = vrcp.pop %v2689
  %v2698 = vmul.f32 1.0, %v2697
  %v2699 = vrcp.pop %v2690
  %v2700 = vmul.f32 1.0, %v2699
  %v2701 = vrcp.pop %v2691
  %v2702 = vmul.f32 1.0, %v2701
  %v2703 = vrcp.pop %v2692
  %v2704 = vmul.f32 1.0, %v2703
  %v2705 = vrcp.pop %v2693
  %v2706 = vmul.f32 1.0, %v2705
  %v2707 = vrcp.pop %v2694
  %v2708 = vmul.f32 1.0, %v2707
  %v2709 = vrcp.pop %v2695
  %v2710 = vmul.f32 1.0, %v2709
  %v2711 = vrcp.pop %v2696
  %v2712 = vmul.f32 1.0, %v2711
  %v2713 = vmul.f32 %v2635, %v2698
  %v2714 = vmul.f32 %v2638, %v2700
  %v2715 = vmul.f32 %v2643, %v2702
  %v2716 = vmul.f32 %v2646, %v2704
  %v2717 = vmul.f32 %v2651, %v2706
  %v2718 = vmul.f32 %v2654, %v2708
  %v2719 = vmul.f32 %v2659, %v2710
  %v2720 = vmul.f32 %v2662, %v2712
  %v2721 = vadd.f32 %v2389, %v2713
  %v2722 = vadd.f32 %v2390, %v2714
  %v2723 = vadd.f32 %v2391, %v2715
  %v2724 = vadd.f32 %v2392, %v2716
  %v2725 = vadd.f32 %v2393, %v2717
  %v2726 = vadd.f32 %v2394, %v2718
  %v2727 = vadd.f32 %v2395, %v2719
  %v2728 = vadd.f32 %v2396, %v2720
  %s2729 = scalar_lea.vmem %s10, 64
  %v2730 = vld [vmem:[%s2729] sm:$0xf]
  %v2731 = vld [vmem:[%s2729 + $0x4] sm:$0xf]
  %v2732 = vld [vmem:[%s2729 + $0x8] sm:$0xf]
  %v2733 = vld [vmem:[%s2729 + $0xc] sm:$0xf]
  %v2734 = vpack.c.bf16 %v2722, %v2721
  %v2735 = vpack.c.bf16 %v2724, %v2723
  %v2736 = vpack.c.bf16 %v2726, %v2725
  %v2737 = vpack.c.bf16 %v2728, %v2727
  %s2738 = scalar_lea.vmem %s11, 6
  %v2739 = vld [vmem:[%s2738] sm:$0x1]
  %v2741 = vlaneseq
  %v2742 = vshrl.u32 %v2741, 7
  %v2743 = vsub.s32 0, %v2742
  %v2744 = vrot.slane %v2739, %v2743
  %v2750 = vunpack.c.l.b16 %v2730
  %v2751 = vunpack.c.l.b16 %v2731
  %v2752 = vunpack.c.l.b16 %v2732
  %v2753 = vunpack.c.l.b16 %v2733
  %v2754 = vpack.c.b16 %v2751, %v2750
  %v2755 = vpack.c.b16 %v2753, %v2752
  %v2759 = vsel %vm620, %v2734, 0
  %v2762 = vsel %vm620, %v2735, 0
  %v2765 = vsel %vm620, %v2736, 0
  %v2768 = vsel %vm620, %v2737, 0
  %2770 = vmatprep.subr.bf16.mxu0 0
  %2771 = vmatpush1.bf16.msra.mxu0 %v2754
  %2772 = vmatprep.subr.bf16.mxu0 0
  %2773 = vmatpush1.bf16.msra.mxu0 %v2755
  %2774 = vmatprep.subr.bf16.mxu0 0
  %2775 = vmatpush1.bf16.msra.mxu0 0
  %2776 = vmatprep.subr.bf16.mxu0 0
  %2777 = vmatpush1.bf16.msra.mxu0 0
  %2778 = vmatprep.subr.bf16.mxu0 0
  %2779 = vmatpush1.bf16.msra.mxu0 0
  %2780 = vmatprep.subr.bf16.mxu0 0
  %2781 = vmatpush1.bf16.msra.mxu0 0
  %2782 = vmatprep.subr.bf16.mxu0 0
  %2783 = vmatpush1.bf16.msra.mxu0 0
  %2784 = vmatprep.subr.bf16.mxu0 0
  %2785 = vmatpush1.bf16.msra.mxu0 0
  %2786 = vmatprep.subr.bf16.mxu0 0
  %2787 = vmatpush1.bf16.msra.mxu0 0
  %2788 = vmatprep.subr.bf16.mxu0 0
  %2789 = vmatpush1.bf16.msra.mxu0 0
  %2790 = vmatprep.subr.bf16.mxu0 0
  %2791 = vmatpush1.bf16.msra.mxu0 0
  %2792 = vmatprep.subr.bf16.mxu0 0
  %2793 = vmatpush1.bf16.msra.mxu0 0
  %2794 = vmatprep.subr.bf16.mxu0 0
  %2795 = vmatpush1.bf16.msra.mxu0 0
  %2796 = vmatprep.subr.bf16.mxu0 0
  %2797 = vmatpush1.bf16.msra.mxu0 0
  %2798 = vmatprep.subr.bf16.mxu0 0
  %2799 = vmatpush1.bf16.msra.mxu0 0
  %2800 = vmatprep.subr.bf16.mxu0 0
  %2801 = vmatpush1.bf16.msra.mxu0 0
  %2802 = vmatprep.mubr.bf16.mxu0 0
  %2803 = vmatmul.mubr.bf16.gmra.mrb[0].mxu0 %v2759
  %v2804 = vpop.f32.mrb[0].mxu0
  %v2805 = vadd.f32 %v2744, %v2804
  %v2806 = vpop.f32.mrb[0].mxu0
  %v2807 = vpop.f32.mrb[0].mxu0
  %v2808 = vadd.f32 %v2744, %v2807
  %v2809 = vpop.f32.mrb[0].mxu0
  %2810 = vmatprep.mubr.bf16.mxu0 0
  %2811 = vmatmul.mubr.bf16.gmra.mrb[0].mxu0 %v2762
  %v2812 = vpop.f32.mrb[0].mxu0
  %v2813 = vadd.f32 %v2744, %v2812
  %v2814 = vpop.f32.mrb[0].mxu0
  %v2815 = vpop.f32.mrb[0].mxu0
  %v2816 = vadd.f32 %v2744, %v2815
  %v2817 = vpop.f32.mrb[0].mxu0
  %2818 = vmatprep.mubr.bf16.mxu0 0
  %2819 = vmatmul.mubr.bf16.gmra.mrb[0].mxu0 %v2765
  %v2820 = vpop.f32.mrb[0].mxu0
  %v2821 = vadd.f32 %v2744, %v2820
  %v2822 = vpop.f32.mrb[0].mxu0
  %v2823 = vpop.f32.mrb[0].mxu0
  %v2824 = vadd.f32 %v2744, %v2823
  %v2825 = vpop.f32.mrb[0].mxu0
  %2826 = vmatprep.mubr.bf16.mxu0 0
  %2827 = vmatmul.mubr.bf16.gmra.mrb[0].mxu0 %v2768
  %v2828 = vpop.f32.mrb[0].mxu0
  %v2829 = vadd.f32 %v2744, %v2828
  %v2830 = vpop.f32.mrb[0].mxu0
  %v2831 = vpop.f32.mrb[0].mxu0
  %v2832 = vadd.f32 %v2744, %v2831
  %v2833 = vpop.f32.mrb[0].mxu0
  %2834 = vdwg.mxu0
  %v2835 = vxor.u32 %v2805, 2147483648
  %v2836 = vxor.u32 %v2808, 2147483648
  %v2837 = vxor.u32 %v2813, 2147483648
  %v2838 = vxor.u32 %v2816, 2147483648
  %v2839 = vxor.u32 %v2821, 2147483648
  %v2840 = vxor.u32 %v2824, 2147483648
  %v2841 = vxor.u32 %v2829, 2147483648
  %v2842 = vxor.u32 %v2832, 2147483648
  %v2843 = vmul.f32 %v2835, 1.442695
  %v2844 = vpow.pop %v2843
  %v2845 = vmul.f32 %v2836, 1.442695
  %v2846 = vpow.pop %v2845
  %v2847 = vmul.f32 %v2837, 1.442695
  %v2848 = vpow.pop %v2847
  %v2849 = vmul.f32 %v2838, 1.442695
  %v2850 = vpow.pop %v2849
  %v2851 = vmul.f32 %v2839, 1.442695
  %v2852 = vpow.pop %v2851
  %v2853 = vmul.f32 %v2840, 1.442695
  %v2854 = vpow.pop %v2853
  %v2855 = vmul.f32 %v2841, 1.442695
  %v2856 = vpow.pop %v2855
  %v2857 = vmul.f32 %v2842, 1.442695
  %v2858 = vpow.pop %v2857
  %v2859 = vadd.f32 %v2844, 1.0
  %v2860 = vadd.f32 %v2846, 1.0
  %v2861 = vadd.f32 %v2848, 1.0
  %v2862 = vadd.f32 %v2850, 1.0
  %v2863 = vadd.f32 %v2852, 1.0
  %v2864 = vadd.f32 %v2854, 1.0
  %v2865 = vadd.f32 %v2856, 1.0
  %v2866 = vadd.f32 %v2858, 1.0
  %v2867 = vrcp.pop %v2859
  %v2868 = vmul.f32 1.0, %v2867
  %v2869 = vrcp.pop %v2860
  %v2870 = vmul.f32 1.0, %v2869
  %v2871 = vrcp.pop %v2861
  %v2872 = vmul.f32 1.0, %v2871
  %v2873 = vrcp.pop %v2862
  %v2874 = vmul.f32 1.0, %v2873
  %v2875 = vrcp.pop %v2863
  %v2876 = vmul.f32 1.0, %v2875
  %v2877 = vrcp.pop %v2864
  %v2878 = vmul.f32 1.0, %v2877
  %v2879 = vrcp.pop %v2865
  %v2880 = vmul.f32 1.0, %v2879
  %v2881 = vrcp.pop %v2866
  %v2882 = vmul.f32 1.0, %v2881
  %v2883 = vmul.f32 %v2805, %v2868
  %v2884 = vmul.f32 %v2808, %v2870
  %v2885 = vmul.f32 %v2813, %v2872
  %v2886 = vmul.f32 %v2816, %v2874
  %v2887 = vmul.f32 %v2821, %v2876
  %v2888 = vmul.f32 %v2824, %v2878
  %v2889 = vmul.f32 %v2829, %v2880
  %v2890 = vmul.f32 %v2832, %v2882
  %v2891 = vadd.f32 %v2883, %v482
  %v2892 = vadd.f32 %v2884, %v483
  %v2893 = vadd.f32 %v2885, %v484
  %v2894 = vadd.f32 %v2886, %v485
  %v2895 = vadd.f32 %v2887, %v486
  %v2896 = vadd.f32 %v2888, %v487
  %v2897 = vadd.f32 %v2889, %v488
  %v2898 = vadd.f32 %v2890, %v489
  %s2899 = scalar_lea.vmem %s10, 80
  %v2900 = vld [vmem:[%s2899] sm:$0xf]
  %v2901 = vld [vmem:[%s2899 + $0x4] sm:$0xf]
  %v2902 = vld [vmem:[%s2899 + $0x8] sm:$0xf]
  %v2903 = vld [vmem:[%s2899 + $0xc] sm:$0xf]
  %v2904 = vpack.c.bf16 %v2892, %v2891
  %v2905 = vpack.c.bf16 %v2894, %v2893
  %v2906 = vpack.c.bf16 %v2896, %v2895
  %v2907 = vpack.c.bf16 %v2898, %v2897
  %s2908 = scalar_lea.vmem %s11, 7
  %v2909 = vld [vmem:[%s2908] sm:$0x1]
  %v2911 = vlaneseq
  %v2912 = vshrl.u32 %v2911, 7
  %v2913 = vsub.s32 0, %v2912
  %v2914 = vrot.slane %v2909, %v2913
  %v2920 = vunpack.c.l.b16 %v2900
  %v2921 = vunpack.c.l.b16 %v2901
  %v2922 = vunpack.c.l.b16 %v2902
  %v2923 = vunpack.c.l.b16 %v2903
  %v2924 = vpack.c.b16 %v2921, %v2920
  %v2925 = vpack.c.b16 %v2923, %v2922
  %v2929 = vsel %vm620, %v2904, 0
  %v2932 = vsel %vm620, %v2905, 0
  %v2935 = vsel %vm620, %v2906, 0
  %v2938 = vsel %vm620, %v2907, 0
  %2940 = vmatprep.subr.bf16.mxu0 0
  %2941 = vmatpush1.bf16.msra.mxu0 %v2924
  %2942 = vmatprep.subr.bf16.mxu0 0
  %2943 = vmatpush1.bf16.msra.mxu0 %v2925
  %2944 = vmatprep.subr.bf16.mxu0 0
  %2945 = vmatpush1.bf16.msra.mxu0 0
  %2946 = vmatprep.subr.bf16.mxu0 0
  %2947 = vmatpush1.bf16.msra.mxu0 0
  %2948 = vmatprep.subr.bf16.mxu0 0
  %2949 = vmatpush1.bf16.msra.mxu0 0
  %2950 = vmatprep.subr.bf16.mxu0 0
  %2951 = vmatpush1.bf16.msra.mxu0 0
  %2952 = vmatprep.subr.bf16.mxu0 0
  %2953 = vmatpush1.bf16.msra.mxu0 0
  %2954 = vmatprep.subr.bf16.mxu0 0
  %2955 = vmatpush1.bf16.msra.mxu0 0
  %2956 = vmatprep.subr.bf16.mxu0 0
  %2957 = vmatpush1.bf16.msra.mxu0 0
  %2958 = vmatprep.subr.bf16.mxu0 0
  %2959 = vmatpush1.bf16.msra.mxu0 0
  %2960 = vmatprep.subr.bf16.mxu0 0
  %2961 = vmatpush1.bf16.msra.mxu0 0
  %2962 = vmatprep.subr.bf16.mxu0 0
  %2963 = vmatpush1.bf16.msra.mxu0 0
  %2964 = vmatprep.subr.bf16.mxu0 0
  %2965 = vmatpush1.bf16.msra.mxu0 0
  %2966 = vmatprep.subr.bf16.mxu0 0
  %2967 = vmatpush1.bf16.msra.mxu0 0
  %2968 = vmatprep.subr.bf16.mxu0 0
  %2969 = vmatpush1.bf16.msra.mxu0 0
  %2970 = vmatprep.subr.bf16.mxu0 0
  %2971 = vmatpush1.bf16.msra.mxu0 0
  %2972 = vmatprep.mubr.bf16.mxu0 0
  %2973 = vmatmul.mubr.bf16.gmra.mrb[0].mxu0 %v2929
  %v2974 = vpop.f32.mrb[0].mxu0
  %v2975 = vadd.f32 %v2914, %v2974
  %v2976 = vpop.f32.mrb[0].mxu0
  %v2977 = vpop.f32.mrb[0].mxu0
  %v2978 = vadd.f32 %v2914, %v2977
  %v2979 = vpop.f32.mrb[0].mxu0
  %2980 = vmatprep.mubr.bf16.mxu0 0
  %2981 = vmatmul.mubr.bf16.gmra.mrb[0].mxu0 %v2932
  %v2982 = vpop.f32.mrb[0].mxu0
  %v2983 = vadd.f32 %v2914, %v2982
  %v2984 = vpop.f32.mrb[0].mxu0
  %v2985 = vpop.f32.mrb[0].mxu0
  %v2986 = vadd.f32 %v2914, %v2985
  %v2987 = vpop.f32.mrb[0].mxu0
  %2988 = vmatprep.mubr.bf16.mxu0 0
  %2989 = vmatmul.mubr.bf16.gmra.mrb[0].mxu0 %v2935
  %v2990 = vpop.f32.mrb[0].mxu0
  %v2991 = vadd.f32 %v2914, %v2990
  %v2992 = vpop.f32.mrb[0].mxu0
  %v2993 = vpop.f32.mrb[0].mxu0
  %v2994 = vadd.f32 %v2914, %v2993
  %v2995 = vpop.f32.mrb[0].mxu0
  %2996 = vmatprep.mubr.bf16.mxu0 0
  %2997 = vmatmul.mubr.bf16.gmra.mrb[0].mxu0 %v2938
  %v2998 = vpop.f32.mrb[0].mxu0
  %v2999 = vadd.f32 %v2914, %v2998
  %v3000 = vpop.f32.mrb[0].mxu0
  %v3001 = vpop.f32.mrb[0].mxu0
  %v3002 = vadd.f32 %v2914, %v3001
  %v3003 = vpop.f32.mrb[0].mxu0
  %3004 = vdwg.mxu0
  %v3005 = vxor.u32 %v2975, 2147483648
  %v3006 = vxor.u32 %v2978, 2147483648
  %v3007 = vxor.u32 %v2983, 2147483648
  %v3008 = vxor.u32 %v2986, 2147483648
  %v3009 = vxor.u32 %v2991, 2147483648
  %v3010 = vxor.u32 %v2994, 2147483648
  %v3011 = vxor.u32 %v2999, 2147483648
  %v3012 = vxor.u32 %v3002, 2147483648
  %v3013 = vmul.f32 %v3005, 1.442695
  %v3014 = vpow.pop %v3013
  %v3015 = vmul.f32 %v3006, 1.442695
  %v3016 = vpow.pop %v3015
  %v3017 = vmul.f32 %v3007, 1.442695
  %v3018 = vpow.pop %v3017
  %v3019 = vmul.f32 %v3008, 1.442695
  %v3020 = vpow.pop %v3019
  %v3021 = vmul.f32 %v3009, 1.442695
  %v3022 = vpow.pop %v3021
  %v3023 = vmul.f32 %v3010, 1.442695
  %v3024 = vpow.pop %v3023
  %v3025 = vmul.f32 %v3011, 1.442695
  %v3026 = vpow.pop %v3025
  %v3027 = vmul.f32 %v3012, 1.442695
  %v3028 = vpow.pop %v3027
  %v3029 = vadd.f32 %v3014, 1.0
  %v3030 = vadd.f32 %v3016, 1.0
  %v3031 = vadd.f32 %v3018, 1.0
  %v3032 = vadd.f32 %v3020, 1.0
  %v3033 = vadd.f32 %v3022, 1.0
  %v3034 = vadd.f32 %v3024, 1.0
  %v3035 = vadd.f32 %v3026, 1.0
  %v3036 = vadd.f32 %v3028, 1.0
  %v3037 = vrcp.pop %v3029
  %v3038 = vmul.f32 1.0, %v3037
  %v3039 = vrcp.pop %v3030
  %v3040 = vmul.f32 1.0, %v3039
  %v3041 = vrcp.pop %v3031
  %v3042 = vmul.f32 1.0, %v3041
  %v3043 = vrcp.pop %v3032
  %v3044 = vmul.f32 1.0, %v3043
  %v3045 = vrcp.pop %v3033
  %v3046 = vmul.f32 1.0, %v3045
  %v3047 = vrcp.pop %v3034
  %v3048 = vmul.f32 1.0, %v3047
  %v3049 = vrcp.pop %v3035
  %v3050 = vmul.f32 1.0, %v3049
  %v3051 = vrcp.pop %v3036
  %v3052 = vmul.f32 1.0, %v3051
  %v3053 = vmul.f32 %v2975, %v3038
  %v3054 = vmul.f32 %v2978, %v3040
  %v3055 = vmul.f32 %v2983, %v3042
  %v3056 = vmul.f32 %v2986, %v3044
  %v3057 = vmul.f32 %v2991, %v3046
  %v3058 = vmul.f32 %v2994, %v3048
  %v3059 = vmul.f32 %v2999, %v3050
  %v3060 = vmul.f32 %v3002, %v3052
  %s3061 = scalar_lea.vmem %s10, 96
  %v3062 = vld [vmem:[%s3061] sm:$0xf]
  %v3063 = vld [vmem:[%s3061 + $0x4] sm:$0xf]
  %v3064 = vld [vmem:[%s3061 + $0x8] sm:$0xf]
  %v3065 = vld [vmem:[%s3061 + $0xc] sm:$0xf]
  %v3066 = vpack.c.bf16 %v3054, %v3053
  %v3067 = vpack.c.bf16 %v3056, %v3055
  %v3068 = vpack.c.bf16 %v3058, %v3057
  %v3069 = vpack.c.bf16 %v3060, %v3059
  %s3070 = scalar_lea.vmem %s11, 8
  %v3071 = vld [vmem:[%s3070] sm:$0x1]
  %v3073 = vlaneseq
  %v3074 = vshrl.u32 %v3073, 7
  %v3075 = vsub.s32 0, %v3074
  %v3076 = vrot.slane %v3071, %v3075
  %v3082 = vunpack.c.l.b16 %v3062
  %v3083 = vunpack.c.l.b16 %v3063
  %v3084 = vunpack.c.l.b16 %v3064
  %v3085 = vunpack.c.l.b16 %v3065
  %v3086 = vpack.c.b16 %v3083, %v3082
  %v3087 = vpack.c.b16 %v3085, %v3084
  %v3091 = vsel %vm620, %v3066, 0
  %v3094 = vsel %vm620, %v3067, 0
  %v3097 = vsel %vm620, %v3068, 0
  %v3100 = vsel %vm620, %v3069, 0
  %3102 = vmatprep.subr.bf16.mxu0 0
  %3103 = vmatpush1.bf16.msra.mxu0 %v3086
  %3104 = vmatprep.subr.bf16.mxu0 0
  %3105 = vmatpush1.bf16.msra.mxu0 %v3087
  %3106 = vmatprep.subr.bf16.mxu0 0
  %3107 = vmatpush1.bf16.msra.mxu0 0
  %3108 = vmatprep.subr.bf16.mxu0 0
  %3109 = vmatpush1.bf16.msra.mxu0 0
  %3110 = vmatprep.subr.bf16.mxu0 0
  %3111 = vmatpush1.bf16.msra.mxu0 0
  %3112 = vmatprep.subr.bf16.mxu0 0
  %3113 = vmatpush1.bf16.msra.mxu0 0
  %3114 = vmatprep.subr.bf16.mxu0 0
  %3115 = vmatpush1.bf16.msra.mxu0 0
  %3116 = vmatprep.subr.bf16.mxu0 0
  %3117 = vmatpush1.bf16.msra.mxu0 0
  %3118 = vmatprep.subr.bf16.mxu0 0
  %3119 = vmatpush1.bf16.msra.mxu0 0
  %3120 = vmatprep.subr.bf16.mxu0 0
  %3121 = vmatpush1.bf16.msra.mxu0 0
  %3122 = vmatprep.subr.bf16.mxu0 0
  %3123 = vmatpush1.bf16.msra.mxu0 0
  %3124 = vmatprep.subr.bf16.mxu0 0
  %3125 = vmatpush1.bf16.msra.mxu0 0
  %3126 = vmatprep.subr.bf16.mxu0 0
  %3127 = vmatpush1.bf16.msra.mxu0 0
  %3128 = vmatprep.subr.bf16.mxu0 0
  %3129 = vmatpush1.bf16.msra.mxu0 0
  %3130 = vmatprep.subr.bf16.mxu0 0
  %3131 = vmatpush1.bf16.msra.mxu0 0
  %3132 = vmatprep.subr.bf16.mxu0 0
  %3133 = vmatpush1.bf16.msra.mxu0 0
  %3134 = vmatprep.mubr.bf16.mxu0 0
  %3135 = vmatmul.mubr.bf16.gmra.mrb[0].mxu0 %v3091
  %v3136 = vpop.f32.mrb[0].mxu0
  %v3137 = vadd.f32 %v3076, %v3136
  %v3138 = vpop.f32.mrb[0].mxu0
  %v3139 = vpop.f32.mrb[0].mxu0
  %v3140 = vadd.f32 %v3076, %v3139
  %v3141 = vpop.f32.mrb[0].mxu0
  %3142 = vmatprep.mubr.bf16.mxu0 0
  %3143 = vmatmul.mubr.bf16.gmra.mrb[0].mxu0 %v3094
  %v3144 = vpop.f32.mrb[0].mxu0
  %v3145 = vadd.f32 %v3076, %v3144
  %v3146 = vpop.f32.mrb[0].mxu0
  %v3147 = vpop.f32.mrb[0].mxu0
  %v3148 = vadd.f32 %v3076, %v3147
  %v3149 = vpop.f32.mrb[0].mxu0
  %3150 = vmatprep.mubr.bf16.mxu0 0
  %3151 = vmatmul.mubr.bf16.gmra.mrb[0].mxu0 %v3097
  %v3152 = vpop.f32.mrb[0].mxu0
  %v3153 = vadd.f32 %v3076, %v3152
  %v3154 = vpop.f32.mrb[0].mxu0
  %v3155 = vpop.f32.mrb[0].mxu0
  %v3156 = vadd.f32 %v3076, %v3155
  %v3157 = vpop.f32.mrb[0].mxu0
  %3158 = vmatprep.mubr.bf16.mxu0 0
  %3159 = vmatmul.mubr.bf16.gmra.mrb[0].mxu0 %v3100
  %v3160 = vpop.f32.mrb[0].mxu0
  %v3161 = vadd.f32 %v3076, %v3160
  %v3162 = vpop.f32.mrb[0].mxu0
  %v3163 = vpop.f32.mrb[0].mxu0
  %v3164 = vadd.f32 %v3076, %v3163
  %v3165 = vpop.f32.mrb[0].mxu0
  %3166 = vdwg.mxu0
  %v3167 = vxor.u32 %v3137, 2147483648
  %v3168 = vxor.u32 %v3140, 2147483648
  %v3169 = vxor.u32 %v3145, 2147483648
  %v3170 = vxor.u32 %v3148, 2147483648
  %v3171 = vxor.u32 %v3153, 2147483648
  %v3172 = vxor.u32 %v3156, 2147483648
  %v3173 = vxor.u32 %v3161, 2147483648
  %v3174 = vxor.u32 %v3164, 2147483648
  %v3175 = vmul.f32 %v3167, 1.442695
  %v3176 = vpow.pop %v3175
  %v3177 = vmul.f32 %v3168, 1.442695
  %v3178 = vpow.pop %v3177
  %v3179 = vmul.f32 %v3169, 1.442695
  %v3180 = vpow.pop %v3179
  %v3181 = vmul.f32 %v3170, 1.442695
  %v3182 = vpow.pop %v3181
  %v3183 = vmul.f32 %v3171, 1.442695
  %v3184 = vpow.pop %v3183
  %v3185 = vmul.f32 %v3172, 1.442695
  %v3186 = vpow.pop %v3185
  %v3187 = vmul.f32 %v3173, 1.442695
  %v3188 = vpow.pop %v3187
  %v3189 = vmul.f32 %v3174, 1.442695
  %v3190 = vpow.pop %v3189
  %v3191 = vadd.f32 %v3176, 1.0
  %v3192 = vadd.f32 %v3178, 1.0
  %v3193 = vadd.f32 %v3180, 1.0
  %v3194 = vadd.f32 %v3182, 1.0
  %v3195 = vadd.f32 %v3184, 1.0
  %v3196 = vadd.f32 %v3186, 1.0
  %v3197 = vadd.f32 %v3188, 1.0
  %v3198 = vadd.f32 %v3190, 1.0
  %v3199 = vrcp.pop %v3191
  %v3200 = vmul.f32 1.0, %v3199
  %v3201 = vrcp.pop %v3192
  %v3202 = vmul.f32 1.0, %v3201
  %v3203 = vrcp.pop %v3193
  %v3204 = vmul.f32 1.0, %v3203
  %v3205 = vrcp.pop %v3194
  %v3206 = vmul.f32 1.0, %v3205
  %v3207 = vrcp.pop %v3195
  %v3208 = vmul.f32 1.0, %v3207
  %v3209 = vrcp.pop %v3196
  %v3210 = vmul.f32 1.0, %v3209
  %v3211 = vrcp.pop %v3197
  %v3212 = vmul.f32 1.0, %v3211
  %v3213 = vrcp.pop %v3198
  %v3214 = vmul.f32 1.0, %v3213
  %v3215 = vmul.f32 %v3137, %v3200
  %v3216 = vmul.f32 %v3140, %v3202
  %v3217 = vmul.f32 %v3145, %v3204
  %v3218 = vmul.f32 %v3148, %v3206
  %v3219 = vmul.f32 %v3153, %v3208
  %v3220 = vmul.f32 %v3156, %v3210
  %v3221 = vmul.f32 %v3161, %v3212
  %v3222 = vmul.f32 %v3164, %v3214
  %v3223 = vadd.f32 %v2891, %v3215
  %v3224 = vadd.f32 %v2892, %v3216
  %v3225 = vadd.f32 %v2893, %v3217
  %v3226 = vadd.f32 %v2894, %v3218
  %v3227 = vadd.f32 %v2895, %v3219
  %v3228 = vadd.f32 %v2896, %v3220
  %v3229 = vadd.f32 %v2897, %v3221
  %v3230 = vadd.f32 %v2898, %v3222
  %s3231 = scalar_lea.vmem %s10, 112
  %v3232 = vld [vmem:[%s3231] sm:$0xf]
  %v3233 = vld [vmem:[%s3231 + $0x4] sm:$0xf]
  %v3234 = vld [vmem:[%s3231 + $0x8] sm:$0xf]
  %v3235 = vld [vmem:[%s3231 + $0xc] sm:$0xf]
  %v3236 = vpack.c.bf16 %v3224, %v3223
  %v3237 = vpack.c.bf16 %v3226, %v3225
  %v3238 = vpack.c.bf16 %v3228, %v3227
  %v3239 = vpack.c.bf16 %v3230, %v3229
  %s3240 = scalar_lea.vmem %s11, 9
  %v3241 = vld [vmem:[%s3240] sm:$0x1]
  %v3243 = vlaneseq
  %v3244 = vshrl.u32 %v3243, 7
  %v3245 = vsub.s32 0, %v3244
  %v3246 = vrot.slane %v3241, %v3245
  %v3252 = vunpack.c.l.b16 %v3232
  %v3253 = vunpack.c.l.b16 %v3233
  %v3254 = vunpack.c.l.b16 %v3234
  %v3255 = vunpack.c.l.b16 %v3235
  %v3256 = vpack.c.b16 %v3253, %v3252
  %v3257 = vpack.c.b16 %v3255, %v3254
  %v3261 = vsel %vm620, %v3236, 0
  %v3264 = vsel %vm620, %v3237, 0
  %v3267 = vsel %vm620, %v3238, 0
  %v3270 = vsel %vm620, %v3239, 0
  %3272 = vmatprep.subr.bf16.mxu0 0
  %3273 = vmatpush1.bf16.msra.mxu0 %v3256
  %3274 = vmatprep.subr.bf16.mxu0 0
  %3275 = vmatpush1.bf16.msra.mxu0 %v3257
  %3276 = vmatprep.subr.bf16.mxu0 0
  %3277 = vmatpush1.bf16.msra.mxu0 0
  %3278 = vmatprep.subr.bf16.mxu0 0
  %3279 = vmatpush1.bf16.msra.mxu0 0
  %3280 = vmatprep.subr.bf16.mxu0 0
  %3281 = vmatpush1.bf16.msra.mxu0 0
  %3282 = vmatprep.subr.bf16.mxu0 0
  %3283 = vmatpush1.bf16.msra.mxu0 0
  %3284 = vmatprep.subr.bf16.mxu0 0
  %3285 = vmatpush1.bf16.msra.mxu0 0
  %3286 = vmatprep.subr.bf16.mxu0 0
  %3287 = vmatpush1.bf16.msra.mxu0 0
  %3288 = vmatprep.subr.bf16.mxu0 0
  %3289 = vmatpush1.bf16.msra.mxu0 0
  %3290 = vmatprep.subr.bf16.mxu0 0
  %3291 = vmatpush1.bf16.msra.mxu0 0
  %3292 = vmatprep.subr.bf16.mxu0 0
  %3293 = vmatpush1.bf16.msra.mxu0 0
  %3294 = vmatprep.subr.bf16.mxu0 0
  %3295 = vmatpush1.bf16.msra.mxu0 0
  %3296 = vmatprep.subr.bf16.mxu0 0
  %3297 = vmatpush1.bf16.msra.mxu0 0
  %3298 = vmatprep.subr.bf16.mxu0 0
  %3299 = vmatpush1.bf16.msra.mxu0 0
  %3300 = vmatprep.subr.bf16.mxu0 0
  %3301 = vmatpush1.bf16.msra.mxu0 0
  %3302 = vmatprep.subr.bf16.mxu0 0
  %3303 = vmatpush1.bf16.msra.mxu0 0
  %3304 = vmatprep.mubr.bf16.mxu0 0
  %3305 = vmatmul.mubr.bf16.gmra.mrb[0].mxu0 %v3261
  %v3306 = vpop.f32.mrb[0].mxu0
  %v3307 = vadd.f32 %v3246, %v3306
  %v3308 = vpop.f32.mrb[0].mxu0
  %v3309 = vpop.f32.mrb[0].mxu0
  %v3310 = vadd.f32 %v3246, %v3309
  %v3311 = vpop.f32.mrb[0].mxu0
  %3312 = vmatprep.mubr.bf16.mxu0 0
  %3313 = vmatmul.mubr.bf16.gmra.mrb[0].mxu0 %v3264
  %v3314 = vpop.f32.mrb[0].mxu0
  %v3315 = vadd.f32 %v3246, %v3314
  %v3316 = vpop.f32.mrb[0].mxu0
  %v3317 = vpop.f32.mrb[0].mxu0
  %v3318 = vadd.f32 %v3246, %v3317
  %v3319 = vpop.f32.mrb[0].mxu0
  %3320 = vmatprep.mubr.bf16.mxu0 0
  %3321 = vmatmul.mubr.bf16.gmra.mrb[0].mxu0 %v3267
  %v3322 = vpop.f32.mrb[0].mxu0
  %v3323 = vadd.f32 %v3246, %v3322
  %v3324 = vpop.f32.mrb[0].mxu0
  %v3325 = vpop.f32.mrb[0].mxu0
  %v3326 = vadd.f32 %v3246, %v3325
  %v3327 = vpop.f32.mrb[0].mxu0
  %3328 = vmatprep.mubr.bf16.mxu0 0
  %3329 = vmatmul.mubr.bf16.gmra.mrb[0].mxu0 %v3270
  %v3330 = vpop.f32.mrb[0].mxu0
  %v3331 = vadd.f32 %v3246, %v3330
  %v3332 = vpop.f32.mrb[0].mxu0
  %v3333 = vpop.f32.mrb[0].mxu0
  %v3334 = vadd.f32 %v3246, %v3333
  %v3335 = vpop.f32.mrb[0].mxu0
  %3336 = vdwg.mxu0
  %v3337 = vxor.u32 %v3307, 2147483648
  %v3338 = vxor.u32 %v3310, 2147483648
  %v3339 = vxor.u32 %v3315, 2147483648
  %v3340 = vxor.u32 %v3318, 2147483648
  %v3341 = vxor.u32 %v3323, 2147483648
  %v3342 = vxor.u32 %v3326, 2147483648
  %v3343 = vxor.u32 %v3331, 2147483648
  %v3344 = vxor.u32 %v3334, 2147483648
  %v3345 = vmul.f32 %v3337, 1.442695
  %v3346 = vpow.pop %v3345
  %v3347 = vmul.f32 %v3338, 1.442695
  %v3348 = vpow.pop %v3347
  %v3349 = vmul.f32 %v3339, 1.442695
  %v3350 = vpow.pop %v3349
  %v3351 = vmul.f32 %v3340, 1.442695
  %v3352 = vpow.pop %v3351
  %v3353 = vmul.f32 %v3341, 1.442695
  %v3354 = vpow.pop %v3353
  %v3355 = vmul.f32 %v3342, 1.442695
  %v3356 = vpow.pop %v3355
  %v3357 = vmul.f32 %v3343, 1.442695
  %v3358 = vpow.pop %v3357
  %v3359 = vmul.f32 %v3344, 1.442695
  %v3360 = vpow.pop %v3359
  %v3361 = vadd.f32 %v3346, 1.0
  %v3362 = vadd.f32 %v3348, 1.0
  %v3363 = vadd.f32 %v3350, 1.0
  %v3364 = vadd.f32 %v3352, 1.0
  %v3365 = vadd.f32 %v3354, 1.0
  %v3366 = vadd.f32 %v3356, 1.0
  %v3367 = vadd.f32 %v3358, 1.0
  %v3368 = vadd.f32 %v3360, 1.0
  %v3369 = vrcp.pop %v3361
  %v3370 = vmul.f32 1.0, %v3369
  %v3371 = vrcp.pop %v3362
  %v3372 = vmul.f32 1.0, %v3371
  %v3373 = vrcp.pop %v3363
  %v3374 = vmul.f32 1.0, %v3373
  %v3375 = vrcp.pop %v3364
  %v3376 = vmul.f32 1.0, %v3375
  %v3377 = vrcp.pop %v3365
  %v3378 = vmul.f32 1.0, %v3377
  %v3379 = vrcp.pop %v3366
  %v3380 = vmul.f32 1.0, %v3379
  %v3381 = vrcp.pop %v3367
  %v3382 = vmul.f32 1.0, %v3381
  %v3383 = vrcp.pop %v3368
  %v3384 = vmul.f32 1.0, %v3383
  %v3385 = vmul.f32 %v3307, %v3370
  %v3386 = vmul.f32 %v3310, %v3372
  %v3387 = vmul.f32 %v3315, %v3374
  %v3388 = vmul.f32 %v3318, %v3376
  %v3389 = vmul.f32 %v3323, %v3378
  %v3390 = vmul.f32 %v3326, %v3380
  %v3391 = vmul.f32 %v3331, %v3382
  %v3392 = vmul.f32 %v3334, %v3384
  %s3393 = scalar_lea.vmem %s10, 128
  %v3394 = vld [vmem:[%s3393] sm:$0xf]
  %v3395 = vld [vmem:[%s3393 + $0x4] sm:$0xf]
  %v3396 = vld [vmem:[%s3393 + $0x8] sm:$0xf]
  %v3397 = vld [vmem:[%s3393 + $0xc] sm:$0xf]
  %v3398 = vpack.c.bf16 %v3386, %v3385
  %v3399 = vpack.c.bf16 %v3388, %v3387
  %v3400 = vpack.c.bf16 %v3390, %v3389
  %v3401 = vpack.c.bf16 %v3392, %v3391
  %s3402 = scalar_lea.vmem %s11, 10
  %v3403 = vld [vmem:[%s3402] sm:$0x1]
  %v3405 = vlaneseq
  %v3406 = vshrl.u32 %v3405, 7
  %v3407 = vsub.s32 0, %v3406
  %v3408 = vrot.slane %v3403, %v3407
  %v3414 = vunpack.c.l.b16 %v3394
  %v3415 = vunpack.c.l.b16 %v3395
  %v3416 = vunpack.c.l.b16 %v3396
  %v3417 = vunpack.c.l.b16 %v3397
  %v3418 = vpack.c.b16 %v3415, %v3414
  %v3419 = vpack.c.b16 %v3417, %v3416
  %v3423 = vsel %vm620, %v3398, 0
  %v3426 = vsel %vm620, %v3399, 0
  %v3429 = vsel %vm620, %v3400, 0
  %v3432 = vsel %vm620, %v3401, 0
  %3434 = vmatprep.subr.bf16.mxu0 0
  %3435 = vmatpush1.bf16.msra.mxu0 %v3418
  %3436 = vmatprep.subr.bf16.mxu0 0
  %3437 = vmatpush1.bf16.msra.mxu0 %v3419
  %3438 = vmatprep.subr.bf16.mxu0 0
  %3439 = vmatpush1.bf16.msra.mxu0 0
  %3440 = vmatprep.subr.bf16.mxu0 0
  %3441 = vmatpush1.bf16.msra.mxu0 0
  %3442 = vmatprep.subr.bf16.mxu0 0
  %3443 = vmatpush1.bf16.msra.mxu0 0
  %3444 = vmatprep.subr.bf16.mxu0 0
  %3445 = vmatpush1.bf16.msra.mxu0 0
  %3446 = vmatprep.subr.bf16.mxu0 0
  %3447 = vmatpush1.bf16.msra.mxu0 0
  %3448 = vmatprep.subr.bf16.mxu0 0
  %3449 = vmatpush1.bf16.msra.mxu0 0
  %3450 = vmatprep.subr.bf16.mxu0 0
  %3451 = vmatpush1.bf16.msra.mxu0 0
  %3452 = vmatprep.subr.bf16.mxu0 0
  %3453 = vmatpush1.bf16.msra.mxu0 0
  %3454 = vmatprep.subr.bf16.mxu0 0
  %3455 = vmatpush1.bf16.msra.mxu0 0
  %3456 = vmatprep.subr.bf16.mxu0 0
  %3457 = vmatpush1.bf16.msra.mxu0 0
  %3458 = vmatprep.subr.bf16.mxu0 0
  %3459 = vmatpush1.bf16.msra.mxu0 0
  %3460 = vmatprep.subr.bf16.mxu0 0
  %3461 = vmatpush1.bf16.msra.mxu0 0
  %3462 = vmatprep.subr.bf16.mxu0 0
  %3463 = vmatpush1.bf16.msra.mxu0 0
  %3464 = vmatprep.subr.bf16.mxu0 0
  %3465 = vmatpush1.bf16.msra.mxu0 0
  %3466 = vmatprep.mubr.bf16.mxu0 0
  %3467 = vmatmul.mubr.bf16.gmra.mrb[0].mxu0 %v3423
  %v3468 = vpop.f32.mrb[0].mxu0
  %v3469 = vadd.f32 %v3408, %v3468
  %v3470 = vpop.f32.mrb[0].mxu0
  %v3471 = vpop.f32.mrb[0].mxu0
  %v3472 = vadd.f32 %v3408, %v3471
  %v3473 = vpop.f32.mrb[0].mxu0
  %3474 = vmatprep.mubr.bf16.mxu0 0
  %3475 = vmatmul.mubr.bf16.gmra.mrb[0].mxu0 %v3426
  %v3476 = vpop.f32.mrb[0].mxu0
  %v3477 = vadd.f32 %v3408, %v3476
  %v3478 = vpop.f32.mrb[0].mxu0
  %v3479 = vpop.f32.mrb[0].mxu0
  %v3480 = vadd.f32 %v3408, %v3479
  %v3481 = vpop.f32.mrb[0].mxu0
  %3482 = vmatprep.mubr.bf16.mxu0 0
  %3483 = vmatmul.mubr.bf16.gmra.mrb[0].mxu0 %v3429
  %v3484 = vpop.f32.mrb[0].mxu0
  %v3485 = vadd.f32 %v3408, %v3484
  %v3486 = vpop.f32.mrb[0].mxu0
  %v3487 = vpop.f32.mrb[0].mxu0
  %v3488 = vadd.f32 %v3408, %v3487
  %v3489 = vpop.f32.mrb[0].mxu0
  %3490 = vmatprep.mubr.bf16.mxu0 0
  %3491 = vmatmul.mubr.bf16.gmra.mrb[0].mxu0 %v3432
  %v3492 = vpop.f32.mrb[0].mxu0
  %v3493 = vadd.f32 %v3408, %v3492
  %v3494 = vpop.f32.mrb[0].mxu0
  %v3495 = vpop.f32.mrb[0].mxu0
  %v3496 = vadd.f32 %v3408, %v3495
  %v3497 = vpop.f32.mrb[0].mxu0
  %3498 = vdwg.mxu0
  %v3499 = vxor.u32 %v3469, 2147483648
  %v3500 = vxor.u32 %v3472, 2147483648
  %v3501 = vxor.u32 %v3477, 2147483648
  %v3502 = vxor.u32 %v3480, 2147483648
  %v3503 = vxor.u32 %v3485, 2147483648
  %v3504 = vxor.u32 %v3488, 2147483648
  %v3505 = vxor.u32 %v3493, 2147483648
  %v3506 = vxor.u32 %v3496, 2147483648
  %v3507 = vmul.f32 %v3499, 1.442695
  %v3508 = vpow.pop %v3507
  %v3509 = vmul.f32 %v3500, 1.442695
  %v3510 = vpow.pop %v3509
  %v3511 = vmul.f32 %v3501, 1.442695
  %v3512 = vpow.pop %v3511
  %v3513 = vmul.f32 %v3502, 1.442695
  %v3514 = vpow.pop %v3513
  %v3515 = vmul.f32 %v3503, 1.442695
  %v3516 = vpow.pop %v3515
  %v3517 = vmul.f32 %v3504, 1.442695
  %v3518 = vpow.pop %v3517
  %v3519 = vmul.f32 %v3505, 1.442695
  %v3520 = vpow.pop %v3519
  %v3521 = vmul.f32 %v3506, 1.442695
  %v3522 = vpow.pop %v3521
  %v3523 = vadd.f32 %v3508, 1.0
  %v3524 = vadd.f32 %v3510, 1.0
  %v3525 = vadd.f32 %v3512, 1.0
  %v3526 = vadd.f32 %v3514, 1.0
  %v3527 = vadd.f32 %v3516, 1.0
  %v3528 = vadd.f32 %v3518, 1.0
  %v3529 = vadd.f32 %v3520, 1.0
  %v3530 = vadd.f32 %v3522, 1.0
  %v3531 = vrcp.pop %v3523
  %v3532 = vmul.f32 1.0, %v3531
  %v3533 = vrcp.pop %v3524
  %v3534 = vmul.f32 1.0, %v3533
  %v3535 = vrcp.pop %v3525
  %v3536 = vmul.f32 1.0, %v3535
  %v3537 = vrcp.pop %v3526
  %v3538 = vmul.f32 1.0, %v3537
  %v3539 = vrcp.pop %v3527
  %v3540 = vmul.f32 1.0, %v3539
  %v3541 = vrcp.pop %v3528
  %v3542 = vmul.f32 1.0, %v3541
  %v3543 = vrcp.pop %v3529
  %v3544 = vmul.f32 1.0, %v3543
  %v3545 = vrcp.pop %v3530
  %v3546 = vmul.f32 1.0, %v3545
  %v3547 = vmul.f32 %v3469, %v3532
  %v3548 = vmul.f32 %v3472, %v3534
  %v3549 = vmul.f32 %v3477, %v3536
  %v3550 = vmul.f32 %v3480, %v3538
  %v3551 = vmul.f32 %v3485, %v3540
  %v3552 = vmul.f32 %v3488, %v3542
  %v3553 = vmul.f32 %v3493, %v3544
  %v3554 = vmul.f32 %v3496, %v3546
  %v3555 = vadd.f32 %v3223, %v3547
  %v3556 = vadd.f32 %v3224, %v3548
  %v3557 = vadd.f32 %v3225, %v3549
  %v3558 = vadd.f32 %v3226, %v3550
  %v3559 = vadd.f32 %v3227, %v3551
  %v3560 = vadd.f32 %v3228, %v3552
  %v3561 = vadd.f32 %v3229, %v3553
  %v3562 = vadd.f32 %v3230, %v3554
  %v3563 = vmul.f32 %v140, %v3555
  %v3564 = vmul.f32 %v144, %v3556
  %v3565 = vmul.f32 %v150, %v3557
  %v3566 = vmul.f32 %v154, %v3558
  %v3567 = vmul.f32 %v160, %v3559
  %v3568 = vmul.f32 %v164, %v3560
  %v3569 = vmul.f32 %v170, %v3561
  %v3570 = vmul.f32 %v174, %v3562
  %v3571 = vpack.c.bf16 %v3564, %v3563
  %v3572 = vpack.c.bf16 %v3566, %v3565
  %v3573 = vpack.c.bf16 %v3568, %v3567
  %v3574 = vpack.c.bf16 %v3570, %v3569
  %3575 = vmatprep.subr.bf16.mxu0 0
  %3576 = vmatpush1.bf16.msra.mxu0 %v3571
  %3577 = vmatprep.subr.bf16.mxu0 0
  %3578 = vmatpush1.bf16.msra.mxu0 %v3572
  %3579 = vmatprep.subr.bf16.mxu0 0
  %3580 = vmatpush1.bf16.msra.mxu0 %v3573
  %3581 = vmatprep.subr.bf16.mxu0 0
  %3582 = vmatpush1.bf16.msra.mxu0 %v3574
  %3583 = vmatprep.subr.bf16.mxu0 0
  %3584 = vmatpush1.bf16.msra.mxu0 0
  %3585 = vmatprep.subr.bf16.mxu0 0
  %3586 = vmatpush1.bf16.msra.mxu0 0
  %3587 = vmatprep.subr.bf16.mxu0 0
  %3588 = vmatpush1.bf16.msra.mxu0 0
  %3589 = vmatprep.subr.bf16.mxu0 0
  %3590 = vmatpush1.bf16.msra.mxu0 0
  %3591 = vmatprep.subr.bf16.mxu0 0
  %3592 = vmatpush1.bf16.msra.mxu0 0
  %3593 = vmatprep.subr.bf16.mxu0 0
  %3594 = vmatpush1.bf16.msra.mxu0 0
  %3595 = vmatprep.subr.bf16.mxu0 0
  %3596 = vmatpush1.bf16.msra.mxu0 0
  %3597 = vmatprep.subr.bf16.mxu0 0
  %3598 = vmatpush1.bf16.msra.mxu0 0
  %3599 = vmatprep.subr.bf16.mxu0 0
  %3600 = vmatpush1.bf16.msra.mxu0 0
  %3601 = vmatprep.subr.bf16.mxu0 0
  %3602 = vmatpush1.bf16.msra.mxu0 0
  %3603 = vmatprep.subr.bf16.mxu0 0
  %3604 = vmatpush1.bf16.msra.mxu0 0
  %3605 = vmatprep.subr.bf16.mxu0 0
  %3606 = vmatpush1.bf16.msra.mxu0 0
  %3607 = vmatprep.mubr.bf16.mxu0 0
  %3608 = vmatmul.mubr.bf16.gmra.mrb[0].mxu0 %v552
  %v3609 = vpop.f32.mrb[0].mxu0
  %v3610 = vadd.f32 0.0, %v3609
  %v3611 = vpop.f32.mrb[0].mxu0
  %v3612 = vpop.f32.mrb[0].mxu0
  %v3613 = vpop.f32.mrb[0].mxu0
  %3614 = vdwg.mxu0
  %s3615 = scalar_lea.vmem %s10, 336
  %v3616 = vld [vmem:[%s3615] sm:$0xf]
  %v3617 = vld [vmem:[%s3615 + $0x4] sm:$0xf]
  %v3618 = vld [vmem:[%s3615 + $0x8] sm:$0xf]
  %v3619 = vld [vmem:[%s3615 + $0xc] sm:$0xf]
  %v3620 = vpack.c.bf16 %v3610, %v3610
  %s3621 = scalar_lea.vmem %s11, 23
  %v3622 = vld [vmem:[%s3621] sm:$0x1]
  %v3624 = vlaneseq
  %v3625 = vshrl.u32 %v3624, 7
  %v3626 = vsub.s32 0, %v3625
  %v3627 = vrot.slane %v3622, %v3626
  %v3633 = vunpack.c.l.b16 %v3616
  %v3634 = vunpack.c.l.b16 %v3617
  %v3635 = vunpack.c.l.b16 %v3618
  %v3636 = vunpack.c.l.b16 %v3619
  %v3637 = vpack.c.b16 %v3634, %v3633
  %v3638 = vpack.c.b16 %v3636, %v3635
  %v3642 = vsel %vm620, %v3620, 0
  %3644 = vmatprep.subr.bf16.mxu0 0
  %3645 = vmatpush1.bf16.msra.mxu0 %v3637
  %3646 = vmatprep.subr.bf16.mxu0 0
  %3647 = vmatpush1.bf16.msra.mxu0 %v3638
  %3648 = vmatprep.subr.bf16.mxu0 0
  %3649 = vmatpush1.bf16.msra.mxu0 0
  %3650 = vmatprep.subr.bf16.mxu0 0
  %3651 = vmatpush1.bf16.msra.mxu0 0
  %3652 = vmatprep.subr.bf16.mxu0 0
  %3653 = vmatpush1.bf16.msra.mxu0 0
  %3654 = vmatprep.subr.bf16.mxu0 0
  %3655 = vmatpush1.bf16.msra.mxu0 0
  %3656 = vmatprep.subr.bf16.mxu0 0
  %3657 = vmatpush1.bf16.msra.mxu0 0
  %3658 = vmatprep.subr.bf16.mxu0 0
  %3659 = vmatpush1.bf16.msra.mxu0 0
  %3660 = vmatprep.subr.bf16.mxu0 0
  %3661 = vmatpush1.bf16.msra.mxu0 0
  %3662 = vmatprep.subr.bf16.mxu0 0
  %3663 = vmatpush1.bf16.msra.mxu0 0
  %3664 = vmatprep.subr.bf16.mxu0 0
  %3665 = vmatpush1.bf16.msra.mxu0 0
  %3666 = vmatprep.subr.bf16.mxu0 0
  %3667 = vmatpush1.bf16.msra.mxu0 0
  %3668 = vmatprep.subr.bf16.mxu0 0
  %3669 = vmatpush1.bf16.msra.mxu0 0
  %3670 = vmatprep.subr.bf16.mxu0 0
  %3671 = vmatpush1.bf16.msra.mxu0 0
  %3672 = vmatprep.subr.bf16.mxu0 0
  %3673 = vmatpush1.bf16.msra.mxu0 0
  %3674 = vmatprep.subr.bf16.mxu0 0
  %3675 = vmatpush1.bf16.msra.mxu0 0
  %3676 = vmatprep.mubr.bf16.mxu0 0
  %3677 = vmatmul.mubr.bf16.gmra.mrb[0].mxu0 %v3642
  %v3678 = vpop.f32.mrb[0].mxu0
  %v3679 = vadd.f32 %v3627, %v3678
  %v3680 = vpop.f32.mrb[0].mxu0
  %v3681 = vpop.f32.mrb[0].mxu0
  %v3682 = vpop.f32.mrb[0].mxu0
  %3683 = vdwg.mxu0
  %v3684 = vxor.u32 %v3679, 2147483648
  %v3685 = vmul.f32 %v3684, 1.442695
  %v3686 = vpow.pop %v3685
  %v3687 = vadd.f32 %v3686, 1.0
  %v3688 = vrcp.pop %v3687
  %v3689 = vmul.f32 1.0, %v3688
  %v3690 = vmul.f32 %v3679, %v3689
  %s3691 = scalar_lea.vmem %s10, 352
  %v3692 = vld [vmem:[%s3691] sm:$0xf]
  %v3693 = vld [vmem:[%s3691 + $0x4] sm:$0xf]
  %v3694 = vld [vmem:[%s3691 + $0x8] sm:$0xf]
  %v3695 = vld [vmem:[%s3691 + $0xc] sm:$0xf]
  %v3696 = vpack.c.bf16 %v3690, %v3690
  %s3697 = scalar_lea.vmem %s11, 24
  %v3698 = vld [vmem:[%s3697] sm:$0x1]
  %v3700 = vlaneseq
  %v3701 = vshrl.u32 %v3700, 7
  %v3702 = vsub.s32 0, %v3701
  %v3703 = vrot.slane %v3698, %v3702
  %v3709 = vunpack.c.l.b16 %v3692
  %v3710 = vunpack.c.l.b16 %v3693
  %v3711 = vunpack.c.l.b16 %v3694
  %v3712 = vunpack.c.l.b16 %v3695
  %v3713 = vpack.c.b16 %v3710, %v3709
  %v3714 = vpack.c.b16 %v3712, %v3711
  %v3718 = vsel %vm620, %v3696, 0
  %3720 = vmatprep.subr.bf16.mxu0 0
  %3721 = vmatpush1.bf16.msra.mxu0 %v3713
  %3722 = vmatprep.subr.bf16.mxu0 0
  %3723 = vmatpush1.bf16.msra.mxu0 %v3714
  %3724 = vmatprep.subr.bf16.mxu0 0
  %3725 = vmatpush1.bf16.msra.mxu0 0
  %3726 = vmatprep.subr.bf16.mxu0 0
  %3727 = vmatpush1.bf16.msra.mxu0 0
  %3728 = vmatprep.subr.bf16.mxu0 0
  %3729 = vmatpush1.bf16.msra.mxu0 0
  %3730 = vmatprep.subr.bf16.mxu0 0
  %3731 = vmatpush1.bf16.msra.mxu0 0
  %3732 = vmatprep.subr.bf16.mxu0 0
  %3733 = vmatpush1.bf16.msra.mxu0 0
  %3734 = vmatprep.subr.bf16.mxu0 0
  %3735 = vmatpush1.bf16.msra.mxu0 0
  %3736 = vmatprep.subr.bf16.mxu0 0
  %3737 = vmatpush1.bf16.msra.mxu0 0
  %3738 = vmatprep.subr.bf16.mxu0 0
  %3739 = vmatpush1.bf16.msra.mxu0 0
  %3740 = vmatprep.subr.bf16.mxu0 0
  %3741 = vmatpush1.bf16.msra.mxu0 0
  %3742 = vmatprep.subr.bf16.mxu0 0
  %3743 = vmatpush1.bf16.msra.mxu0 0
  %3744 = vmatprep.subr.bf16.mxu0 0
  %3745 = vmatpush1.bf16.msra.mxu0 0
  %3746 = vmatprep.subr.bf16.mxu0 0
  %3747 = vmatpush1.bf16.msra.mxu0 0
  %3748 = vmatprep.subr.bf16.mxu0 0
  %3749 = vmatpush1.bf16.msra.mxu0 0
  %3750 = vmatprep.subr.bf16.mxu0 0
  %3751 = vmatpush1.bf16.msra.mxu0 0
  %3752 = vmatprep.mubr.bf16.mxu0 0
  %3753 = vmatmul.mubr.bf16.gmra.mrb[0].mxu0 %v3718
  %v3754 = vpop.f32.mrb[0].mxu0
  %v3755 = vadd.f32 %v3703, %v3754
  %v3756 = vpop.f32.mrb[0].mxu0
  %v3757 = vpop.f32.mrb[0].mxu0
  %v3758 = vpop.f32.mrb[0].mxu0
  %3759 = vdwg.mxu0
  %v3760 = vxor.u32 %v3755, 2147483648
  %v3761 = vmul.f32 %v3760, 1.442695
  %v3762 = vpow.pop %v3761
  %v3763 = vadd.f32 %v3762, 1.0
  %v3764 = vrcp.pop %v3763
  %v3765 = vmul.f32 1.0, %v3764
  %v3766 = vmul.f32 %v3755, %v3765
  %s3767 = scalar_lea.vmem %s10, 368
  %v3768 = vld [vmem:[%s3767] sm:$0xf]
  %v3769 = vld [vmem:[%s3767 + $0x4] sm:$0xf]
  %v3770 = vld [vmem:[%s3767 + $0x8] sm:$0xf]
  %v3771 = vld [vmem:[%s3767 + $0xc] sm:$0xf]
  %v3772 = vpack.c.bf16 %v3766, %v3766
  %s3773 = scalar_lea.vmem %s11, 25
  %v3774 = vld [vmem:[%s3773] sm:$0x1]
  %v3776 = vlaneseq
  %v3777 = vshrl.u32 %v3776, 7
  %v3778 = vsub.s32 0, %v3777
  %v3779 = vrot.slane %v3774, %v3778
  %v3785 = vunpack.c.l.b16 %v3768
  %v3786 = vunpack.c.l.b16 %v3769
  %v3787 = vunpack.c.l.b16 %v3770
  %v3788 = vunpack.c.l.b16 %v3771
  %v3789 = vpack.c.b16 %v3786, %v3785
  %v3790 = vpack.c.b16 %v3788, %v3787
  %v3794 = vsel %vm620, %v3772, 0
  %3796 = vmatprep.subr.bf16.mxu0 0
  %3797 = vmatpush1.bf16.msra.mxu0 %v3789
  %3798 = vmatprep.subr.bf16.mxu0 0
  %3799 = vmatpush1.bf16.msra.mxu0 %v3790
  %3800 = vmatprep.subr.bf16.mxu0 0
  %3801 = vmatpush1.bf16.msra.mxu0 0
  %3802 = vmatprep.subr.bf16.mxu0 0
  %3803 = vmatpush1.bf16.msra.mxu0 0
  %3804 = vmatprep.subr.bf16.mxu0 0
  %3805 = vmatpush1.bf16.msra.mxu0 0
  %3806 = vmatprep.subr.bf16.mxu0 0
  %3807 = vmatpush1.bf16.msra.mxu0 0
  %3808 = vmatprep.subr.bf16.mxu0 0
  %3809 = vmatpush1.bf16.msra.mxu0 0
  %3810 = vmatprep.subr.bf16.mxu0 0
  %3811 = vmatpush1.bf16.msra.mxu0 0
  %3812 = vmatprep.subr.bf16.mxu0 0
  %3813 = vmatpush1.bf16.msra.mxu0 0
  %3814 = vmatprep.subr.bf16.mxu0 0
  %3815 = vmatpush1.bf16.msra.mxu0 0
  %3816 = vmatprep.subr.bf16.mxu0 0
  %3817 = vmatpush1.bf16.msra.mxu0 0
  %3818 = vmatprep.subr.bf16.mxu0 0
  %3819 = vmatpush1.bf16.msra.mxu0 0
  %3820 = vmatprep.subr.bf16.mxu0 0
  %3821 = vmatpush1.bf16.msra.mxu0 0
  %3822 = vmatprep.subr.bf16.mxu0 0
  %3823 = vmatpush1.bf16.msra.mxu0 0
  %3824 = vmatprep.subr.bf16.mxu0 0
  %3825 = vmatpush1.bf16.msra.mxu0 0
  %3826 = vmatprep.subr.bf16.mxu0 0
  %3827 = vmatpush1.bf16.msra.mxu0 0
  %3828 = vmatprep.mubr.bf16.mxu0 0
  %3829 = vmatmul.mubr.bf16.gmra.mrb[0].mxu0 %v3794
  %v3830 = vpop.f32.mrb[0].mxu0
  %v3831 = vadd.f32 %v3779, %v3830
  %v3832 = vpop.f32.mrb[0].mxu0
  %v3833 = vpop.f32.mrb[0].mxu0
  %v3834 = vpop.f32.mrb[0].mxu0
  %3835 = vdwg.mxu0
  %v3836 = vxor.u32 %v3831, 2147483648
  %v3837 = vmul.f32 %v3836, 1.442695
  %v3838 = vpow.pop %v3837
  %v3839 = vadd.f32 %v3838, 1.0
  %v3840 = vrcp.pop %v3839
  %v3841 = vmul.f32 1.0, %v3840
  %v3842 = vmul.f32 %v3831, %v3841
  %s3843 = scalar_lea.vmem %s12, 16
  %v3844 = vld [vmem:[%s3843] sm:$0xf]
  %v3845 = vld [vmem:[%s3843 + $0x4] sm:$0xf]
  %v3846 = vld [vmem:[%s3843 + $0x8] sm:$0xf]
  %v3847 = vld [vmem:[%s3843 + $0xc] sm:$0xf]
  %v3848 = vpack.c.bf16 %v3842, %v3842
  %v3853 = vunpack.c.l.b16 %v3844
  %v3854 = vunpack.c.l.b16 %v3845
  %v3855 = vunpack.c.l.b16 %v3846
  %v3856 = vunpack.c.l.b16 %v3847
  %v3857 = vpack.c.b16 %v3854, %v3853
  %v3858 = vpack.c.b16 %v3856, %v3855
  %v3862 = vsel %vm620, %v3848, 0
  %3864 = vmatprep.subr.bf16.mxu0 0
  %3865 = vmatpush1.bf16.msra.mxu0 %v3857
  %3866 = vmatprep.subr.bf16.mxu0 0
  %3867 = vmatpush1.bf16.msra.mxu0 %v3858
  %3868 = vmatprep.subr.bf16.mxu0 0
  %3869 = vmatpush1.bf16.msra.mxu0 0
  %3870 = vmatprep.subr.bf16.mxu0 0
  %3871 = vmatpush1.bf16.msra.mxu0 0
  %3872 = vmatprep.subr.bf16.mxu0 0
  %3873 = vmatpush1.bf16.msra.mxu0 0
  %3874 = vmatprep.subr.bf16.mxu0 0
  %3875 = vmatpush1.bf16.msra.mxu0 0
  %3876 = vmatprep.subr.bf16.mxu0 0
  %3877 = vmatpush1.bf16.msra.mxu0 0
  %3878 = vmatprep.subr.bf16.mxu0 0
  %3879 = vmatpush1.bf16.msra.mxu0 0
  %3880 = vmatprep.subr.bf16.mxu0 0
  %3881 = vmatpush1.bf16.msra.mxu0 0
  %3882 = vmatprep.subr.bf16.mxu0 0
  %3883 = vmatpush1.bf16.msra.mxu0 0
  %3884 = vmatprep.subr.bf16.mxu0 0
  %3885 = vmatpush1.bf16.msra.mxu0 0
  %3886 = vmatprep.subr.bf16.mxu0 0
  %3887 = vmatpush1.bf16.msra.mxu0 0
  %3888 = vmatprep.subr.bf16.mxu0 0
  %3889 = vmatpush1.bf16.msra.mxu0 0
  %3890 = vmatprep.subr.bf16.mxu0 0
  %3891 = vmatpush1.bf16.msra.mxu0 0
  %3892 = vmatprep.subr.bf16.mxu0 0
  %3893 = vmatpush1.bf16.msra.mxu0 0
  %3894 = vmatprep.subr.bf16.mxu0 0
  %3895 = vmatpush1.bf16.msra.mxu0 0
  %3896 = vmatprep.mubr.bf16.mxu0 0
  %3897 = vmatmul.mubr.bf16.gmra.mrb[0].mxu0 %v3862
  %v3898 = vpop.f32.mrb[0].mxu0
  %v3899 = vadd.f32 0.0, %v3898
  %v3900 = vpop.f32.mrb[0].mxu0
  %v3901 = vpop.f32.mrb[0].mxu0
  %v3902 = vpop.f32.mrb[0].mxu0
  %3903 = vdwg.mxu0
  %v3908 = vunpack.c.l.b16 %v823
  %v3909 = vunpack.c.l.b16 %v824
  %v3910 = vunpack.c.l.b16 %v825
  %v3911 = vunpack.c.l.b16 %v826
  %v3912 = vpack.c.b16 %v3909, %v3908
  %v3913 = vpack.c.b16 %v3911, %v3910
  %v3917 = vsel %vm620, %v827, 0
  %3919 = vmatprep.subr.bf16.mxu0 0
  %3920 = vmatpush1.bf16.msra.mxu0 %v3912
  %3921 = vmatprep.subr.bf16.mxu0 0
  %3922 = vmatpush1.bf16.msra.mxu0 %v3913
  %3923 = vmatprep.subr.bf16.mxu0 0
  %3924 = vmatpush1.bf16.msra.mxu0 0
  %3925 = vmatprep.subr.bf16.mxu0 0
  %3926 = vmatpush1.bf16.msra.mxu0 0
  %3927 = vmatprep.subr.bf16.mxu0 0
  %3928 = vmatpush1.bf16.msra.mxu0 0
  %3929 = vmatprep.subr.bf16.mxu0 0
  %3930 = vmatpush1.bf16.msra.mxu0 0
  %3931 = vmatprep.subr.bf16.mxu0 0
  %3932 = vmatpush1.bf16.msra.mxu0 0
  %3933 = vmatprep.subr.bf16.mxu0 0
  %3934 = vmatpush1.bf16.msra.mxu0 0
  %3935 = vmatprep.subr.bf16.mxu0 0
  %3936 = vmatpush1.bf16.msra.mxu0 0
  %3937 = vmatprep.subr.bf16.mxu0 0
  %3938 = vmatpush1.bf16.msra.mxu0 0
  %3939 = vmatprep.subr.bf16.mxu0 0
  %3940 = vmatpush1.bf16.msra.mxu0 0
  %3941 = vmatprep.subr.bf16.mxu0 0
  %3942 = vmatpush1.bf16.msra.mxu0 0
  %3943 = vmatprep.subr.bf16.mxu0 0
  %3944 = vmatpush1.bf16.msra.mxu0 0
  %3945 = vmatprep.subr.bf16.mxu0 0
  %3946 = vmatpush1.bf16.msra.mxu0 0
  %3947 = vmatprep.subr.bf16.mxu0 0
  %3948 = vmatpush1.bf16.msra.mxu0 0
  %3949 = vmatprep.subr.bf16.mxu0 0
  %3950 = vmatpush1.bf16.msra.mxu0 0
  %3951 = vmatprep.mubr.bf16.mxu0 0
  %3952 = vmatmul.mubr.bf16.gmra.mrb[0].mxu0 %v3917
  %v3953 = vpop.f32.mrb[0].mxu0
  %v3954 = vadd.f32 %v3899, %v3953
  %v3955 = vpop.f32.mrb[0].mxu0
  %v3956 = vpop.f32.mrb[0].mxu0
  %v3957 = vpop.f32.mrb[0].mxu0
  %3958 = vdwg.mxu0
  %s3959 = scalar_lea.vmem %s10, 160
  %v3960 = vld [vmem:[%s3959] sm:$0xf]
  %v3961 = vld [vmem:[%s3959 + $0x4] sm:$0xf]
  %v3962 = vld [vmem:[%s3959 + $0x8] sm:$0xf]
  %v3963 = vld [vmem:[%s3959 + $0xc] sm:$0xf]
  %v3964 = vpack.c.bf16 %v3556, %v3555
  %v3965 = vpack.c.bf16 %v3558, %v3557
  %v3966 = vpack.c.bf16 %v3560, %v3559
  %v3967 = vpack.c.bf16 %v3562, %v3561
  %s3968 = scalar_lea.vmem %s11, 12
  %v3969 = vld [vmem:[%s3968] sm:$0x1]
  %v3971 = vlaneseq
  %v3972 = vshrl.u32 %v3971, 7
  %v3973 = vsub.s32 0, %v3972
  %v3974 = vrot.slane %v3969, %v3973
  %v3980 = vunpack.c.l.b16 %v3960
  %v3981 = vunpack.c.l.b16 %v3961
  %v3982 = vunpack.c.l.b16 %v3962
  %v3983 = vunpack.c.l.b16 %v3963
  %v3984 = vpack.c.b16 %v3981, %v3980
  %v3985 = vpack.c.b16 %v3983, %v3982
  %v3989 = vsel %vm620, %v3964, 0
  %v3992 = vsel %vm620, %v3965, 0
  %v3995 = vsel %vm620, %v3966, 0
  %v3998 = vsel %vm620, %v3967, 0
  %4000 = vmatprep.subr.bf16.mxu0 0
  %4001 = vmatpush1.bf16.msra.mxu0 %v3984
  %4002 = vmatprep.subr.bf16.mxu0 0
  %4003 = vmatpush1.bf16.msra.mxu0 %v3985
  %4004 = vmatprep.subr.bf16.mxu0 0
  %4005 = vmatpush1.bf16.msra.mxu0 0
  %4006 = vmatprep.subr.bf16.mxu0 0
  %4007 = vmatpush1.bf16.msra.mxu0 0
  %4008 = vmatprep.subr.bf16.mxu0 0
  %4009 = vmatpush1.bf16.msra.mxu0 0
  %4010 = vmatprep.subr.bf16.mxu0 0
  %4011 = vmatpush1.bf16.msra.mxu0 0
  %4012 = vmatprep.subr.bf16.mxu0 0
  %4013 = vmatpush1.bf16.msra.mxu0 0
  %4014 = vmatprep.subr.bf16.mxu0 0
  %4015 = vmatpush1.bf16.msra.mxu0 0
  %4016 = vmatprep.subr.bf16.mxu0 0
  %4017 = vmatpush1.bf16.msra.mxu0 0
  %4018 = vmatprep.subr.bf16.mxu0 0
  %4019 = vmatpush1.bf16.msra.mxu0 0
  %4020 = vmatprep.subr.bf16.mxu0 0
  %4021 = vmatpush1.bf16.msra.mxu0 0
  %4022 = vmatprep.subr.bf16.mxu0 0
  %4023 = vmatpush1.bf16.msra.mxu0 0
  %4024 = vmatprep.subr.bf16.mxu0 0
  %4025 = vmatpush1.bf16.msra.mxu0 0
  %4026 = vmatprep.subr.bf16.mxu0 0
  %4027 = vmatpush1.bf16.msra.mxu0 0
  %4028 = vmatprep.subr.bf16.mxu0 0
  %4029 = vmatpush1.bf16.msra.mxu0 0
  %4030 = vmatprep.subr.bf16.mxu0 0
  %4031 = vmatpush1.bf16.msra.mxu0 0
  %4032 = vmatprep.mubr.bf16.mxu0 0
  %4033 = vmatmul.mubr.bf16.gmra.mrb[0].mxu0 %v3989
  %v4034 = vpop.f32.mrb[0].mxu0
  %v4035 = vadd.f32 %v3974, %v4034
  %v4036 = vpop.f32.mrb[0].mxu0
  %v4037 = vpop.f32.mrb[0].mxu0
  %v4038 = vadd.f32 %v3974, %v4037
  %v4039 = vpop.f32.mrb[0].mxu0
  %4040 = vmatprep.mubr.bf16.mxu0 0
  %4041 = vmatmul.mubr.bf16.gmra.mrb[0].mxu0 %v3992
  %v4042 = vpop.f32.mrb[0].mxu0
  %v4043 = vadd.f32 %v3974, %v4042
  %v4044 = vpop.f32.mrb[0].mxu0
  %v4045 = vpop.f32.mrb[0].mxu0
  %v4046 = vadd.f32 %v3974, %v4045
  %v4047 = vpop.f32.mrb[0].mxu0
  %4048 = vmatprep.mubr.bf16.mxu0 0
  %4049 = vmatmul.mubr.bf16.gmra.mrb[0].mxu0 %v3995
  %v4050 = vpop.f32.mrb[0].mxu0
  %v4051 = vadd.f32 %v3974, %v4050
  %v4052 = vpop.f32.mrb[0].mxu0
  %v4053 = vpop.f32.mrb[0].mxu0
  %v4054 = vadd.f32 %v3974, %v4053
  %v4055 = vpop.f32.mrb[0].mxu0
  %4056 = vmatprep.mubr.bf16.mxu0 0
  %4057 = vmatmul.mubr.bf16.gmra.mrb[0].mxu0 %v3998
  %v4058 = vpop.f32.mrb[0].mxu0
  %v4059 = vadd.f32 %v3974, %v4058
  %v4060 = vpop.f32.mrb[0].mxu0
  %v4061 = vpop.f32.mrb[0].mxu0
  %v4062 = vadd.f32 %v3974, %v4061
  %v4063 = vpop.f32.mrb[0].mxu0
  %4064 = vdwg.mxu0
  %v4065 = vxor.u32 %v4035, 2147483648
  %v4066 = vxor.u32 %v4038, 2147483648
  %v4067 = vxor.u32 %v4043, 2147483648
  %v4068 = vxor.u32 %v4046, 2147483648
  %v4069 = vxor.u32 %v4051, 2147483648
  %v4070 = vxor.u32 %v4054, 2147483648
  %v4071 = vxor.u32 %v4059, 2147483648
  %v4072 = vxor.u32 %v4062, 2147483648
  %v4073 = vmul.f32 %v4065, 1.442695
  %v4074 = vpow.pop %v4073
  %v4075 = vmul.f32 %v4066, 1.442695
  %v4076 = vpow.pop %v4075
  %v4077 = vmul.f32 %v4067, 1.442695
  %v4078 = vpow.pop %v4077
  %v4079 = vmul.f32 %v4068, 1.442695
  %v4080 = vpow.pop %v4079
  %v4081 = vmul.f32 %v4069, 1.442695
  %v4082 = vpow.pop %v4081
  %v4083 = vmul.f32 %v4070, 1.442695
  %v4084 = vpow.pop %v4083
  %v4085 = vmul.f32 %v4071, 1.442695
  %v4086 = vpow.pop %v4085
  %v4087 = vmul.f32 %v4072, 1.442695
  %v4088 = vpow.pop %v4087
  %v4089 = vadd.f32 %v4074, 1.0
  %v4090 = vadd.f32 %v4076, 1.0
  %v4091 = vadd.f32 %v4078, 1.0
  %v4092 = vadd.f32 %v4080, 1.0
  %v4093 = vadd.f32 %v4082, 1.0
  %v4094 = vadd.f32 %v4084, 1.0
  %v4095 = vadd.f32 %v4086, 1.0
  %v4096 = vadd.f32 %v4088, 1.0
  %v4097 = vrcp.pop %v4089
  %v4098 = vmul.f32 1.0, %v4097
  %v4099 = vrcp.pop %v4090
  %v4100 = vmul.f32 1.0, %v4099
  %v4101 = vrcp.pop %v4091
  %v4102 = vmul.f32 1.0, %v4101
  %v4103 = vrcp.pop %v4092
  %v4104 = vmul.f32 1.0, %v4103
  %v4105 = vrcp.pop %v4093
  %v4106 = vmul.f32 1.0, %v4105
  %v4107 = vrcp.pop %v4094
  %v4108 = vmul.f32 1.0, %v4107
  %v4109 = vrcp.pop %v4095
  %v4110 = vmul.f32 1.0, %v4109
  %v4111 = vrcp.pop %v4096
  %v4112 = vmul.f32 1.0, %v4111
  %v4113 = vmul.f32 %v4035, %v4098
  %v4114 = vmul.f32 %v4038, %v4100
  %v4115 = vmul.f32 %v4043, %v4102
  %v4116 = vmul.f32 %v4046, %v4104
  %v4117 = vmul.f32 %v4051, %v4106
  %v4118 = vmul.f32 %v4054, %v4108
  %v4119 = vmul.f32 %v4059, %v4110
  %v4120 = vmul.f32 %v4062, %v4112
  %s4121 = scalar_lea.vmem %s10, 144
  %v4122 = vld [vmem:[%s4121] sm:$0xf]
  %v4123 = vld [vmem:[%s4121 + $0x4] sm:$0xf]
  %v4124 = vld [vmem:[%s4121 + $0x8] sm:$0xf]
  %v4125 = vld [vmem:[%s4121 + $0xc] sm:$0xf]
  %s4126 = scalar_lea.vmem %s11, 11
  %v4127 = vld [vmem:[%s4126] sm:$0x1]
  %v4129 = vlaneseq
  %v4130 = vshrl.u32 %v4129, 7
  %v4131 = vsub.s32 0, %v4130
  %v4132 = vrot.slane %v4127, %v4131
  %v4138 = vunpack.c.l.b16 %v4122
  %v4139 = vunpack.c.l.b16 %v4123
  %v4140 = vunpack.c.l.b16 %v4124
  %v4141 = vunpack.c.l.b16 %v4125
  %v4142 = vpack.c.b16 %v4139, %v4138
  %v4143 = vpack.c.b16 %v4141, %v4140
  %4146 = vmatprep.subr.bf16.mxu0 0
  %4147 = vmatpush1.bf16.msra.mxu0 %v4142
  %4148 = vmatprep.subr.bf16.mxu0 0
  %4149 = vmatpush1.bf16.msra.mxu0 %v4143
  %4150 = vmatprep.subr.bf16.mxu0 0
  %4151 = vmatpush1.bf16.msra.mxu0 0
  %4152 = vmatprep.subr.bf16.mxu0 0
  %4153 = vmatpush1.bf16.msra.mxu0 0
  %4154 = vmatprep.subr.bf16.mxu0 0
  %4155 = vmatpush1.bf16.msra.mxu0 0
  %4156 = vmatprep.subr.bf16.mxu0 0
  %4157 = vmatpush1.bf16.msra.mxu0 0
  %4158 = vmatprep.subr.bf16.mxu0 0
  %4159 = vmatpush1.bf16.msra.mxu0 0
  %4160 = vmatprep.subr.bf16.mxu0 0
  %4161 = vmatpush1.bf16.msra.mxu0 0
  %4162 = vmatprep.subr.bf16.mxu0 0
  %4163 = vmatpush1.bf16.msra.mxu0 0
  %4164 = vmatprep.subr.bf16.mxu0 0
  %4165 = vmatpush1.bf16.msra.mxu0 0
  %4166 = vmatprep.subr.bf16.mxu0 0
  %4167 = vmatpush1.bf16.msra.mxu0 0
  %4168 = vmatprep.subr.bf16.mxu0 0
  %4169 = vmatpush1.bf16.msra.mxu0 0
  %4170 = vmatprep.subr.bf16.mxu0 0
  %4171 = vmatpush1.bf16.msra.mxu0 0
  %4172 = vmatprep.subr.bf16.mxu0 0
  %4173 = vmatpush1.bf16.msra.mxu0 0
  %4174 = vmatprep.subr.bf16.mxu0 0
  %4175 = vmatpush1.bf16.msra.mxu0 0
  %4176 = vmatprep.subr.bf16.mxu0 0
  %4177 = vmatpush1.bf16.msra.mxu0 0
  %4178 = vmatprep.mubr.bf16.mxu0 0
  %4179 = vmatmul.mubr.bf16.gmra.mrb[0].mxu0 %v3989
  %v4180 = vpop.f32.mrb[0].mxu0
  %v4181 = vadd.f32 %v4132, %v4180
  %v4182 = vpop.f32.mrb[0].mxu0
  %v4183 = vpop.f32.mrb[0].mxu0
  %v4184 = vadd.f32 %v4132, %v4183
  %v4185 = vpop.f32.mrb[0].mxu0
  %4186 = vmatprep.mubr.bf16.mxu0 0
  %4187 = vmatmul.mubr.bf16.gmra.mrb[0].mxu0 %v3992
  %v4188 = vpop.f32.mrb[0].mxu0
  %v4189 = vadd.f32 %v4132, %v4188
  %v4190 = vpop.f32.mrb[0].mxu0
  %v4191 = vpop.f32.mrb[0].mxu0
  %v4192 = vadd.f32 %v4132, %v4191
  %v4193 = vpop.f32.mrb[0].mxu0
  %4194 = vmatprep.mubr.bf16.mxu0 0
  %4195 = vmatmul.mubr.bf16.gmra.mrb[0].mxu0 %v3995
  %v4196 = vpop.f32.mrb[0].mxu0
  %v4197 = vadd.f32 %v4132, %v4196
  %v4198 = vpop.f32.mrb[0].mxu0
  %v4199 = vpop.f32.mrb[0].mxu0
  %v4200 = vadd.f32 %v4132, %v4199
  %v4201 = vpop.f32.mrb[0].mxu0
  %4202 = vmatprep.mubr.bf16.mxu0 0
  %4203 = vmatmul.mubr.bf16.gmra.mrb[0].mxu0 %v3998
  %v4204 = vpop.f32.mrb[0].mxu0
  %v4205 = vadd.f32 %v4132, %v4204
  %v4206 = vpop.f32.mrb[0].mxu0
  %v4207 = vpop.f32.mrb[0].mxu0
  %v4208 = vadd.f32 %v4132, %v4207
  %v4209 = vpop.f32.mrb[0].mxu0
  %4210 = vdwg.mxu0
  %v4211 = vxor.u32 %v4181, 2147483648
  %v4212 = vxor.u32 %v4184, 2147483648
  %v4213 = vxor.u32 %v4189, 2147483648
  %v4214 = vxor.u32 %v4192, 2147483648
  %v4215 = vxor.u32 %v4197, 2147483648
  %v4216 = vxor.u32 %v4200, 2147483648
  %v4217 = vxor.u32 %v4205, 2147483648
  %v4218 = vxor.u32 %v4208, 2147483648
  %v4219 = vmul.f32 %v4211, 1.442695
  %v4220 = vpow.pop %v4219
  %v4221 = vmul.f32 %v4212, 1.442695
  %v4222 = vpow.pop %v4221
  %v4223 = vmul.f32 %v4213, 1.442695
  %v4224 = vpow.pop %v4223
  %v4225 = vmul.f32 %v4214, 1.442695
  %v4226 = vpow.pop %v4225
  %v4227 = vmul.f32 %v4215, 1.442695
  %v4228 = vpow.pop %v4227
  %v4229 = vmul.f32 %v4216, 1.442695
  %v4230 = vpow.pop %v4229
  %v4231 = vmul.f32 %v4217, 1.442695
  %v4232 = vpow.pop %v4231
  %v4233 = vmul.f32 %v4218, 1.442695
  %v4234 = vpow.pop %v4233
  %v4235 = vadd.f32 %v4220, 1.0
  %v4236 = vadd.f32 %v4222, 1.0
  %v4237 = vadd.f32 %v4224, 1.0
  %v4238 = vadd.f32 %v4226, 1.0
  %v4239 = vadd.f32 %v4228, 1.0
  %v4240 = vadd.f32 %v4230, 1.0
  %v4241 = vadd.f32 %v4232, 1.0
  %v4242 = vadd.f32 %v4234, 1.0
  %v4243 = vrcp.pop %v4235
  %v4244 = vmul.f32 1.0, %v4243
  %v4245 = vrcp.pop %v4236
  %v4246 = vmul.f32 1.0, %v4245
  %v4247 = vrcp.pop %v4237
  %v4248 = vmul.f32 1.0, %v4247
  %v4249 = vrcp.pop %v4238
  %v4250 = vmul.f32 1.0, %v4249
  %v4251 = vrcp.pop %v4239
  %v4252 = vmul.f32 1.0, %v4251
  %v4253 = vrcp.pop %v4240
  %v4254 = vmul.f32 1.0, %v4253
  %v4255 = vrcp.pop %v4241
  %v4256 = vmul.f32 1.0, %v4255
  %v4257 = vrcp.pop %v4242
  %v4258 = vmul.f32 1.0, %v4257
  %v4259 = vmul.f32 %v4181, %v4244
  %v4260 = vmul.f32 %v4184, %v4246
  %v4261 = vmul.f32 %v4189, %v4248
  %v4262 = vmul.f32 %v4192, %v4250
  %v4263 = vmul.f32 %v4197, %v4252
  %v4264 = vmul.f32 %v4200, %v4254
  %v4265 = vmul.f32 %v4205, %v4256
  %v4266 = vmul.f32 %v4208, %v4258
  %4267 = vrot.lane.b32.xlu0 %v138, 64
  %v4268 = vpop.permute.xlu0 %4267
  %4269 = vrot.lane.b32.xlu0 %v142, 64
  %v4270 = vpop.permute.xlu0 %4269
  %4271 = vrot.lane.b32.xlu0 %v148, 64
  %v4272 = vpop.permute.xlu0 %4271
  %4273 = vrot.lane.b32.xlu0 %v152, 64
  %v4274 = vpop.permute.xlu0 %4273
  %4275 = vrot.lane.b32.xlu0 %v158, 64
  %v4276 = vpop.permute.xlu0 %4275
  %4277 = vrot.lane.b32.xlu0 %v162, 64
  %v4278 = vpop.permute.xlu0 %4277
  %4279 = vrot.lane.b32.xlu0 %v168, 64
  %v4280 = vpop.permute.xlu0 %4279
  %4281 = vrot.lane.b32.xlu0 %v172, 64
  %v4282 = vpop.permute.xlu0 %4281
  %v4291 = vmul.f32 %v4259, %v4268
  %v4292 = vmul.f32 %v4260, %v4270
  %v4293 = vmul.f32 %v4261, %v4272
  %v4294 = vmul.f32 %v4262, %v4274
  %v4295 = vmul.f32 %v4263, %v4276
  %v4296 = vmul.f32 %v4264, %v4278
  %v4297 = vmul.f32 %v4265, %v4280
  %v4298 = vmul.f32 %v4266, %v4282
  %s4299 = scalar_lea.vmem %s8, 64
  %v4300 = vld [vmem:[%s4299] sm:$0xf]
  %v4301 = vld [vmem:[%s4299 + $0x4] sm:$0xf]
  %v4302 = vld [vmem:[%s4299 + $0x8] sm:$0xf]
  %v4303 = vld [vmem:[%s4299 + $0xc] sm:$0xf]
  %v4304 = vld [vmem:[%s4299 + $0x10] sm:$0xf]
  %v4305 = vld [vmem:[%s4299 + $0x14] sm:$0xf]
  %v4306 = vld [vmem:[%s4299 + $0x18] sm:$0xf]
  %v4307 = vld [vmem:[%s4299 + $0x1c] sm:$0xf]
  %v4308 = vld [vmem:[%s4299 + $0x20] sm:$0xf]
  %v4309 = vld [vmem:[%s4299 + $0x24] sm:$0xf]
  %v4310 = vld [vmem:[%s4299 + $0x28] sm:$0xf]
  %v4311 = vld [vmem:[%s4299 + $0x2c] sm:$0xf]
  %v4312 = vld [vmem:[%s4299 + $0x30] sm:$0xf]
  %v4313 = vld [vmem:[%s4299 + $0x34] sm:$0xf]
  %v4314 = vld [vmem:[%s4299 + $0x38] sm:$0xf]
  %v4315 = vld [vmem:[%s4299 + $0x3c] sm:$0xf]
  %v4332 = vunpack.c.l.b16 %v4300
  %v4333 = vunpack.c.l.b16 %v4301
  %v4334 = vunpack.c.l.b16 %v4302
  %v4335 = vunpack.c.l.b16 %v4303
  %v4336 = vunpack.c.l.b16 %v4304
  %v4337 = vunpack.c.l.b16 %v4305
  %v4338 = vunpack.c.l.b16 %v4306
  %v4339 = vunpack.c.l.b16 %v4307
  %v4340 = vunpack.c.l.b16 %v4308
  %v4341 = vunpack.c.l.b16 %v4309
  %v4342 = vunpack.c.l.b16 %v4310
  %v4343 = vunpack.c.l.b16 %v4311
  %v4344 = vunpack.c.l.b16 %v4312
  %v4345 = vunpack.c.l.b16 %v4313
  %v4346 = vunpack.c.l.b16 %v4314
  %v4347 = vunpack.c.l.b16 %v4315
  %v4348 = vpack.c.b16 %v4333, %v4332
  %v4349 = vpack.c.b16 %v4335, %v4334
  %v4350 = vpack.c.b16 %v4337, %v4336
  %v4351 = vpack.c.b16 %v4339, %v4338
  %v4352 = vpack.c.b16 %v4341, %v4340
  %v4353 = vpack.c.b16 %v4343, %v4342
  %v4354 = vpack.c.b16 %v4345, %v4344
  %v4355 = vpack.c.b16 %v4347, %v4346
  %4364 = vmatprep.subr.bf16.mxu0 0
  %4365 = vmatpush1.bf16.msra.mxu0 %v4348
  %4366 = vmatprep.subr.bf16.mxu0 0
  %4367 = vmatpush1.bf16.msra.mxu0 %v4349
  %4368 = vmatprep.subr.bf16.mxu0 0
  %4369 = vmatpush1.bf16.msra.mxu0 %v4350
  %4370 = vmatprep.subr.bf16.mxu0 0
  %4371 = vmatpush1.bf16.msra.mxu0 %v4351
  %4372 = vmatprep.subr.bf16.mxu0 0
  %4373 = vmatpush1.bf16.msra.mxu0 %v4352
  %4374 = vmatprep.subr.bf16.mxu0 0
  %4375 = vmatpush1.bf16.msra.mxu0 %v4353
  %4376 = vmatprep.subr.bf16.mxu0 0
  %4377 = vmatpush1.bf16.msra.mxu0 %v4354
  %4378 = vmatprep.subr.bf16.mxu0 0
  %4379 = vmatpush1.bf16.msra.mxu0 %v4355
  %4380 = vmatprep.subr.bf16.mxu0 0
  %4381 = vmatpush1.bf16.msra.mxu0 0
  %4382 = vmatprep.subr.bf16.mxu0 0
  %4383 = vmatpush1.bf16.msra.mxu0 0
  %4384 = vmatprep.subr.bf16.mxu0 0
  %4385 = vmatpush1.bf16.msra.mxu0 0
  %4386 = vmatprep.subr.bf16.mxu0 0
  %4387 = vmatpush1.bf16.msra.mxu0 0
  %4388 = vmatprep.subr.bf16.mxu0 0
  %4389 = vmatpush1.bf16.msra.mxu0 0
  %4390 = vmatprep.subr.bf16.mxu0 0
  %4391 = vmatpush1.bf16.msra.mxu0 0
  %4392 = vmatprep.subr.bf16.mxu0 0
  %4393 = vmatpush1.bf16.msra.mxu0 0
  %4394 = vmatprep.subr.bf16.mxu0 0
  %4395 = vmatpush1.bf16.msra.mxu0 0
  %4396 = vmatprep.mubr.bf16.mxu0 0
  %4397 = vmatmul.mubr.bf16.gmra.mrb[0].mxu0 %v1223
  %v4398 = vpop.f32.mrb[0].mxu0
  %v4399 = vadd.f32 0.0, %v4398
  %v4400 = vpop.f32.mrb[0].mxu0
  %v4401 = vpop.f32.mrb[0].mxu0
  %v4402 = vadd.f32 0.0, %v4401
  %v4403 = vpop.f32.mrb[0].mxu0
  %4404 = vmatprep.mubr.bf16.mxu0 0
  %4405 = vmatmul.mubr.bf16.gmra.mrb[0].mxu0 %v1224
  %v4406 = vpop.f32.mrb[0].mxu0
  %v4407 = vadd.f32 0.0, %v4406
  %v4408 = vpop.f32.mrb[0].mxu0
  %v4409 = vpop.f32.mrb[0].mxu0
  %v4410 = vadd.f32 0.0, %v4409
  %v4411 = vpop.f32.mrb[0].mxu0
  %4412 = vmatprep.mubr.bf16.mxu0 0
  %4413 = vmatmul.mubr.bf16.gmra.mrb[0].mxu0 %v1225
  %v4414 = vpop.f32.mrb[0].mxu0
  %v4415 = vadd.f32 0.0, %v4414
  %v4416 = vpop.f32.mrb[0].mxu0
  %v4417 = vpop.f32.mrb[0].mxu0
  %v4418 = vadd.f32 0.0, %v4417
  %v4419 = vpop.f32.mrb[0].mxu0
  %4420 = vmatprep.mubr.bf16.mxu0 0
  %4421 = vmatmul.mubr.bf16.gmra.mrb[0].mxu0 %v1226
  %v4422 = vpop.f32.mrb[0].mxu0
  %v4423 = vadd.f32 0.0, %v4422
  %v4424 = vpop.f32.mrb[0].mxu0
  %v4425 = vpop.f32.mrb[0].mxu0
  %v4426 = vadd.f32 0.0, %v4425
  %v4427 = vpop.f32.mrb[0].mxu0
  %4428 = vdwg.mxu0
  %s4429 = scalar_lea.vmem %s9, 32
  %v4430 = vld [vmem:[%s4429] sm:$0xff]
  %v4431 = vld [vmem:[%s4429 + $0x8] sm:$0xff]
  %v4432 = vld [vmem:[%s4429 + $0x10] sm:$0xff]
  %v4433 = vld [vmem:[%s4429 + $0x18] sm:$0xff]
  %v4434 = vpack.c.bf16 %v4292, %v4291
  %v4435 = vpack.c.bf16 %v4294, %v4293
  %v4436 = vpack.c.bf16 %v4296, %v4295
  %v4437 = vpack.c.bf16 %v4298, %v4297
  %v4442 = vunpack.c.l.b16 %v4430
  %v4443 = vunpack.c.h.b16 %v4430
  %v4444 = vunpack.c.l.b16 %v4431
  %v4445 = vunpack.c.h.b16 %v4431
  %v4446 = vunpack.c.l.b16 %v4432
  %v4447 = vunpack.c.h.b16 %v4432
  %v4448 = vunpack.c.l.b16 %v4433
  %v4449 = vunpack.c.h.b16 %v4433
  %v4450 = vpack.c.b16 %v4444, %v4442
  %v4451 = vpack.c.b16 %v4445, %v4443
  %v4452 = vpack.c.b16 %v4448, %v4446
  %v4453 = vpack.c.b16 %v4449, %v4447
  %v4459 = vsel %vm620, %v4434, 0
  %v4462 = vsel %vm620, %v4435, 0
  %v4465 = vsel %vm620, %v4436, 0
  %v4468 = vsel %vm620, %v4437, 0
  %4470 = vmatprep.subr.bf16.mxu0 %v4451
  %4471 = vmatpush1.bf16.msra.mxu0 %v4450
  %4472 = vmatprep.subr.bf16.mxu0 %v4453
  %4473 = vmatpush1.bf16.msra.mxu0 %v4452
  %4474 = vmatprep.subr.bf16.mxu0 0
  %4475 = vmatpush1.bf16.msra.mxu0 0
  %4476 = vmatprep.subr.bf16.mxu0 0
  %4477 = vmatpush1.bf16.msra.mxu0 0
  %4478 = vmatprep.subr.bf16.mxu0 0
  %4479 = vmatpush1.bf16.msra.mxu0 0
  %4480 = vmatprep.subr.bf16.mxu0 0
  %4481 = vmatpush1.bf16.msra.mxu0 0
  %4482 = vmatprep.subr.bf16.mxu0 0
  %4483 = vmatpush1.bf16.msra.mxu0 0
  %4484 = vmatprep.subr.bf16.mxu0 0
  %4485 = vmatpush1.bf16.msra.mxu0 0
  %4486 = vmatprep.subr.bf16.mxu0 0
  %4487 = vmatpush1.bf16.msra.mxu0 0
  %4488 = vmatprep.subr.bf16.mxu0 0
  %4489 = vmatpush1.bf16.msra.mxu0 0
  %4490 = vmatprep.subr.bf16.mxu0 0
  %4491 = vmatpush1.bf16.msra.mxu0 0
  %4492 = vmatprep.subr.bf16.mxu0 0
  %4493 = vmatpush1.bf16.msra.mxu0 0
  %4494 = vmatprep.subr.bf16.mxu0 0
  %4495 = vmatpush1.bf16.msra.mxu0 0
  %4496 = vmatprep.subr.bf16.mxu0 0
  %4497 = vmatpush1.bf16.msra.mxu0 0
  %4498 = vmatprep.subr.bf16.mxu0 0
  %4499 = vmatpush1.bf16.msra.mxu0 0
  %4500 = vmatprep.subr.bf16.mxu0 0
  %4501 = vmatpush1.bf16.msra.mxu0 0
  %4502 = vmatprep.mubr.bf16.mxu0 0
  %4503 = vmatmul.mubr.bf16.gmra.mrb[0].mxu0 %v4459
  %v4504 = vpop.f32.mrb[0].mxu0
  %v4505 = vadd.f32 0.0, %v4504
  %v4506 = vpop.f32.mrb[0].mxu0
  %v4507 = vadd.f32 0.0, %v4506
  %v4508 = vpop.f32.mrb[0].mxu0
  %v4509 = vadd.f32 0.0, %v4508
  %v4510 = vpop.f32.mrb[0].mxu0
  %v4511 = vadd.f32 0.0, %v4510
  %4512 = vmatprep.mubr.bf16.mxu0 0
  %4513 = vmatmul.mubr.bf16.gmra.mrb[0].mxu0 %v4462
  %v4514 = vpop.f32.mrb[0].mxu0
  %v4515 = vadd.f32 0.0, %v4514
  %v4516 = vpop.f32.mrb[0].mxu0
  %v4517 = vadd.f32 0.0, %v4516
  %v4518 = vpop.f32.mrb[0].mxu0
  %v4519 = vadd.f32 0.0, %v4518
  %v4520 = vpop.f32.mrb[0].mxu0
  %v4521 = vadd.f32 0.0, %v4520
  %4522 = vmatprep.mubr.bf16.mxu0 0
  %4523 = vmatmul.mubr.bf16.gmra.mrb[0].mxu0 %v4465
  %v4524 = vpop.f32.mrb[0].mxu0
  %v4525 = vadd.f32 0.0, %v4524
  %v4526 = vpop.f32.mrb[0].mxu0
  %v4527 = vadd.f32 0.0, %v4526
  %v4528 = vpop.f32.mrb[0].mxu0
  %v4529 = vadd.f32 0.0, %v4528
  %v4530 = vpop.f32.mrb[0].mxu0
  %v4531 = vadd.f32 0.0, %v4530
  %4532 = vmatprep.mubr.bf16.mxu0 0
  %4533 = vmatmul.mubr.bf16.gmra.mrb[0].mxu0 %v4468
  %v4534 = vpop.f32.mrb[0].mxu0
  %v4535 = vadd.f32 0.0, %v4534
  %v4536 = vpop.f32.mrb[0].mxu0
  %v4537 = vadd.f32 0.0, %v4536
  %v4538 = vpop.f32.mrb[0].mxu0
  %v4539 = vadd.f32 0.0, %v4538
  %v4540 = vpop.f32.mrb[0].mxu0
  %v4541 = vadd.f32 0.0, %v4540
  %4542 = vdwg.mxu0
  %v4543 = vpack.c.bf16 %v4402, %v4399
  %v4544 = vpack.c.bf16 %v4410, %v4407
  %v4545 = vpack.c.bf16 %v4418, %v4415
  %v4546 = vpack.c.bf16 %v4426, %v4423
  %4551 = vrot.lane.b32.xlu0 %v4543, 8
  %v4552 = vpop.permute.xlu0 %4551
  %4553 = vrot.lane.b32.xlu0 %v4544, 8
  %v4554 = vpop.permute.xlu0 %4553
  %4555 = vrot.lane.b32.xlu0 %v4545, 8
  %v4556 = vpop.permute.xlu0 %4555
  %4557 = vrot.lane.b32.xlu0 %v4546, 8
  %v4558 = vpop.permute.xlu0 %4557
  %4559 = vrot.lane.b32.xlu0 %v4543, 16
  %v4560 = vpop.permute.xlu0 %4559
  %4561 = vrot.lane.b32.xlu0 %v4544, 16
  %v4562 = vpop.permute.xlu0 %4561
  %4563 = vrot.lane.b32.xlu0 %v4545, 16
  %v4564 = vpop.permute.xlu0 %4563
  %4565 = vrot.lane.b32.xlu0 %v4546, 16
  %v4566 = vpop.permute.xlu0 %4565
  %4567 = vrot.lane.b32.xlu0 %v4543, 24
  %v4568 = vpop.permute.xlu0 %4567
  %4569 = vrot.lane.b32.xlu0 %v4544, 24
  %v4570 = vpop.permute.xlu0 %4569
  %4571 = vrot.lane.b32.xlu0 %v4545, 24
  %v4572 = vpop.permute.xlu0 %4571
  %4573 = vrot.lane.b32.xlu0 %v4546, 24
  %v4574 = vpop.permute.xlu0 %4573
  %4575 = vrot.lane.b32.xlu0 %v4543, 32
  %v4576 = vpop.permute.xlu0 %4575
  %4577 = vrot.lane.b32.xlu0 %v4544, 32
  %v4578 = vpop.permute.xlu0 %4577
  %4579 = vrot.lane.b32.xlu0 %v4545, 32
  %v4580 = vpop.permute.xlu0 %4579
  %4581 = vrot.lane.b32.xlu0 %v4546, 32
  %v4582 = vpop.permute.xlu0 %4581
  %4583 = vrot.lane.b32.xlu0 %v4543, 40
  %v4584 = vpop.permute.xlu0 %4583
  %4585 = vrot.lane.b32.xlu0 %v4544, 40
  %v4586 = vpop.permute.xlu0 %4585
  %4587 = vrot.lane.b32.xlu0 %v4545, 40
  %v4588 = vpop.permute.xlu0 %4587
  %4589 = vrot.lane.b32.xlu0 %v4546, 40
  %v4590 = vpop.permute.xlu0 %4589
  %4591 = vrot.lane.b32.xlu0 %v4543, 48
  %v4592 = vpop.permute.xlu0 %4591
  %4593 = vrot.lane.b32.xlu0 %v4544, 48
  %v4594 = vpop.permute.xlu0 %4593
  %4595 = vrot.lane.b32.xlu0 %v4545, 48
  %v4596 = vpop.permute.xlu0 %4595
  %4597 = vrot.lane.b32.xlu0 %v4546, 48
  %v4598 = vpop.permute.xlu0 %4597
  %4599 = vrot.lane.b32.xlu0 %v4543, 56
  %v4600 = vpop.permute.xlu0 %4599
  %4601 = vrot.lane.b32.xlu0 %v4544, 56
  %v4602 = vpop.permute.xlu0 %4601
  %4603 = vrot.lane.b32.xlu0 %v4545, 56
  %v4604 = vpop.permute.xlu0 %4603
  %4605 = vrot.lane.b32.xlu0 %v4546, 56
  %v4606 = vpop.permute.xlu0 %4605
  %v4609 = vsel %vm1521, %v4543, %v4552
  %v4612 = vsel %vm1521, %v4544, %v4554
  %v4615 = vsel %vm1521, %v4545, %v4556
  %v4618 = vsel %vm1521, %v4546, %v4558
  %v4620 = vsel %vm1534, %v4609, %v4560
  %v4622 = vsel %vm1534, %v4612, %v4562
  %v4624 = vsel %vm1534, %v4615, %v4564
  %v4626 = vsel %vm1534, %v4618, %v4566
  %v4628 = vsel %vm1543, %v4620, %v4568
  %v4630 = vsel %vm1543, %v4622, %v4570
  %v4632 = vsel %vm1543, %v4624, %v4572
  %v4634 = vsel %vm1543, %v4626, %v4574
  %v4636 = vsel %vm620, %v4628, %v4576
  %v4638 = vsel %vm620, %v4630, %v4578
  %v4640 = vsel %vm620, %v4632, %v4580
  %v4642 = vsel %vm620, %v4634, %v4582
  %v4644 = vsel %vm1560, %v4636, %v4584
  %v4646 = vsel %vm1560, %v4638, %v4586
  %v4648 = vsel %vm1560, %v4640, %v4588
  %v4650 = vsel %vm1560, %v4642, %v4590
  %v4652 = vsel %vm1569, %v4644, %v4592
  %v4654 = vsel %vm1569, %v4646, %v4594
  %v4656 = vsel %vm1569, %v4648, %v4596
  %v4658 = vsel %vm1569, %v4650, %v4598
  %v4660 = vsel %vm1578, %v4652, %v4600
  %v4663 = vsel %vm1578, %v4654, %v4602
  %v4666 = vsel %vm1578, %v4656, %v4604
  %v4669 = vsel %vm1578, %v4658, %v4606
  %v4671 = vmul.bf16 %v4660, %v1607
  %v4672 = vmul.bf16 %v4663, %v1608
  %v4673 = vmul.bf16 %v4666, %v1609
  %v4674 = vmul.bf16 %v4669, %v1610
  %4675 = vrot.lane.b32.xlu0 %v4543, 120
  %v4676 = vpop.permute.xlu0 %4675
  %4677 = vrot.lane.b32.xlu0 %v4544, 120
  %v4678 = vpop.permute.xlu0 %4677
  %4679 = vrot.lane.b32.xlu0 %v4545, 120
  %v4680 = vpop.permute.xlu0 %4679
  %4681 = vrot.lane.b32.xlu0 %v4546, 120
  %v4682 = vpop.permute.xlu0 %4681
  %v4684 = vsel %vm1521, %v4676, %v4543
  %v4686 = vsel %vm1521, %v4678, %v4544
  %v4688 = vsel %vm1521, %v4680, %v4545
  %v4690 = vsel %vm1521, %v4682, %v4546
  %v4691 = vsel %vm1534, %v4684, %v4552
  %v4692 = vsel %vm1534, %v4686, %v4554
  %v4693 = vsel %vm1534, %v4688, %v4556
  %v4694 = vsel %vm1534, %v4690, %v4558
  %v4695 = vsel %vm1543, %v4691, %v4560
  %v4696 = vsel %vm1543, %v4692, %v4562
  %v4697 = vsel %vm1543, %v4693, %v4564
  %v4698 = vsel %vm1543, %v4694, %v4566
  %v4699 = vsel %vm620, %v4695, %v4568
  %v4700 = vsel %vm620, %v4696, %v4570
  %v4701 = vsel %vm620, %v4697, %v4572
  %v4702 = vsel %vm620, %v4698, %v4574
  %v4703 = vsel %vm1560, %v4699, %v4576
  %v4704 = vsel %vm1560, %v4700, %v4578
  %v4705 = vsel %vm1560, %v4701, %v4580
  %v4706 = vsel %vm1560, %v4702, %v4582
  %v4707 = vsel %vm1569, %v4703, %v4584
  %v4708 = vsel %vm1569, %v4704, %v4586
  %v4709 = vsel %vm1569, %v4705, %v4588
  %v4710 = vsel %vm1569, %v4706, %v4590
  %v4711 = vsel %vm1578, %v4707, %v4592
  %v4713 = vsel %vm1578, %v4708, %v4594
  %v4715 = vsel %vm1578, %v4709, %v4596
  %v4717 = vsel %vm1578, %v4710, %v4598
  %v4719 = vmul.bf16 %v4711, %v1607
  %v4720 = vmul.bf16 %v4713, %v1608
  %v4721 = vmul.bf16 %v4715, %v1609
  %v4722 = vmul.bf16 %v4717, %v1610
  %4723 = vrot.lane.b32.xlu0 %v4543, 112
  %v4724 = vpop.permute.xlu0 %4723
  %4725 = vrot.lane.b32.xlu0 %v4544, 112
  %v4726 = vpop.permute.xlu0 %4725
  %4727 = vrot.lane.b32.xlu0 %v4545, 112
  %v4728 = vpop.permute.xlu0 %4727
  %4729 = vrot.lane.b32.xlu0 %v4546, 112
  %v4730 = vpop.permute.xlu0 %4729
  %v4732 = vsel %vm1521, %v4724, %v4676
  %v4734 = vsel %vm1521, %v4726, %v4678
  %v4736 = vsel %vm1521, %v4728, %v4680
  %v4738 = vsel %vm1521, %v4730, %v4682
  %v4739 = vsel %vm1534, %v4732, %v4543
  %v4740 = vsel %vm1534, %v4734, %v4544
  %v4741 = vsel %vm1534, %v4736, %v4545
  %v4742 = vsel %vm1534, %v4738, %v4546
  %v4743 = vsel %vm1543, %v4739, %v4552
  %v4744 = vsel %vm1543, %v4740, %v4554
  %v4745 = vsel %vm1543, %v4741, %v4556
  %v4746 = vsel %vm1543, %v4742, %v4558
  %v4747 = vsel %vm620, %v4743, %v4560
  %v4748 = vsel %vm620, %v4744, %v4562
  %v4749 = vsel %vm620, %v4745, %v4564
  %v4750 = vsel %vm620, %v4746, %v4566
  %v4751 = vsel %vm1560, %v4747, %v4568
  %v4752 = vsel %vm1560, %v4748, %v4570
  %v4753 = vsel %vm1560, %v4749, %v4572
  %v4754 = vsel %vm1560, %v4750, %v4574
  %v4755 = vsel %vm1569, %v4751, %v4576
  %v4756 = vsel %vm1569, %v4752, %v4578
  %v4757 = vsel %vm1569, %v4753, %v4580
  %v4758 = vsel %vm1569, %v4754, %v4582
  %v4759 = vsel %vm1578, %v4755, %v4584
  %v4761 = vsel %vm1578, %v4756, %v4586
  %v4763 = vsel %vm1578, %v4757, %v4588
  %v4765 = vsel %vm1578, %v4758, %v4590
  %v4767 = vmul.bf16 %v4759, %v1607
  %v4768 = vmul.bf16 %v4761, %v1608
  %v4769 = vmul.bf16 %v4763, %v1609
  %v4770 = vmul.bf16 %v4765, %v1610
  %4771 = vrot.lane.b32.xlu0 %v4543, 104
  %v4772 = vpop.permute.xlu0 %4771
  %4773 = vrot.lane.b32.xlu0 %v4544, 104
  %v4774 = vpop.permute.xlu0 %4773
  %4775 = vrot.lane.b32.xlu0 %v4545, 104
  %v4776 = vpop.permute.xlu0 %4775
  %4777 = vrot.lane.b32.xlu0 %v4546, 104
  %v4778 = vpop.permute.xlu0 %4777
  %v4780 = vsel %vm1521, %v4772, %v4724
  %v4782 = vsel %vm1521, %v4774, %v4726
  %v4784 = vsel %vm1521, %v4776, %v4728
  %v4786 = vsel %vm1521, %v4778, %v4730
  %v4787 = vsel %vm1534, %v4780, %v4676
  %v4788 = vsel %vm1534, %v4782, %v4678
  %v4789 = vsel %vm1534, %v4784, %v4680
  %v4790 = vsel %vm1534, %v4786, %v4682
  %v4791 = vsel %vm1543, %v4787, %v4543
  %v4792 = vsel %vm1543, %v4788, %v4544
  %v4793 = vsel %vm1543, %v4789, %v4545
  %v4794 = vsel %vm1543, %v4790, %v4546
  %v4795 = vsel %vm620, %v4791, %v4552
  %v4796 = vsel %vm620, %v4792, %v4554
  %v4797 = vsel %vm620, %v4793, %v4556
  %v4798 = vsel %vm620, %v4794, %v4558
  %v4799 = vsel %vm1560, %v4795, %v4560
  %v4800 = vsel %vm1560, %v4796, %v4562
  %v4801 = vsel %vm1560, %v4797, %v4564
  %v4802 = vsel %vm1560, %v4798, %v4566
  %v4803 = vsel %vm1569, %v4799, %v4568
  %v4804 = vsel %vm1569, %v4800, %v4570
  %v4805 = vsel %vm1569, %v4801, %v4572
  %v4806 = vsel %vm1569, %v4802, %v4574
  %v4807 = vsel %vm1578, %v4803, %v4576
  %v4809 = vsel %vm1578, %v4804, %v4578
  %v4811 = vsel %vm1578, %v4805, %v4580
  %v4813 = vsel %vm1578, %v4806, %v4582
  %v4815 = vmul.bf16 %v4807, %v1607
  %v4816 = vmul.bf16 %v4809, %v1608
  %v4817 = vmul.bf16 %v4811, %v1609
  %v4818 = vmul.bf16 %v4813, %v1610
  %4819 = vrot.lane.b32.xlu0 %v4543, 96
  %v4820 = vpop.permute.xlu0 %4819
  %4821 = vrot.lane.b32.xlu0 %v4544, 96
  %v4822 = vpop.permute.xlu0 %4821
  %4823 = vrot.lane.b32.xlu0 %v4545, 96
  %v4824 = vpop.permute.xlu0 %4823
  %4825 = vrot.lane.b32.xlu0 %v4546, 96
  %v4826 = vpop.permute.xlu0 %4825
  %v4828 = vsel %vm1521, %v4820, %v4772
  %v4830 = vsel %vm1521, %v4822, %v4774
  %v4832 = vsel %vm1521, %v4824, %v4776
  %v4834 = vsel %vm1521, %v4826, %v4778
  %v4835 = vsel %vm1534, %v4828, %v4724
  %v4836 = vsel %vm1534, %v4830, %v4726
  %v4837 = vsel %vm1534, %v4832, %v4728
  %v4838 = vsel %vm1534, %v4834, %v4730
  %v4839 = vsel %vm1543, %v4835, %v4676
  %v4840 = vsel %vm1543, %v4836, %v4678
  %v4841 = vsel %vm1543, %v4837, %v4680
  %v4842 = vsel %vm1543, %v4838, %v4682
  %v4843 = vsel %vm620, %v4839, %v4543
  %v4844 = vsel %vm620, %v4840, %v4544
  %v4845 = vsel %vm620, %v4841, %v4545
  %v4846 = vsel %vm620, %v4842, %v4546
  %v4847 = vsel %vm1560, %v4843, %v4552
  %v4848 = vsel %vm1560, %v4844, %v4554
  %v4849 = vsel %vm1560, %v4845, %v4556
  %v4850 = vsel %vm1560, %v4846, %v4558
  %v4851 = vsel %vm1569, %v4847, %v4560
  %v4852 = vsel %vm1569, %v4848, %v4562
  %v4853 = vsel %vm1569, %v4849, %v4564
  %v4854 = vsel %vm1569, %v4850, %v4566
  %v4855 = vsel %vm1578, %v4851, %v4568
  %v4857 = vsel %vm1578, %v4852, %v4570
  %v4859 = vsel %vm1578, %v4853, %v4572
  %v4861 = vsel %vm1578, %v4854, %v4574
  %v4863 = vmul.bf16 %v4855, %v1607
  %v4864 = vmul.bf16 %v4857, %v1608
  %v4865 = vmul.bf16 %v4859, %v1609
  %v4866 = vmul.bf16 %v4861, %v1610
  %4867 = vrot.lane.b32.xlu0 %v4543, 88
  %v4868 = vpop.permute.xlu0 %4867
  %4869 = vrot.lane.b32.xlu0 %v4544, 88
  %v4870 = vpop.permute.xlu0 %4869
  %4871 = vrot.lane.b32.xlu0 %v4545, 88
  %v4872 = vpop.permute.xlu0 %4871
  %4873 = vrot.lane.b32.xlu0 %v4546, 88
  %v4874 = vpop.permute.xlu0 %4873
  %v4876 = vsel %vm1521, %v4868, %v4820
  %v4878 = vsel %vm1521, %v4870, %v4822
  %v4880 = vsel %vm1521, %v4872, %v4824
  %v4882 = vsel %vm1521, %v4874, %v4826
  %v4883 = vsel %vm1534, %v4876, %v4772
  %v4884 = vsel %vm1534, %v4878, %v4774
  %v4885 = vsel %vm1534, %v4880, %v4776
  %v4886 = vsel %vm1534, %v4882, %v4778
  %v4887 = vsel %vm1543, %v4883, %v4724
  %v4888 = vsel %vm1543, %v4884, %v4726
  %v4889 = vsel %vm1543, %v4885, %v4728
  %v4890 = vsel %vm1543, %v4886, %v4730
  %v4891 = vsel %vm620, %v4887, %v4676
  %v4892 = vsel %vm620, %v4888, %v4678
  %v4893 = vsel %vm620, %v4889, %v4680
  %v4894 = vsel %vm620, %v4890, %v4682
  %v4895 = vsel %vm1560, %v4891, %v4543
  %v4896 = vsel %vm1560, %v4892, %v4544
  %v4897 = vsel %vm1560, %v4893, %v4545
  %v4898 = vsel %vm1560, %v4894, %v4546
  %v4899 = vsel %vm1569, %v4895, %v4552
  %v4900 = vsel %vm1569, %v4896, %v4554
  %v4901 = vsel %vm1569, %v4897, %v4556
  %v4902 = vsel %vm1569, %v4898, %v4558
  %v4903 = vsel %vm1578, %v4899, %v4560
  %v4905 = vsel %vm1578, %v4900, %v4562
  %v4907 = vsel %vm1578, %v4901, %v4564
  %v4909 = vsel %vm1578, %v4902, %v4566
  %v4911 = vmul.bf16 %v4903, %v1607
  %v4912 = vmul.bf16 %v4905, %v1608
  %v4913 = vmul.bf16 %v4907, %v1609
  %v4914 = vmul.bf16 %v4909, %v1610
  %4915 = vrot.lane.b32.xlu0 %v4543, 80
  %v4916 = vpop.permute.xlu0 %4915
  %4917 = vrot.lane.b32.xlu0 %v4544, 80
  %v4918 = vpop.permute.xlu0 %4917
  %4919 = vrot.lane.b32.xlu0 %v4545, 80
  %v4920 = vpop.permute.xlu0 %4919
  %4921 = vrot.lane.b32.xlu0 %v4546, 80
  %v4922 = vpop.permute.xlu0 %4921
  %v4924 = vsel %vm1521, %v4916, %v4868
  %v4926 = vsel %vm1521, %v4918, %v4870
  %v4928 = vsel %vm1521, %v4920, %v4872
  %v4930 = vsel %vm1521, %v4922, %v4874
  %v4931 = vsel %vm1534, %v4924, %v4820
  %v4932 = vsel %vm1534, %v4926, %v4822
  %v4933 = vsel %vm1534, %v4928, %v4824
  %v4934 = vsel %vm1534, %v4930, %v4826
  %v4935 = vsel %vm1543, %v4931, %v4772
  %v4936 = vsel %vm1543, %v4932, %v4774
  %v4937 = vsel %vm1543, %v4933, %v4776
  %v4938 = vsel %vm1543, %v4934, %v4778
  %v4939 = vsel %vm620, %v4935, %v4724
  %v4940 = vsel %vm620, %v4936, %v4726
  %v4941 = vsel %vm620, %v4937, %v4728
  %v4942 = vsel %vm620, %v4938, %v4730
  %v4943 = vsel %vm1560, %v4939, %v4676
  %v4944 = vsel %vm1560, %v4940, %v4678
  %v4945 = vsel %vm1560, %v4941, %v4680
  %v4946 = vsel %vm1560, %v4942, %v4682
  %v4947 = vsel %vm1569, %v4943, %v4543
  %v4948 = vsel %vm1569, %v4944, %v4544
  %v4949 = vsel %vm1569, %v4945, %v4545
  %v4950 = vsel %vm1569, %v4946, %v4546
  %v4951 = vsel %vm1578, %v4947, %v4552
  %v4953 = vsel %vm1578, %v4948, %v4554
  %v4955 = vsel %vm1578, %v4949, %v4556
  %v4957 = vsel %vm1578, %v4950, %v4558
  %v4959 = vmul.bf16 %v4951, %v1607
  %v4960 = vmul.bf16 %v4953, %v1608
  %v4961 = vmul.bf16 %v4955, %v1609
  %v4962 = vmul.bf16 %v4957, %v1610
  %4963 = vrot.lane.b32.xlu0 %v4543, 72
  %v4964 = vpop.permute.xlu0 %4963
  %4965 = vrot.lane.b32.xlu0 %v4544, 72
  %v4966 = vpop.permute.xlu0 %4965
  %4967 = vrot.lane.b32.xlu0 %v4545, 72
  %v4968 = vpop.permute.xlu0 %4967
  %4969 = vrot.lane.b32.xlu0 %v4546, 72
  %v4970 = vpop.permute.xlu0 %4969
  %v4972 = vsel %vm1521, %v4964, %v4916
  %v4974 = vsel %vm1521, %v4966, %v4918
  %v4976 = vsel %vm1521, %v4968, %v4920
  %v4978 = vsel %vm1521, %v4970, %v4922
  %v4979 = vsel %vm1534, %v4972, %v4868
  %v4980 = vsel %vm1534, %v4974, %v4870
  %v4981 = vsel %vm1534, %v4976, %v4872
  %v4982 = vsel %vm1534, %v4978, %v4874
  %v4983 = vsel %vm1543, %v4979, %v4820
  %v4984 = vsel %vm1543, %v4980, %v4822
  %v4985 = vsel %vm1543, %v4981, %v4824
  %v4986 = vsel %vm1543, %v4982, %v4826
  %v4987 = vsel %vm620, %v4983, %v4772
  %v4988 = vsel %vm620, %v4984, %v4774
  %v4989 = vsel %vm620, %v4985, %v4776
  %v4990 = vsel %vm620, %v4986, %v4778
  %v4991 = vsel %vm1560, %v4987, %v4724
  %v4992 = vsel %vm1560, %v4988, %v4726
  %v4993 = vsel %vm1560, %v4989, %v4728
  %v4994 = vsel %vm1560, %v4990, %v4730
  %v4995 = vsel %vm1569, %v4991, %v4676
  %v4996 = vsel %vm1569, %v4992, %v4678
  %v4997 = vsel %vm1569, %v4993, %v4680
  %v4998 = vsel %vm1569, %v4994, %v4682
  %v4999 = vsel %vm1578, %v4995, %v4543
  %v5001 = vsel %vm1578, %v4996, %v4544
  %v5003 = vsel %vm1578, %v4997, %v4545
  %v5005 = vsel %vm1578, %v4998, %v4546
  %v5007 = vmul.bf16 %v4999, %v1607
  %v5008 = vmul.bf16 %v5001, %v1608
  %v5009 = vmul.bf16 %v5003, %v1609
  %v5010 = vmul.bf16 %v5005, %v1610
  %5015 = vrot.lane.b32.xlu0 %v4719, 64
  %v5016 = vpop.permute.xlu0 %5015
  %5017 = vrot.lane.b32.xlu0 %v4720, 64
  %v5018 = vpop.permute.xlu0 %5017
  %5019 = vrot.lane.b32.xlu0 %v4721, 64
  %v5020 = vpop.permute.xlu0 %5019
  %5021 = vrot.lane.b32.xlu0 %v4722, 64
  %v5022 = vpop.permute.xlu0 %5021
  %5027 = vrot.lane.b32.xlu0 %v4815, 64
  %v5028 = vpop.permute.xlu0 %5027
  %5029 = vrot.lane.b32.xlu0 %v4816, 64
  %v5030 = vpop.permute.xlu0 %5029
  %5031 = vrot.lane.b32.xlu0 %v4817, 64
  %v5032 = vpop.permute.xlu0 %5031
  %5033 = vrot.lane.b32.xlu0 %v4818, 64
  %v5034 = vpop.permute.xlu0 %5033
  %5039 = vrot.lane.b32.xlu0 %v4911, 64
  %v5040 = vpop.permute.xlu0 %5039
  %5041 = vrot.lane.b32.xlu0 %v4912, 64
  %v5042 = vpop.permute.xlu0 %5041
  %5043 = vrot.lane.b32.xlu0 %v4913, 64
  %v5044 = vpop.permute.xlu0 %5043
  %5045 = vrot.lane.b32.xlu0 %v4914, 64
  %v5046 = vpop.permute.xlu0 %5045
  %5051 = vrot.lane.b32.xlu0 %v5007, 64
  %v5052 = vpop.permute.xlu0 %5051
  %5053 = vrot.lane.b32.xlu0 %v5008, 64
  %v5054 = vpop.permute.xlu0 %5053
  %5055 = vrot.lane.b32.xlu0 %v5009, 64
  %v5056 = vpop.permute.xlu0 %5055
  %5057 = vrot.lane.b32.xlu0 %v5010, 64
  %v5058 = vpop.permute.xlu0 %5057
  %v5061 = vsel %vm291, %v4671, %v5016
  %v5065 = vsel %vm291, %v4672, %v5018
  %v5069 = vsel %vm291, %v4673, %v5020
  %v5073 = vsel %vm291, %v4674, %v5022
  %v5077 = vsel %vm291, %v4767, %v5028
  %v5081 = vsel %vm291, %v4768, %v5030
  %v5085 = vsel %vm291, %v4769, %v5032
  %v5089 = vsel %vm291, %v4770, %v5034
  %v5093 = vsel %vm291, %v4863, %v5040
  %v5097 = vsel %vm291, %v4864, %v5042
  %v5101 = vsel %vm291, %v4865, %v5044
  %v5105 = vsel %vm291, %v4866, %v5046
  %v5109 = vsel %vm291, %v4959, %v5052
  %v5113 = vsel %vm291, %v4960, %v5054
  %v5117 = vsel %vm291, %v4961, %v5056
  %v5121 = vsel %vm291, %v4962, %v5058
  %5131 = vrot.lane.b32.xlu0 %v4505, 96
  %v5132 = vpop.permute.xlu0 %5131
  %5133 = vrot.lane.b32.xlu0 %v4509, 96
  %v5134 = vpop.permute.xlu0 %5133
  %5135 = vrot.lane.b32.xlu0 %v4515, 96
  %v5136 = vpop.permute.xlu0 %5135
  %5137 = vrot.lane.b32.xlu0 %v4519, 96
  %v5138 = vpop.permute.xlu0 %5137
  %5139 = vrot.lane.b32.xlu0 %v4525, 96
  %v5140 = vpop.permute.xlu0 %5139
  %5141 = vrot.lane.b32.xlu0 %v4529, 96
  %v5142 = vpop.permute.xlu0 %5141
  %5143 = vrot.lane.b32.xlu0 %v4535, 96
  %v5144 = vpop.permute.xlu0 %5143
  %5145 = vrot.lane.b32.xlu0 %v4539, 96
  %v5146 = vpop.permute.xlu0 %5145
  %5155 = vrot.lane.b32.xlu0 %v4505, 64
  %v5156 = vpop.permute.xlu0 %5155
  %5157 = vrot.lane.b32.xlu0 %v4509, 64
  %v5158 = vpop.permute.xlu0 %5157
  %5159 = vrot.lane.b32.xlu0 %v4515, 64
  %v5160 = vpop.permute.xlu0 %5159
  %5161 = vrot.lane.b32.xlu0 %v4519, 64
  %v5162 = vpop.permute.xlu0 %5161
  %5163 = vrot.lane.b32.xlu0 %v4525, 64
  %v5164 = vpop.permute.xlu0 %5163
  %5165 = vrot.lane.b32.xlu0 %v4529, 64
  %v5166 = vpop.permute.xlu0 %5165
  %5167 = vrot.lane.b32.xlu0 %v4535, 64
  %v5168 = vpop.permute.xlu0 %5167
  %5169 = vrot.lane.b32.xlu0 %v4539, 64
  %v5170 = vpop.permute.xlu0 %5169
  %5179 = vrot.lane.b32.xlu0 %v4505, 32
  %v5180 = vpop.permute.xlu0 %5179
  %5181 = vrot.lane.b32.xlu0 %v4509, 32
  %v5182 = vpop.permute.xlu0 %5181
  %5183 = vrot.lane.b32.xlu0 %v4515, 32
  %v5184 = vpop.permute.xlu0 %5183
  %5185 = vrot.lane.b32.xlu0 %v4519, 32
  %v5186 = vpop.permute.xlu0 %5185
  %5187 = vrot.lane.b32.xlu0 %v4525, 32
  %v5188 = vpop.permute.xlu0 %5187
  %5189 = vrot.lane.b32.xlu0 %v4529, 32
  %v5190 = vpop.permute.xlu0 %5189
  %5191 = vrot.lane.b32.xlu0 %v4535, 32
  %v5192 = vpop.permute.xlu0 %5191
  %5193 = vrot.lane.b32.xlu0 %v4539, 32
  %v5194 = vpop.permute.xlu0 %5193
  %5211 = vrot.lane.b32.xlu0 %v4507, 96
  %v5212 = vpop.permute.xlu0 %5211
  %5213 = vrot.lane.b32.xlu0 %v4511, 96
  %v5214 = vpop.permute.xlu0 %5213
  %5215 = vrot.lane.b32.xlu0 %v4517, 96
  %v5216 = vpop.permute.xlu0 %5215
  %5217 = vrot.lane.b32.xlu0 %v4521, 96
  %v5218 = vpop.permute.xlu0 %5217
  %5219 = vrot.lane.b32.xlu0 %v4527, 96
  %v5220 = vpop.permute.xlu0 %5219
  %5221 = vrot.lane.b32.xlu0 %v4531, 96
  %v5222 = vpop.permute.xlu0 %5221
  %5223 = vrot.lane.b32.xlu0 %v4537, 96
  %v5224 = vpop.permute.xlu0 %5223
  %5225 = vrot.lane.b32.xlu0 %v4541, 96
  %v5226 = vpop.permute.xlu0 %5225
  %5235 = vrot.lane.b32.xlu0 %v4507, 64
  %v5236 = vpop.permute.xlu0 %5235
  %5237 = vrot.lane.b32.xlu0 %v4511, 64
  %v5238 = vpop.permute.xlu0 %5237
  %5239 = vrot.lane.b32.xlu0 %v4517, 64
  %v5240 = vpop.permute.xlu0 %5239
  %5241 = vrot.lane.b32.xlu0 %v4521, 64
  %v5242 = vpop.permute.xlu0 %5241
  %5243 = vrot.lane.b32.xlu0 %v4527, 64
  %v5244 = vpop.permute.xlu0 %5243
  %5245 = vrot.lane.b32.xlu0 %v4531, 64
  %v5246 = vpop.permute.xlu0 %5245
  %5247 = vrot.lane.b32.xlu0 %v4537, 64
  %v5248 = vpop.permute.xlu0 %5247
  %5249 = vrot.lane.b32.xlu0 %v4541, 64
  %v5250 = vpop.permute.xlu0 %5249
  %5259 = vrot.lane.b32.xlu0 %v4507, 32
  %v5260 = vpop.permute.xlu0 %5259
  %5261 = vrot.lane.b32.xlu0 %v4511, 32
  %v5262 = vpop.permute.xlu0 %5261
  %5263 = vrot.lane.b32.xlu0 %v4517, 32
  %v5264 = vpop.permute.xlu0 %5263
  %5265 = vrot.lane.b32.xlu0 %v4521, 32
  %v5266 = vpop.permute.xlu0 %5265
  %5267 = vrot.lane.b32.xlu0 %v4527, 32
  %v5268 = vpop.permute.xlu0 %5267
  %5269 = vrot.lane.b32.xlu0 %v4531, 32
  %v5270 = vpop.permute.xlu0 %5269
  %5271 = vrot.lane.b32.xlu0 %v4537, 32
  %v5272 = vpop.permute.xlu0 %5271
  %5273 = vrot.lane.b32.xlu0 %v4541, 32
  %v5274 = vpop.permute.xlu0 %5273
  %v5283 = vpack.c.bf16 %v4509, %v4505
  %v5284 = vpack.c.bf16 %v4519, %v4515
  %v5285 = vpack.c.bf16 %v4529, %v4525
  %v5286 = vpack.c.bf16 %v4539, %v4535
  %v5287 = vpack.c.bf16 %v5134, %v5132
  %v5288 = vpack.c.bf16 %v5138, %v5136
  %v5289 = vpack.c.bf16 %v5142, %v5140
  %v5290 = vpack.c.bf16 %v5146, %v5144
  %v5291 = vpack.c.bf16 %v5158, %v5156
  %v5292 = vpack.c.bf16 %v5162, %v5160
  %v5293 = vpack.c.bf16 %v5166, %v5164
  %v5294 = vpack.c.bf16 %v5170, %v5168
  %v5295 = vpack.c.bf16 %v5182, %v5180
  %v5296 = vpack.c.bf16 %v5186, %v5184
  %v5297 = vpack.c.bf16 %v5190, %v5188
  %v5298 = vpack.c.bf16 %v5194, %v5192
  %v5299 = vpack.c.bf16 %v4511, %v4507
  %v5300 = vpack.c.bf16 %v4521, %v4517
  %v5301 = vpack.c.bf16 %v4531, %v4527
  %v5302 = vpack.c.bf16 %v4541, %v4537
  %v5303 = vpack.c.bf16 %v5214, %v5212
  %v5304 = vpack.c.bf16 %v5218, %v5216
  %v5305 = vpack.c.bf16 %v5222, %v5220
  %v5306 = vpack.c.bf16 %v5226, %v5224
  %v5307 = vpack.c.bf16 %v5238, %v5236
  %v5308 = vpack.c.bf16 %v5242, %v5240
  %v5309 = vpack.c.bf16 %v5246, %v5244
  %v5310 = vpack.c.bf16 %v5250, %v5248
  %v5311 = vpack.c.bf16 %v5262, %v5260
  %v5312 = vpack.c.bf16 %v5266, %v5264
  %v5313 = vpack.c.bf16 %v5270, %v5268
  %v5314 = vpack.c.bf16 %v5274, %v5272
  %5315 = vmatprep.subr.bf16.mxu0 0
  %5316 = vmatpush1.bf16.msra.mxu0 %v5283
  %5317 = vmatprep.subr.bf16.mxu0 0
  %5318 = vmatpush1.bf16.msra.mxu0 %v5284
  %5319 = vmatprep.subr.bf16.mxu0 0
  %5320 = vmatpush1.bf16.msra.mxu0 %v5285
  %5321 = vmatprep.subr.bf16.mxu0 0
  %5322 = vmatpush1.bf16.msra.mxu0 %v5286
  %5323 = vmatprep.subr.bf16.mxu0 0
  %5324 = vmatpush1.bf16.msra.mxu0 %v5287
  %5325 = vmatprep.subr.bf16.mxu0 0
  %5326 = vmatpush1.bf16.msra.mxu0 %v5288
  %5327 = vmatprep.subr.bf16.mxu0 0
  %5328 = vmatpush1.bf16.msra.mxu0 %v5289
  %5329 = vmatprep.subr.bf16.mxu0 0
  %5330 = vmatpush1.bf16.msra.mxu0 %v5290
  %5331 = vmatprep.subr.bf16.mxu0 0
  %5332 = vmatpush1.bf16.msra.mxu0 %v5291
  %5333 = vmatprep.subr.bf16.mxu0 0
  %5334 = vmatpush1.bf16.msra.mxu0 %v5292
  %5335 = vmatprep.subr.bf16.mxu0 0
  %5336 = vmatpush1.bf16.msra.mxu0 %v5293
  %5337 = vmatprep.subr.bf16.mxu0 0
  %5338 = vmatpush1.bf16.msra.mxu0 %v5294
  %5339 = vmatprep.subr.bf16.mxu0 0
  %5340 = vmatpush1.bf16.msra.mxu0 %v5295
  %5341 = vmatprep.subr.bf16.mxu0 0
  %5342 = vmatpush1.bf16.msra.mxu0 %v5296
  %5343 = vmatprep.subr.bf16.mxu0 0
  %5344 = vmatpush1.bf16.msra.mxu0 %v5297
  %5345 = vmatprep.subr.bf16.mxu0 0
  %5346 = vmatpush1.bf16.msra.mxu0 %v5298
  %5347 = vmatprep.mubr.bf16.mxu0 %v5077
  %5348 = vmatmul.mubr.bf16.gmra.mrb[0].mxu0 %v5061
  %v5349 = vpop.f32.mrb[0].mxu0
  %v5350 = vadd.f32 0.0, %v5349
  %v5351 = vpop.f32.mrb[0].mxu0
  %v5352 = vpop.f32.mrb[0].mxu0
  %v5353 = vadd.f32 0.0, %v5352
  %v5354 = vpop.f32.mrb[0].mxu0
  %5355 = vmatprep.mubr.bf16.mxu0 %v5081
  %5356 = vmatmul.mubr.bf16.gmra.mrb[0].mxu0 %v5065
  %v5357 = vpop.f32.mrb[0].mxu0
  %v5358 = vadd.f32 0.0, %v5357
  %v5359 = vpop.f32.mrb[0].mxu0
  %v5360 = vpop.f32.mrb[0].mxu0
  %v5361 = vadd.f32 0.0, %v5360
  %v5362 = vpop.f32.mrb[0].mxu0
  %5363 = vmatprep.mubr.bf16.mxu0 %v5085
  %5364 = vmatmul.mubr.bf16.gmra.mrb[0].mxu0 %v5069
  %v5365 = vpop.f32.mrb[0].mxu0
  %v5366 = vadd.f32 0.0, %v5365
  %v5367 = vpop.f32.mrb[0].mxu0
  %v5368 = vpop.f32.mrb[0].mxu0
  %v5369 = vadd.f32 0.0, %v5368
  %v5370 = vpop.f32.mrb[0].mxu0
  %5371 = vmatprep.mubr.bf16.mxu0 %v5089
  %5372 = vmatmul.mubr.bf16.gmra.mrb[0].mxu0 %v5073
  %v5373 = vpop.f32.mrb[0].mxu0
  %v5374 = vadd.f32 0.0, %v5373
  %v5375 = vpop.f32.mrb[0].mxu0
  %v5376 = vpop.f32.mrb[0].mxu0
  %v5377 = vadd.f32 0.0, %v5376
  %v5378 = vpop.f32.mrb[0].mxu0
  %5379 = vdwg.mxu0
  %5380 = vmatprep.subr.bf16.mxu0 0
  %5381 = vmatpush1.bf16.msra.mxu0 %v5299
  %5382 = vmatprep.subr.bf16.mxu0 0
  %5383 = vmatpush1.bf16.msra.mxu0 %v5300
  %5384 = vmatprep.subr.bf16.mxu0 0
  %5385 = vmatpush1.bf16.msra.mxu0 %v5301
  %5386 = vmatprep.subr.bf16.mxu0 0
  %5387 = vmatpush1.bf16.msra.mxu0 %v5302
  %5388 = vmatprep.subr.bf16.mxu0 0
  %5389 = vmatpush1.bf16.msra.mxu0 %v5303
  %5390 = vmatprep.subr.bf16.mxu0 0
  %5391 = vmatpush1.bf16.msra.mxu0 %v5304
  %5392 = vmatprep.subr.bf16.mxu0 0
  %5393 = vmatpush1.bf16.msra.mxu0 %v5305
  %5394 = vmatprep.subr.bf16.mxu0 0
  %5395 = vmatpush1.bf16.msra.mxu0 %v5306
  %5396 = vmatprep.subr.bf16.mxu0 0
  %5397 = vmatpush1.bf16.msra.mxu0 %v5307
  %5398 = vmatprep.subr.bf16.mxu0 0
  %5399 = vmatpush1.bf16.msra.mxu0 %v5308
  %5400 = vmatprep.subr.bf16.mxu0 0
  %5401 = vmatpush1.bf16.msra.mxu0 %v5309
  %5402 = vmatprep.subr.bf16.mxu0 0
  %5403 = vmatpush1.bf16.msra.mxu0 %v5310
  %5404 = vmatprep.subr.bf16.mxu0 0
  %5405 = vmatpush1.bf16.msra.mxu0 %v5311
  %5406 = vmatprep.subr.bf16.mxu0 0
  %5407 = vmatpush1.bf16.msra.mxu0 %v5312
  %5408 = vmatprep.subr.bf16.mxu0 0
  %5409 = vmatpush1.bf16.msra.mxu0 %v5313
  %5410 = vmatprep.subr.bf16.mxu0 0
  %5411 = vmatpush1.bf16.msra.mxu0 %v5314
  %5412 = vmatprep.mubr.bf16.mxu0 %v5109
  %5413 = vmatmul.mubr.bf16.gmra.mrb[0].mxu0 %v5093
  %v5414 = vpop.f32.mrb[0].mxu0
  %v5415 = vadd.f32 %v5350, %v5414
  %v5416 = vpop.f32.mrb[0].mxu0
  %v5417 = vpop.f32.mrb[0].mxu0
  %v5418 = vadd.f32 %v5353, %v5417
  %v5419 = vpop.f32.mrb[0].mxu0
  %5420 = vmatprep.mubr.bf16.mxu0 %v5113
  %5421 = vmatmul.mubr.bf16.gmra.mrb[0].mxu0 %v5097
  %v5422 = vpop.f32.mrb[0].mxu0
  %v5423 = vadd.f32 %v5358, %v5422
  %v5424 = vpop.f32.mrb[0].mxu0
  %v5425 = vpop.f32.mrb[0].mxu0
  %v5426 = vadd.f32 %v5361, %v5425
  %v5427 = vpop.f32.mrb[0].mxu0
  %5428 = vmatprep.mubr.bf16.mxu0 %v5117
  %5429 = vmatmul.mubr.bf16.gmra.mrb[0].mxu0 %v5101
  %v5430 = vpop.f32.mrb[0].mxu0
  %v5431 = vadd.f32 %v5366, %v5430
  %v5432 = vpop.f32.mrb[0].mxu0
  %v5433 = vpop.f32.mrb[0].mxu0
  %v5434 = vadd.f32 %v5369, %v5433
  %v5435 = vpop.f32.mrb[0].mxu0
  %5436 = vmatprep.mubr.bf16.mxu0 %v5121
  %5437 = vmatmul.mubr.bf16.gmra.mrb[0].mxu0 %v5105
  %v5438 = vpop.f32.mrb[0].mxu0
  %v5439 = vadd.f32 %v5374, %v5438
  %v5440 = vpop.f32.mrb[0].mxu0
  %v5441 = vpop.f32.mrb[0].mxu0
  %v5442 = vadd.f32 %v5377, %v5441
  %v5443 = vpop.f32.mrb[0].mxu0
  %5444 = vdwg.mxu0
  %v5445 = vadd.f32 %v4113, %v5415
  %v5446 = vadd.f32 %v4114, %v5418
  %v5447 = vadd.f32 %v4115, %v5423
  %v5448 = vadd.f32 %v4116, %v5426
  %v5449 = vadd.f32 %v4117, %v5431
  %v5450 = vadd.f32 %v4118, %v5434
  %v5451 = vadd.f32 %v4119, %v5439
  %v5452 = vadd.f32 %v4120, %v5442
  %s5453 = scalar_lea.vmem %s10, 176
  %v5454 = vld [vmem:[%s5453] sm:$0xf]
  %v5455 = vld [vmem:[%s5453 + $0x4] sm:$0xf]
  %v5456 = vld [vmem:[%s5453 + $0x8] sm:$0xf]
  %v5457 = vld [vmem:[%s5453 + $0xc] sm:$0xf]
  %v5458 = vpack.c.bf16 %v5446, %v5445
  %v5459 = vpack.c.bf16 %v5448, %v5447
  %v5460 = vpack.c.bf16 %v5450, %v5449
  %v5461 = vpack.c.bf16 %v5452, %v5451
  %s5462 = scalar_lea.vmem %s11, 13
  %v5463 = vld [vmem:[%s5462] sm:$0x1]
  %v5465 = vlaneseq
  %v5466 = vshrl.u32 %v5465, 7
  %v5467 = vsub.s32 0, %v5466
  %v5468 = vrot.slane %v5463, %v5467
  %v5474 = vunpack.c.l.b16 %v5454
  %v5475 = vunpack.c.l.b16 %v5455
  %v5476 = vunpack.c.l.b16 %v5456
  %v5477 = vunpack.c.l.b16 %v5457
  %v5478 = vpack.c.b16 %v5475, %v5474
  %v5479 = vpack.c.b16 %v5477, %v5476
  %v5483 = vsel %vm620, %v5458, 0
  %v5486 = vsel %vm620, %v5459, 0
  %v5489 = vsel %vm620, %v5460, 0
  %v5492 = vsel %vm620, %v5461, 0
  %5494 = vmatprep.subr.bf16.mxu0 0
  %5495 = vmatpush1.bf16.msra.mxu0 %v5478
  %5496 = vmatprep.subr.bf16.mxu0 0
  %5497 = vmatpush1.bf16.msra.mxu0 %v5479
  %5498 = vmatprep.subr.bf16.mxu0 0
  %5499 = vmatpush1.bf16.msra.mxu0 0
  %5500 = vmatprep.subr.bf16.mxu0 0
  %5501 = vmatpush1.bf16.msra.mxu0 0
  %5502 = vmatprep.subr.bf16.mxu0 0
  %5503 = vmatpush1.bf16.msra.mxu0 0
  %5504 = vmatprep.subr.bf16.mxu0 0
  %5505 = vmatpush1.bf16.msra.mxu0 0
  %5506 = vmatprep.subr.bf16.mxu0 0
  %5507 = vmatpush1.bf16.msra.mxu0 0
  %5508 = vmatprep.subr.bf16.mxu0 0
  %5509 = vmatpush1.bf16.msra.mxu0 0
  %5510 = vmatprep.subr.bf16.mxu0 0
  %5511 = vmatpush1.bf16.msra.mxu0 0
  %5512 = vmatprep.subr.bf16.mxu0 0
  %5513 = vmatpush1.bf16.msra.mxu0 0
  %5514 = vmatprep.subr.bf16.mxu0 0
  %5515 = vmatpush1.bf16.msra.mxu0 0
  %5516 = vmatprep.subr.bf16.mxu0 0
  %5517 = vmatpush1.bf16.msra.mxu0 0
  %5518 = vmatprep.subr.bf16.mxu0 0
  %5519 = vmatpush1.bf16.msra.mxu0 0
  %5520 = vmatprep.subr.bf16.mxu0 0
  %5521 = vmatpush1.bf16.msra.mxu0 0
  %5522 = vmatprep.subr.bf16.mxu0 0
  %5523 = vmatpush1.bf16.msra.mxu0 0
  %5524 = vmatprep.subr.bf16.mxu0 0
  %5525 = vmatpush1.bf16.msra.mxu0 0
  %5526 = vmatprep.mubr.bf16.mxu0 0
  %5527 = vmatmul.mubr.bf16.gmra.mrb[0].mxu0 %v5483
  %v5528 = vpop.f32.mrb[0].mxu0
  %v5529 = vadd.f32 %v5468, %v5528
  %v5530 = vpop.f32.mrb[0].mxu0
  %v5531 = vpop.f32.mrb[0].mxu0
  %v5532 = vadd.f32 %v5468, %v5531
  %v5533 = vpop.f32.mrb[0].mxu0
  %5534 = vmatprep.mubr.bf16.mxu0 0
  %5535 = vmatmul.mubr.bf16.gmra.mrb[0].mxu0 %v5486
  %v5536 = vpop.f32.mrb[0].mxu0
  %v5537 = vadd.f32 %v5468, %v5536
  %v5538 = vpop.f32.mrb[0].mxu0
  %v5539 = vpop.f32.mrb[0].mxu0
  %v5540 = vadd.f32 %v5468, %v5539
  %v5541 = vpop.f32.mrb[0].mxu0
  %5542 = vmatprep.mubr.bf16.mxu0 0
  %5543 = vmatmul.mubr.bf16.gmra.mrb[0].mxu0 %v5489
  %v5544 = vpop.f32.mrb[0].mxu0
  %v5545 = vadd.f32 %v5468, %v5544
  %v5546 = vpop.f32.mrb[0].mxu0
  %v5547 = vpop.f32.mrb[0].mxu0
  %v5548 = vadd.f32 %v5468, %v5547
  %v5549 = vpop.f32.mrb[0].mxu0
  %5550 = vmatprep.mubr.bf16.mxu0 0
  %5551 = vmatmul.mubr.bf16.gmra.mrb[0].mxu0 %v5492
  %v5552 = vpop.f32.mrb[0].mxu0
  %v5553 = vadd.f32 %v5468, %v5552
  %v5554 = vpop.f32.mrb[0].mxu0
  %v5555 = vpop.f32.mrb[0].mxu0
  %v5556 = vadd.f32 %v5468, %v5555
  %v5557 = vpop.f32.mrb[0].mxu0
  %5558 = vdwg.mxu0
  %v5559 = vxor.u32 %v5529, 2147483648
  %v5560 = vxor.u32 %v5532, 2147483648
  %v5561 = vxor.u32 %v5537, 2147483648
  %v5562 = vxor.u32 %v5540, 2147483648
  %v5563 = vxor.u32 %v5545, 2147483648
  %v5564 = vxor.u32 %v5548, 2147483648
  %v5565 = vxor.u32 %v5553, 2147483648
  %v5566 = vxor.u32 %v5556, 2147483648
  %v5567 = vmul.f32 %v5559, 1.442695
  %v5568 = vpow.pop %v5567
  %v5569 = vmul.f32 %v5560, 1.442695
  %v5570 = vpow.pop %v5569
  %v5571 = vmul.f32 %v5561, 1.442695
  %v5572 = vpow.pop %v5571
  %v5573 = vmul.f32 %v5562, 1.442695
  %v5574 = vpow.pop %v5573
  %v5575 = vmul.f32 %v5563, 1.442695
  %v5576 = vpow.pop %v5575
  %v5577 = vmul.f32 %v5564, 1.442695
  %v5578 = vpow.pop %v5577
  %v5579 = vmul.f32 %v5565, 1.442695
  %v5580 = vpow.pop %v5579
  %v5581 = vmul.f32 %v5566, 1.442695
  %v5582 = vpow.pop %v5581
  %v5583 = vadd.f32 %v5568, 1.0
  %v5584 = vadd.f32 %v5570, 1.0
  %v5585 = vadd.f32 %v5572, 1.0
  %v5586 = vadd.f32 %v5574, 1.0
  %v5587 = vadd.f32 %v5576, 1.0
  %v5588 = vadd.f32 %v5578, 1.0
  %v5589 = vadd.f32 %v5580, 1.0
  %v5590 = vadd.f32 %v5582, 1.0
  %v5591 = vrcp.pop %v5583
  %v5592 = vmul.f32 1.0, %v5591
  %v5593 = vrcp.pop %v5584
  %v5594 = vmul.f32 1.0, %v5593
  %v5595 = vrcp.pop %v5585
  %v5596 = vmul.f32 1.0, %v5595
  %v5597 = vrcp.pop %v5586
  %v5598 = vmul.f32 1.0, %v5597
  %v5599 = vrcp.pop %v5587
  %v5600 = vmul.f32 1.0, %v5599
  %v5601 = vrcp.pop %v5588
  %v5602 = vmul.f32 1.0, %v5601
  %v5603 = vrcp.pop %v5589
  %v5604 = vmul.f32 1.0, %v5603
  %v5605 = vrcp.pop %v5590
  %v5606 = vmul.f32 1.0, %v5605
  %v5607 = vmul.f32 %v5529, %v5592
  %v5608 = vmul.f32 %v5532, %v5594
  %v5609 = vmul.f32 %v5537, %v5596
  %v5610 = vmul.f32 %v5540, %v5598
  %v5611 = vmul.f32 %v5545, %v5600
  %v5612 = vmul.f32 %v5548, %v5602
  %v5613 = vmul.f32 %v5553, %v5604
  %v5614 = vmul.f32 %v5556, %v5606
  %s5615 = scalar_lea.vmem %s10, 192
  %v5616 = vld [vmem:[%s5615] sm:$0xf]
  %v5617 = vld [vmem:[%s5615 + $0x4] sm:$0xf]
  %v5618 = vld [vmem:[%s5615 + $0x8] sm:$0xf]
  %v5619 = vld [vmem:[%s5615 + $0xc] sm:$0xf]
  %v5620 = vpack.c.bf16 %v5608, %v5607
  %v5621 = vpack.c.bf16 %v5610, %v5609
  %v5622 = vpack.c.bf16 %v5612, %v5611
  %v5623 = vpack.c.bf16 %v5614, %v5613
  %s5624 = scalar_lea.vmem %s11, 14
  %v5625 = vld [vmem:[%s5624] sm:$0x1]
  %v5627 = vlaneseq
  %v5628 = vshrl.u32 %v5627, 7
  %v5629 = vsub.s32 0, %v5628
  %v5630 = vrot.slane %v5625, %v5629
  %v5636 = vunpack.c.l.b16 %v5616
  %v5637 = vunpack.c.l.b16 %v5617
  %v5638 = vunpack.c.l.b16 %v5618
  %v5639 = vunpack.c.l.b16 %v5619
  %v5640 = vpack.c.b16 %v5637, %v5636
  %v5641 = vpack.c.b16 %v5639, %v5638
  %v5645 = vsel %vm620, %v5620, 0
  %v5648 = vsel %vm620, %v5621, 0
  %v5651 = vsel %vm620, %v5622, 0
  %v5654 = vsel %vm620, %v5623, 0
  %5656 = vmatprep.subr.bf16.mxu0 0
  %5657 = vmatpush1.bf16.msra.mxu0 %v5640
  %5658 = vmatprep.subr.bf16.mxu0 0
  %5659 = vmatpush1.bf16.msra.mxu0 %v5641
  %5660 = vmatprep.subr.bf16.mxu0 0
  %5661 = vmatpush1.bf16.msra.mxu0 0
  %5662 = vmatprep.subr.bf16.mxu0 0
  %5663 = vmatpush1.bf16.msra.mxu0 0
  %5664 = vmatprep.subr.bf16.mxu0 0
  %5665 = vmatpush1.bf16.msra.mxu0 0
  %5666 = vmatprep.subr.bf16.mxu0 0
  %5667 = vmatpush1.bf16.msra.mxu0 0
  %5668 = vmatprep.subr.bf16.mxu0 0
  %5669 = vmatpush1.bf16.msra.mxu0 0
  %5670 = vmatprep.subr.bf16.mxu0 0
  %5671 = vmatpush1.bf16.msra.mxu0 0
  %5672 = vmatprep.subr.bf16.mxu0 0
  %5673 = vmatpush1.bf16.msra.mxu0 0
  %5674 = vmatprep.subr.bf16.mxu0 0
  %5675 = vmatpush1.bf16.msra.mxu0 0
  %5676 = vmatprep.subr.bf16.mxu0 0
  %5677 = vmatpush1.bf16.msra.mxu0 0
  %5678 = vmatprep.subr.bf16.mxu0 0
  %5679 = vmatpush1.bf16.msra.mxu0 0
  %5680 = vmatprep.subr.bf16.mxu0 0
  %5681 = vmatpush1.bf16.msra.mxu0 0
  %5682 = vmatprep.subr.bf16.mxu0 0
  %5683 = vmatpush1.bf16.msra.mxu0 0
  %5684 = vmatprep.subr.bf16.mxu0 0
  %5685 = vmatpush1.bf16.msra.mxu0 0
  %5686 = vmatprep.subr.bf16.mxu0 0
  %5687 = vmatpush1.bf16.msra.mxu0 0
  %5688 = vmatprep.mubr.bf16.mxu0 0
  %5689 = vmatmul.mubr.bf16.gmra.mrb[0].mxu0 %v5645
  %v5690 = vpop.f32.mrb[0].mxu0
  %v5691 = vadd.f32 %v5630, %v5690
  %v5692 = vpop.f32.mrb[0].mxu0
  %v5693 = vpop.f32.mrb[0].mxu0
  %v5694 = vadd.f32 %v5630, %v5693
  %v5695 = vpop.f32.mrb[0].mxu0
  %5696 = vmatprep.mubr.bf16.mxu0 0
  %5697 = vmatmul.mubr.bf16.gmra.mrb[0].mxu0 %v5648
  %v5698 = vpop.f32.mrb[0].mxu0
  %v5699 = vadd.f32 %v5630, %v5698
  %v5700 = vpop.f32.mrb[0].mxu0
  %v5701 = vpop.f32.mrb[0].mxu0
  %v5702 = vadd.f32 %v5630, %v5701
  %v5703 = vpop.f32.mrb[0].mxu0
  %5704 = vmatprep.mubr.bf16.mxu0 0
  %5705 = vmatmul.mubr.bf16.gmra.mrb[0].mxu0 %v5651
  %v5706 = vpop.f32.mrb[0].mxu0
  %v5707 = vadd.f32 %v5630, %v5706
  %v5708 = vpop.f32.mrb[0].mxu0
  %v5709 = vpop.f32.mrb[0].mxu0
  %v5710 = vadd.f32 %v5630, %v5709
  %v5711 = vpop.f32.mrb[0].mxu0
  %5712 = vmatprep.mubr.bf16.mxu0 0
  %5713 = vmatmul.mubr.bf16.gmra.mrb[0].mxu0 %v5654
  %v5714 = vpop.f32.mrb[0].mxu0
  %v5715 = vadd.f32 %v5630, %v5714
  %v5716 = vpop.f32.mrb[0].mxu0
  %v5717 = vpop.f32.mrb[0].mxu0
  %v5718 = vadd.f32 %v5630, %v5717
  %v5719 = vpop.f32.mrb[0].mxu0
  %5720 = vdwg.mxu0
  %v5721 = vxor.u32 %v5691, 2147483648
  %v5722 = vxor.u32 %v5694, 2147483648
  %v5723 = vxor.u32 %v5699, 2147483648
  %v5724 = vxor.u32 %v5702, 2147483648
  %v5725 = vxor.u32 %v5707, 2147483648
  %v5726 = vxor.u32 %v5710, 2147483648
  %v5727 = vxor.u32 %v5715, 2147483648
  %v5728 = vxor.u32 %v5718, 2147483648
  %v5729 = vmul.f32 %v5721, 1.442695
  %v5730 = vpow.pop %v5729
  %v5731 = vmul.f32 %v5722, 1.442695
  %v5732 = vpow.pop %v5731
  %v5733 = vmul.f32 %v5723, 1.442695
  %v5734 = vpow.pop %v5733
  %v5735 = vmul.f32 %v5724, 1.442695
  %v5736 = vpow.pop %v5735
  %v5737 = vmul.f32 %v5725, 1.442695
  %v5738 = vpow.pop %v5737
  %v5739 = vmul.f32 %v5726, 1.442695
  %v5740 = vpow.pop %v5739
  %v5741 = vmul.f32 %v5727, 1.442695
  %v5742 = vpow.pop %v5741
  %v5743 = vmul.f32 %v5728, 1.442695
  %v5744 = vpow.pop %v5743
  %v5745 = vadd.f32 %v5730, 1.0
  %v5746 = vadd.f32 %v5732, 1.0
  %v5747 = vadd.f32 %v5734, 1.0
  %v5748 = vadd.f32 %v5736, 1.0
  %v5749 = vadd.f32 %v5738, 1.0
  %v5750 = vadd.f32 %v5740, 1.0
  %v5751 = vadd.f32 %v5742, 1.0
  %v5752 = vadd.f32 %v5744, 1.0
  %v5753 = vrcp.pop %v5745
  %v5754 = vmul.f32 1.0, %v5753
  %v5755 = vrcp.pop %v5746
  %v5756 = vmul.f32 1.0, %v5755
  %v5757 = vrcp.pop %v5747
  %v5758 = vmul.f32 1.0, %v5757
  %v5759 = vrcp.pop %v5748
  %v5760 = vmul.f32 1.0, %v5759
  %v5761 = vrcp.pop %v5749
  %v5762 = vmul.f32 1.0, %v5761
  %v5763 = vrcp.pop %v5750
  %v5764 = vmul.f32 1.0, %v5763
  %v5765 = vrcp.pop %v5751
  %v5766 = vmul.f32 1.0, %v5765
  %v5767 = vrcp.pop %v5752
  %v5768 = vmul.f32 1.0, %v5767
  %v5769 = vmul.f32 %v5691, %v5754
  %v5770 = vmul.f32 %v5694, %v5756
  %v5771 = vmul.f32 %v5699, %v5758
  %v5772 = vmul.f32 %v5702, %v5760
  %v5773 = vmul.f32 %v5707, %v5762
  %v5774 = vmul.f32 %v5710, %v5764
  %v5775 = vmul.f32 %v5715, %v5766
  %v5776 = vmul.f32 %v5718, %v5768
  %v5777 = vadd.f32 %v5445, %v5769
  %v5778 = vadd.f32 %v5446, %v5770
  %v5779 = vadd.f32 %v5447, %v5771
  %v5780 = vadd.f32 %v5448, %v5772
  %v5781 = vadd.f32 %v5449, %v5773
  %v5782 = vadd.f32 %v5450, %v5774
  %v5783 = vadd.f32 %v5451, %v5775
  %v5784 = vadd.f32 %v5452, %v5776
  %s5785 = scalar_lea.vmem %s10, 208
  %v5786 = vld [vmem:[%s5785] sm:$0xf]
  %v5787 = vld [vmem:[%s5785 + $0x4] sm:$0xf]
  %v5788 = vld [vmem:[%s5785 + $0x8] sm:$0xf]
  %v5789 = vld [vmem:[%s5785 + $0xc] sm:$0xf]
  %v5790 = vpack.c.bf16 %v5778, %v5777
  %v5791 = vpack.c.bf16 %v5780, %v5779
  %v5792 = vpack.c.bf16 %v5782, %v5781
  %v5793 = vpack.c.bf16 %v5784, %v5783
  %s5794 = scalar_lea.vmem %s11, 15
  %v5795 = vld [vmem:[%s5794] sm:$0x1]
  %v5797 = vlaneseq
  %v5798 = vshrl.u32 %v5797, 7
  %v5799 = vsub.s32 0, %v5798
  %v5800 = vrot.slane %v5795, %v5799
  %v5806 = vunpack.c.l.b16 %v5786
  %v5807 = vunpack.c.l.b16 %v5787
  %v5808 = vunpack.c.l.b16 %v5788
  %v5809 = vunpack.c.l.b16 %v5789
  %v5810 = vpack.c.b16 %v5807, %v5806
  %v5811 = vpack.c.b16 %v5809, %v5808
  %v5815 = vsel %vm620, %v5790, 0
  %v5818 = vsel %vm620, %v5791, 0
  %v5821 = vsel %vm620, %v5792, 0
  %v5824 = vsel %vm620, %v5793, 0
  %5826 = vmatprep.subr.bf16.mxu0 0
  %5827 = vmatpush1.bf16.msra.mxu0 %v5810
  %5828 = vmatprep.subr.bf16.mxu0 0
  %5829 = vmatpush1.bf16.msra.mxu0 %v5811
  %5830 = vmatprep.subr.bf16.mxu0 0
  %5831 = vmatpush1.bf16.msra.mxu0 0
  %5832 = vmatprep.subr.bf16.mxu0 0
  %5833 = vmatpush1.bf16.msra.mxu0 0
  %5834 = vmatprep.subr.bf16.mxu0 0
  %5835 = vmatpush1.bf16.msra.mxu0 0
  %5836 = vmatprep.subr.bf16.mxu0 0
  %5837 = vmatpush1.bf16.msra.mxu0 0
  %5838 = vmatprep.subr.bf16.mxu0 0
  %5839 = vmatpush1.bf16.msra.mxu0 0
  %5840 = vmatprep.subr.bf16.mxu0 0
  %5841 = vmatpush1.bf16.msra.mxu0 0
  %5842 = vmatprep.subr.bf16.mxu0 0
  %5843 = vmatpush1.bf16.msra.mxu0 0
  %5844 = vmatprep.subr.bf16.mxu0 0
  %5845 = vmatpush1.bf16.msra.mxu0 0
  %5846 = vmatprep.subr.bf16.mxu0 0
  %5847 = vmatpush1.bf16.msra.mxu0 0
  %5848 = vmatprep.subr.bf16.mxu0 0
  %5849 = vmatpush1.bf16.msra.mxu0 0
  %5850 = vmatprep.subr.bf16.mxu0 0
  %5851 = vmatpush1.bf16.msra.mxu0 0
  %5852 = vmatprep.subr.bf16.mxu0 0
  %5853 = vmatpush1.bf16.msra.mxu0 0
  %5854 = vmatprep.subr.bf16.mxu0 0
  %5855 = vmatpush1.bf16.msra.mxu0 0
  %5856 = vmatprep.subr.bf16.mxu0 0
  %5857 = vmatpush1.bf16.msra.mxu0 0
  %5858 = vmatprep.mubr.bf16.mxu0 0
  %5859 = vmatmul.mubr.bf16.gmra.mrb[0].mxu0 %v5815
  %v5860 = vpop.f32.mrb[0].mxu0
  %v5861 = vadd.f32 %v5800, %v5860
  %v5862 = vpop.f32.mrb[0].mxu0
  %v5863 = vpop.f32.mrb[0].mxu0
  %v5864 = vadd.f32 %v5800, %v5863
  %v5865 = vpop.f32.mrb[0].mxu0
  %5866 = vmatprep.mubr.bf16.mxu0 0
  %5867 = vmatmul.mubr.bf16.gmra.mrb[0].mxu0 %v5818
  %v5868 = vpop.f32.mrb[0].mxu0
  %v5869 = vadd.f32 %v5800, %v5868
  %v5870 = vpop.f32.mrb[0].mxu0
  %v5871 = vpop.f32.mrb[0].mxu0
  %v5872 = vadd.f32 %v5800, %v5871
  %v5873 = vpop.f32.mrb[0].mxu0
  %5874 = vmatprep.mubr.bf16.mxu0 0
  %5875 = vmatmul.mubr.bf16.gmra.mrb[0].mxu0 %v5821
  %v5876 = vpop.f32.mrb[0].mxu0
  %v5877 = vadd.f32 %v5800, %v5876
  %v5878 = vpop.f32.mrb[0].mxu0
  %v5879 = vpop.f32.mrb[0].mxu0
  %v5880 = vadd.f32 %v5800, %v5879
  %v5881 = vpop.f32.mrb[0].mxu0
  %5882 = vmatprep.mubr.bf16.mxu0 0
  %5883 = vmatmul.mubr.bf16.gmra.mrb[0].mxu0 %v5824
  %v5884 = vpop.f32.mrb[0].mxu0
  %v5885 = vadd.f32 %v5800, %v5884
  %v5886 = vpop.f32.mrb[0].mxu0
  %v5887 = vpop.f32.mrb[0].mxu0
  %v5888 = vadd.f32 %v5800, %v5887
  %v5889 = vpop.f32.mrb[0].mxu0
  %5890 = vdwg.mxu0
  %v5891 = vxor.u32 %v5861, 2147483648
  %v5892 = vxor.u32 %v5864, 2147483648
  %v5893 = vxor.u32 %v5869, 2147483648
  %v5894 = vxor.u32 %v5872, 2147483648
  %v5895 = vxor.u32 %v5877, 2147483648
  %v5896 = vxor.u32 %v5880, 2147483648
  %v5897 = vxor.u32 %v5885, 2147483648
  %v5898 = vxor.u32 %v5888, 2147483648
  %v5899 = vmul.f32 %v5891, 1.442695
  %v5900 = vpow.pop %v5899
  %v5901 = vmul.f32 %v5892, 1.442695
  %v5902 = vpow.pop %v5901
  %v5903 = vmul.f32 %v5893, 1.442695
  %v5904 = vpow.pop %v5903
  %v5905 = vmul.f32 %v5894, 1.442695
  %v5906 = vpow.pop %v5905
  %v5907 = vmul.f32 %v5895, 1.442695
  %v5908 = vpow.pop %v5907
  %v5909 = vmul.f32 %v5896, 1.442695
  %v5910 = vpow.pop %v5909
  %v5911 = vmul.f32 %v5897, 1.442695
  %v5912 = vpow.pop %v5911
  %v5913 = vmul.f32 %v5898, 1.442695
  %v5914 = vpow.pop %v5913
  %v5915 = vadd.f32 %v5900, 1.0
  %v5916 = vadd.f32 %v5902, 1.0
  %v5917 = vadd.f32 %v5904, 1.0
  %v5918 = vadd.f32 %v5906, 1.0
  %v5919 = vadd.f32 %v5908, 1.0
  %v5920 = vadd.f32 %v5910, 1.0
  %v5921 = vadd.f32 %v5912, 1.0
  %v5922 = vadd.f32 %v5914, 1.0
  %v5923 = vrcp.pop %v5915
  %v5924 = vmul.f32 1.0, %v5923
  %v5925 = vrcp.pop %v5916
  %v5926 = vmul.f32 1.0, %v5925
  %v5927 = vrcp.pop %v5917
  %v5928 = vmul.f32 1.0, %v5927
  %v5929 = vrcp.pop %v5918
  %v5930 = vmul.f32 1.0, %v5929
  %v5931 = vrcp.pop %v5919
  %v5932 = vmul.f32 1.0, %v5931
  %v5933 = vrcp.pop %v5920
  %v5934 = vmul.f32 1.0, %v5933
  %v5935 = vrcp.pop %v5921
  %v5936 = vmul.f32 1.0, %v5935
  %v5937 = vrcp.pop %v5922
  %v5938 = vmul.f32 1.0, %v5937
  %v5939 = vmul.f32 %v5861, %v5924
  %v5940 = vmul.f32 %v5864, %v5926
  %v5941 = vmul.f32 %v5869, %v5928
  %v5942 = vmul.f32 %v5872, %v5930
  %v5943 = vmul.f32 %v5877, %v5932
  %v5944 = vmul.f32 %v5880, %v5934
  %v5945 = vmul.f32 %v5885, %v5936
  %v5946 = vmul.f32 %v5888, %v5938
  %v5947 = vadd.f32 %v5939, %v3555
  %v5948 = vadd.f32 %v5940, %v3556
  %v5949 = vadd.f32 %v5941, %v3557
  %v5950 = vadd.f32 %v5942, %v3558
  %v5951 = vadd.f32 %v5943, %v3559
  %v5952 = vadd.f32 %v5944, %v3560
  %v5953 = vadd.f32 %v5945, %v3561
  %v5954 = vadd.f32 %v5946, %v3562
  %s5955 = scalar_lea.vmem %s10, 224
  %v5956 = vld [vmem:[%s5955] sm:$0xf]
  %v5957 = vld [vmem:[%s5955 + $0x4] sm:$0xf]
  %v5958 = vld [vmem:[%s5955 + $0x8] sm:$0xf]
  %v5959 = vld [vmem:[%s5955 + $0xc] sm:$0xf]
  %v5960 = vpack.c.bf16 %v5948, %v5947
  %v5961 = vpack.c.bf16 %v5950, %v5949
  %v5962 = vpack.c.bf16 %v5952, %v5951
  %v5963 = vpack.c.bf16 %v5954, %v5953
  %s5964 = scalar_lea.vmem %s11, 16
  %v5965 = vld [vmem:[%s5964] sm:$0x1]
  %v5967 = vlaneseq
  %v5968 = vshrl.u32 %v5967, 7
  %v5969 = vsub.s32 0, %v5968
  %v5970 = vrot.slane %v5965, %v5969
  %v5976 = vunpack.c.l.b16 %v5956
  %v5977 = vunpack.c.l.b16 %v5957
  %v5978 = vunpack.c.l.b16 %v5958
  %v5979 = vunpack.c.l.b16 %v5959
  %v5980 = vpack.c.b16 %v5977, %v5976
  %v5981 = vpack.c.b16 %v5979, %v5978
  %v5985 = vsel %vm620, %v5960, 0
  %v5988 = vsel %vm620, %v5961, 0
  %v5991 = vsel %vm620, %v5962, 0
  %v5994 = vsel %vm620, %v5963, 0
  %5996 = vmatprep.subr.bf16.mxu0 0
  %5997 = vmatpush1.bf16.msra.mxu0 %v5980
  %5998 = vmatprep.subr.bf16.mxu0 0
  %5999 = vmatpush1.bf16.msra.mxu0 %v5981
  %6000 = vmatprep.subr.bf16.mxu0 0
  %6001 = vmatpush1.bf16.msra.mxu0 0
  %6002 = vmatprep.subr.bf16.mxu0 0
  %6003 = vmatpush1.bf16.msra.mxu0 0
  %6004 = vmatprep.subr.bf16.mxu0 0
  %6005 = vmatpush1.bf16.msra.mxu0 0
  %6006 = vmatprep.subr.bf16.mxu0 0
  %6007 = vmatpush1.bf16.msra.mxu0 0
  %6008 = vmatprep.subr.bf16.mxu0 0
  %6009 = vmatpush1.bf16.msra.mxu0 0
  %6010 = vmatprep.subr.bf16.mxu0 0
  %6011 = vmatpush1.bf16.msra.mxu0 0
  %6012 = vmatprep.subr.bf16.mxu0 0
  %6013 = vmatpush1.bf16.msra.mxu0 0
  %6014 = vmatprep.subr.bf16.mxu0 0
  %6015 = vmatpush1.bf16.msra.mxu0 0
  %6016 = vmatprep.subr.bf16.mxu0 0
  %6017 = vmatpush1.bf16.msra.mxu0 0
  %6018 = vmatprep.subr.bf16.mxu0 0
  %6019 = vmatpush1.bf16.msra.mxu0 0
  %6020 = vmatprep.subr.bf16.mxu0 0
  %6021 = vmatpush1.bf16.msra.mxu0 0
  %6022 = vmatprep.subr.bf16.mxu0 0
  %6023 = vmatpush1.bf16.msra.mxu0 0
  %6024 = vmatprep.subr.bf16.mxu0 0
  %6025 = vmatpush1.bf16.msra.mxu0 0
  %6026 = vmatprep.subr.bf16.mxu0 0
  %6027 = vmatpush1.bf16.msra.mxu0 0
  %6028 = vmatprep.mubr.bf16.mxu0 0
  %6029 = vmatmul.mubr.bf16.gmra.mrb[0].mxu0 %v5985
  %v6030 = vpop.f32.mrb[0].mxu0
  %v6031 = vadd.f32 %v5970, %v6030
  %v6032 = vpop.f32.mrb[0].mxu0
  %v6033 = vpop.f32.mrb[0].mxu0
  %v6034 = vadd.f32 %v5970, %v6033
  %v6035 = vpop.f32.mrb[0].mxu0
  %6036 = vmatprep.mubr.bf16.mxu0 0
  %6037 = vmatmul.mubr.bf16.gmra.mrb[0].mxu0 %v5988
  %v6038 = vpop.f32.mrb[0].mxu0
  %v6039 = vadd.f32 %v5970, %v6038
  %v6040 = vpop.f32.mrb[0].mxu0
  %v6041 = vpop.f32.mrb[0].mxu0
  %v6042 = vadd.f32 %v5970, %v6041
  %v6043 = vpop.f32.mrb[0].mxu0
  %6044 = vmatprep.mubr.bf16.mxu0 0
  %6045 = vmatmul.mubr.bf16.gmra.mrb[0].mxu0 %v5991
  %v6046 = vpop.f32.mrb[0].mxu0
  %v6047 = vadd.f32 %v5970, %v6046
  %v6048 = vpop.f32.mrb[0].mxu0
  %v6049 = vpop.f32.mrb[0].mxu0
  %v6050 = vadd.f32 %v5970, %v6049
  %v6051 = vpop.f32.mrb[0].mxu0
  %6052 = vmatprep.mubr.bf16.mxu0 0
  %6053 = vmatmul.mubr.bf16.gmra.mrb[0].mxu0 %v5994
  %v6054 = vpop.f32.mrb[0].mxu0
  %v6055 = vadd.f32 %v5970, %v6054
  %v6056 = vpop.f32.mrb[0].mxu0
  %v6057 = vpop.f32.mrb[0].mxu0
  %v6058 = vadd.f32 %v5970, %v6057
  %v6059 = vpop.f32.mrb[0].mxu0
  %6060 = vdwg.mxu0
  %v6061 = vxor.u32 %v6031, 2147483648
  %v6062 = vxor.u32 %v6034, 2147483648
  %v6063 = vxor.u32 %v6039, 2147483648
  %v6064 = vxor.u32 %v6042, 2147483648
  %v6065 = vxor.u32 %v6047, 2147483648
  %v6066 = vxor.u32 %v6050, 2147483648
  %v6067 = vxor.u32 %v6055, 2147483648
  %v6068 = vxor.u32 %v6058, 2147483648
  %v6069 = vmul.f32 %v6061, 1.442695
  %v6070 = vpow.pop %v6069
  %v6071 = vmul.f32 %v6062, 1.442695
  %v6072 = vpow.pop %v6071
  %v6073 = vmul.f32 %v6063, 1.442695
  %v6074 = vpow.pop %v6073
  %v6075 = vmul.f32 %v6064, 1.442695
  %v6076 = vpow.pop %v6075
  %v6077 = vmul.f32 %v6065, 1.442695
  %v6078 = vpow.pop %v6077
  %v6079 = vmul.f32 %v6066, 1.442695
  %v6080 = vpow.pop %v6079
  %v6081 = vmul.f32 %v6067, 1.442695
  %v6082 = vpow.pop %v6081
  %v6083 = vmul.f32 %v6068, 1.442695
  %v6084 = vpow.pop %v6083
  %v6085 = vadd.f32 %v6070, 1.0
  %v6086 = vadd.f32 %v6072, 1.0
  %v6087 = vadd.f32 %v6074, 1.0
  %v6088 = vadd.f32 %v6076, 1.0
  %v6089 = vadd.f32 %v6078, 1.0
  %v6090 = vadd.f32 %v6080, 1.0
  %v6091 = vadd.f32 %v6082, 1.0
  %v6092 = vadd.f32 %v6084, 1.0
  %v6093 = vrcp.pop %v6085
  %v6094 = vmul.f32 1.0, %v6093
  %v6095 = vrcp.pop %v6086
  %v6096 = vmul.f32 1.0, %v6095
  %v6097 = vrcp.pop %v6087
  %v6098 = vmul.f32 1.0, %v6097
  %v6099 = vrcp.pop %v6088
  %v6100 = vmul.f32 1.0, %v6099
  %v6101 = vrcp.pop %v6089
  %v6102 = vmul.f32 1.0, %v6101
  %v6103 = vrcp.pop %v6090
  %v6104 = vmul.f32 1.0, %v6103
  %v6105 = vrcp.pop %v6091
  %v6106 = vmul.f32 1.0, %v6105
  %v6107 = vrcp.pop %v6092
  %v6108 = vmul.f32 1.0, %v6107
  %v6109 = vmul.f32 %v6031, %v6094
  %v6110 = vmul.f32 %v6034, %v6096
  %v6111 = vmul.f32 %v6039, %v6098
  %v6112 = vmul.f32 %v6042, %v6100
  %v6113 = vmul.f32 %v6047, %v6102
  %v6114 = vmul.f32 %v6050, %v6104
  %v6115 = vmul.f32 %v6055, %v6106
  %v6116 = vmul.f32 %v6058, %v6108
  %s6117 = scalar_lea.vmem %s10, 240
  %v6118 = vld [vmem:[%s6117] sm:$0xf]
  %v6119 = vld [vmem:[%s6117 + $0x4] sm:$0xf]
  %v6120 = vld [vmem:[%s6117 + $0x8] sm:$0xf]
  %v6121 = vld [vmem:[%s6117 + $0xc] sm:$0xf]
  %v6122 = vpack.c.bf16 %v6110, %v6109
  %v6123 = vpack.c.bf16 %v6112, %v6111
  %v6124 = vpack.c.bf16 %v6114, %v6113
  %v6125 = vpack.c.bf16 %v6116, %v6115
  %s6126 = scalar_lea.vmem %s11, 17
  %v6127 = vld [vmem:[%s6126] sm:$0x1]
  %v6129 = vlaneseq
  %v6130 = vshrl.u32 %v6129, 7
  %v6131 = vsub.s32 0, %v6130
  %v6132 = vrot.slane %v6127, %v6131
  %v6138 = vunpack.c.l.b16 %v6118
  %v6139 = vunpack.c.l.b16 %v6119
  %v6140 = vunpack.c.l.b16 %v6120
  %v6141 = vunpack.c.l.b16 %v6121
  %v6142 = vpack.c.b16 %v6139, %v6138
  %v6143 = vpack.c.b16 %v6141, %v6140
  %v6147 = vsel %vm620, %v6122, 0
  %v6150 = vsel %vm620, %v6123, 0
  %v6153 = vsel %vm620, %v6124, 0
  %v6156 = vsel %vm620, %v6125, 0
  %6158 = vmatprep.subr.bf16.mxu0 0
  %6159 = vmatpush1.bf16.msra.mxu0 %v6142
  %6160 = vmatprep.subr.bf16.mxu0 0
  %6161 = vmatpush1.bf16.msra.mxu0 %v6143
  %6162 = vmatprep.subr.bf16.mxu0 0
  %6163 = vmatpush1.bf16.msra.mxu0 0
  %6164 = vmatprep.subr.bf16.mxu0 0
  %6165 = vmatpush1.bf16.msra.mxu0 0
  %6166 = vmatprep.subr.bf16.mxu0 0
  %6167 = vmatpush1.bf16.msra.mxu0 0
  %6168 = vmatprep.subr.bf16.mxu0 0
  %6169 = vmatpush1.bf16.msra.mxu0 0
  %6170 = vmatprep.subr.bf16.mxu0 0
  %6171 = vmatpush1.bf16.msra.mxu0 0
  %6172 = vmatprep.subr.bf16.mxu0 0
  %6173 = vmatpush1.bf16.msra.mxu0 0
  %6174 = vmatprep.subr.bf16.mxu0 0
  %6175 = vmatpush1.bf16.msra.mxu0 0
  %6176 = vmatprep.subr.bf16.mxu0 0
  %6177 = vmatpush1.bf16.msra.mxu0 0
  %6178 = vmatprep.subr.bf16.mxu0 0
  %6179 = vmatpush1.bf16.msra.mxu0 0
  %6180 = vmatprep.subr.bf16.mxu0 0
  %6181 = vmatpush1.bf16.msra.mxu0 0
  %6182 = vmatprep.subr.bf16.mxu0 0
  %6183 = vmatpush1.bf16.msra.mxu0 0
  %6184 = vmatprep.subr.bf16.mxu0 0
  %6185 = vmatpush1.bf16.msra.mxu0 0
  %6186 = vmatprep.subr.bf16.mxu0 0
  %6187 = vmatpush1.bf16.msra.mxu0 0
  %6188 = vmatprep.subr.bf16.mxu0 0
  %6189 = vmatpush1.bf16.msra.mxu0 0
  %6190 = vmatprep.mubr.bf16.mxu0 0
  %6191 = vmatmul.mubr.bf16.gmra.mrb[0].mxu0 %v6147
  %v6192 = vpop.f32.mrb[0].mxu0
  %v6193 = vadd.f32 %v6132, %v6192
  %v6194 = vpop.f32.mrb[0].mxu0
  %v6195 = vpop.f32.mrb[0].mxu0
  %v6196 = vadd.f32 %v6132, %v6195
  %v6197 = vpop.f32.mrb[0].mxu0
  %6198 = vmatprep.mubr.bf16.mxu0 0
  %6199 = vmatmul.mubr.bf16.gmra.mrb[0].mxu0 %v6150
  %v6200 = vpop.f32.mrb[0].mxu0
  %v6201 = vadd.f32 %v6132, %v6200
  %v6202 = vpop.f32.mrb[0].mxu0
  %v6203 = vpop.f32.mrb[0].mxu0
  %v6204 = vadd.f32 %v6132, %v6203
  %v6205 = vpop.f32.mrb[0].mxu0
  %6206 = vmatprep.mubr.bf16.mxu0 0
  %6207 = vmatmul.mubr.bf16.gmra.mrb[0].mxu0 %v6153
  %v6208 = vpop.f32.mrb[0].mxu0
  %v6209 = vadd.f32 %v6132, %v6208
  %v6210 = vpop.f32.mrb[0].mxu0
  %v6211 = vpop.f32.mrb[0].mxu0
  %v6212 = vadd.f32 %v6132, %v6211
  %v6213 = vpop.f32.mrb[0].mxu0
  %6214 = vmatprep.mubr.bf16.mxu0 0
  %6215 = vmatmul.mubr.bf16.gmra.mrb[0].mxu0 %v6156
  %v6216 = vpop.f32.mrb[0].mxu0
  %v6217 = vadd.f32 %v6132, %v6216
  %v6218 = vpop.f32.mrb[0].mxu0
  %v6219 = vpop.f32.mrb[0].mxu0
  %v6220 = vadd.f32 %v6132, %v6219
  %v6221 = vpop.f32.mrb[0].mxu0
  %6222 = vdwg.mxu0
  %v6223 = vxor.u32 %v6193, 2147483648
  %v6224 = vxor.u32 %v6196, 2147483648
  %v6225 = vxor.u32 %v6201, 2147483648
  %v6226 = vxor.u32 %v6204, 2147483648
  %v6227 = vxor.u32 %v6209, 2147483648
  %v6228 = vxor.u32 %v6212, 2147483648
  %v6229 = vxor.u32 %v6217, 2147483648
  %v6230 = vxor.u32 %v6220, 2147483648
  %v6231 = vmul.f32 %v6223, 1.442695
  %v6232 = vpow.pop %v6231
  %v6233 = vmul.f32 %v6224, 1.442695
  %v6234 = vpow.pop %v6233
  %v6235 = vmul.f32 %v6225, 1.442695
  %v6236 = vpow.pop %v6235
  %v6237 = vmul.f32 %v6226, 1.442695
  %v6238 = vpow.pop %v6237
  %v6239 = vmul.f32 %v6227, 1.442695
  %v6240 = vpow.pop %v6239
  %v6241 = vmul.f32 %v6228, 1.442695
  %v6242 = vpow.pop %v6241
  %v6243 = vmul.f32 %v6229, 1.442695
  %v6244 = vpow.pop %v6243
  %v6245 = vmul.f32 %v6230, 1.442695
  %v6246 = vpow.pop %v6245
  %v6247 = vadd.f32 %v6232, 1.0
  %v6248 = vadd.f32 %v6234, 1.0
  %v6249 = vadd.f32 %v6236, 1.0
  %v6250 = vadd.f32 %v6238, 1.0
  %v6251 = vadd.f32 %v6240, 1.0
  %v6252 = vadd.f32 %v6242, 1.0
  %v6253 = vadd.f32 %v6244, 1.0
  %v6254 = vadd.f32 %v6246, 1.0
  %v6255 = vrcp.pop %v6247
  %v6256 = vmul.f32 1.0, %v6255
  %v6257 = vrcp.pop %v6248
  %v6258 = vmul.f32 1.0, %v6257
  %v6259 = vrcp.pop %v6249
  %v6260 = vmul.f32 1.0, %v6259
  %v6261 = vrcp.pop %v6250
  %v6262 = vmul.f32 1.0, %v6261
  %v6263 = vrcp.pop %v6251
  %v6264 = vmul.f32 1.0, %v6263
  %v6265 = vrcp.pop %v6252
  %v6266 = vmul.f32 1.0, %v6265
  %v6267 = vrcp.pop %v6253
  %v6268 = vmul.f32 1.0, %v6267
  %v6269 = vrcp.pop %v6254
  %v6270 = vmul.f32 1.0, %v6269
  %v6271 = vmul.f32 %v6193, %v6256
  %v6272 = vmul.f32 %v6196, %v6258
  %v6273 = vmul.f32 %v6201, %v6260
  %v6274 = vmul.f32 %v6204, %v6262
  %v6275 = vmul.f32 %v6209, %v6264
  %v6276 = vmul.f32 %v6212, %v6266
  %v6277 = vmul.f32 %v6217, %v6268
  %v6278 = vmul.f32 %v6220, %v6270
  %v6279 = vadd.f32 %v5947, %v6271
  %v6280 = vadd.f32 %v5948, %v6272
  %v6281 = vadd.f32 %v5949, %v6273
  %v6282 = vadd.f32 %v5950, %v6274
  %v6283 = vadd.f32 %v5951, %v6275
  %v6284 = vadd.f32 %v5952, %v6276
  %v6285 = vadd.f32 %v5953, %v6277
  %v6286 = vadd.f32 %v5954, %v6278
  %s6287 = scalar_lea.vmem %s10, 256
  %v6288 = vld [vmem:[%s6287] sm:$0xf]
  %v6289 = vld [vmem:[%s6287 + $0x4] sm:$0xf]
  %v6290 = vld [vmem:[%s6287 + $0x8] sm:$0xf]
  %v6291 = vld [vmem:[%s6287 + $0xc] sm:$0xf]
  %v6292 = vpack.c.bf16 %v6280, %v6279
  %v6293 = vpack.c.bf16 %v6282, %v6281
  %v6294 = vpack.c.bf16 %v6284, %v6283
  %v6295 = vpack.c.bf16 %v6286, %v6285
  %s6296 = scalar_lea.vmem %s11, 18
  %v6297 = vld [vmem:[%s6296] sm:$0x1]
  %v6299 = vlaneseq
  %v6300 = vshrl.u32 %v6299, 7
  %v6301 = vsub.s32 0, %v6300
  %v6302 = vrot.slane %v6297, %v6301
  %v6308 = vunpack.c.l.b16 %v6288
  %v6309 = vunpack.c.l.b16 %v6289
  %v6310 = vunpack.c.l.b16 %v6290
  %v6311 = vunpack.c.l.b16 %v6291
  %v6312 = vpack.c.b16 %v6309, %v6308
  %v6313 = vpack.c.b16 %v6311, %v6310
  %v6317 = vsel %vm620, %v6292, 0
  %v6320 = vsel %vm620, %v6293, 0
  %v6323 = vsel %vm620, %v6294, 0
  %v6326 = vsel %vm620, %v6295, 0
  %6328 = vmatprep.subr.bf16.mxu0 0
  %6329 = vmatpush1.bf16.msra.mxu0 %v6312
  %6330 = vmatprep.subr.bf16.mxu0 0
  %6331 = vmatpush1.bf16.msra.mxu0 %v6313
  %6332 = vmatprep.subr.bf16.mxu0 0
  %6333 = vmatpush1.bf16.msra.mxu0 0
  %6334 = vmatprep.subr.bf16.mxu0 0
  %6335 = vmatpush1.bf16.msra.mxu0 0
  %6336 = vmatprep.subr.bf16.mxu0 0
  %6337 = vmatpush1.bf16.msra.mxu0 0
  %6338 = vmatprep.subr.bf16.mxu0 0
  %6339 = vmatpush1.bf16.msra.mxu0 0
  %6340 = vmatprep.subr.bf16.mxu0 0
  %6341 = vmatpush1.bf16.msra.mxu0 0
  %6342 = vmatprep.subr.bf16.mxu0 0
  %6343 = vmatpush1.bf16.msra.mxu0 0
  %6344 = vmatprep.subr.bf16.mxu0 0
  %6345 = vmatpush1.bf16.msra.mxu0 0
  %6346 = vmatprep.subr.bf16.mxu0 0
  %6347 = vmatpush1.bf16.msra.mxu0 0
  %6348 = vmatprep.subr.bf16.mxu0 0
  %6349 = vmatpush1.bf16.msra.mxu0 0
  %6350 = vmatprep.subr.bf16.mxu0 0
  %6351 = vmatpush1.bf16.msra.mxu0 0
  %6352 = vmatprep.subr.bf16.mxu0 0
  %6353 = vmatpush1.bf16.msra.mxu0 0
  %6354 = vmatprep.subr.bf16.mxu0 0
  %6355 = vmatpush1.bf16.msra.mxu0 0
  %6356 = vmatprep.subr.bf16.mxu0 0
  %6357 = vmatpush1.bf16.msra.mxu0 0
  %6358 = vmatprep.subr.bf16.mxu0 0
  %6359 = vmatpush1.bf16.msra.mxu0 0
  %6360 = vmatprep.mubr.bf16.mxu0 0
  %6361 = vmatmul.mubr.bf16.gmra.mrb[0].mxu0 %v6317
  %v6362 = vpop.f32.mrb[0].mxu0
  %v6363 = vadd.f32 %v6302, %v6362
  %v6364 = vpop.f32.mrb[0].mxu0
  %v6365 = vpop.f32.mrb[0].mxu0
  %v6366 = vadd.f32 %v6302, %v6365
  %v6367 = vpop.f32.mrb[0].mxu0
  %6368 = vmatprep.mubr.bf16.mxu0 0
  %6369 = vmatmul.mubr.bf16.gmra.mrb[0].mxu0 %v6320
  %v6370 = vpop.f32.mrb[0].mxu0
  %v6371 = vadd.f32 %v6302, %v6370
  %v6372 = vpop.f32.mrb[0].mxu0
  %v6373 = vpop.f32.mrb[0].mxu0
  %v6374 = vadd.f32 %v6302, %v6373
  %v6375 = vpop.f32.mrb[0].mxu0
  %6376 = vmatprep.mubr.bf16.mxu0 0
  %6377 = vmatmul.mubr.bf16.gmra.mrb[0].mxu0 %v6323
  %v6378 = vpop.f32.mrb[0].mxu0
  %v6379 = vadd.f32 %v6302, %v6378
  %v6380 = vpop.f32.mrb[0].mxu0
  %v6381 = vpop.f32.mrb[0].mxu0
  %v6382 = vadd.f32 %v6302, %v6381
  %v6383 = vpop.f32.mrb[0].mxu0
  %6384 = vmatprep.mubr.bf16.mxu0 0
  %6385 = vmatmul.mubr.bf16.gmra.mrb[0].mxu0 %v6326
  %v6386 = vpop.f32.mrb[0].mxu0
  %v6387 = vadd.f32 %v6302, %v6386
  %v6388 = vpop.f32.mrb[0].mxu0
  %v6389 = vpop.f32.mrb[0].mxu0
  %v6390 = vadd.f32 %v6302, %v6389
  %v6391 = vpop.f32.mrb[0].mxu0
  %6392 = vdwg.mxu0
  %v6393 = vxor.u32 %v6363, 2147483648
  %v6394 = vxor.u32 %v6366, 2147483648
  %v6395 = vxor.u32 %v6371, 2147483648
  %v6396 = vxor.u32 %v6374, 2147483648
  %v6397 = vxor.u32 %v6379, 2147483648
  %v6398 = vxor.u32 %v6382, 2147483648
  %v6399 = vxor.u32 %v6387, 2147483648
  %v6400 = vxor.u32 %v6390, 2147483648
  %v6401 = vmul.f32 %v6393, 1.442695
  %v6402 = vpow.pop %v6401
  %v6403 = vmul.f32 %v6394, 1.442695
  %v6404 = vpow.pop %v6403
  %v6405 = vmul.f32 %v6395, 1.442695
  %v6406 = vpow.pop %v6405
  %v6407 = vmul.f32 %v6396, 1.442695
  %v6408 = vpow.pop %v6407
  %v6409 = vmul.f32 %v6397, 1.442695
  %v6410 = vpow.pop %v6409
  %v6411 = vmul.f32 %v6398, 1.442695
  %v6412 = vpow.pop %v6411
  %v6413 = vmul.f32 %v6399, 1.442695
  %v6414 = vpow.pop %v6413
  %v6415 = vmul.f32 %v6400, 1.442695
  %v6416 = vpow.pop %v6415
  %v6417 = vadd.f32 %v6402, 1.0
  %v6418 = vadd.f32 %v6404, 1.0
  %v6419 = vadd.f32 %v6406, 1.0
  %v6420 = vadd.f32 %v6408, 1.0
  %v6421 = vadd.f32 %v6410, 1.0
  %v6422 = vadd.f32 %v6412, 1.0
  %v6423 = vadd.f32 %v6414, 1.0
  %v6424 = vadd.f32 %v6416, 1.0
  %v6425 = vrcp.pop %v6417
  %v6426 = vmul.f32 1.0, %v6425
  %v6427 = vrcp.pop %v6418
  %v6428 = vmul.f32 1.0, %v6427
  %v6429 = vrcp.pop %v6419
  %v6430 = vmul.f32 1.0, %v6429
  %v6431 = vrcp.pop %v6420
  %v6432 = vmul.f32 1.0, %v6431
  %v6433 = vrcp.pop %v6421
  %v6434 = vmul.f32 1.0, %v6433
  %v6435 = vrcp.pop %v6422
  %v6436 = vmul.f32 1.0, %v6435
  %v6437 = vrcp.pop %v6423
  %v6438 = vmul.f32 1.0, %v6437
  %v6439 = vrcp.pop %v6424
  %v6440 = vmul.f32 1.0, %v6439
  %v6441 = vmul.f32 %v6363, %v6426
  %v6442 = vmul.f32 %v6366, %v6428
  %v6443 = vmul.f32 %v6371, %v6430
  %v6444 = vmul.f32 %v6374, %v6432
  %v6445 = vmul.f32 %v6379, %v6434
  %v6446 = vmul.f32 %v6382, %v6436
  %v6447 = vmul.f32 %v6387, %v6438
  %v6448 = vmul.f32 %v6390, %v6440
  %s6449 = scalar_lea.vmem %s10, 272
  %v6450 = vld [vmem:[%s6449] sm:$0xf]
  %v6451 = vld [vmem:[%s6449 + $0x4] sm:$0xf]
  %v6452 = vld [vmem:[%s6449 + $0x8] sm:$0xf]
  %v6453 = vld [vmem:[%s6449 + $0xc] sm:$0xf]
  %v6454 = vpack.c.bf16 %v6442, %v6441
  %v6455 = vpack.c.bf16 %v6444, %v6443
  %v6456 = vpack.c.bf16 %v6446, %v6445
  %v6457 = vpack.c.bf16 %v6448, %v6447
  %s6458 = scalar_lea.vmem %s11, 19
  %v6459 = vld [vmem:[%s6458] sm:$0x1]
  %v6461 = vlaneseq
  %v6462 = vshrl.u32 %v6461, 7
  %v6463 = vsub.s32 0, %v6462
  %v6464 = vrot.slane %v6459, %v6463
  %v6470 = vunpack.c.l.b16 %v6450
  %v6471 = vunpack.c.l.b16 %v6451
  %v6472 = vunpack.c.l.b16 %v6452
  %v6473 = vunpack.c.l.b16 %v6453
  %v6474 = vpack.c.b16 %v6471, %v6470
  %v6475 = vpack.c.b16 %v6473, %v6472
  %v6479 = vsel %vm620, %v6454, 0
  %v6482 = vsel %vm620, %v6455, 0
  %v6485 = vsel %vm620, %v6456, 0
  %v6488 = vsel %vm620, %v6457, 0
  %6490 = vmatprep.subr.bf16.mxu0 0
  %6491 = vmatpush1.bf16.msra.mxu0 %v6474
  %6492 = vmatprep.subr.bf16.mxu0 0
  %6493 = vmatpush1.bf16.msra.mxu0 %v6475
  %6494 = vmatprep.subr.bf16.mxu0 0
  %6495 = vmatpush1.bf16.msra.mxu0 0
  %6496 = vmatprep.subr.bf16.mxu0 0
  %6497 = vmatpush1.bf16.msra.mxu0 0
  %6498 = vmatprep.subr.bf16.mxu0 0
  %6499 = vmatpush1.bf16.msra.mxu0 0
  %6500 = vmatprep.subr.bf16.mxu0 0
  %6501 = vmatpush1.bf16.msra.mxu0 0
  %6502 = vmatprep.subr.bf16.mxu0 0
  %6503 = vmatpush1.bf16.msra.mxu0 0
  %6504 = vmatprep.subr.bf16.mxu0 0
  %6505 = vmatpush1.bf16.msra.mxu0 0
  %6506 = vmatprep.subr.bf16.mxu0 0
  %6507 = vmatpush1.bf16.msra.mxu0 0
  %6508 = vmatprep.subr.bf16.mxu0 0
  %6509 = vmatpush1.bf16.msra.mxu0 0
  %6510 = vmatprep.subr.bf16.mxu0 0
  %6511 = vmatpush1.bf16.msra.mxu0 0
  %6512 = vmatprep.subr.bf16.mxu0 0
  %6513 = vmatpush1.bf16.msra.mxu0 0
  %6514 = vmatprep.subr.bf16.mxu0 0
  %6515 = vmatpush1.bf16.msra.mxu0 0
  %6516 = vmatprep.subr.bf16.mxu0 0
  %6517 = vmatpush1.bf16.msra.mxu0 0
  %6518 = vmatprep.subr.bf16.mxu0 0
  %6519 = vmatpush1.bf16.msra.mxu0 0
  %6520 = vmatprep.subr.bf16.mxu0 0
  %6521 = vmatpush1.bf16.msra.mxu0 0
  %6522 = vmatprep.mubr.bf16.mxu0 0
  %6523 = vmatmul.mubr.bf16.gmra.mrb[0].mxu0 %v6479
  %v6524 = vpop.f32.mrb[0].mxu0
  %v6525 = vadd.f32 %v6464, %v6524
  %v6526 = vpop.f32.mrb[0].mxu0
  %v6527 = vpop.f32.mrb[0].mxu0
  %v6528 = vadd.f32 %v6464, %v6527
  %v6529 = vpop.f32.mrb[0].mxu0
  %6530 = vmatprep.mubr.bf16.mxu0 0
  %6531 = vmatmul.mubr.bf16.gmra.mrb[0].mxu0 %v6482
  %v6532 = vpop.f32.mrb[0].mxu0
  %v6533 = vadd.f32 %v6464, %v6532
  %v6534 = vpop.f32.mrb[0].mxu0
  %v6535 = vpop.f32.mrb[0].mxu0
  %v6536 = vadd.f32 %v6464, %v6535
  %v6537 = vpop.f32.mrb[0].mxu0
  %6538 = vmatprep.mubr.bf16.mxu0 0
  %6539 = vmatmul.mubr.bf16.gmra.mrb[0].mxu0 %v6485
  %v6540 = vpop.f32.mrb[0].mxu0
  %v6541 = vadd.f32 %v6464, %v6540
  %v6542 = vpop.f32.mrb[0].mxu0
  %v6543 = vpop.f32.mrb[0].mxu0
  %v6544 = vadd.f32 %v6464, %v6543
  %v6545 = vpop.f32.mrb[0].mxu0
  %6546 = vmatprep.mubr.bf16.mxu0 0
  %6547 = vmatmul.mubr.bf16.gmra.mrb[0].mxu0 %v6488
  %v6548 = vpop.f32.mrb[0].mxu0
  %v6549 = vadd.f32 %v6464, %v6548
  %v6550 = vpop.f32.mrb[0].mxu0
  %v6551 = vpop.f32.mrb[0].mxu0
  %v6552 = vadd.f32 %v6464, %v6551
  %v6553 = vpop.f32.mrb[0].mxu0
  %6554 = vdwg.mxu0
  %v6555 = vxor.u32 %v6525, 2147483648
  %v6556 = vxor.u32 %v6528, 2147483648
  %v6557 = vxor.u32 %v6533, 2147483648
  %v6558 = vxor.u32 %v6536, 2147483648
  %v6559 = vxor.u32 %v6541, 2147483648
  %v6560 = vxor.u32 %v6544, 2147483648
  %v6561 = vxor.u32 %v6549, 2147483648
  %v6562 = vxor.u32 %v6552, 2147483648
  %v6563 = vmul.f32 %v6555, 1.442695
  %v6564 = vpow.pop %v6563
  %v6565 = vmul.f32 %v6556, 1.442695
  %v6566 = vpow.pop %v6565
  %v6567 = vmul.f32 %v6557, 1.442695
  %v6568 = vpow.pop %v6567
  %v6569 = vmul.f32 %v6558, 1.442695
  %v6570 = vpow.pop %v6569
  %v6571 = vmul.f32 %v6559, 1.442695
  %v6572 = vpow.pop %v6571
  %v6573 = vmul.f32 %v6560, 1.442695
  %v6574 = vpow.pop %v6573
  %v6575 = vmul.f32 %v6561, 1.442695
  %v6576 = vpow.pop %v6575
  %v6577 = vmul.f32 %v6562, 1.442695
  %v6578 = vpow.pop %v6577
  %v6579 = vadd.f32 %v6564, 1.0
  %v6580 = vadd.f32 %v6566, 1.0
  %v6581 = vadd.f32 %v6568, 1.0
  %v6582 = vadd.f32 %v6570, 1.0
  %v6583 = vadd.f32 %v6572, 1.0
  %v6584 = vadd.f32 %v6574, 1.0
  %v6585 = vadd.f32 %v6576, 1.0
  %v6586 = vadd.f32 %v6578, 1.0
  %v6587 = vrcp.pop %v6579
  %v6588 = vmul.f32 1.0, %v6587
  %v6589 = vrcp.pop %v6580
  %v6590 = vmul.f32 1.0, %v6589
  %v6591 = vrcp.pop %v6581
  %v6592 = vmul.f32 1.0, %v6591
  %v6593 = vrcp.pop %v6582
  %v6594 = vmul.f32 1.0, %v6593
  %v6595 = vrcp.pop %v6583
  %v6596 = vmul.f32 1.0, %v6595
  %v6597 = vrcp.pop %v6584
  %v6598 = vmul.f32 1.0, %v6597
  %v6599 = vrcp.pop %v6585
  %v6600 = vmul.f32 1.0, %v6599
  %v6601 = vrcp.pop %v6586
  %v6602 = vmul.f32 1.0, %v6601
  %v6603 = vmul.f32 %v6525, %v6588
  %v6604 = vmul.f32 %v6528, %v6590
  %v6605 = vmul.f32 %v6533, %v6592
  %v6606 = vmul.f32 %v6536, %v6594
  %v6607 = vmul.f32 %v6541, %v6596
  %v6608 = vmul.f32 %v6544, %v6598
  %v6609 = vmul.f32 %v6549, %v6600
  %v6610 = vmul.f32 %v6552, %v6602
  %v6611 = vadd.f32 %v6279, %v6603
  %v6612 = vadd.f32 %v6280, %v6604
  %v6613 = vadd.f32 %v6281, %v6605
  %v6614 = vadd.f32 %v6282, %v6606
  %v6615 = vadd.f32 %v6283, %v6607
  %v6616 = vadd.f32 %v6284, %v6608
  %v6617 = vadd.f32 %v6285, %v6609
  %v6618 = vadd.f32 %v6286, %v6610
  %6627 = vrot.lane.b32.xlu0 %v6611, 32
  %v6628 = vpop.permute.xlu0 %6627
  %6629 = vrot.lane.b32.xlu0 %v6612, 32
  %v6630 = vpop.permute.xlu0 %6629
  %6631 = vrot.lane.b32.xlu0 %v6613, 32
  %v6632 = vpop.permute.xlu0 %6631
  %6633 = vrot.lane.b32.xlu0 %v6614, 32
  %v6634 = vpop.permute.xlu0 %6633
  %6635 = vrot.lane.b32.xlu0 %v6615, 32
  %v6636 = vpop.permute.xlu0 %6635
  %6637 = vrot.lane.b32.xlu0 %v6616, 32
  %v6638 = vpop.permute.xlu0 %6637
  %6639 = vrot.lane.b32.xlu0 %v6617, 32
  %v6640 = vpop.permute.xlu0 %6639
  %6641 = vrot.lane.b32.xlu0 %v6618, 32
  %v6642 = vpop.permute.xlu0 %6641
  %v6651 = vmul.f32 %v140, %v6628
  %v6652 = vmul.f32 %v144, %v6630
  %v6653 = vmul.f32 %v150, %v6632
  %v6654 = vmul.f32 %v154, %v6634
  %v6655 = vmul.f32 %v160, %v6636
  %v6656 = vmul.f32 %v164, %v6638
  %v6657 = vmul.f32 %v170, %v6640
  %v6658 = vmul.f32 %v174, %v6642
  %v6659 = vpack.c.bf16 %v6652, %v6651
  %v6660 = vpack.c.bf16 %v6654, %v6653
  %v6661 = vpack.c.bf16 %v6656, %v6655
  %v6662 = vpack.c.bf16 %v6658, %v6657
  %6667 = vrot.lane.b32.xlu0 %v6659, 96
  %v6668 = vpop.permute.xlu0 %6667
  %6669 = vrot.lane.b32.xlu0 %v6660, 96
  %v6670 = vpop.permute.xlu0 %6669
  %6671 = vrot.lane.b32.xlu0 %v6661, 96
  %v6672 = vpop.permute.xlu0 %6671
  %6673 = vrot.lane.b32.xlu0 %v6662, 96
  %v6674 = vpop.permute.xlu0 %6673
  %6679 = vmatprep.subr.bf16.mxu0 0
  %6680 = vmatpush1.bf16.msra.mxu0 %v6668
  %6681 = vmatprep.subr.bf16.mxu0 0
  %6682 = vmatpush1.bf16.msra.mxu0 %v6670
  %6683 = vmatprep.subr.bf16.mxu0 0
  %6684 = vmatpush1.bf16.msra.mxu0 %v6672
  %6685 = vmatprep.subr.bf16.mxu0 0
  %6686 = vmatpush1.bf16.msra.mxu0 %v6674
  %6687 = vmatprep.subr.bf16.mxu0 0
  %6688 = vmatpush1.bf16.msra.mxu0 0
  %6689 = vmatprep.subr.bf16.mxu0 0
  %6690 = vmatpush1.bf16.msra.mxu0 0
  %6691 = vmatprep.subr.bf16.mxu0 0
  %6692 = vmatpush1.bf16.msra.mxu0 0
  %6693 = vmatprep.subr.bf16.mxu0 0
  %6694 = vmatpush1.bf16.msra.mxu0 0
  %6695 = vmatprep.subr.bf16.mxu0 0
  %6696 = vmatpush1.bf16.msra.mxu0 0
  %6697 = vmatprep.subr.bf16.mxu0 0
  %6698 = vmatpush1.bf16.msra.mxu0 0
  %6699 = vmatprep.subr.bf16.mxu0 0
  %6700 = vmatpush1.bf16.msra.mxu0 0
  %6701 = vmatprep.subr.bf16.mxu0 0
  %6702 = vmatpush1.bf16.msra.mxu0 0
  %6703 = vmatprep.subr.bf16.mxu0 0
  %6704 = vmatpush1.bf16.msra.mxu0 0
  %6705 = vmatprep.subr.bf16.mxu0 0
  %6706 = vmatpush1.bf16.msra.mxu0 0
  %6707 = vmatprep.subr.bf16.mxu0 0
  %6708 = vmatpush1.bf16.msra.mxu0 0
  %6709 = vmatprep.subr.bf16.mxu0 0
  %6710 = vmatpush1.bf16.msra.mxu0 0
  %6711 = vmatprep.mubr.bf16.mxu0 0
  %6712 = vmatmul.mubr.bf16.gmra.mrb[0].mxu0 %v552
  %v6713 = vpop.f32.mrb[0].mxu0
  %v6714 = vadd.f32 0.0, %v6713
  %v6715 = vpop.f32.mrb[0].mxu0
  %v6716 = vpop.f32.mrb[0].mxu0
  %v6717 = vpop.f32.mrb[0].mxu0
  %6718 = vdwg.mxu0
  %s6719 = scalar_lea.vmem %s10, 384
  %v6720 = vld [vmem:[%s6719] sm:$0xf]
  %v6721 = vld [vmem:[%s6719 + $0x4] sm:$0xf]
  %v6722 = vld [vmem:[%s6719 + $0x8] sm:$0xf]
  %v6723 = vld [vmem:[%s6719 + $0xc] sm:$0xf]
  %v6724 = vpack.c.bf16 %v6714, %v6714
  %s6725 = scalar_lea.vmem %s11, 26
  %v6726 = vld [vmem:[%s6725] sm:$0x1]
  %v6728 = vlaneseq
  %v6729 = vshrl.u32 %v6728, 7
  %v6730 = vsub.s32 0, %v6729
  %v6731 = vrot.slane %v6726, %v6730
  %v6737 = vunpack.c.l.b16 %v6720
  %v6738 = vunpack.c.l.b16 %v6721
  %v6739 = vunpack.c.l.b16 %v6722
  %v6740 = vunpack.c.l.b16 %v6723
  %v6741 = vpack.c.b16 %v6738, %v6737
  %v6742 = vpack.c.b16 %v6740, %v6739
  %v6746 = vsel %vm620, %v6724, 0
  %6748 = vmatprep.subr.bf16.mxu0 0
  %6749 = vmatpush1.bf16.msra.mxu0 %v6741
  %6750 = vmatprep.subr.bf16.mxu0 0
  %6751 = vmatpush1.bf16.msra.mxu0 %v6742
  %6752 = vmatprep.subr.bf16.mxu0 0
  %6753 = vmatpush1.bf16.msra.mxu0 0
  %6754 = vmatprep.subr.bf16.mxu0 0
  %6755 = vmatpush1.bf16.msra.mxu0 0
  %6756 = vmatprep.subr.bf16.mxu0 0
  %6757 = vmatpush1.bf16.msra.mxu0 0
  %6758 = vmatprep.subr.bf16.mxu0 0
  %6759 = vmatpush1.bf16.msra.mxu0 0
  %6760 = vmatprep.subr.bf16.mxu0 0
  %6761 = vmatpush1.bf16.msra.mxu0 0
  %6762 = vmatprep.subr.bf16.mxu0 0
  %6763 = vmatpush1.bf16.msra.mxu0 0
  %6764 = vmatprep.subr.bf16.mxu0 0
  %6765 = vmatpush1.bf16.msra.mxu0 0
  %6766 = vmatprep.subr.bf16.mxu0 0
  %6767 = vmatpush1.bf16.msra.mxu0 0
  %6768 = vmatprep.subr.bf16.mxu0 0
  %6769 = vmatpush1.bf16.msra.mxu0 0
  %6770 = vmatprep.subr.bf16.mxu0 0
  %6771 = vmatpush1.bf16.msra.mxu0 0
  %6772 = vmatprep.subr.bf16.mxu0 0
  %6773 = vmatpush1.bf16.msra.mxu0 0
  %6774 = vmatprep.subr.bf16.mxu0 0
  %6775 = vmatpush1.bf16.msra.mxu0 0
  %6776 = vmatprep.subr.bf16.mxu0 0
  %6777 = vmatpush1.bf16.msra.mxu0 0
  %6778 = vmatprep.subr.bf16.mxu0 0
  %6779 = vmatpush1.bf16.msra.mxu0 0
  %6780 = vmatprep.mubr.bf16.mxu0 0
  %6781 = vmatmul.mubr.bf16.gmra.mrb[0].mxu0 %v6746
  %v6782 = vpop.f32.mrb[0].mxu0
  %v6783 = vadd.f32 %v6731, %v6782
  %v6784 = vpop.f32.mrb[0].mxu0
  %v6785 = vpop.f32.mrb[0].mxu0
  %v6786 = vpop.f32.mrb[0].mxu0
  %6787 = vdwg.mxu0
  %v6788 = vxor.u32 %v6783, 2147483648
  %v6789 = vmul.f32 %v6788, 1.442695
  %v6790 = vpow.pop %v6789
  %v6791 = vadd.f32 %v6790, 1.0
  %v6792 = vrcp.pop %v6791
  %v6793 = vmul.f32 1.0, %v6792
  %v6794 = vmul.f32 %v6783, %v6793
  %s6795 = scalar_lea.vmem %s10, 400
  %v6796 = vld [vmem:[%s6795] sm:$0xf]
  %v6797 = vld [vmem:[%s6795 + $0x4] sm:$0xf]
  %v6798 = vld [vmem:[%s6795 + $0x8] sm:$0xf]
  %v6799 = vld [vmem:[%s6795 + $0xc] sm:$0xf]
  %v6800 = vpack.c.bf16 %v6794, %v6794
  %s6801 = scalar_lea.vmem %s11, 27
  %v6802 = vld [vmem:[%s6801] sm:$0x1]
  %v6804 = vlaneseq
  %v6805 = vshrl.u32 %v6804, 7
  %v6806 = vsub.s32 0, %v6805
  %v6807 = vrot.slane %v6802, %v6806
  %v6813 = vunpack.c.l.b16 %v6796
  %v6814 = vunpack.c.l.b16 %v6797
  %v6815 = vunpack.c.l.b16 %v6798
  %v6816 = vunpack.c.l.b16 %v6799
  %v6817 = vpack.c.b16 %v6814, %v6813
  %v6818 = vpack.c.b16 %v6816, %v6815
  %v6822 = vsel %vm620, %v6800, 0
  %6824 = vmatprep.subr.bf16.mxu0 0
  %6825 = vmatpush1.bf16.msra.mxu0 %v6817
  %6826 = vmatprep.subr.bf16.mxu0 0
  %6827 = vmatpush1.bf16.msra.mxu0 %v6818
  %6828 = vmatprep.subr.bf16.mxu0 0
  %6829 = vmatpush1.bf16.msra.mxu0 0
  %6830 = vmatprep.subr.bf16.mxu0 0
  %6831 = vmatpush1.bf16.msra.mxu0 0
  %6832 = vmatprep.subr.bf16.mxu0 0
  %6833 = vmatpush1.bf16.msra.mxu0 0
  %6834 = vmatprep.subr.bf16.mxu0 0
  %6835 = vmatpush1.bf16.msra.mxu0 0
  %6836 = vmatprep.subr.bf16.mxu0 0
  %6837 = vmatpush1.bf16.msra.mxu0 0
  %6838 = vmatprep.subr.bf16.mxu0 0
  %6839 = vmatpush1.bf16.msra.mxu0 0
  %6840 = vmatprep.subr.bf16.mxu0 0
  %6841 = vmatpush1.bf16.msra.mxu0 0
  %6842 = vmatprep.subr.bf16.mxu0 0
  %6843 = vmatpush1.bf16.msra.mxu0 0
  %6844 = vmatprep.subr.bf16.mxu0 0
  %6845 = vmatpush1.bf16.msra.mxu0 0
  %6846 = vmatprep.subr.bf16.mxu0 0
  %6847 = vmatpush1.bf16.msra.mxu0 0
  %6848 = vmatprep.subr.bf16.mxu0 0
  %6849 = vmatpush1.bf16.msra.mxu0 0
  %6850 = vmatprep.subr.bf16.mxu0 0
  %6851 = vmatpush1.bf16.msra.mxu0 0
  %6852 = vmatprep.subr.bf16.mxu0 0
  %6853 = vmatpush1.bf16.msra.mxu0 0
  %6854 = vmatprep.subr.bf16.mxu0 0
  %6855 = vmatpush1.bf16.msra.mxu0 0
  %6856 = vmatprep.mubr.bf16.mxu0 0
  %6857 = vmatmul.mubr.bf16.gmra.mrb[0].mxu0 %v6822
  %v6858 = vpop.f32.mrb[0].mxu0
  %v6859 = vadd.f32 %v6807, %v6858
  %v6860 = vpop.f32.mrb[0].mxu0
  %v6861 = vpop.f32.mrb[0].mxu0
  %v6862 = vpop.f32.mrb[0].mxu0
  %6863 = vdwg.mxu0
  %v6864 = vxor.u32 %v6859, 2147483648
  %v6865 = vmul.f32 %v6864, 1.442695
  %v6866 = vpow.pop %v6865
  %v6867 = vadd.f32 %v6866, 1.0
  %v6868 = vrcp.pop %v6867
  %v6869 = vmul.f32 1.0, %v6868
  %v6870 = vmul.f32 %v6859, %v6869
  %s6871 = scalar_lea.vmem %s10, 416
  %v6872 = vld [vmem:[%s6871] sm:$0xf]
  %v6873 = vld [vmem:[%s6871 + $0x4] sm:$0xf]
  %v6874 = vld [vmem:[%s6871 + $0x8] sm:$0xf]
  %v6875 = vld [vmem:[%s6871 + $0xc] sm:$0xf]
  %v6876 = vpack.c.bf16 %v6870, %v6870
  %s6877 = scalar_lea.vmem %s11, 28
  %v6878 = vld [vmem:[%s6877] sm:$0x1]
  %v6880 = vlaneseq
  %v6881 = vshrl.u32 %v6880, 7
  %v6882 = vsub.s32 0, %v6881
  %v6883 = vrot.slane %v6878, %v6882
  %v6889 = vunpack.c.l.b16 %v6872
  %v6890 = vunpack.c.l.b16 %v6873
  %v6891 = vunpack.c.l.b16 %v6874
  %v6892 = vunpack.c.l.b16 %v6875
  %v6893 = vpack.c.b16 %v6890, %v6889
  %v6894 = vpack.c.b16 %v6892, %v6891
  %v6898 = vsel %vm620, %v6876, 0
  %6900 = vmatprep.subr.bf16.mxu0 0
  %6901 = vmatpush1.bf16.msra.mxu0 %v6893
  %6902 = vmatprep.subr.bf16.mxu0 0
  %6903 = vmatpush1.bf16.msra.mxu0 %v6894
  %6904 = vmatprep.subr.bf16.mxu0 0
  %6905 = vmatpush1.bf16.msra.mxu0 0
  %6906 = vmatprep.subr.bf16.mxu0 0
  %6907 = vmatpush1.bf16.msra.mxu0 0
  %6908 = vmatprep.subr.bf16.mxu0 0
  %6909 = vmatpush1.bf16.msra.mxu0 0
  %6910 = vmatprep.subr.bf16.mxu0 0
  %6911 = vmatpush1.bf16.msra.mxu0 0
  %6912 = vmatprep.subr.bf16.mxu0 0
  %6913 = vmatpush1.bf16.msra.mxu0 0
  %6914 = vmatprep.subr.bf16.mxu0 0
  %6915 = vmatpush1.bf16.msra.mxu0 0
  %6916 = vmatprep.subr.bf16.mxu0 0
  %6917 = vmatpush1.bf16.msra.mxu0 0
  %6918 = vmatprep.subr.bf16.mxu0 0
  %6919 = vmatpush1.bf16.msra.mxu0 0
  %6920 = vmatprep.subr.bf16.mxu0 0
  %6921 = vmatpush1.bf16.msra.mxu0 0
  %6922 = vmatprep.subr.bf16.mxu0 0
  %6923 = vmatpush1.bf16.msra.mxu0 0
  %6924 = vmatprep.subr.bf16.mxu0 0
  %6925 = vmatpush1.bf16.msra.mxu0 0
  %6926 = vmatprep.subr.bf16.mxu0 0
  %6927 = vmatpush1.bf16.msra.mxu0 0
  %6928 = vmatprep.subr.bf16.mxu0 0
  %6929 = vmatpush1.bf16.msra.mxu0 0
  %6930 = vmatprep.subr.bf16.mxu0 0
  %6931 = vmatpush1.bf16.msra.mxu0 0
  %6932 = vmatprep.mubr.bf16.mxu0 0
  %6933 = vmatmul.mubr.bf16.gmra.mrb[0].mxu0 %v6898
  %v6934 = vpop.f32.mrb[0].mxu0
  %v6935 = vadd.f32 %v6883, %v6934
  %v6936 = vpop.f32.mrb[0].mxu0
  %v6937 = vpop.f32.mrb[0].mxu0
  %v6938 = vpop.f32.mrb[0].mxu0
  %6939 = vdwg.mxu0
  %v6940 = vxor.u32 %v6935, 2147483648
  %v6941 = vmul.f32 %v6940, 1.442695
  %v6942 = vpow.pop %v6941
  %v6943 = vadd.f32 %v6942, 1.0
  %v6944 = vrcp.pop %v6943
  %v6945 = vmul.f32 1.0, %v6944
  %v6946 = vmul.f32 %v6935, %v6945
  %s6947 = scalar_lea.vmem %s12, 32
  %v6948 = vld [vmem:[%s6947] sm:$0xf]
  %v6949 = vld [vmem:[%s6947 + $0x4] sm:$0xf]
  %v6950 = vld [vmem:[%s6947 + $0x8] sm:$0xf]
  %v6951 = vld [vmem:[%s6947 + $0xc] sm:$0xf]
  %v6952 = vpack.c.bf16 %v6946, %v6946
  %v6957 = vunpack.c.l.b16 %v6948
  %v6958 = vunpack.c.l.b16 %v6949
  %v6959 = vunpack.c.l.b16 %v6950
  %v6960 = vunpack.c.l.b16 %v6951
  %v6961 = vpack.c.b16 %v6958, %v6957
  %v6962 = vpack.c.b16 %v6960, %v6959
  %v6966 = vsel %vm620, %v6952, 0
  %6968 = vmatprep.subr.bf16.mxu0 0
  %6969 = vmatpush1.bf16.msra.mxu0 %v6961
  %6970 = vmatprep.subr.bf16.mxu0 0
  %6971 = vmatpush1.bf16.msra.mxu0 %v6962
  %6972 = vmatprep.subr.bf16.mxu0 0
  %6973 = vmatpush1.bf16.msra.mxu0 0
  %6974 = vmatprep.subr.bf16.mxu0 0
  %6975 = vmatpush1.bf16.msra.mxu0 0
  %6976 = vmatprep.subr.bf16.mxu0 0
  %6977 = vmatpush1.bf16.msra.mxu0 0
  %6978 = vmatprep.subr.bf16.mxu0 0
  %6979 = vmatpush1.bf16.msra.mxu0 0
  %6980 = vmatprep.subr.bf16.mxu0 0
  %6981 = vmatpush1.bf16.msra.mxu0 0
  %6982 = vmatprep.subr.bf16.mxu0 0
  %6983 = vmatpush1.bf16.msra.mxu0 0
  %6984 = vmatprep.subr.bf16.mxu0 0
  %6985 = vmatpush1.bf16.msra.mxu0 0
  %6986 = vmatprep.subr.bf16.mxu0 0
  %6987 = vmatpush1.bf16.msra.mxu0 0
  %6988 = vmatprep.subr.bf16.mxu0 0
  %6989 = vmatpush1.bf16.msra.mxu0 0
  %6990 = vmatprep.subr.bf16.mxu0 0
  %6991 = vmatpush1.bf16.msra.mxu0 0
  %6992 = vmatprep.subr.bf16.mxu0 0
  %6993 = vmatpush1.bf16.msra.mxu0 0
  %6994 = vmatprep.subr.bf16.mxu0 0
  %6995 = vmatpush1.bf16.msra.mxu0 0
  %6996 = vmatprep.subr.bf16.mxu0 0
  %6997 = vmatpush1.bf16.msra.mxu0 0
  %6998 = vmatprep.subr.bf16.mxu0 0
  %6999 = vmatpush1.bf16.msra.mxu0 0
  %7000 = vmatprep.mubr.bf16.mxu0 0
  %7001 = vmatmul.mubr.bf16.gmra.mrb[0].mxu0 %v6966
  %v7002 = vpop.f32.mrb[0].mxu0
  %v7003 = vadd.f32 0.0, %v7002
  %v7004 = vpop.f32.mrb[0].mxu0
  %v7005 = vpop.f32.mrb[0].mxu0
  %v7006 = vpop.f32.mrb[0].mxu0
  %7007 = vdwg.mxu0
  %v7008 = vadd.f32 %v3954, %v7003
  %v7009 = vld [vmem:[%s3] sm:$0x1]
  %v7010 = vpack.c.bf16 %v7008, %v7008
  %v7012 = vsel %vm1521, %v7009, 0
  %vm7014 = vcmask 1043456
  %v7016 = vsel %vm7014, %v7010, 0
  %7018 = vmatprep.subr.bf16.mxu0 0
  %7019 = vmatpush1.bf16.msra.mxu0 %v7016
  %7020 = vmatprep.subr.bf16.mxu0 0
  %7021 = vmatpush1.bf16.msra.mxu0 0
  %7022 = vmatprep.subr.bf16.mxu0 0
  %7023 = vmatpush1.bf16.msra.mxu0 0
  %7024 = vmatprep.subr.bf16.mxu0 0
  %7025 = vmatpush1.bf16.msra.mxu0 0
  %7026 = vmatprep.subr.bf16.mxu0 0
  %7027 = vmatpush1.bf16.msra.mxu0 0
  %7028 = vmatprep.subr.bf16.mxu0 0
  %7029 = vmatpush1.bf16.msra.mxu0 0
  %7030 = vmatprep.subr.bf16.mxu0 0
  %7031 = vmatpush1.bf16.msra.mxu0 0
  %7032 = vmatprep.subr.bf16.mxu0 0
  %7033 = vmatpush1.bf16.msra.mxu0 0
  %7034 = vmatprep.subr.bf16.mxu0 0
  %7035 = vmatpush1.bf16.msra.mxu0 0
  %7036 = vmatprep.subr.bf16.mxu0 0
  %7037 = vmatpush1.bf16.msra.mxu0 0
  %7038 = vmatprep.subr.bf16.mxu0 0
  %7039 = vmatpush1.bf16.msra.mxu0 0
  %7040 = vmatprep.subr.bf16.mxu0 0
  %7041 = vmatpush1.bf16.msra.mxu0 0
  %7042 = vmatprep.subr.bf16.mxu0 0
  %7043 = vmatpush1.bf16.msra.mxu0 0
  %7044 = vmatprep.subr.bf16.mxu0 0
  %7045 = vmatpush1.bf16.msra.mxu0 0
  %7046 = vmatprep.subr.bf16.mxu0 0
  %7047 = vmatpush1.bf16.msra.mxu0 0
  %7048 = vmatprep.subr.bf16.mxu0 0
  %7049 = vmatpush1.bf16.msra.mxu0 0
  %7050 = vmatprep.mubr.bf16.mxu0 0
  %7051 = vmatmul.mubr.bf16.gmra.mrb[0].mxu0 %v7012
  %v7052 = vpop.f32.mrb[0].mxu0
  %v7053 = vadd.f32 0.0, %v7052
  %v7054 = vpop.f32.mrb[0].mxu0
  %v7055 = vpop.f32.mrb[0].mxu0
  %v7056 = vpop.f32.mrb[0].mxu0
  %7057 = vdwg.mxu0
  %v7058 = vxor.u32 %v7053, 2147483648
  %v7059 = vmul.f32 %v7058, 1.442695
  %v7060 = vpow.pop %v7059
  %v7061 = vadd.f32 %v7060, 1.0
  %v7062 = vrcp.pop %v7061
  %v7063 = vmul.f32 1.0, %v7062
  %vm7064 = vcmask 1024
  %7065 = vst.msk [vmem:[%s13] sm:$0x3] %vm7064, %v7063
  // Predicated region
  $region54: #{dimenet_predictor.1} parent=0 // pred_check
    _
  $region55: #{dimenet_predictor.1} parent=0 // pred_check_branch
    %7067 = sbr.rel (0) target = $region57
  $region56: #{dimenet_predictor.1} parent=0 // pred_region
    _
  $region57: #{dimenet_predictor.1} parent=0 // pred_fallthru
    _
  // Predicated region
  $region58: #{dimenet_predictor.1} parent=0 // pred_check
    _
  $region59: #{dimenet_predictor.1} parent=0 // pred_check_branch
    %7069 = sbr.rel (0) target = $region61
  $region60: #{dimenet_predictor.1} parent=0 // pred_region
    _
  $region61: #{dimenet_predictor.1} parent=0 // pred_fallthru
    _

</llo_original>
